<compile_context>
chip_gen: v7x
topology: tpu7x:2x2x1
jax: 0.10.0
libtpu: 0.0.40
codegen_flags: <defaults>
</compile_context>

<pallas_src>
import jax
import jax.numpy as jnp
from jax.experimental import pallas as pl
from jax.experimental.pallas import tpu as pltpu

EPS = 1e-5
LANE = 128


def _round_up(x, m):
    return (x + m - 1) // m * m


def _pick_row_tile(rows):
    """Largest convenient row tile that divides `rows` (and gives >=2 blocks)."""
    for t in (1024, 512, 256, 128, 64, 32, 16, 8):
        if rows % t == 0 and rows // t >= 2:
            return t
    return rows


# ----------------------------- Pallas kernels ------------------------------ #

def _conv3x3_stats_kernel(xp_ref, w_ref, y_ref, stats_ref, acc_ref):
    """Fused 3x3 conv (stride 1, input already zero-padded) + per-image stats.

    xp_ref    : (H+2, W+2, Cin_p)   bf16  -- one spatially pre-padded image
    w_ref     : (9, Cin_p, Cout_p)  bf16  -- tap-major weight matrices
    y_ref     : (H*W, Cout_p)       f32   -- raw conv output (pre-BN)
    stats_ref : (2, Cout_p)         f32   -- row 0: sum(y), row 1: sum(y*y)
    acc_ref   : VMEM scratch (H*W, Cout_p) f32
    """
    hp2, wp2, _ = xp_ref.shape
    h, w = hp2 - 2, wp2 - 2

    acc_ref[...] = jnp.zeros_like(acc_ref)
    # 3x3 conv == 9 shifted (H*W, Cin) x (Cin, Cout) matmuls on the MXU.
    for kh in range(3):
        for kw in range(3):
            patch = xp_ref[kh:kh + h, kw:kw + w, :].reshape(h * w, -1)
            acc_ref[...] += jnp.dot(patch, w_ref[kh * 3 + kw],
                                    preferred_element_type=jnp.float32)

    y = acc_ref[...]
    y_ref[...] = y
    s = jnp.sum(y, axis=0, keepdims=True)          # (1, Cout_p)
    ss = jnp.sum(y * y, axis=0, keepdims=True)     # (1, Cout_p)
    stats_ref[...] = jnp.concatenate([s, ss], axis=0)


def _bn_relu_kernel(y_ref, scale_ref, bias_ref, o_ref):
    """o = relu(y * scale + bias)  (scale/bias are folded BN params)."""
    o_ref[...] = jnp.maximum(
        y_ref[...] * scale_ref[...] + bias_ref[...], 0.0).astype(o_ref.dtype)


def _bn_add_relu_kernel(y_ref, res_ref, scale_ref, bias_ref, o_ref):
    """o = relu(y * scale + bias + residual)."""
    o_ref[...] = jnp.maximum(
        y_ref[...] * scale_ref[...] + bias_ref[...] + res_ref[...], 0.0
    ).astype(o_ref.dtype)


# ---------------------------- pallas_call wrappers -------------------------- #

def conv3x3_bn_stats(xpad_nhwc, w_taps):
    """Per-image fused conv + partial BN stats.

    xpad_nhwc: (N, H+2, W+2, Cin_p) bf16, w_taps: (9, Cin_p, Cout_p) bf16.
    Returns y: (N, H*W, Cout_p) f32 and stats: (N, 2, Cout_p) f32.
    """
    n, hp2, wp2, cin_p = xpad_nhwc.shape
    h, w = hp2 - 2, wp2 - 2
    cout_p = w_taps.shape[-1]
    rows_img = h * w

    return pl.pallas_call(
        _conv3x3_stats_kernel,
        out_shape=(jax.ShapeDtypeStruct((n, rows_img, cout_p), jnp.float32),
                   jax.ShapeDtypeStruct((n, 2, cout_p), jnp.float32)),
        grid=(n,),
        in_specs=[pl.BlockSpec((None, hp2, wp2, cin_p), lambda i: (i, 0, 0, 0)),
                  pl.BlockSpec((9, cin_p, cout_p), lambda i: (0, 0, 0))],
        out_specs=(pl.BlockSpec((None, rows_img, cout_p), lambda i: (i, 0, 0)),
                   pl.BlockSpec((None, 2, cout_p), lambda i: (i, 0, 0))),
        scratch_shapes=[pltpu.VMEM((rows_img, cout_p), jnp.float32)],
        compiler_params=pltpu.CompilerParams(
            dimension_semantics=("parallel",)),
    )(xpad_nhwc, w_taps)


def bn_relu(y, scale, bias, out_dtype):
    rows, cp = y.shape
    tm = _pick_row_tile(rows)
    return pl.pallas_call(
        _bn_relu_kernel,
        out_shape=jax.ShapeDtypeStruct((rows, cp), out_dtype),
        grid=(rows // tm,),
        in_specs=[pl.BlockSpec((tm, cp), lambda i: (i, 0)),
                  pl.BlockSpec((1, cp), lambda i: (0, 0)),
                  pl.BlockSpec((1, cp), lambda i: (0, 0))],
        out_specs=pl.BlockSpec((tm, cp), lambda i: (i, 0)),
        compiler_params=pltpu.CompilerParams(
            dimension_semantics=("parallel",)),
    )(y, scale, bias)


def bn_add_relu(y, res, scale, bias):
    rows, cp = y.shape
    tm = _pick_row_tile(rows)
    return pl.pallas_call(
        _bn_add_relu_kernel,
        out_shape=jax.ShapeDtypeStruct((rows, cp), jnp.float32),
        grid=(rows // tm,),
        in_specs=[pl.BlockSpec((tm, cp), lambda i: (i, 0)),
                  pl.BlockSpec((tm, cp), lambda i: (i, 0)),
                  pl.BlockSpec((1, cp), lambda i: (0, 0)),
                  pl.BlockSpec((1, cp), lambda i: (0, 0))],
        out_specs=pl.BlockSpec((tm, cp), lambda i: (i, 0)),
        compiler_params=pltpu.CompilerParams(
            dimension_semantics=("parallel",)),
    )(y, res, scale, bias)


# ------------------------------ JAX glue ----------------------------------- #

def _weight_taps(w_oihw, cin_p, cout_p):
    """(Cout,Cin,3,3) -> (9, Cin_p, Cout_p) bf16, tap-major, zero-padded channels."""
    cout, cin, _, _ = w_oihw.shape
    wt = jnp.transpose(w_oihw, (2, 3, 1, 0))                       # (3,3,Cin,Cout)
    wt = jnp.pad(wt, ((0, 0), (0, 0), (0, cin_p - cin), (0, cout_p - cout)))
    return wt.reshape(9, cin_p, cout_p).astype(jnp.bfloat16)


def _pad_spatial_and_channels(x_nhwc, cp):
    n, h, w, c = x_nhwc.shape
    return jnp.pad(x_nhwc, ((0, 0), (1, 1), (1, 1), (0, cp - c)))


def _fold_bn(stats, gamma_p, beta_p, count):
    """Global batch stats from per-image partial sums; fold into scale/bias."""
    s = jnp.sum(stats[:, 0, :], axis=0)
    ss = jnp.sum(stats[:, 1, :], axis=0)
    mean = s / count
    var = jnp.maximum(ss / count - mean * mean, 0.0)   # biased batch variance
    inv = jax.lax.rsqrt(var + EPS)
    scale = gamma_p * inv
    bias = beta_p - mean * scale
    return (scale.reshape(1, -1).astype(jnp.float32),
            bias.reshape(1, -1).astype(jnp.float32))


def basic_block_forward(x_nchw, w1, g1, b1, w2, g2, b2):
    """BasicBlock forward (stride=1, downsample=None). Input/output are NCHW."""
    n, c, h, w = x_nchw.shape
    cp = _round_up(c, LANE)
    rows = n * h * w

    x_nhwc = jnp.transpose(x_nchw, (0, 2, 3, 1)).astype(jnp.float32)
    residual = jnp.pad(x_nhwc, ((0, 0), (0, 0), (0, 0), (0, cp - c))
                       ).reshape(rows, cp)                         # f32, lane-dense

    g1p = jnp.pad(g1.astype(jnp.float32), (0, cp - c))
    b1p = jnp.pad(b1.astype(jnp.float32), (0, cp - c))
    g2p = jnp.pad(g2.astype(jnp.float32), (0, cp - c))
    b2p = jnp.pad(b2.astype(jnp.float32), (0, cp - c))

    # conv1 (+ bn1 batch-stat partials), then bn1 + relu
    xpad = _pad_spatial_and_channels(x_nhwc, cp).astype(jnp.bfloat16)
    y1, st1 = conv3x3_bn_stats(xpad, _weight_taps(w1, cp, cp))
    y1 = y1.reshape(rows, cp)
    scale1, bias1 = _fold_bn(st1, g1p, b1p, rows)
    a1 = bn_relu(y1, scale1, bias1, jnp.bfloat16)                  # (rows, cp) bf16

    # conv2 (+ bn2 batch-stat partials), then bn2 + residual + relu
    a1_pad = _pad_spatial_and_channels(a1.reshape(n, h, w, cp), cp)  # bf16
    y2, st2 = conv3x3_bn_stats(a1_pad, _weight_taps(w2, cp, cp))
    y2 = y2.reshape(rows, cp)
    scale2, bias2 = _fold_bn(st2, g2p, b2p, rows)
    out = bn_add_relu(y2, residual, scale2, bias2)                 # (rows, cp) f32

    out = out.reshape(n, h, w, cp)[..., :c]
    return jnp.transpose(out, (0, 3, 1, 2))                        # back to NCHW


# ------------------------------ reference ---------------------------------- #

def _reference(x, w1, g1, b1, w2, g2, b2, *, matmul_dtype=jnp.float32):
    """Plain-JAX BasicBlock forward (training-mode BN, batch stats)."""
    def conv(xx, ww):
        return jax.lax.conv_general_dilated(
            xx.astype(matmul_dtype), ww.astype(matmul_dtype), (1, 1),
            ((1, 1), (1, 1)), dimension_numbers=("NCHW", "OIHW", "NCHW"),
            preferred_element_type=jnp.float32)

    def bn_train(y, g, b):
        mean = y.mean(axis=(0, 2, 3), keepdims=True)
        var = ((y - mean) ** 2).mean(axis=(0, 2, 3), keepdims=True)
        return ((y - mean) / jnp.sqrt(var + EPS) * g.reshape(1, -1, 1, 1)
                + b.reshape(1, -1, 1, 1))

    out = jax.nn.relu(bn_train(conv(x, w1), g1, b1))
    out = bn_train(conv(out, w2), g2, b2)
    return jax.nn.relu(out + x)


# --------------------------------- main ------------------------------------ #

if __name__ == "__main__":
    # downsample=None  =>  in_channel == out_channel, stride == 1
    N, C, H, W = 2, 4, 16, 16

    key = jax.random.PRNGKey(0)
    kx, k1, k2, k3, k4 = jax.random.split(key, 5)

    x = jax.random.normal(kx, (N, C, H, W), jnp.float32)
    w1 = 0.1 * jax.random.normal(k1, (C, C, 3, 3), jnp.float32)   # conv1.weight
    w2 = 0.1 * jax.random.normal(k2, (C, C, 3, 3), jnp.float32)   # conv2.weight
    g1 = 1.0 + 0.1 * jax.random.normal(k3, (C,), jnp.float32)     # bn1.weight
    b1 = 0.1 * jax.random.normal(k4, (C,), jnp.float32)           # bn1.bias
    g2 = jnp.ones((C,), jnp.float32)                              # bn2.weight (default init)
    b2 = jnp.zeros((C,), jnp.float32)                             # bn2.bias (default init)

    fwd = jax.jit(basic_block_forward)
    out = jax.block_until_ready(fwd(x, w1, g1, b1, w2, g2, b2))
    assert out.shape == (N, C, H, W)

    # 1) Tight check vs a reference using the same bf16 MXU inputs / f32 accumulation
    #    (validates the kernel math; small slack for 1-ulp bf16 intermediate flips).
    ref_bf16 = _reference(x, w1, g1, b1, w2, g2, b2, matmul_dtype=jnp.bfloat16)
    assert jnp.allclose(out, ref_bf16, rtol=5e-3, atol=5e-3), \
        "mismatch vs bf16-matmul reference"

    # 2) Sanity check vs the full-f32 module semantics (tolerance set by bf16 MXU
    #    input rounding; deviations measured well below this bound).
    ref_f32 = _reference(x, w1, g1, b1, w2, g2, b2, matmul_dtype=jnp.float32)
    assert jnp.allclose(out, ref_f32, rtol=5e-2, atol=5e-2), \
        "mismatch vs f32 reference"

    # TODO(synk): BatchNorm running_mean/running_var buffer updates (a training-time
    # side effect, not part of the forward output) are not emulated.
    print("KERNEL_OK")
</pallas_src>

<mosaic_0001>
module attributes {stable_mosaic.version = 11 : i64} {
  func.func @_conv3x3_stats_kernel(%arg0: i32, %arg1: memref<1x18x18x128xbf16, #tpu.memory_space<vmem>>, %arg2: memref<9x128x128xbf16, #tpu.memory_space<vmem>>, %arg3: memref<1x256x128xf32, #tpu.memory_space<vmem>>, %arg4: memref<1x2x128xf32, #tpu.memory_space<vmem>>, %arg5: memref<256x128xf32, #tpu.memory_space<vmem>>) attributes {dimension_semantics = [#tpu.dimension_semantics<parallel>], iteration_bounds = array<i64: 2>, scalar_prefetch = 0 : i64, scratch_operands = 1 : i64, tpu.core_type = #tpu.core_type<tc>, window_params = [{transform_indices = @transform_0, window_bounds = array<i64: 1, 18, 18, 128>}, {pipeline_mode = #tpu.pipeline_mode<synchronous>, transform_indices = @transform_1, window_bounds = array<i64: 9, 128, 128>}, {transform_indices = @transform_2, window_bounds = array<i64: 1, 256, 128>}, {transform_indices = @transform_3, window_bounds = array<i64: 1, 2, 128>}]} {
    %cst = arith.constant 0.000000e+00 : f32
    %0 = vector.broadcast %cst : f32 to vector<256x128xf32>
    %c0 = arith.constant 0 : index
    %c0_0 = arith.constant 0 : index
    %1 = vector.load %arg5[%c0, %c0_0] : memref<256x128xf32, #tpu.memory_space<vmem>>, vector<256x128xf32>
    tpu.vector_store %arg5[%c0, %c0_0], %0 {strides = array<i32>} : memref<256x128xf32, #tpu.memory_space<vmem>>, vector<256x128xf32>,
    %c0_1 = arith.constant 0 : index
    %c0_2 = arith.constant 0 : index
    %c0_3 = arith.constant 0 : index
    %c0_4 = arith.constant 0 : index
    %2 = vector.load %arg1[%c0_1, %c0_2, %c0_3, %c0_4] : memref<1x18x18x128xbf16, #tpu.memory_space<vmem>>, vector<1x16x16x128xbf16>
    %3 = vector.shape_cast %2 : vector<1x16x16x128xbf16> to vector<16x16x128xbf16>
    %4 = vector.shape_cast %3 : vector<16x16x128xbf16> to vector<256x128xbf16>
    %c0_5 = arith.constant 0 : index
    %c0_6 = arith.constant 0 : index
    %5 = vector.load %arg5[%c0_5, %c0_6] : memref<256x128xf32, #tpu.memory_space<vmem>>, vector<256x128xf32>
    %c0_7 = arith.constant 0 : index
    %c0_8 = arith.constant 0 : index
    %c0_9 = arith.constant 0 : index
    %6 = vector.load %arg2[%c0_7, %c0_8, %c0_9] : memref<9x128x128xbf16, #tpu.memory_space<vmem>>, vector<1x128x128xbf16>
    %7 = vector.shape_cast %6 : vector<1x128x128xbf16> to vector<128x128xbf16>
    %cst_10 = arith.constant dense<0.000000e+00> : vector<256x128xf32>
    %8 = tpu.matmul %4, %7, %cst_10 {dimension_numbers = #tpu.dot_dimension_numbers<[1], [0], [0], [1], [0, 0, 1, 1], [], []>} : vector<256x128xbf16>, vector<128x128xbf16>, vector<256x128xf32> -> vector<256x128xf32>
    %9 = arith.addf %5, %8 : vector<256x128xf32>
    %c0_11 = arith.constant 0 : index
    %c0_12 = arith.constant 0 : index
    %10 = vector.load %arg5[%c0_11, %c0_12] : memref<256x128xf32, #tpu.memory_space<vmem>>, vector<256x128xf32>
    tpu.vector_store %arg5[%c0_11, %c0_12], %9 {strides = array<i32>} : memref<256x128xf32, #tpu.memory_space<vmem>>, vector<256x128xf32>,
    %c0_13 = arith.constant 0 : index
    %c0_14 = arith.constant 0 : index
    %c1 = arith.constant 1 : index
    %c0_15 = arith.constant 0 : index
    %11 = vector.load %arg1[%c0_13, %c0_14, %c1, %c0_15] : memref<1x18x18x128xbf16, #tpu.memory_space<vmem>>, vector<1x16x16x128xbf16>
    %12 = vector.shape_cast %11 : vector<1x16x16x128xbf16> to vector<16x16x128xbf16>
    %13 = vector.shape_cast %12 : vector<16x16x128xbf16> to vector<256x128xbf16>
    %c0_16 = arith.constant 0 : index
    %c0_17 = arith.constant 0 : index
    %14 = vector.load %arg5[%c0_16, %c0_17] : memref<256x128xf32, #tpu.memory_space<vmem>>, vector<256x128xf32>
    %c1_18 = arith.constant 1 : index
    %c0_19 = arith.constant 0 : index
    %c0_20 = arith.constant 0 : index
    %15 = vector.load %arg2[%c1_18, %c0_19, %c0_20] : memref<9x128x128xbf16, #tpu.memory_space<vmem>>, vector<1x128x128xbf16>
    %16 = vector.shape_cast %15 : vector<1x128x128xbf16> to vector<128x128xbf16>
    %cst_21 = arith.constant dense<0.000000e+00> : vector<256x128xf32>
    %17 = tpu.matmul %13, %16, %cst_21 {dimension_numbers = #tpu.dot_dimension_numbers<[1], [0], [0], [1], [0, 0, 1, 1], [], []>} : vector<256x128xbf16>, vector<128x128xbf16>, vector<256x128xf32> -> vector<256x128xf32>
    %18 = arith.addf %14, %17 : vector<256x128xf32>
    %c0_22 = arith.constant 0 : index
    %c0_23 = arith.constant 0 : index
    %19 = vector.load %arg5[%c0_22, %c0_23] : memref<256x128xf32, #tpu.memory_space<vmem>>, vector<256x128xf32>
    tpu.vector_store %arg5[%c0_22, %c0_23], %18 {strides = array<i32>} : memref<256x128xf32, #tpu.memory_space<vmem>>, vector<256x128xf32>,
    %c0_24 = arith.constant 0 : index
    %c0_25 = arith.constant 0 : index
    %c2 = arith.constant 2 : index
    %c0_26 = arith.constant 0 : index
    %20 = vector.load %arg1[%c0_24, %c0_25, %c2, %c0_26] : memref<1x18x18x128xbf16, #tpu.memory_space<vmem>>, vector<1x16x16x128xbf16>
    %21 = vector.shape_cast %20 : vector<1x16x16x128xbf16> to vector<16x16x128xbf16>
    %22 = vector.shape_cast %21 : vector<16x16x128xbf16> to vector<256x128xbf16>
    %c0_27 = arith.constant 0 : index
    %c0_28 = arith.constant 0 : index
    %23 = vector.load %arg5[%c0_27, %c0_28] : memref<256x128xf32, #tpu.memory_space<vmem>>, vector<256x128xf32>
    %c2_29 = arith.constant 2 : index
    %c0_30 = arith.constant 0 : index
    %c0_31 = arith.constant 0 : index
    %24 = vector.load %arg2[%c2_29, %c0_30, %c0_31] : memref<9x128x128xbf16, #tpu.memory_space<vmem>>, vector<1x128x128xbf16>
    %25 = vector.shape_cast %24 : vector<1x128x128xbf16> to vector<128x128xbf16>
    %cst_32 = arith.constant dense<0.000000e+00> : vector<256x128xf32>
    %26 = tpu.matmul %22, %25, %cst_32 {dimension_numbers = #tpu.dot_dimension_numbers<[1], [0], [0], [1], [0, 0, 1, 1], [], []>} : vector<256x128xbf16>, vector<128x128xbf16>, vector<256x128xf32> -> vector<256x128xf32>
    %27 = arith.addf %23, %26 : vector<256x128xf32>
    %c0_33 = arith.constant 0 : index
    %c0_34 = arith.constant 0 : index
    %28 = vector.load %arg5[%c0_33, %c0_34] : memref<256x128xf32, #tpu.memory_space<vmem>>, vector<256x128xf32>
    tpu.vector_store %arg5[%c0_33, %c0_34], %27 {strides = array<i32>} : memref<256x128xf32, #tpu.memory_space<vmem>>, vector<256x128xf32>,
    %c0_35 = arith.constant 0 : index
    %c1_36 = arith.constant 1 : index
    %c0_37 = arith.constant 0 : index
    %c0_38 = arith.constant 0 : index
    %29 = vector.load %arg1[%c0_35, %c1_36, %c0_37, %c0_38] : memref<1x18x18x128xbf16, #tpu.memory_space<vmem>>, vector<1x16x16x128xbf16>
    %30 = vector.shape_cast %29 : vector<1x16x16x128xbf16> to vector<16x16x128xbf16>
    %31 = vector.shape_cast %30 : vector<16x16x128xbf16> to vector<256x128xbf16>
    %c0_39 = arith.constant 0 : index
    %c0_40 = arith.constant 0 : index
    %32 = vector.load %arg5[%c0_39, %c0_40] : memref<256x128xf32, #tpu.memory_space<vmem>>, vector<256x128xf32>
    %c3 = arith.constant 3 : index
    %c0_41 = arith.constant 0 : index
    %c0_42 = arith.constant 0 : index
    %33 = vector.load %arg2[%c3, %c0_41, %c0_42] : memref<9x128x128xbf16, #tpu.memory_space<vmem>>, vector<1x128x128xbf16>
    %34 = vector.shape_cast %33 : vector<1x128x128xbf16> to vector<128x128xbf16>
    %cst_43 = arith.constant dense<0.000000e+00> : vector<256x128xf32>
    %35 = tpu.matmul %31, %34, %cst_43 {dimension_numbers = #tpu.dot_dimension_numbers<[1], [0], [0], [1], [0, 0, 1, 1], [], []>} : vector<256x128xbf16>, vector<128x128xbf16>, vector<256x128xf32> -> vector<256x128xf32>
    %36 = arith.addf %32, %35 : vector<256x128xf32>
    %c0_44 = arith.constant 0 : index
    %c0_45 = arith.constant 0 : index
    %37 = vector.load %arg5[%c0_44, %c0_45] : memref<256x128xf32, #tpu.memory_space<vmem>>, vector<256x128xf32>
    tpu.vector_store %arg5[%c0_44, %c0_45], %36 {strides = array<i32>} : memref<256x128xf32, #tpu.memory_space<vmem>>, vector<256x128xf32>,
    %c0_46 = arith.constant 0 : index
    %c1_47 = arith.constant 1 : index
    %c1_48 = arith.constant 1 : index
    %c0_49 = arith.constant 0 : index
    %38 = vector.load %arg1[%c0_46, %c1_47, %c1_48, %c0_49] : memref<1x18x18x128xbf16, #tpu.memory_space<vmem>>, vector<1x16x16x128xbf16>
    %39 = vector.shape_cast %38 : vector<1x16x16x128xbf16> to vector<16x16x128xbf16>
    %40 = vector.shape_cast %39 : vector<16x16x128xbf16> to vector<256x128xbf16>
    %c0_50 = arith.constant 0 : index
    %c0_51 = arith.constant 0 : index
    %41 = vector.load %arg5[%c0_50, %c0_51] : memref<256x128xf32, #tpu.memory_space<vmem>>, vector<256x128xf32>
    %c4 = arith.constant 4 : index
    %c0_52 = arith.constant 0 : index
    %c0_53 = arith.constant 0 : index
    %42 = vector.load %arg2[%c4, %c0_52, %c0_53] : memref<9x128x128xbf16, #tpu.memory_space<vmem>>, vector<1x128x128xbf16>
    %43 = vector.shape_cast %42 : vector<1x128x128xbf16> to vector<128x128xbf16>
    %cst_54 = arith.constant dense<0.000000e+00> : vector<256x128xf32>
    %44 = tpu.matmul %40, %43, %cst_54 {dimension_numbers = #tpu.dot_dimension_numbers<[1], [0], [0], [1], [0, 0, 1, 1], [], []>} : vector<256x128xbf16>, vector<128x128xbf16>, vector<256x128xf32> -> vector<256x128xf32>
    %45 = arith.addf %41, %44 : vector<256x128xf32>
    %c0_55 = arith.constant 0 : index
    %c0_56 = arith.constant 0 : index
    %46 = vector.load %arg5[%c0_55, %c0_56] : memref<256x128xf32, #tpu.memory_space<vmem>>, vector<256x128xf32>
    tpu.vector_store %arg5[%c0_55, %c0_56], %45 {strides = array<i32>} : memref<256x128xf32, #tpu.memory_space<vmem>>, vector<256x128xf32>,
    %c0_57 = arith.constant 0 : index
    %c1_58 = arith.constant 1 : index
    %c2_59 = arith.constant 2 : index
    %c0_60 = arith.constant 0 : index
    %47 = vector.load %arg1[%c0_57, %c1_58, %c2_59, %c0_60] : memref<1x18x18x128xbf16, #tpu.memory_space<vmem>>, vector<1x16x16x128xbf16>
    %48 = vector.shape_cast %47 : vector<1x16x16x128xbf16> to vector<16x16x128xbf16>
    %49 = vector.shape_cast %48 : vector<16x16x128xbf16> to vector<256x128xbf16>
    %c0_61 = arith.constant 0 : index
    %c0_62 = arith.constant 0 : index
    %50 = vector.load %arg5[%c0_61, %c0_62] : memref<256x128xf32, #tpu.memory_space<vmem>>, vector<256x128xf32>
    %c5 = arith.constant 5 : index
    %c0_63 = arith.constant 0 : index
    %c0_64 = arith.constant 0 : index
    %51 = vector.load %arg2[%c5, %c0_63, %c0_64] : memref<9x128x128xbf16, #tpu.memory_space<vmem>>, vector<1x128x128xbf16>
    %52 = vector.shape_cast %51 : vector<1x128x128xbf16> to vector<128x128xbf16>
    %cst_65 = arith.constant dense<0.000000e+00> : vector<256x128xf32>
    %53 = tpu.matmul %49, %52, %cst_65 {dimension_numbers = #tpu.dot_dimension_numbers<[1], [0], [0], [1], [0, 0, 1, 1], [], []>} : vector<256x128xbf16>, vector<128x128xbf16>, vector<256x128xf32> -> vector<256x128xf32>
    %54 = arith.addf %50, %53 : vector<256x128xf32>
    %c0_66 = arith.constant 0 : index
    %c0_67 = arith.constant 0 : index
    %55 = vector.load %arg5[%c0_66, %c0_67] : memref<256x128xf32, #tpu.memory_space<vmem>>, vector<256x128xf32>
    tpu.vector_store %arg5[%c0_66, %c0_67], %54 {strides = array<i32>} : memref<256x128xf32, #tpu.memory_space<vmem>>, vector<256x128xf32>,
    %c0_68 = arith.constant 0 : index
    %c2_69 = arith.constant 2 : index
    %c0_70 = arith.constant 0 : index
    %c0_71 = arith.constant 0 : index
    %56 = vector.load %arg1[%c0_68, %c2_69, %c0_70, %c0_71] : memref<1x18x18x128xbf16, #tpu.memory_space<vmem>>, vector<1x16x16x128xbf16>
    %57 = vector.shape_cast %56 : vector<1x16x16x128xbf16> to vector<16x16x128xbf16>
    %58 = vector.shape_cast %57 : vector<16x16x128xbf16> to vector<256x128xbf16>
    %c0_72 = arith.constant 0 : index
    %c0_73 = arith.constant 0 : index
    %59 = vector.load %arg5[%c0_72, %c0_73] : memref<256x128xf32, #tpu.memory_space<vmem>>, vector<256x128xf32>
    %c6 = arith.constant 6 : index
    %c0_74 = arith.constant 0 : index
    %c0_75 = arith.constant 0 : index
    %60 = vector.load %arg2[%c6, %c0_74, %c0_75] : memref<9x128x128xbf16, #tpu.memory_space<vmem>>, vector<1x128x128xbf16>
    %61 = vector.shape_cast %60 : vector<1x128x128xbf16> to vector<128x128xbf16>
    %cst_76 = arith.constant dense<0.000000e+00> : vector<256x128xf32>
    %62 = tpu.matmul %58, %61, %cst_76 {dimension_numbers = #tpu.dot_dimension_numbers<[1], [0], [0], [1], [0, 0, 1, 1], [], []>} : vector<256x128xbf16>, vector<128x128xbf16>, vector<256x128xf32> -> vector<256x128xf32>
    %63 = arith.addf %59, %62 : vector<256x128xf32>
    %c0_77 = arith.constant 0 : index
    %c0_78 = arith.constant 0 : index
    %64 = vector.load %arg5[%c0_77, %c0_78] : memref<256x128xf32, #tpu.memory_space<vmem>>, vector<256x128xf32>
    tpu.vector_store %arg5[%c0_77, %c0_78], %63 {strides = array<i32>} : memref<256x128xf32, #tpu.memory_space<vmem>>, vector<256x128xf32>,
    %c0_79 = arith.constant 0 : index
    %c2_80 = arith.constant 2 : index
    %c1_81 = arith.constant 1 : index
    %c0_82 = arith.constant 0 : index
    %65 = vector.load %arg1[%c0_79, %c2_80, %c1_81, %c0_82] : memref<1x18x18x128xbf16, #tpu.memory_space<vmem>>, vector<1x16x16x128xbf16>
    %66 = vector.shape_cast %65 : vector<1x16x16x128xbf16> to vector<16x16x128xbf16>
    %67 = vector.shape_cast %66 : vector<16x16x128xbf16> to vector<256x128xbf16>
    %c0_83 = arith.constant 0 : index
    %c0_84 = arith.constant 0 : index
    %68 = vector.load %arg5[%c0_83, %c0_84] : memref<256x128xf32, #tpu.memory_space<vmem>>, vector<256x128xf32>
    %c7 = arith.constant 7 : index
    %c0_85 = arith.constant 0 : index
    %c0_86 = arith.constant 0 : index
    %69 = vector.load %arg2[%c7, %c0_85, %c0_86] : memref<9x128x128xbf16, #tpu.memory_space<vmem>>, vector<1x128x128xbf16>
    %70 = vector.shape_cast %69 : vector<1x128x128xbf16> to vector<128x128xbf16>
    %cst_87 = arith.constant dense<0.000000e+00> : vector<256x128xf32>
    %71 = tpu.matmul %67, %70, %cst_87 {dimension_numbers = #tpu.dot_dimension_numbers<[1], [0], [0], [1], [0, 0, 1, 1], [], []>} : vector<256x128xbf16>, vector<128x128xbf16>, vector<256x128xf32> -> vector<256x128xf32>
    %72 = arith.addf %68, %71 : vector<256x128xf32>
    %c0_88 = arith.constant 0 : index
    %c0_89 = arith.constant 0 : index
    %73 = vector.load %arg5[%c0_88, %c0_89] : memref<256x128xf32, #tpu.memory_space<vmem>>, vector<256x128xf32>
    tpu.vector_store %arg5[%c0_88, %c0_89], %72 {strides = array<i32>} : memref<256x128xf32, #tpu.memory_space<vmem>>, vector<256x128xf32>,
    %c0_90 = arith.constant 0 : index
    %c2_91 = arith.constant 2 : index
    %c2_92 = arith.constant 2 : index
    %c0_93 = arith.constant 0 : index
    %74 = vector.load %arg1[%c0_90, %c2_91, %c2_92, %c0_93] : memref<1x18x18x128xbf16, #tpu.memory_space<vmem>>, vector<1x16x16x128xbf16>
    %75 = vector.shape_cast %74 : vector<1x16x16x128xbf16> to vector<16x16x128xbf16>
    %76 = vector.shape_cast %75 : vector<16x16x128xbf16> to vector<256x128xbf16>
    %c0_94 = arith.constant 0 : index
    %c0_95 = arith.constant 0 : index
    %77 = vector.load %arg5[%c0_94, %c0_95] : memref<256x128xf32, #tpu.memory_space<vmem>>, vector<256x128xf32>
    %c8 = arith.constant 8 : index
    %c0_96 = arith.constant 0 : index
    %c0_97 = arith.constant 0 : index
    %78 = vector.load %arg2[%c8, %c0_96, %c0_97] : memref<9x128x128xbf16, #tpu.memory_space<vmem>>, vector<1x128x128xbf16>
    %79 = vector.shape_cast %78 : vector<1x128x128xbf16> to vector<128x128xbf16>
    %cst_98 = arith.constant dense<0.000000e+00> : vector<256x128xf32>
    %80 = tpu.matmul %76, %79, %cst_98 {dimension_numbers = #tpu.dot_dimension_numbers<[1], [0], [0], [1], [0, 0, 1, 1], [], []>} : vector<256x128xbf16>, vector<128x128xbf16>, vector<256x128xf32> -> vector<256x128xf32>
    %81 = arith.addf %77, %80 : vector<256x128xf32>
    %c0_99 = arith.constant 0 : index
    %c0_100 = arith.constant 0 : index
    %82 = vector.load %arg5[%c0_99, %c0_100] : memref<256x128xf32, #tpu.memory_space<vmem>>, vector<256x128xf32>
    tpu.vector_store %arg5[%c0_99, %c0_100], %81 {strides = array<i32>} : memref<256x128xf32, #tpu.memory_space<vmem>>, vector<256x128xf32>,
    %c0_101 = arith.constant 0 : index
    %c0_102 = arith.constant 0 : index
    %83 = vector.load %arg5[%c0_101, %c0_102] : memref<256x128xf32, #tpu.memory_space<vmem>>, vector<256x128xf32>
    %c0_103 = arith.constant 0 : index
    %c0_104 = arith.constant 0 : index
    %c0_105 = arith.constant 0 : index
    %84 = vector.load %arg3[%c0_103, %c0_104, %c0_105] : memref<1x256x128xf32, #tpu.memory_space<vmem>>, vector<1x256x128xf32>
    %85 = vector.shape_cast %84 : vector<1x256x128xf32> to vector<256x128xf32>
    %86 = vector.shape_cast %83 : vector<256x128xf32> to vector<1x256x128xf32>
    tpu.vector_store %arg3[%c0_103, %c0_104, %c0_105], %86 {strides = array<i32>} : memref<1x256x128xf32, #tpu.memory_space<vmem>>, vector<1x256x128xf32>,
    %cst_106 = arith.constant dense<0.000000e+00> : vector<128xf32>
    %87 = vector.multi_reduction <add>, %83, %cst_106 [0] : vector<256x128xf32> to vector<128xf32>
    %88 = vector.shape_cast %87 : vector<128xf32> to vector<1x128xf32>
    %89 = arith.mulf %83, %83 : vector<256x128xf32>
    %cst_107 = arith.constant dense<0.000000e+00> : vector<128xf32>
    %90 = vector.multi_reduction <add>, %89, %cst_107 [0] : vector<256x128xf32> to vector<128xf32>
    %91 = vector.shape_cast %90 : vector<128xf32> to vector<1x128xf32>
    %92 = tpu.concatenate %88, %91 in 0 : vector<1x128xf32>, vector<1x128xf32> -> vector<2x128xf32>
    %c0_108 = arith.constant 0 : index
    %c0_109 = arith.constant 0 : index
    %c0_110 = arith.constant 0 : index
    %93 = vector.load %arg4[%c0_108, %c0_109, %c0_110] : memref<1x2x128xf32, #tpu.memory_space<vmem>>, vector<1x2x128xf32>
    %94 = vector.shape_cast %93 : vector<1x2x128xf32> to vector<2x128xf32>
    %95 = vector.shape_cast %92 : vector<2x128xf32> to vector<1x2x128xf32>
    tpu.vector_store %arg4[%c0_108, %c0_109, %c0_110], %95 {strides = array<i32>} : memref<1x2x128xf32, #tpu.memory_space<vmem>>, vector<1x2x128xf32>,
    return
  }
  func.func @transform_0(%arg0: i32) -> (i32, i32, i32, i32) {
    %c0_i32 = arith.constant 0 : i32
    %c0_i32_0 = arith.constant 0 : i32
    %c0_i32_1 = arith.constant 0 : i32
    %c0_i32_2 = arith.constant 0 : i32
    return %arg0, %c0_i32, %c0_i32_0, %c0_i32_1 : i32, i32, i32, i32
  }
  func.func @transform_1(%arg0: i32) -> (i32, i32, i32) {
    %c0_i32 = arith.constant 0 : i32
    %c0_i32_0 = arith.constant 0 : i32
    %c0_i32_1 = arith.constant 0 : i32
    %c0_i32_2 = arith.constant 0 : i32
    return %c0_i32, %c0_i32_0, %c0_i32_1 : i32, i32, i32
  }
  func.func @transform_2(%arg0: i32) -> (i32, i32, i32) {
    %c0_i32 = arith.constant 0 : i32
    %c0_i32_0 = arith.constant 0 : i32
    %c0_i32_1 = arith.constant 0 : i32
    return %arg0, %c0_i32, %c0_i32_0 : i32, i32, i32
  }
  func.func @transform_3(%arg0: i32) -> (i32, i32, i32) {
    %c0_i32 = arith.constant 0 : i32
    %c0_i32_0 = arith.constant 0 : i32
    %c0_i32_1 = arith.constant 0 : i32
    return %arg0, %c0_i32, %c0_i32_0 : i32, i32, i32
  }
}

module attributes {stable_mosaic.version = 11 : i64} {
  func.func @_bn_relu_kernel(%arg0: i32, %arg1: memref<256x128xf32, #tpu.memory_space<vmem>>, %arg2: memref<1x128xf32, #tpu.memory_space<vmem>>, %arg3: memref<1x128xf32, #tpu.memory_space<vmem>>, %arg4: memref<256x128xbf16, #tpu.memory_space<vmem>>) attributes {dimension_semantics = [#tpu.dimension_semantics<parallel>], iteration_bounds = array<i64: 2>, scalar_prefetch = 0 : i64, scratch_operands = 0 : i64, tpu.core_type = #tpu.core_type<tc>, window_params = [{transform_indices = @transform_0, window_bounds = array<i64: 256, 128>}, {pipeline_mode = #tpu.pipeline_mode<synchronous>, transform_indices = @transform_1, window_bounds = array<i64: 1, 128>}, {pipeline_mode = #tpu.pipeline_mode<synchronous>, transform_indices = @transform_2, window_bounds = array<i64: 1, 128>}, {transform_indices = @transform_3, window_bounds = array<i64: 256, 128>}]} {
    %c0 = arith.constant 0 : index
    %c0_0 = arith.constant 0 : index
    %0 = vector.load %arg1[%c0, %c0_0] : memref<256x128xf32, #tpu.memory_space<vmem>>, vector<256x128xf32>
    %c0_1 = arith.constant 0 : index
    %c0_2 = arith.constant 0 : index
    %1 = vector.load %arg2[%c0_1, %c0_2] : memref<1x128xf32, #tpu.memory_space<vmem>>, vector<1x128xf32>
    %2 = vector.broadcast %1 : vector<1x128xf32> to vector<256x128xf32>
    %3 = arith.mulf %0, %2 : vector<256x128xf32>
    %c0_3 = arith.constant 0 : index
    %c0_4 = arith.constant 0 : index
    %4 = vector.load %arg3[%c0_3, %c0_4] : memref<1x128xf32, #tpu.memory_space<vmem>>, vector<1x128xf32>
    %5 = vector.broadcast %4 : vector<1x128xf32> to vector<256x128xf32>
    %6 = arith.addf %3, %5 : vector<256x128xf32>
    %cst = arith.constant 0.000000e+00 : f32
    %7 = vector.broadcast %cst : f32 to vector<256x128xf32>
    %8 = arith.maximumf %6, %7 : vector<256x128xf32>
    %9 = arith.truncf %8 : vector<256x128xf32> to vector<256x128xbf16>
    %c0_5 = arith.constant 0 : index
    %c0_6 = arith.constant 0 : index
    %10 = vector.load %arg4[%c0_5, %c0_6] : memref<256x128xbf16, #tpu.memory_space<vmem>>, vector<256x128xbf16>
    tpu.vector_store %arg4[%c0_5, %c0_6], %9 {strides = array<i32>} : memref<256x128xbf16, #tpu.memory_space<vmem>>, vector<256x128xbf16>,
    return
  }
  func.func @transform_0(%arg0: i32) -> (i32, i32) {
    %c0_i32 = arith.constant 0 : i32
    %c0_i32_0 = arith.constant 0 : i32
    return %arg0, %c0_i32 : i32, i32
  }
  func.func @transform_1(%arg0: i32) -> (i32, i32) {
    %c0_i32 = arith.constant 0 : i32
    %c0_i32_0 = arith.constant 0 : i32
    %c0_i32_1 = arith.constant 0 : i32
    return %c0_i32, %c0_i32_0 : i32, i32
  }
  func.func @transform_2(%arg0: i32) -> (i32, i32) {
    %c0_i32 = arith.constant 0 : i32
    %c0_i32_0 = arith.constant 0 : i32
    %c0_i32_1 = arith.constant 0 : i32
    return %c0_i32, %c0_i32_0 : i32, i32
  }
  func.func @transform_3(%arg0: i32) -> (i32, i32) {
    %c0_i32 = arith.constant 0 : i32
    %c0_i32_0 = arith.constant 0 : i32
    return %arg0, %c0_i32 : i32, i32
  }
}

module attributes {stable_mosaic.version = 11 : i64} {
  func.func @_bn_add_relu_kernel(%arg0: i32, %arg1: memref<256x128xf32, #tpu.memory_space<vmem>>, %arg2: memref<256x128xf32, #tpu.memory_space<vmem>>, %arg3: memref<1x128xf32, #tpu.memory_space<vmem>>, %arg4: memref<1x128xf32, #tpu.memory_space<vmem>>, %arg5: memref<256x128xf32, #tpu.memory_space<vmem>>) attributes {dimension_semantics = [#tpu.dimension_semantics<parallel>], iteration_bounds = array<i64: 2>, scalar_prefetch = 0 : i64, scratch_operands = 0 : i64, tpu.core_type = #tpu.core_type<tc>, window_params = [{transform_indices = @transform_0, window_bounds = array<i64: 256, 128>}, {transform_indices = @transform_1, window_bounds = array<i64: 256, 128>}, {pipeline_mode = #tpu.pipeline_mode<synchronous>, transform_indices = @transform_2, window_bounds = array<i64: 1, 128>}, {pipeline_mode = #tpu.pipeline_mode<synchronous>, transform_indices = @transform_3, window_bounds = array<i64: 1, 128>}, {transform_indices = @transform_4, window_bounds = array<i64: 256, 128>}]} {
    %c0 = arith.constant 0 : index
    %c0_0 = arith.constant 0 : index
    %0 = vector.load %arg1[%c0, %c0_0] : memref<256x128xf32, #tpu.memory_space<vmem>>, vector<256x128xf32>
    %c0_1 = arith.constant 0 : index
    %c0_2 = arith.constant 0 : index
    %1 = vector.load %arg3[%c0_1, %c0_2] : memref<1x128xf32, #tpu.memory_space<vmem>>, vector<1x128xf32>
    %2 = vector.broadcast %1 : vector<1x128xf32> to vector<256x128xf32>
    %3 = arith.mulf %0, %2 : vector<256x128xf32>
    %c0_3 = arith.constant 0 : index
    %c0_4 = arith.constant 0 : index
    %4 = vector.load %arg4[%c0_3, %c0_4] : memref<1x128xf32, #tpu.memory_space<vmem>>, vector<1x128xf32>
    %5 = vector.broadcast %4 : vector<1x128xf32> to vector<256x128xf32>
    %6 = arith.addf %3, %5 : vector<256x128xf32>
    %c0_5 = arith.constant 0 : index
    %c0_6 = arith.constant 0 : index
    %7 = vector.load %arg2[%c0_5, %c0_6] : memref<256x128xf32, #tpu.memory_space<vmem>>, vector<256x128xf32>
    %8 = arith.addf %6, %7 : vector<256x128xf32>
    %cst = arith.constant 0.000000e+00 : f32
    %9 = vector.broadcast %cst : f32 to vector<256x128xf32>
    %10 = arith.maximumf %8, %9 : vector<256x128xf32>
    %c0_7 = arith.constant 0 : index
    %c0_8 = arith.constant 0 : index
    %11 = vector.load %arg5[%c0_7, %c0_8] : memref<256x128xf32, #tpu.memory_space<vmem>>, vector<256x128xf32>
    tpu.vector_store %arg5[%c0_7, %c0_8], %10 {strides = array<i32>} : memref<256x128xf32, #tpu.memory_space<vmem>>, vector<256x128xf32>,
    return
  }
  func.func @transform_0(%arg0: i32) -> (i32, i32) {
    %c0_i32 = arith.constant 0 : i32
    %c0_i32_0 = arith.constant 0 : i32
    return %arg0, %c0_i32 : i32, i32
  }
  func.func @transform_1(%arg0: i32) -> (i32, i32) {
    %c0_i32 = arith.constant 0 : i32
    %c0_i32_0 = arith.constant 0 : i32
    return %arg0, %c0_i32 : i32, i32
  }
  func.func @transform_2(%arg0: i32) -> (i32, i32) {
    %c0_i32 = arith.constant 0 : i32
    %c0_i32_0 = arith.constant 0 : i32
    %c0_i32_1 = arith.constant 0 : i32
    return %c0_i32, %c0_i32_0 : i32, i32
  }
  func.func @transform_3(%arg0: i32) -> (i32, i32) {
    %c0_i32 = arith.constant 0 : i32
    %c0_i32_0 = arith.constant 0 : i32
    %c0_i32_1 = arith.constant 0 : i32
    return %c0_i32, %c0_i32_0 : i32, i32
  }
  func.func @transform_4(%arg0: i32) -> (i32, i32) {
    %c0_i32 = arith.constant 0 : i32
    %c0_i32_0 = arith.constant 0 : i32
    return %arg0, %c0_i32 : i32, i32
  }
}

</mosaic_0001>

<llo_original>
// kernel: basic_block_forward.5
$region0: #{basic_block_forward.5}
  #allocation0 [shape = 'u32[]', space=smem, size = 0x4, offset = 0x4, fixed_abs, tag = 'smem constant byte address 0x4 - core index']
  #allocation1 [shape = 'u32[144,128]{1,0:T(1,128)}', space=vmem, size = 0x12000, scoped, tag = 'internal scratch']
  %s0 = inlined_call_operand.vmem [shape: f32[512,128], index: 0, kind: input, shape index: {}]
  %s1 = inlined_call_operand.vmem [shape: f32[1,128], index: 1, kind: input, shape index: {}]
  %s2 = inlined_call_operand.vmem [shape: f32[1,128], index: 2, kind: input, shape index: {}]
  %s3 = inlined_call_operand.vmem [shape: bf16[512,128], index: 3, kind: output, shape index: {}]
  %s4 = sld [smem:[#allocation0]]
  $region45: #{basic_block_forward.5} parent=0
    _
  %s6 = ssub.s32 1, %s4
  %s7 = scalar_select 0, %s6, %s4
  loop: start=0, step=1, limit=4
  $region2: #{basic_block_forward.5} parent=0 // loop_pre_header
    _
  $region3: #{basic_block_forward.5} parent=0 // loop_header
    %s9 = sphi 0, %s13
    %p10 = scmp.ge.s32.totalorder %s9, 4
    %s19 = sphi 0, %s21
    %s22 = sphi 0, %s19
    %s23 = sphi 0, %s22
    %s39 = sphi 0, %s23
    %s43 = sphi 0, %s43
    %s45 = sphi 0, %s43
    %s46 = sphi 0, %s45
    %s60 = sphi 0, %s46
    %s64 = sphi 0, %s64
    %s66 = sphi 0, %s64
    %s67 = sphi 0, %s66
    %s81 = sphi 0, %s67
    %s87 = sphi 0, %s89
    %s90 = sphi 0, %s87
    %s91 = sphi 0, %s90
    %s107 = sphi 0, %s91
  $region4: #{basic_block_forward.5} parent=0 // loop_header_branch
    %12 = sbr.rel (%p10) target = $region8
  $region5: #{basic_block_forward.5} parent=0 // loop_body
    %s14 = ssub.s32 %s9, 1
    %s15 = ssub.s32 %s9, 2
    %s16 = sadd.s32 %s9, 1
    %s17 = ssub.s32 %s9, %s16
    %p18 = scmp.eq.s32.totalorder %s17, 0
    %s20 = sadd.s32 %s19, 1
    %s21 = scalar_select %p18, %s19, %s20
    %p24 = pneg %p18
    %p25 = scmp.eq.s32.totalorder %s9, 1
    %p26 = por %p24, %p25
    %p27 = scmp.ne.s32.totalorder %s19, %s22
    %p28 = scmp.eq.s32.totalorder %s9, 0
    %p29 = por %p27, %p28
    %p30 = scmp.ne.s32.totalorder %s19, %s22
    %p31 = scmp.eq.s32.totalorder %s14, 1
    %p32 = por %p30, %p31
    %p33 = scmp.ne.s32.totalorder %s22, %s23
    %p34 = scmp.eq.s32.totalorder %s14, 0
    %p35 = por %p33, %p34
    %p36 = scmp.ne.s32.totalorder %s22, %s23
    %p37 = scmp.eq.s32.totalorder %s15, 1
    %p38 = por %p36, %p37
    %p40 = scmp.ne.s32.totalorder %s23, %s39
    %p41 = scmp.eq.s32.totalorder %s15, 0
    %p42 = por %p40, %p41
    %s44 = sadd.s32 %s43, 1
    %p47 = scmp.eq.s32.totalorder %s9, 1
    %p48 = scmp.ne.s32.totalorder %s43, %s45
    %p49 = scmp.eq.s32.totalorder %s9, 0
    %p50 = por %p48, %p49
    %p51 = scmp.ne.s32.totalorder %s43, %s45
    %p52 = scmp.eq.s32.totalorder %s14, 1
    %p53 = por %p51, %p52
    %p54 = scmp.ne.s32.totalorder %s45, %s46
    %p55 = scmp.eq.s32.totalorder %s14, 0
    %p56 = por %p54, %p55
    %p57 = scmp.ne.s32.totalorder %s45, %s46
    %p58 = scmp.eq.s32.totalorder %s15, 1
    %p59 = por %p57, %p58
    %p61 = scmp.ne.s32.totalorder %s46, %s60
    %p62 = scmp.eq.s32.totalorder %s15, 0
    %p63 = por %p61, %p62
    %s65 = sadd.s32 %s64, 1
    %p68 = scmp.eq.s32.totalorder %s9, 1
    %p69 = scmp.ne.s32.totalorder %s64, %s66
    %p70 = scmp.eq.s32.totalorder %s9, 0
    %p71 = por %p69, %p70
    %p72 = scmp.ne.s32.totalorder %s64, %s66
    %p73 = scmp.eq.s32.totalorder %s14, 1
    %p74 = por %p72, %p73
    %p75 = scmp.ne.s32.totalorder %s66, %s67
    %p76 = scmp.eq.s32.totalorder %s14, 0
    %p77 = por %p75, %p76
    %p78 = scmp.ne.s32.totalorder %s66, %s67
    %p79 = scmp.eq.s32.totalorder %s15, 1
    %p80 = por %p78, %p79
    %p82 = scmp.ne.s32.totalorder %s67, %s81
    %p83 = scmp.eq.s32.totalorder %s15, 0
    %p84 = por %p82, %p83
    %s85 = ssub.s32 %s9, %s16
    %p86 = scmp.eq.s32.totalorder %s85, 0
    %s88 = sadd.s32 %s87, 1
    %s89 = scalar_select %p86, %s87, %s88
    %p92 = pneg %p86
    %p93 = scmp.eq.s32.totalorder %s9, 1
    %p94 = por %p92, %p93
    %p95 = scmp.ne.s32.totalorder %s87, %s90
    %p96 = scmp.eq.s32.totalorder %s9, 0
    %p97 = por %p95, %p96
    %p98 = scmp.ne.s32.totalorder %s87, %s90
    %p99 = scmp.eq.s32.totalorder %s14, 1
    %p100 = por %p98, %p99
    %p101 = scmp.ne.s32.totalorder %s90, %s91
    %p102 = scmp.eq.s32.totalorder %s14, 0
    %p103 = por %p101, %p102
    %p104 = scmp.ne.s32.totalorder %s90, %s91
    %p105 = scmp.eq.s32.totalorder %s15, 1
    %p106 = por %p104, %p105
    %p108 = scmp.ne.s32.totalorder %s91, %s107
    %p109 = scmp.eq.s32.totalorder %s15, 0
    %p110 = por %p108, %p109
    %p111 = scmp.le.s32.totalorder 1, %s9
    %p112 = scmp.lt.s32.totalorder %s9, 3
    %p113 = pnand %p111, %p112
    %p114 = pneg %p113
    // Predicated region
    $region9: #{basic_block_forward.5} parent=5 // pred_check
      _
    $region10: #{basic_block_forward.5} parent=5 // pred_check_branch
      %116 = sbr.rel (%p113) target = $region12
    $region11: #{basic_block_forward.5} parent=5 // pred_region
      %s117 = ssub.s32 %s9, 1
      // Predicated region
      $region13: #{basic_block_forward.5} parent=11 // pred_check
        %p118 = pneg %p56
      $region14: #{basic_block_forward.5} parent=11 // pred_check_branch
        %120 = sbr.rel (%p118) target = $region16
      $region15: #{basic_block_forward.5} parent=11 // pred_region
        _
      $region16: #{basic_block_forward.5} parent=11 // pred_fallthru
        _
      // Predicated region
      $region17: #{basic_block_forward.5} parent=11 // pred_check
        %p121 = pneg %p77
      $region18: #{basic_block_forward.5} parent=11 // pred_check_branch
        %123 = sbr.rel (%p121) target = $region20
      $region19: #{basic_block_forward.5} parent=11 // pred_region
        _
      $region20: #{basic_block_forward.5} parent=11 // pred_fallthru
        _
    $region12: #{basic_block_forward.5} parent=5 // pred_fallthru
      _
    %p124 = scmp.lt.s32.totalorder %s9, 2
    // Predicated region
    $region21: #{basic_block_forward.5} parent=5 // pred_check
      %p125 = pneg %p124
    $region22: #{basic_block_forward.5} parent=5 // pred_check_branch
      %127 = sbr.rel (%p125) target = $region24
    $region23: #{basic_block_forward.5} parent=5 // pred_region
      // Predicated region
      $region25: #{basic_block_forward.5} parent=23 // pred_check
        %p128 = pneg %p29
      $region26: #{basic_block_forward.5} parent=23 // pred_check_branch
        %130 = sbr.rel (%p128) target = $region28
      $region27: #{basic_block_forward.5} parent=23 // pred_region
        %s131 = smul.u32 32, %s9
        %p132 = scmp.lt.s32.totalorder %s131, 63
        %s133 = scalar_select %p132, %s131, 63
        %s134 = smul.addr %s133, 8
        %s135 = scalar_lea.vmem %s0, %s134
        %s136 = smul.u32 32, %s9
      $region28: #{basic_block_forward.5} parent=23 // pred_fallthru
        _
    $region24: #{basic_block_forward.5} parent=5 // pred_fallthru
      _
    %p137 = scmp.le.s32.totalorder 1, %s9
    %p138 = scmp.lt.s32.totalorder %s9, 3
    %p139 = pnand %p137, %p138
    %p140 = pneg %p139
    // Predicated region
    $region29: #{basic_block_forward.5} parent=5 // pred_check
      _
    $region30: #{basic_block_forward.5} parent=5 // pred_check_branch
      %142 = sbr.rel (%p139) target = $region32
    $region31: #{basic_block_forward.5} parent=5 // pred_region
      %s143 = ssub.s32 %s9, 1
      %s144 = smul.u32 32, %s14
      %p145 = scmp.lt.s32.totalorder %s144, 63
      %s146 = scalar_select %p145, %s144, 63
      %s147 = smul.addr %s146, 8
      %s148 = scalar_lea.vmem %s0, %s147
      %p149 = pneg %p35
      %p150 = pneg %p32
      %p151 = pneg %p56
      %p152 = pneg %p53
      %p153 = pneg %p77
      %p154 = pneg %p74
      %p155 = pneg %p103
      %p156 = pneg %p100
      %s157 = smul.u32 32, %s14
      %p158 = scmp.lt.s32.totalorder %s157, 63
      %s159 = scalar_select %p158, %s157, 63
      %s160 = smul.addr %s159, 4
      %s161 = scalar_lea.vmem %s3, %s160
      %s162 = smul.u32 32, %s14
      %p163 = scmp.lt.s32.totalorder %s162, 63
      %s164 = scalar_select %p163, %s162, 63
      %s165 = smul.addr %s164, 8
      %s166 = scalar_lea.vmem %s0, %s165
      %s167 = smul.u32 32, %s14
      %s168 = smul.u32 32, %s14
      %p169 = scmp.lt.s32.totalorder %s168, 63
      %s170 = scalar_select %p169, %s168, 63
      %s171 = smul.addr %s170, 4
      %s172 = scalar_lea.vmem %s3, %s171
      %s173 = smul.u32 32, %s14
      %v174 = vld [vmem:[%s166] sm:$0xff]
      %v175 = vld [vmem:[%s166 + $0x8] sm:$0xff]
      %v176 = vld [vmem:[%s166 + $0x10] sm:$0xff]
      %v177 = vld [vmem:[%s166 + $0x18] sm:$0xff]
      %v178 = vld [vmem:[%s166 + $0x20] sm:$0xff]
      %v179 = vld [vmem:[%s166 + $0x28] sm:$0xff]
      %v180 = vld [vmem:[%s166 + $0x30] sm:$0xff]
      %v181 = vld [vmem:[%s166 + $0x38] sm:$0xff]
      %v182 = vld [vmem:[%s166 + $0x40] sm:$0xff]
      %v183 = vld [vmem:[%s166 + $0x48] sm:$0xff]
      %v184 = vld [vmem:[%s166 + $0x50] sm:$0xff]
      %v185 = vld [vmem:[%s166 + $0x58] sm:$0xff]
      %v186 = vld [vmem:[%s166 + $0x60] sm:$0xff]
      %v187 = vld [vmem:[%s166 + $0x68] sm:$0xff]
      %v188 = vld [vmem:[%s166 + $0x70] sm:$0xff]
      %v189 = vld [vmem:[%s166 + $0x78] sm:$0xff]
      %v190 = vld [vmem:[%s166 + $0x80] sm:$0xff]
      %v191 = vld [vmem:[%s166 + $0x88] sm:$0xff]
      %v192 = vld [vmem:[%s166 + $0x90] sm:$0xff]
      %v193 = vld [vmem:[%s166 + $0x98] sm:$0xff]
      %v194 = vld [vmem:[%s166 + $0xa0] sm:$0xff]
      %v195 = vld [vmem:[%s166 + $0xa8] sm:$0xff]
      %v196 = vld [vmem:[%s166 + $0xb0] sm:$0xff]
      %v197 = vld [vmem:[%s166 + $0xb8] sm:$0xff]
      %v198 = vld [vmem:[%s166 + $0xc0] sm:$0xff]
      %v199 = vld [vmem:[%s166 + $0xc8] sm:$0xff]
      %v200 = vld [vmem:[%s166 + $0xd0] sm:$0xff]
      %v201 = vld [vmem:[%s166 + $0xd8] sm:$0xff]
      %v202 = vld [vmem:[%s166 + $0xe0] sm:$0xff]
      %v203 = vld [vmem:[%s166 + $0xe8] sm:$0xff]
      %v204 = vld [vmem:[%s166 + $0xf0] sm:$0xff]
      %v205 = vld [vmem:[%s166 + $0xf8] sm:$0xff]
      %v206 = vld [vmem:[%s1] sm:$0x1]
      %v208 = vlaneseq
      %v209 = vshrl.u32 %v208, 7
      %v210 = vsub.s32 0, %v209
      %v211 = vrot.slane %v206, %v210
      %v213 = vmul.f32 %v174, %v211
      %v214 = vmul.f32 %v175, %v211
      %v215 = vmul.f32 %v176, %v211
      %v216 = vmul.f32 %v177, %v211
      %v217 = vmul.f32 %v178, %v211
      %v218 = vmul.f32 %v179, %v211
      %v219 = vmul.f32 %v180, %v211
      %v220 = vmul.f32 %v181, %v211
      %v221 = vmul.f32 %v182, %v211
      %v222 = vmul.f32 %v183, %v211
      %v223 = vmul.f32 %v184, %v211
      %v224 = vmul.f32 %v185, %v211
      %v225 = vmul.f32 %v186, %v211
      %v226 = vmul.f32 %v187, %v211
      %v227 = vmul.f32 %v188, %v211
      %v228 = vmul.f32 %v189, %v211
      %v229 = vmul.f32 %v190, %v211
      %v230 = vmul.f32 %v191, %v211
      %v231 = vmul.f32 %v192, %v211
      %v232 = vmul.f32 %v193, %v211
      %v233 = vmul.f32 %v194, %v211
      %v234 = vmul.f32 %v195, %v211
      %v235 = vmul.f32 %v196, %v211
      %v236 = vmul.f32 %v197, %v211
      %v237 = vmul.f32 %v198, %v211
      %v238 = vmul.f32 %v199, %v211
      %v239 = vmul.f32 %v200, %v211
      %v240 = vmul.f32 %v201, %v211
      %v241 = vmul.f32 %v202, %v211
      %v242 = vmul.f32 %v203, %v211
      %v243 = vmul.f32 %v204, %v211
      %v244 = vmul.f32 %v205, %v211
      %v245 = vld [vmem:[%s2] sm:$0x1]
      %v247 = vlaneseq
      %v248 = vshrl.u32 %v247, 7
      %v249 = vsub.s32 0, %v248
      %v250 = vrot.slane %v245, %v249
      %v252 = vadd.f32 %v213, %v250
      %v253 = vadd.f32 %v214, %v250
      %v254 = vadd.f32 %v215, %v250
      %v255 = vadd.f32 %v216, %v250
      %v256 = vadd.f32 %v217, %v250
      %v257 = vadd.f32 %v218, %v250
      %v258 = vadd.f32 %v219, %v250
      %v259 = vadd.f32 %v220, %v250
      %v260 = vadd.f32 %v221, %v250
      %v261 = vadd.f32 %v222, %v250
      %v262 = vadd.f32 %v223, %v250
      %v263 = vadd.f32 %v224, %v250
      %v264 = vadd.f32 %v225, %v250
      %v265 = vadd.f32 %v226, %v250
      %v266 = vadd.f32 %v227, %v250
      %v267 = vadd.f32 %v228, %v250
      %v268 = vadd.f32 %v229, %v250
      %v269 = vadd.f32 %v230, %v250
      %v270 = vadd.f32 %v231, %v250
      %v271 = vadd.f32 %v232, %v250
      %v272 = vadd.f32 %v233, %v250
      %v273 = vadd.f32 %v234, %v250
      %v274 = vadd.f32 %v235, %v250
      %v275 = vadd.f32 %v236, %v250
      %v276 = vadd.f32 %v237, %v250
      %v277 = vadd.f32 %v238, %v250
      %v278 = vadd.f32 %v239, %v250
      %v279 = vadd.f32 %v240, %v250
      %v280 = vadd.f32 %v241, %v250
      %v281 = vadd.f32 %v242, %v250
      %v282 = vadd.f32 %v243, %v250
      %v283 = vadd.f32 %v244, %v250
      %v284 = vmax.f32 %v252, 0.0
      %v285 = vmax.f32 %v253, 0.0
      %v286 = vmax.f32 %v254, 0.0
      %v287 = vmax.f32 %v255, 0.0
      %v288 = vmax.f32 %v256, 0.0
      %v289 = vmax.f32 %v257, 0.0
      %v290 = vmax.f32 %v258, 0.0
      %v291 = vmax.f32 %v259, 0.0
      %v292 = vmax.f32 %v260, 0.0
      %v293 = vmax.f32 %v261, 0.0
      %v294 = vmax.f32 %v262, 0.0
      %v295 = vmax.f32 %v263, 0.0
      %v296 = vmax.f32 %v264, 0.0
      %v297 = vmax.f32 %v265, 0.0
      %v298 = vmax.f32 %v266, 0.0
      %v299 = vmax.f32 %v267, 0.0
      %v300 = vmax.f32 %v268, 0.0
      %v301 = vmax.f32 %v269, 0.0
      %v302 = vmax.f32 %v270, 0.0
      %v303 = vmax.f32 %v271, 0.0
      %v304 = vmax.f32 %v272, 0.0
      %v305 = vmax.f32 %v273, 0.0
      %v306 = vmax.f32 %v274, 0.0
      %v307 = vmax.f32 %v275, 0.0
      %v308 = vmax.f32 %v276, 0.0
      %v309 = vmax.f32 %v277, 0.0
      %v310 = vmax.f32 %v278, 0.0
      %v311 = vmax.f32 %v279, 0.0
      %v312 = vmax.f32 %v280, 0.0
      %v313 = vmax.f32 %v281, 0.0
      %v314 = vmax.f32 %v282, 0.0
      %v315 = vmax.f32 %v283, 0.0
      %v316 = vpack.c.bf16 %v285, %v284
      %v317 = vpack.c.bf16 %v287, %v286
      %v318 = vpack.c.bf16 %v289, %v288
      %v319 = vpack.c.bf16 %v291, %v290
      %v320 = vpack.c.bf16 %v293, %v292
      %v321 = vpack.c.bf16 %v295, %v294
      %v322 = vpack.c.bf16 %v297, %v296
      %v323 = vpack.c.bf16 %v299, %v298
      %v324 = vpack.c.bf16 %v301, %v300
      %v325 = vpack.c.bf16 %v303, %v302
      %v326 = vpack.c.bf16 %v305, %v304
      %v327 = vpack.c.bf16 %v307, %v306
      %v328 = vpack.c.bf16 %v309, %v308
      %v329 = vpack.c.bf16 %v311, %v310
      %v330 = vpack.c.bf16 %v313, %v312
      %v331 = vpack.c.bf16 %v315, %v314
      %v348 = vunpack.c.l.b16 %v316
      %v349 = vunpack.c.h.b16 %v316
      %v350 = vunpack.c.l.b16 %v317
      %v351 = vunpack.c.h.b16 %v317
      %v352 = vunpack.c.l.b16 %v318
      %v353 = vunpack.c.h.b16 %v318
      %v354 = vunpack.c.l.b16 %v319
      %v355 = vunpack.c.h.b16 %v319
      %v356 = vunpack.c.l.b16 %v320
      %v357 = vunpack.c.h.b16 %v320
      %v358 = vunpack.c.l.b16 %v321
      %v359 = vunpack.c.h.b16 %v321
      %v360 = vunpack.c.l.b16 %v322
      %v361 = vunpack.c.h.b16 %v322
      %v362 = vunpack.c.l.b16 %v323
      %v363 = vunpack.c.h.b16 %v323
      %v364 = vunpack.c.l.b16 %v324
      %v365 = vunpack.c.h.b16 %v324
      %v366 = vunpack.c.l.b16 %v325
      %v367 = vunpack.c.h.b16 %v325
      %v368 = vunpack.c.l.b16 %v326
      %v369 = vunpack.c.h.b16 %v326
      %v370 = vunpack.c.l.b16 %v327
      %v371 = vunpack.c.h.b16 %v327
      %v372 = vunpack.c.l.b16 %v328
      %v373 = vunpack.c.h.b16 %v328
      %v374 = vunpack.c.l.b16 %v329
      %v375 = vunpack.c.h.b16 %v329
      %v376 = vunpack.c.l.b16 %v330
      %v377 = vunpack.c.h.b16 %v330
      %v378 = vunpack.c.l.b16 %v331
      %v379 = vunpack.c.h.b16 %v331
      %v380 = vpack.c.b16 %v348, %v348
      %v381 = vpack.c.b16 %v349, %v349
      %v382 = vpack.c.b16 %v350, %v350
      %v383 = vpack.c.b16 %v351, %v351
      %v384 = vpack.c.b16 %v352, %v352
      %v385 = vpack.c.b16 %v353, %v353
      %v386 = vpack.c.b16 %v354, %v354
      %v387 = vpack.c.b16 %v355, %v355
      %v388 = vpack.c.b16 %v356, %v356
      %v389 = vpack.c.b16 %v357, %v357
      %v390 = vpack.c.b16 %v358, %v358
      %v391 = vpack.c.b16 %v359, %v359
      %v392 = vpack.c.b16 %v360, %v360
      %v393 = vpack.c.b16 %v361, %v361
      %v394 = vpack.c.b16 %v362, %v362
      %v395 = vpack.c.b16 %v363, %v363
      %v396 = vpack.c.b16 %v364, %v364
      %v397 = vpack.c.b16 %v365, %v365
      %v398 = vpack.c.b16 %v366, %v366
      %v399 = vpack.c.b16 %v367, %v367
      %v400 = vpack.c.b16 %v368, %v368
      %v401 = vpack.c.b16 %v369, %v369
      %v402 = vpack.c.b16 %v370, %v370
      %v403 = vpack.c.b16 %v371, %v371
      %v404 = vpack.c.b16 %v372, %v372
      %v405 = vpack.c.b16 %v373, %v373
      %v406 = vpack.c.b16 %v374, %v374
      %v407 = vpack.c.b16 %v375, %v375
      %v408 = vpack.c.b16 %v376, %v376
      %v409 = vpack.c.b16 %v377, %v377
      %v410 = vpack.c.b16 %v378, %v378
      %v411 = vpack.c.b16 %v379, %v379
      %444 = vst [vmem:[%s172] sm:$0xf] %v380
      %445 = vst [vmem:[%s172 + $0x4] sm:$0xf] %v381
      %446 = vst [vmem:[%s172 + $0x8] sm:$0xf] %v382
      %447 = vst [vmem:[%s172 + $0xc] sm:$0xf] %v383
      %448 = vst [vmem:[%s172 + $0x10] sm:$0xf] %v384
      %449 = vst [vmem:[%s172 + $0x14] sm:$0xf] %v385
      %450 = vst [vmem:[%s172 + $0x18] sm:$0xf] %v386
      %451 = vst [vmem:[%s172 + $0x1c] sm:$0xf] %v387
      %452 = vst [vmem:[%s172 + $0x20] sm:$0xf] %v388
      %453 = vst [vmem:[%s172 + $0x24] sm:$0xf] %v389
      %454 = vst [vmem:[%s172 + $0x28] sm:$0xf] %v390
      %455 = vst [vmem:[%s172 + $0x2c] sm:$0xf] %v391
      %456 = vst [vmem:[%s172 + $0x30] sm:$0xf] %v392
      %457 = vst [vmem:[%s172 + $0x34] sm:$0xf] %v393
      %458 = vst [vmem:[%s172 + $0x38] sm:$0xf] %v394
      %459 = vst [vmem:[%s172 + $0x3c] sm:$0xf] %v395
      %460 = vst [vmem:[%s172 + $0x40] sm:$0xf] %v396
      %461 = vst [vmem:[%s172 + $0x44] sm:$0xf] %v397
      %462 = vst [vmem:[%s172 + $0x48] sm:$0xf] %v398
      %463 = vst [vmem:[%s172 + $0x4c] sm:$0xf] %v399
      %464 = vst [vmem:[%s172 + $0x50] sm:$0xf] %v400
      %465 = vst [vmem:[%s172 + $0x54] sm:$0xf] %v401
      %466 = vst [vmem:[%s172 + $0x58] sm:$0xf] %v402
      %467 = vst [vmem:[%s172 + $0x5c] sm:$0xf] %v403
      %468 = vst [vmem:[%s172 + $0x60] sm:$0xf] %v404
      %469 = vst [vmem:[%s172 + $0x64] sm:$0xf] %v405
      %470 = vst [vmem:[%s172 + $0x68] sm:$0xf] %v406
      %471 = vst [vmem:[%s172 + $0x6c] sm:$0xf] %v407
      %472 = vst [vmem:[%s172 + $0x70] sm:$0xf] %v408
      %473 = vst [vmem:[%s172 + $0x74] sm:$0xf] %v409
      %474 = vst [vmem:[%s172 + $0x78] sm:$0xf] %v410
      %475 = vst [vmem:[%s172 + $0x7c] sm:$0xf] %v411
      %s476 = smul.u32 32, %s14
      %p477 = scmp.lt.s32.totalorder %s476, 63
      %s478 = scalar_select %p477, %s476, 63
      %s479 = smul.addr %s478, 4
      %s480 = scalar_lea.vmem %s3, %s479
      // Predicated region
      $region33: #{basic_block_forward.5} parent=31 // pred_check
        %p481 = pneg %p100
      $region34: #{basic_block_forward.5} parent=31 // pred_check_branch
        %483 = sbr.rel (%p481) target = $region36
      $region35: #{basic_block_forward.5} parent=31 // pred_region
        %s484 = smul.u32 32, %s14
      $region36: #{basic_block_forward.5} parent=31 // pred_fallthru
        _
    $region32: #{basic_block_forward.5} parent=5 // pred_fallthru
      _
    %p485 = scmp.le.s32.totalorder 2, %s9
    // Predicated region
    $region37: #{basic_block_forward.5} parent=5 // pred_check
      %p486 = pneg %p485
    $region38: #{basic_block_forward.5} parent=5 // pred_check_branch
      %488 = sbr.rel (%p486) target = $region40
    $region39: #{basic_block_forward.5} parent=5 // pred_region
      %s489 = ssub.s32 %s9, 2
      // Predicated region
      $region41: #{basic_block_forward.5} parent=39 // pred_check
        %p490 = pneg %p106
      $region42: #{basic_block_forward.5} parent=39 // pred_check_branch
        %492 = sbr.rel (%p490) target = $region44
      $region43: #{basic_block_forward.5} parent=39 // pred_region
        %s493 = smul.u32 32, %s15
        %p494 = scmp.lt.s32.totalorder %s493, 63
        %s495 = scalar_select %p494, %s493, 63
        %s496 = smul.addr %s495, 4
        %s497 = scalar_lea.vmem %s3, %s496
      $region44: #{basic_block_forward.5} parent=39 // pred_fallthru
        _
    $region40: #{basic_block_forward.5} parent=5 // pred_fallthru
      _
  $region6: #{basic_block_forward.5} parent=0 // loop_footer
    %s13 = sadd.s32 1, %s9
  $region7: #{basic_block_forward.5} parent=0 // loop_footer_branch
    %8 = sbr.rel target = $region3
  $region8: #{basic_block_forward.5} parent=0 // loop_exit
    _

// kernel: basic_block_forward.7
$region0: #{basic_block_forward.7}
  #allocation0 [shape = 'u32[]', space=smem, size = 0x4, offset = 0x4, fixed_abs, tag = 'smem constant byte address 0x4 - core index']
  #allocation1 [shape = 'u32[144,128]{1,0:T(1,128)}', space=vmem, size = 0x12000, scoped, tag = 'internal scratch']
  %s0 = inlined_call_operand.vmem [shape: f32[512,128], index: 0, kind: input, shape index: {}]
  %s1 = inlined_call_operand.vmem [shape: f32[512,128], index: 1, kind: input, shape index: {}]
  %s2 = inlined_call_operand.vmem [shape: f32[1,128], index: 2, kind: input, shape index: {}]
  %s3 = inlined_call_operand.vmem [shape: f32[1,128], index: 3, kind: input, shape index: {}]
  %s4 = inlined_call_operand.vmem [shape: f32[512,128], index: 4, kind: output, shape index: {}]
  %s5 = sld [smem:[#allocation0]]
  $region49: #{basic_block_forward.7} parent=0
    _
  %s7 = ssub.s32 1, %s5
  %s8 = scalar_select 0, %s7, %s5
  loop: start=0, step=1, limit=4
  $region2: #{basic_block_forward.7} parent=0 // loop_pre_header
    _
  $region3: #{basic_block_forward.7} parent=0 // loop_header
    %s10 = sphi 0, %s14
    %p11 = scmp.ge.s32.totalorder %s10, 4
    %s20 = sphi 0, %s22
    %s23 = sphi 0, %s20
    %s24 = sphi 0, %s23
    %s40 = sphi 0, %s24
    %s46 = sphi 0, %s48
    %s49 = sphi 0, %s46
    %s50 = sphi 0, %s49
    %s66 = sphi 0, %s50
    %s70 = sphi 0, %s70
    %s72 = sphi 0, %s70
    %s73 = sphi 0, %s72
    %s87 = sphi 0, %s73
    %s91 = sphi 0, %s91
    %s93 = sphi 0, %s91
    %s94 = sphi 0, %s93
    %s108 = sphi 0, %s94
    %s114 = sphi 0, %s116
    %s117 = sphi 0, %s114
    %s118 = sphi 0, %s117
    %s134 = sphi 0, %s118
  $region4: #{basic_block_forward.7} parent=0 // loop_header_branch
    %13 = sbr.rel (%p11) target = $region8
  $region5: #{basic_block_forward.7} parent=0 // loop_body
    %s15 = ssub.s32 %s10, 1
    %s16 = ssub.s32 %s10, 2
    %s17 = sadd.s32 %s10, 1
    %s18 = ssub.s32 %s10, %s17
    %p19 = scmp.eq.s32.totalorder %s18, 0
    %s21 = sadd.s32 %s20, 1
    %s22 = scalar_select %p19, %s20, %s21
    %p25 = pneg %p19
    %p26 = scmp.eq.s32.totalorder %s10, 1
    %p27 = por %p25, %p26
    %p28 = scmp.ne.s32.totalorder %s20, %s23
    %p29 = scmp.eq.s32.totalorder %s10, 0
    %p30 = por %p28, %p29
    %p31 = scmp.ne.s32.totalorder %s20, %s23
    %p32 = scmp.eq.s32.totalorder %s15, 1
    %p33 = por %p31, %p32
    %p34 = scmp.ne.s32.totalorder %s23, %s24
    %p35 = scmp.eq.s32.totalorder %s15, 0
    %p36 = por %p34, %p35
    %p37 = scmp.ne.s32.totalorder %s23, %s24
    %p38 = scmp.eq.s32.totalorder %s16, 1
    %p39 = por %p37, %p38
    %p41 = scmp.ne.s32.totalorder %s24, %s40
    %p42 = scmp.eq.s32.totalorder %s16, 0
    %p43 = por %p41, %p42
    %s44 = ssub.s32 %s10, %s17
    %p45 = scmp.eq.s32.totalorder %s44, 0
    %s47 = sadd.s32 %s46, 1
    %s48 = scalar_select %p45, %s46, %s47
    %p51 = pneg %p45
    %p52 = scmp.eq.s32.totalorder %s10, 1
    %p53 = por %p51, %p52
    %p54 = scmp.ne.s32.totalorder %s46, %s49
    %p55 = scmp.eq.s32.totalorder %s10, 0
    %p56 = por %p54, %p55
    %p57 = scmp.ne.s32.totalorder %s46, %s49
    %p58 = scmp.eq.s32.totalorder %s15, 1
    %p59 = por %p57, %p58
    %p60 = scmp.ne.s32.totalorder %s49, %s50
    %p61 = scmp.eq.s32.totalorder %s15, 0
    %p62 = por %p60, %p61
    %p63 = scmp.ne.s32.totalorder %s49, %s50
    %p64 = scmp.eq.s32.totalorder %s16, 1
    %p65 = por %p63, %p64
    %p67 = scmp.ne.s32.totalorder %s50, %s66
    %p68 = scmp.eq.s32.totalorder %s16, 0
    %p69 = por %p67, %p68
    %s71 = sadd.s32 %s70, 1
    %p74 = scmp.eq.s32.totalorder %s10, 1
    %p75 = scmp.ne.s32.totalorder %s70, %s72
    %p76 = scmp.eq.s32.totalorder %s10, 0
    %p77 = por %p75, %p76
    %p78 = scmp.ne.s32.totalorder %s70, %s72
    %p79 = scmp.eq.s32.totalorder %s15, 1
    %p80 = por %p78, %p79
    %p81 = scmp.ne.s32.totalorder %s72, %s73
    %p82 = scmp.eq.s32.totalorder %s15, 0
    %p83 = por %p81, %p82
    %p84 = scmp.ne.s32.totalorder %s72, %s73
    %p85 = scmp.eq.s32.totalorder %s16, 1
    %p86 = por %p84, %p85
    %p88 = scmp.ne.s32.totalorder %s73, %s87
    %p89 = scmp.eq.s32.totalorder %s16, 0
    %p90 = por %p88, %p89
    %s92 = sadd.s32 %s91, 1
    %p95 = scmp.eq.s32.totalorder %s10, 1
    %p96 = scmp.ne.s32.totalorder %s91, %s93
    %p97 = scmp.eq.s32.totalorder %s10, 0
    %p98 = por %p96, %p97
    %p99 = scmp.ne.s32.totalorder %s91, %s93
    %p100 = scmp.eq.s32.totalorder %s15, 1
    %p101 = por %p99, %p100
    %p102 = scmp.ne.s32.totalorder %s93, %s94
    %p103 = scmp.eq.s32.totalorder %s15, 0
    %p104 = por %p102, %p103
    %p105 = scmp.ne.s32.totalorder %s93, %s94
    %p106 = scmp.eq.s32.totalorder %s16, 1
    %p107 = por %p105, %p106
    %p109 = scmp.ne.s32.totalorder %s94, %s108
    %p110 = scmp.eq.s32.totalorder %s16, 0
    %p111 = por %p109, %p110
    %s112 = ssub.s32 %s10, %s17
    %p113 = scmp.eq.s32.totalorder %s112, 0
    %s115 = sadd.s32 %s114, 1
    %s116 = scalar_select %p113, %s114, %s115
    %p119 = pneg %p113
    %p120 = scmp.eq.s32.totalorder %s10, 1
    %p121 = por %p119, %p120
    %p122 = scmp.ne.s32.totalorder %s114, %s117
    %p123 = scmp.eq.s32.totalorder %s10, 0
    %p124 = por %p122, %p123
    %p125 = scmp.ne.s32.totalorder %s114, %s117
    %p126 = scmp.eq.s32.totalorder %s15, 1
    %p127 = por %p125, %p126
    %p128 = scmp.ne.s32.totalorder %s117, %s118
    %p129 = scmp.eq.s32.totalorder %s15, 0
    %p130 = por %p128, %p129
    %p131 = scmp.ne.s32.totalorder %s117, %s118
    %p132 = scmp.eq.s32.totalorder %s16, 1
    %p133 = por %p131, %p132
    %p135 = scmp.ne.s32.totalorder %s118, %s134
    %p136 = scmp.eq.s32.totalorder %s16, 0
    %p137 = por %p135, %p136
    %p138 = scmp.le.s32.totalorder 1, %s10
    %p139 = scmp.lt.s32.totalorder %s10, 3
    %p140 = pnand %p138, %p139
    %p141 = pneg %p140
    // Predicated region
    $region9: #{basic_block_forward.7} parent=5 // pred_check
      _
    $region10: #{basic_block_forward.7} parent=5 // pred_check_branch
      %143 = sbr.rel (%p140) target = $region12
    $region11: #{basic_block_forward.7} parent=5 // pred_region
      %s144 = ssub.s32 %s10, 1
      // Predicated region
      $region13: #{basic_block_forward.7} parent=11 // pred_check
        %p145 = pneg %p83
      $region14: #{basic_block_forward.7} parent=11 // pred_check_branch
        %147 = sbr.rel (%p145) target = $region16
      $region15: #{basic_block_forward.7} parent=11 // pred_region
        _
      $region16: #{basic_block_forward.7} parent=11 // pred_fallthru
        _
      // Predicated region
      $region17: #{basic_block_forward.7} parent=11 // pred_check
        %p148 = pneg %p104
      $region18: #{basic_block_forward.7} parent=11 // pred_check_branch
        %150 = sbr.rel (%p148) target = $region20
      $region19: #{basic_block_forward.7} parent=11 // pred_region
        _
      $region20: #{basic_block_forward.7} parent=11 // pred_fallthru
        _
    $region12: #{basic_block_forward.7} parent=5 // pred_fallthru
      _
    %p151 = scmp.lt.s32.totalorder %s10, 2
    // Predicated region
    $region21: #{basic_block_forward.7} parent=5 // pred_check
      %p152 = pneg %p151
    $region22: #{basic_block_forward.7} parent=5 // pred_check_branch
      %154 = sbr.rel (%p152) target = $region24
    $region23: #{basic_block_forward.7} parent=5 // pred_region
      // Predicated region
      $region25: #{basic_block_forward.7} parent=23 // pred_check
        %p155 = pneg %p30
      $region26: #{basic_block_forward.7} parent=23 // pred_check_branch
        %157 = sbr.rel (%p155) target = $region28
      $region27: #{basic_block_forward.7} parent=23 // pred_region
        %s158 = smul.u32 32, %s10
        %p159 = scmp.lt.s32.totalorder %s158, 63
        %s160 = scalar_select %p159, %s158, 63
        %s161 = smul.addr %s160, 8
        %s162 = scalar_lea.vmem %s0, %s161
        %s163 = smul.u32 32, %s10
      $region28: #{basic_block_forward.7} parent=23 // pred_fallthru
        _
      // Predicated region
      $region29: #{basic_block_forward.7} parent=23 // pred_check
        %p164 = pneg %p56
      $region30: #{basic_block_forward.7} parent=23 // pred_check_branch
        %166 = sbr.rel (%p164) target = $region32
      $region31: #{basic_block_forward.7} parent=23 // pred_region
        %s167 = smul.u32 32, %s10
        %p168 = scmp.lt.s32.totalorder %s167, 63
        %s169 = scalar_select %p168, %s167, 63
        %s170 = smul.addr %s169, 8
        %s171 = scalar_lea.vmem %s1, %s170
        %s172 = smul.u32 32, %s10
      $region32: #{basic_block_forward.7} parent=23 // pred_fallthru
        _
    $region24: #{basic_block_forward.7} parent=5 // pred_fallthru
      _
    %p173 = scmp.le.s32.totalorder 1, %s10
    %p174 = scmp.lt.s32.totalorder %s10, 3
    %p175 = pnand %p173, %p174
    %p176 = pneg %p175
    // Predicated region
    $region33: #{basic_block_forward.7} parent=5 // pred_check
      _
    $region34: #{basic_block_forward.7} parent=5 // pred_check_branch
      %178 = sbr.rel (%p175) target = $region36
    $region35: #{basic_block_forward.7} parent=5 // pred_region
      %s179 = ssub.s32 %s10, 1
      %s180 = smul.u32 32, %s15
      %p181 = scmp.lt.s32.totalorder %s180, 63
      %s182 = scalar_select %p181, %s180, 63
      %s183 = smul.addr %s182, 8
      %s184 = scalar_lea.vmem %s0, %s183
      %p185 = pneg %p36
      %p186 = pneg %p33
      %s187 = smul.u32 32, %s15
      %p188 = scmp.lt.s32.totalorder %s187, 63
      %s189 = scalar_select %p188, %s187, 63
      %s190 = smul.addr %s189, 8
      %s191 = scalar_lea.vmem %s1, %s190
      %p192 = pneg %p62
      %p193 = pneg %p59
      %p194 = pneg %p83
      %p195 = pneg %p80
      %p196 = pneg %p104
      %p197 = pneg %p101
      %p198 = pneg %p130
      %p199 = pneg %p127
      %s200 = smul.u32 32, %s15
      %p201 = scmp.lt.s32.totalorder %s200, 63
      %s202 = scalar_select %p201, %s200, 63
      %s203 = smul.addr %s202, 8
      %s204 = scalar_lea.vmem %s4, %s203
      %s205 = smul.u32 32, %s15
      %p206 = scmp.lt.s32.totalorder %s205, 63
      %s207 = scalar_select %p206, %s205, 63
      %s208 = smul.addr %s207, 8
      %s209 = scalar_lea.vmem %s0, %s208
      %s210 = smul.u32 32, %s15
      %s211 = smul.u32 32, %s15
      %p212 = scmp.lt.s32.totalorder %s211, 63
      %s213 = scalar_select %p212, %s211, 63
      %s214 = smul.addr %s213, 8
      %s215 = scalar_lea.vmem %s1, %s214
      %s216 = smul.u32 32, %s15
      %s217 = smul.u32 32, %s15
      %p218 = scmp.lt.s32.totalorder %s217, 63
      %s219 = scalar_select %p218, %s217, 63
      %s220 = smul.addr %s219, 8
      %s221 = scalar_lea.vmem %s4, %s220
      %s222 = smul.u32 32, %s15
      %v223 = vld [vmem:[%s209] sm:$0xff]
      %v224 = vld [vmem:[%s209 + $0x8] sm:$0xff]
      %v225 = vld [vmem:[%s209 + $0x10] sm:$0xff]
      %v226 = vld [vmem:[%s209 + $0x18] sm:$0xff]
      %v227 = vld [vmem:[%s209 + $0x20] sm:$0xff]
      %v228 = vld [vmem:[%s209 + $0x28] sm:$0xff]
      %v229 = vld [vmem:[%s209 + $0x30] sm:$0xff]
      %v230 = vld [vmem:[%s209 + $0x38] sm:$0xff]
      %v231 = vld [vmem:[%s209 + $0x40] sm:$0xff]
      %v232 = vld [vmem:[%s209 + $0x48] sm:$0xff]
      %v233 = vld [vmem:[%s209 + $0x50] sm:$0xff]
      %v234 = vld [vmem:[%s209 + $0x58] sm:$0xff]
      %v235 = vld [vmem:[%s209 + $0x60] sm:$0xff]
      %v236 = vld [vmem:[%s209 + $0x68] sm:$0xff]
      %v237 = vld [vmem:[%s209 + $0x70] sm:$0xff]
      %v238 = vld [vmem:[%s209 + $0x78] sm:$0xff]
      %v239 = vld [vmem:[%s209 + $0x80] sm:$0xff]
      %v240 = vld [vmem:[%s209 + $0x88] sm:$0xff]
      %v241 = vld [vmem:[%s209 + $0x90] sm:$0xff]
      %v242 = vld [vmem:[%s209 + $0x98] sm:$0xff]
      %v243 = vld [vmem:[%s209 + $0xa0] sm:$0xff]
      %v244 = vld [vmem:[%s209 + $0xa8] sm:$0xff]
      %v245 = vld [vmem:[%s209 + $0xb0] sm:$0xff]
      %v246 = vld [vmem:[%s209 + $0xb8] sm:$0xff]
      %v247 = vld [vmem:[%s209 + $0xc0] sm:$0xff]
      %v248 = vld [vmem:[%s209 + $0xc8] sm:$0xff]
      %v249 = vld [vmem:[%s209 + $0xd0] sm:$0xff]
      %v250 = vld [vmem:[%s209 + $0xd8] sm:$0xff]
      %v251 = vld [vmem:[%s209 + $0xe0] sm:$0xff]
      %v252 = vld [vmem:[%s209 + $0xe8] sm:$0xff]
      %v253 = vld [vmem:[%s209 + $0xf0] sm:$0xff]
      %v254 = vld [vmem:[%s209 + $0xf8] sm:$0xff]
      %v255 = vld [vmem:[%s2] sm:$0x1]
      %v257 = vlaneseq
      %v258 = vshrl.u32 %v257, 7
      %v259 = vsub.s32 0, %v258
      %v260 = vrot.slane %v255, %v259
      %v262 = vmul.f32 %v223, %v260
      %v263 = vmul.f32 %v224, %v260
      %v264 = vmul.f32 %v225, %v260
      %v265 = vmul.f32 %v226, %v260
      %v266 = vmul.f32 %v227, %v260
      %v267 = vmul.f32 %v228, %v260
      %v268 = vmul.f32 %v229, %v260
      %v269 = vmul.f32 %v230, %v260
      %v270 = vmul.f32 %v231, %v260
      %v271 = vmul.f32 %v232, %v260
      %v272 = vmul.f32 %v233, %v260
      %v273 = vmul.f32 %v234, %v260
      %v274 = vmul.f32 %v235, %v260
      %v275 = vmul.f32 %v236, %v260
      %v276 = vmul.f32 %v237, %v260
      %v277 = vmul.f32 %v238, %v260
      %v278 = vmul.f32 %v239, %v260
      %v279 = vmul.f32 %v240, %v260
      %v280 = vmul.f32 %v241, %v260
      %v281 = vmul.f32 %v242, %v260
      %v282 = vmul.f32 %v243, %v260
      %v283 = vmul.f32 %v244, %v260
      %v284 = vmul.f32 %v245, %v260
      %v285 = vmul.f32 %v246, %v260
      %v286 = vmul.f32 %v247, %v260
      %v287 = vmul.f32 %v248, %v260
      %v288 = vmul.f32 %v249, %v260
      %v289 = vmul.f32 %v250, %v260
      %v290 = vmul.f32 %v251, %v260
      %v291 = vmul.f32 %v252, %v260
      %v292 = vmul.f32 %v253, %v260
      %v293 = vmul.f32 %v254, %v260
      %v294 = vld [vmem:[%s3] sm:$0x1]
      %v296 = vlaneseq
      %v297 = vshrl.u32 %v296, 7
      %v298 = vsub.s32 0, %v297
      %v299 = vrot.slane %v294, %v298
      %v301 = vadd.f32 %v262, %v299
      %v302 = vadd.f32 %v263, %v299
      %v303 = vadd.f32 %v264, %v299
      %v304 = vadd.f32 %v265, %v299
      %v305 = vadd.f32 %v266, %v299
      %v306 = vadd.f32 %v267, %v299
      %v307 = vadd.f32 %v268, %v299
      %v308 = vadd.f32 %v269, %v299
      %v309 = vadd.f32 %v270, %v299
      %v310 = vadd.f32 %v271, %v299
      %v311 = vadd.f32 %v272, %v299
      %v312 = vadd.f32 %v273, %v299
      %v313 = vadd.f32 %v274, %v299
      %v314 = vadd.f32 %v275, %v299
      %v315 = vadd.f32 %v276, %v299
      %v316 = vadd.f32 %v277, %v299
      %v317 = vadd.f32 %v278, %v299
      %v318 = vadd.f32 %v279, %v299
      %v319 = vadd.f32 %v280, %v299
      %v320 = vadd.f32 %v281, %v299
      %v321 = vadd.f32 %v282, %v299
      %v322 = vadd.f32 %v283, %v299
      %v323 = vadd.f32 %v284, %v299
      %v324 = vadd.f32 %v285, %v299
      %v325 = vadd.f32 %v286, %v299
      %v326 = vadd.f32 %v287, %v299
      %v327 = vadd.f32 %v288, %v299
      %v328 = vadd.f32 %v289, %v299
      %v329 = vadd.f32 %v290, %v299
      %v330 = vadd.f32 %v291, %v299
      %v331 = vadd.f32 %v292, %v299
      %v332 = vadd.f32 %v293, %v299
      %v333 = vld [vmem:[%s215] sm:$0xff]
      %v334 = vld [vmem:[%s215 + $0x8] sm:$0xff]
      %v335 = vld [vmem:[%s215 + $0x10] sm:$0xff]
      %v336 = vld [vmem:[%s215 + $0x18] sm:$0xff]
      %v337 = vld [vmem:[%s215 + $0x20] sm:$0xff]
      %v338 = vld [vmem:[%s215 + $0x28] sm:$0xff]
      %v339 = vld [vmem:[%s215 + $0x30] sm:$0xff]
      %v340 = vld [vmem:[%s215 + $0x38] sm:$0xff]
      %v341 = vld [vmem:[%s215 + $0x40] sm:$0xff]
      %v342 = vld [vmem:[%s215 + $0x48] sm:$0xff]
      %v343 = vld [vmem:[%s215 + $0x50] sm:$0xff]
      %v344 = vld [vmem:[%s215 + $0x58] sm:$0xff]
      %v345 = vld [vmem:[%s215 + $0x60] sm:$0xff]
      %v346 = vld [vmem:[%s215 + $0x68] sm:$0xff]
      %v347 = vld [vmem:[%s215 + $0x70] sm:$0xff]
      %v348 = vld [vmem:[%s215 + $0x78] sm:$0xff]
      %v349 = vld [vmem:[%s215 + $0x80] sm:$0xff]
      %v350 = vld [vmem:[%s215 + $0x88] sm:$0xff]
      %v351 = vld [vmem:[%s215 + $0x90] sm:$0xff]
      %v352 = vld [vmem:[%s215 + $0x98] sm:$0xff]
      %v353 = vld [vmem:[%s215 + $0xa0] sm:$0xff]
      %v354 = vld [vmem:[%s215 + $0xa8] sm:$0xff]
      %v355 = vld [vmem:[%s215 + $0xb0] sm:$0xff]
      %v356 = vld [vmem:[%s215 + $0xb8] sm:$0xff]
      %v357 = vld [vmem:[%s215 + $0xc0] sm:$0xff]
      %v358 = vld [vmem:[%s215 + $0xc8] sm:$0xff]
      %v359 = vld [vmem:[%s215 + $0xd0] sm:$0xff]
      %v360 = vld [vmem:[%s215 + $0xd8] sm:$0xff]
      %v361 = vld [vmem:[%s215 + $0xe0] sm:$0xff]
      %v362 = vld [vmem:[%s215 + $0xe8] sm:$0xff]
      %v363 = vld [vmem:[%s215 + $0xf0] sm:$0xff]
      %v364 = vld [vmem:[%s215 + $0xf8] sm:$0xff]
      %v365 = vadd.f32 %v301, %v333
      %v366 = vadd.f32 %v302, %v334
      %v367 = vadd.f32 %v303, %v335
      %v368 = vadd.f32 %v304, %v336
      %v369 = vadd.f32 %v305, %v337
      %v370 = vadd.f32 %v306, %v338
      %v371 = vadd.f32 %v307, %v339
      %v372 = vadd.f32 %v308, %v340
      %v373 = vadd.f32 %v309, %v341
      %v374 = vadd.f32 %v310, %v342
      %v375 = vadd.f32 %v311, %v343
      %v376 = vadd.f32 %v312, %v344
      %v377 = vadd.f32 %v313, %v345
      %v378 = vadd.f32 %v314, %v346
      %v379 = vadd.f32 %v315, %v347
      %v380 = vadd.f32 %v316, %v348
      %v381 = vadd.f32 %v317, %v349
      %v382 = vadd.f32 %v318, %v350
      %v383 = vadd.f32 %v319, %v351
      %v384 = vadd.f32 %v320, %v352
      %v385 = vadd.f32 %v321, %v353
      %v386 = vadd.f32 %v322, %v354
      %v387 = vadd.f32 %v323, %v355
      %v388 = vadd.f32 %v324, %v356
      %v389 = vadd.f32 %v325, %v357
      %v390 = vadd.f32 %v326, %v358
      %v391 = vadd.f32 %v327, %v359
      %v392 = vadd.f32 %v328, %v360
      %v393 = vadd.f32 %v329, %v361
      %v394 = vadd.f32 %v330, %v362
      %v395 = vadd.f32 %v331, %v363
      %v396 = vadd.f32 %v332, %v364
      %v397 = vmax.f32 %v365, 0.0
      %v398 = vmax.f32 %v366, 0.0
      %v399 = vmax.f32 %v367, 0.0
      %v400 = vmax.f32 %v368, 0.0
      %v401 = vmax.f32 %v369, 0.0
      %v402 = vmax.f32 %v370, 0.0
      %v403 = vmax.f32 %v371, 0.0
      %v404 = vmax.f32 %v372, 0.0
      %v405 = vmax.f32 %v373, 0.0
      %v406 = vmax.f32 %v374, 0.0
      %v407 = vmax.f32 %v375, 0.0
      %v408 = vmax.f32 %v376, 0.0
      %v409 = vmax.f32 %v377, 0.0
      %v410 = vmax.f32 %v378, 0.0
      %v411 = vmax.f32 %v379, 0.0
      %v412 = vmax.f32 %v380, 0.0
      %v413 = vmax.f32 %v381, 0.0
      %v414 = vmax.f32 %v382, 0.0
      %v415 = vmax.f32 %v383, 0.0
      %v416 = vmax.f32 %v384, 0.0
      %v417 = vmax.f32 %v385, 0.0
      %v418 = vmax.f32 %v386, 0.0
      %v419 = vmax.f32 %v387, 0.0
      %v420 = vmax.f32 %v388, 0.0
      %v421 = vmax.f32 %v389, 0.0
      %v422 = vmax.f32 %v390, 0.0
      %v423 = vmax.f32 %v391, 0.0
      %v424 = vmax.f32 %v392, 0.0
      %v425 = vmax.f32 %v393, 0.0
      %v426 = vmax.f32 %v394, 0.0
      %v427 = vmax.f32 %v395, 0.0
      %v428 = vmax.f32 %v396, 0.0
      %429 = vst [vmem:[%s221] sm:$0xff] %v397
      %430 = vst [vmem:[%s221 + $0x8] sm:$0xff] %v398
      %431 = vst [vmem:[%s221 + $0x10] sm:$0xff] %v399
      %432 = vst [vmem:[%s221 + $0x18] sm:$0xff] %v400
      %433 = vst [vmem:[%s221 + $0x20] sm:$0xff] %v401
      %434 = vst [vmem:[%s221 + $0x28] sm:$0xff] %v402
      %435 = vst [vmem:[%s221 + $0x30] sm:$0xff] %v403
      %436 = vst [vmem:[%s221 + $0x38] sm:$0xff] %v404
      %437 = vst [vmem:[%s221 + $0x40] sm:$0xff] %v405
      %438 = vst [vmem:[%s221 + $0x48] sm:$0xff] %v406
      %439 = vst [vmem:[%s221 + $0x50] sm:$0xff] %v407
      %440 = vst [vmem:[%s221 + $0x58] sm:$0xff] %v408
      %441 = vst [vmem:[%s221 + $0x60] sm:$0xff] %v409
      %442 = vst [vmem:[%s221 + $0x68] sm:$0xff] %v410
      %443 = vst [vmem:[%s221 + $0x70] sm:$0xff] %v411
      %444 = vst [vmem:[%s221 + $0x78] sm:$0xff] %v412
      %445 = vst [vmem:[%s221 + $0x80] sm:$0xff] %v413
      %446 = vst [vmem:[%s221 + $0x88] sm:$0xff] %v414
      %447 = vst [vmem:[%s221 + $0x90] sm:$0xff] %v415
      %448 = vst [vmem:[%s221 + $0x98] sm:$0xff] %v416
      %449 = vst [vmem:[%s221 + $0xa0] sm:$0xff] %v417
      %450 = vst [vmem:[%s221 + $0xa8] sm:$0xff] %v418
      %451 = vst [vmem:[%s221 + $0xb0] sm:$0xff] %v419
      %452 = vst [vmem:[%s221 + $0xb8] sm:$0xff] %v420
      %453 = vst [vmem:[%s221 + $0xc0] sm:$0xff] %v421
      %454 = vst [vmem:[%s221 + $0xc8] sm:$0xff] %v422
      %455 = vst [vmem:[%s221 + $0xd0] sm:$0xff] %v423
      %456 = vst [vmem:[%s221 + $0xd8] sm:$0xff] %v424
      %457 = vst [vmem:[%s221 + $0xe0] sm:$0xff] %v425
      %458 = vst [vmem:[%s221 + $0xe8] sm:$0xff] %v426
      %459 = vst [vmem:[%s221 + $0xf0] sm:$0xff] %v427
      %460 = vst [vmem:[%s221 + $0xf8] sm:$0xff] %v428
      %s461 = smul.u32 32, %s15
      %p462 = scmp.lt.s32.totalorder %s461, 63
      %s463 = scalar_select %p462, %s461, 63
      %s464 = smul.addr %s463, 8
      %s465 = scalar_lea.vmem %s4, %s464
      // Predicated region
      $region37: #{basic_block_forward.7} parent=35 // pred_check
        %p466 = pneg %p127
      $region38: #{basic_block_forward.7} parent=35 // pred_check_branch
        %468 = sbr.rel (%p466) target = $region40
      $region39: #{basic_block_forward.7} parent=35 // pred_region
        %s469 = smul.u32 32, %s15
      $region40: #{basic_block_forward.7} parent=35 // pred_fallthru
        _
    $region36: #{basic_block_forward.7} parent=5 // pred_fallthru
      _
    %p470 = scmp.le.s32.totalorder 2, %s10
    // Predicated region
    $region41: #{basic_block_forward.7} parent=5 // pred_check
      %p471 = pneg %p470
    $region42: #{basic_block_forward.7} parent=5 // pred_check_branch
      %473 = sbr.rel (%p471) target = $region44
    $region43: #{basic_block_forward.7} parent=5 // pred_region
      %s474 = ssub.s32 %s10, 2
      // Predicated region
      $region45: #{basic_block_forward.7} parent=43 // pred_check
        %p475 = pneg %p133
      $region46: #{basic_block_forward.7} parent=43 // pred_check_branch
        %477 = sbr.rel (%p475) target = $region48
      $region47: #{basic_block_forward.7} parent=43 // pred_region
        %s478 = smul.u32 32, %s16
        %p479 = scmp.lt.s32.totalorder %s478, 63
        %s480 = scalar_select %p479, %s478, 63
        %s481 = smul.addr %s480, 8
        %s482 = scalar_lea.vmem %s4, %s481
      $region48: #{basic_block_forward.7} parent=43 // pred_fallthru
        _
    $region44: #{basic_block_forward.7} parent=5 // pred_fallthru
      _
  $region6: #{basic_block_forward.7} parent=0 // loop_footer
    %s14 = sadd.s32 1, %s10
  $region7: #{basic_block_forward.7} parent=0 // loop_footer_branch
    %9 = sbr.rel target = $region3
  $region8: #{basic_block_forward.7} parent=0 // loop_exit
    _

// kernel: basic_block_forward.4
$region0: #{basic_block_forward.4}
  #allocation0 [shape = 'u32[]', space=smem, size = 0x4, offset = 0x4, fixed_abs, tag = 'smem constant byte address 0x4 - core index']
  #allocation1 [shape = 'u32[144,128]{1,0:T(1,128)}', space=vmem, size = 0x12000, scoped, tag = 'internal scratch']
  #allocation2 [shape = 'f32[256,128]{1,0:T(8,128)}', space=vmem, size = 0x20000, scoped, tag = 'scratch operand']
  %s0 = inlined_call_operand.vmem [shape: bf16[2,18,18,128], index: 0, kind: input, shape index: {}]
  %s1 = inlined_call_operand.vmem [shape: bf16[9,128,128], index: 1, kind: input, shape index: {}]
  %s2 = inlined_call_operand.vmem [shape: f32[2,256,128], index: 2, kind: output, shape index: {0}]
  %s3 = inlined_call_operand.vmem [shape: f32[2,2,128], index: 3, kind: output, shape index: {1}]
  %4 = xla_tuple %s2, %s3
  %s5 = sld [smem:[#allocation0]]
  $region49: #{basic_block_forward.4} parent=0
    _
  %s7 = ssub.s32 1, %s5
  %s8 = scalar_select 0, %s7, %s5
  loop: start=0, step=1, limit=4
  $region2: #{basic_block_forward.4} parent=0 // loop_pre_header
    _
  $region3: #{basic_block_forward.4} parent=0 // loop_header
    %s10 = sphi 0, %s14
    %p11 = scmp.ge.s32.totalorder %s10, 4
    %s20 = sphi 0, %s22
    %s23 = sphi 0, %s20
    %s24 = sphi 0, %s23
    %s40 = sphi 0, %s24
    %s44 = sphi 0, %s44
    %s46 = sphi 0, %s44
    %s47 = sphi 0, %s46
    %s61 = sphi 0, %s47
    %s67 = sphi 0, %s69
    %s70 = sphi 0, %s67
    %s71 = sphi 0, %s70
    %s87 = sphi 0, %s71
    %s93 = sphi 0, %s95
    %s96 = sphi 0, %s93
    %s97 = sphi 0, %s96
    %s113 = sphi 0, %s97
  $region4: #{basic_block_forward.4} parent=0 // loop_header_branch
    %13 = sbr.rel (%p11) target = $region8
  $region5: #{basic_block_forward.4} parent=0 // loop_body
    %s15 = ssub.s32 %s10, 1
    %s16 = ssub.s32 %s10, 2
    %s17 = sadd.s32 %s10, 1
    %s18 = ssub.s32 %s10, %s17
    %p19 = scmp.eq.s32.totalorder %s18, 0
    %s21 = sadd.s32 %s20, 1
    %s22 = scalar_select %p19, %s20, %s21
    %p25 = pneg %p19
    %p26 = scmp.eq.s32.totalorder %s10, 1
    %p27 = por %p25, %p26
    %p28 = scmp.ne.s32.totalorder %s20, %s23
    %p29 = scmp.eq.s32.totalorder %s10, 0
    %p30 = por %p28, %p29
    %p31 = scmp.ne.s32.totalorder %s20, %s23
    %p32 = scmp.eq.s32.totalorder %s15, 1
    %p33 = por %p31, %p32
    %p34 = scmp.ne.s32.totalorder %s23, %s24
    %p35 = scmp.eq.s32.totalorder %s15, 0
    %p36 = por %p34, %p35
    %p37 = scmp.ne.s32.totalorder %s23, %s24
    %p38 = scmp.eq.s32.totalorder %s16, 1
    %p39 = por %p37, %p38
    %p41 = scmp.ne.s32.totalorder %s24, %s40
    %p42 = scmp.eq.s32.totalorder %s16, 0
    %p43 = por %p41, %p42
    %s45 = sadd.s32 %s44, 1
    %p48 = scmp.eq.s32.totalorder %s10, 1
    %p49 = scmp.ne.s32.totalorder %s44, %s46
    %p50 = scmp.eq.s32.totalorder %s10, 0
    %p51 = por %p49, %p50
    %p52 = scmp.ne.s32.totalorder %s44, %s46
    %p53 = scmp.eq.s32.totalorder %s15, 1
    %p54 = por %p52, %p53
    %p55 = scmp.ne.s32.totalorder %s46, %s47
    %p56 = scmp.eq.s32.totalorder %s15, 0
    %p57 = por %p55, %p56
    %p58 = scmp.ne.s32.totalorder %s46, %s47
    %p59 = scmp.eq.s32.totalorder %s16, 1
    %p60 = por %p58, %p59
    %p62 = scmp.ne.s32.totalorder %s47, %s61
    %p63 = scmp.eq.s32.totalorder %s16, 0
    %p64 = por %p62, %p63
    %s65 = ssub.s32 %s10, %s17
    %p66 = scmp.eq.s32.totalorder %s65, 0
    %s68 = sadd.s32 %s67, 1
    %s69 = scalar_select %p66, %s67, %s68
    %p72 = pneg %p66
    %p73 = scmp.eq.s32.totalorder %s10, 1
    %p74 = por %p72, %p73
    %p75 = scmp.ne.s32.totalorder %s67, %s70
    %p76 = scmp.eq.s32.totalorder %s10, 0
    %p77 = por %p75, %p76
    %p78 = scmp.ne.s32.totalorder %s67, %s70
    %p79 = scmp.eq.s32.totalorder %s15, 1
    %p80 = por %p78, %p79
    %p81 = scmp.ne.s32.totalorder %s70, %s71
    %p82 = scmp.eq.s32.totalorder %s15, 0
    %p83 = por %p81, %p82
    %p84 = scmp.ne.s32.totalorder %s70, %s71
    %p85 = scmp.eq.s32.totalorder %s16, 1
    %p86 = por %p84, %p85
    %p88 = scmp.ne.s32.totalorder %s71, %s87
    %p89 = scmp.eq.s32.totalorder %s16, 0
    %p90 = por %p88, %p89
    %s91 = ssub.s32 %s10, %s17
    %p92 = scmp.eq.s32.totalorder %s91, 0
    %s94 = sadd.s32 %s93, 1
    %s95 = scalar_select %p92, %s93, %s94
    %p98 = pneg %p92
    %p99 = scmp.eq.s32.totalorder %s10, 1
    %p100 = por %p98, %p99
    %p101 = scmp.ne.s32.totalorder %s93, %s96
    %p102 = scmp.eq.s32.totalorder %s10, 0
    %p103 = por %p101, %p102
    %p104 = scmp.ne.s32.totalorder %s93, %s96
    %p105 = scmp.eq.s32.totalorder %s15, 1
    %p106 = por %p104, %p105
    %p107 = scmp.ne.s32.totalorder %s96, %s97
    %p108 = scmp.eq.s32.totalorder %s15, 0
    %p109 = por %p107, %p108
    %p110 = scmp.ne.s32.totalorder %s96, %s97
    %p111 = scmp.eq.s32.totalorder %s16, 1
    %p112 = por %p110, %p111
    %p114 = scmp.ne.s32.totalorder %s97, %s113
    %p115 = scmp.eq.s32.totalorder %s16, 0
    %p116 = por %p114, %p115
    %p117 = scmp.le.s32.totalorder 1, %s10
    %p118 = scmp.lt.s32.totalorder %s10, 3
    %p119 = pnand %p117, %p118
    %p120 = pneg %p119
    // Predicated region
    $region9: #{basic_block_forward.4} parent=5 // pred_check
      _
    $region10: #{basic_block_forward.4} parent=5 // pred_check_branch
      %122 = sbr.rel (%p119) target = $region12
    $region11: #{basic_block_forward.4} parent=5 // pred_region
      %s123 = ssub.s32 %s10, 1
      // Predicated region
      $region13: #{basic_block_forward.4} parent=11 // pred_check
        %p124 = pneg %p57
      $region14: #{basic_block_forward.4} parent=11 // pred_check_branch
        %126 = sbr.rel (%p124) target = $region16
      $region15: #{basic_block_forward.4} parent=11 // pred_region
        _
      $region16: #{basic_block_forward.4} parent=11 // pred_fallthru
        _
    $region12: #{basic_block_forward.4} parent=5 // pred_fallthru
      _
    %p127 = scmp.lt.s32.totalorder %s10, 2
    // Predicated region
    $region17: #{basic_block_forward.4} parent=5 // pred_check
      %p128 = pneg %p127
    $region18: #{basic_block_forward.4} parent=5 // pred_check_branch
      %130 = sbr.rel (%p128) target = $region20
    $region19: #{basic_block_forward.4} parent=5 // pred_region
      // Predicated region
      $region21: #{basic_block_forward.4} parent=19 // pred_check
        %p131 = pneg %p30
      $region22: #{basic_block_forward.4} parent=19 // pred_check_branch
        %133 = sbr.rel (%p131) target = $region24
      $region23: #{basic_block_forward.4} parent=19 // pred_region
        %p134 = scmp.lt.s32.totalorder %s10, 1
        %s135 = scalar_select %p134, %s10, 1
        %s136 = smul.addr %s135, 54
        %s137 = smul.addr %s136, 4
        %s138 = scalar_lea.vmem %s0, %s137
      $region24: #{basic_block_forward.4} parent=19 // pred_fallthru
        _
    $region20: #{basic_block_forward.4} parent=5 // pred_fallthru
      _
    %p139 = scmp.le.s32.totalorder 1, %s10
    %p140 = scmp.lt.s32.totalorder %s10, 3
    %p141 = pnand %p139, %p140
    %p142 = pneg %p141
    // Predicated region
    $region25: #{basic_block_forward.4} parent=5 // pred_check
      _
    $region26: #{basic_block_forward.4} parent=5 // pred_check_branch
      %144 = sbr.rel (%p141) target = $region28
    $region27: #{basic_block_forward.4} parent=5 // pred_region
      %s145 = ssub.s32 %s10, 1
      %p146 = scmp.lt.s32.totalorder %s15, 1
      %s147 = scalar_select %p146, %s15, 1
      %s148 = smul.addr %s147, 54
      %s149 = smul.addr %s148, 4
      %s150 = scalar_lea.vmem %s0, %s149
      %p151 = pneg %p36
      %p152 = pneg %p33
      %p153 = pneg %p57
      %p154 = pneg %p54
      %p155 = pneg %p83
      %p156 = pneg %p80
      %p157 = scmp.lt.s32.totalorder %s15, 1
      %s158 = scalar_select %p157, %s15, 1
      %s159 = smul.addr %s158, 32
      %s160 = smul.addr %s159, 8
      %s161 = scalar_lea.vmem %s2, %s160
      %p162 = pneg %p109
      %p163 = pneg %p106
      %p164 = scmp.lt.s32.totalorder %s15, 1
      %s165 = scalar_select %p164, %s15, 1
      %s166 = smul.addr %s165, 2
      %s167 = scalar_lea.vmem %s3, %s166
      %p168 = scmp.lt.s32.totalorder %s15, 1
      %s169 = scalar_select %p168, %s15, 1
      %s170 = smul.addr %s169, 54
      %s171 = smul.addr %s170, 4
      %s172 = scalar_lea.vmem %s0, %s171
      %p173 = scmp.lt.s32.totalorder %s15, 1
      %s174 = scalar_select %p173, %s15, 1
      %s175 = smul.addr %s174, 32
      %s176 = smul.addr %s175, 8
      %s177 = scalar_lea.vmem %s2, %s176
      %p178 = scmp.lt.s32.totalorder %s15, 1
      %s179 = scalar_select %p178, %s15, 1
      %s180 = smul.addr %s179, 2
      %s181 = scalar_lea.vmem %s3, %s180
      %183 = vst [vmem:[#allocation2] sm:$0xff] 0.0
      %184 = vst [vmem:[#allocation2 + $0x8] sm:$0xff] 0.0
      %185 = vst [vmem:[#allocation2 + $0x10] sm:$0xff] 0.0
      %186 = vst [vmem:[#allocation2 + $0x18] sm:$0xff] 0.0
      %187 = vst [vmem:[#allocation2 + $0x20] sm:$0xff] 0.0
      %188 = vst [vmem:[#allocation2 + $0x28] sm:$0xff] 0.0
      %189 = vst [vmem:[#allocation2 + $0x30] sm:$0xff] 0.0
      %190 = vst [vmem:[#allocation2 + $0x38] sm:$0xff] 0.0
      %191 = vst [vmem:[#allocation2 + $0x40] sm:$0xff] 0.0
      %192 = vst [vmem:[#allocation2 + $0x48] sm:$0xff] 0.0
      %193 = vst [vmem:[#allocation2 + $0x50] sm:$0xff] 0.0
      %194 = vst [vmem:[#allocation2 + $0x58] sm:$0xff] 0.0
      %195 = vst [vmem:[#allocation2 + $0x60] sm:$0xff] 0.0
      %196 = vst [vmem:[#allocation2 + $0x68] sm:$0xff] 0.0
      %197 = vst [vmem:[#allocation2 + $0x70] sm:$0xff] 0.0
      %198 = vst [vmem:[#allocation2 + $0x78] sm:$0xff] 0.0
      %199 = vst [vmem:[#allocation2 + $0x80] sm:$0xff] 0.0
      %200 = vst [vmem:[#allocation2 + $0x88] sm:$0xff] 0.0
      %201 = vst [vmem:[#allocation2 + $0x90] sm:$0xff] 0.0
      %202 = vst [vmem:[#allocation2 + $0x98] sm:$0xff] 0.0
      %203 = vst [vmem:[#allocation2 + $0xa0] sm:$0xff] 0.0
      %204 = vst [vmem:[#allocation2 + $0xa8] sm:$0xff] 0.0
      %205 = vst [vmem:[#allocation2 + $0xb0] sm:$0xff] 0.0
      %206 = vst [vmem:[#allocation2 + $0xb8] sm:$0xff] 0.0
      %207 = vst [vmem:[#allocation2 + $0xc0] sm:$0xff] 0.0
      %208 = vst [vmem:[#allocation2 + $0xc8] sm:$0xff] 0.0
      %209 = vst [vmem:[#allocation2 + $0xd0] sm:$0xff] 0.0
      %210 = vst [vmem:[#allocation2 + $0xd8] sm:$0xff] 0.0
      %211 = vst [vmem:[#allocation2 + $0xe0] sm:$0xff] 0.0
      %212 = vst [vmem:[#allocation2 + $0xe8] sm:$0xff] 0.0
      %213 = vst [vmem:[#allocation2 + $0xf0] sm:$0xff] 0.0
      %214 = vst [vmem:[#allocation2 + $0xf8] sm:$0xff] 0.0
      %v215 = vld [vmem:[%s172] sm:$0xf]
      %v216 = vld [vmem:[%s172 + $0x4] sm:$0xf]
      %v217 = vld [vmem:[%s172 + $0xc] sm:$0xf]
      %v218 = vld [vmem:[%s172 + $0x10] sm:$0xf]
      %v219 = vld [vmem:[%s172 + $0x18] sm:$0xf]
      %v220 = vld [vmem:[%s172 + $0x1c] sm:$0xf]
      %v221 = vld [vmem:[%s172 + $0x24] sm:$0xf]
      %v222 = vld [vmem:[%s172 + $0x28] sm:$0xf]
      %v223 = vld [vmem:[%s172 + $0x30] sm:$0xf]
      %v224 = vld [vmem:[%s172 + $0x34] sm:$0xf]
      %v225 = vld [vmem:[%s172 + $0x3c] sm:$0xf]
      %v226 = vld [vmem:[%s172 + $0x40] sm:$0xf]
      %v227 = vld [vmem:[%s172 + $0x48] sm:$0xf]
      %v228 = vld [vmem:[%s172 + $0x4c] sm:$0xf]
      %v229 = vld [vmem:[%s172 + $0x54] sm:$0xf]
      %v230 = vld [vmem:[%s172 + $0x58] sm:$0xf]
      %v231 = vld [vmem:[%s172 + $0x60] sm:$0xf]
      %v232 = vld [vmem:[%s172 + $0x64] sm:$0xf]
      %v233 = vld [vmem:[%s172 + $0x6c] sm:$0xf]
      %v234 = vld [vmem:[%s172 + $0x70] sm:$0xf]
      %v235 = vld [vmem:[%s172 + $0x78] sm:$0xf]
      %v236 = vld [vmem:[%s172 + $0x7c] sm:$0xf]
      %v237 = vld [vmem:[%s172 + $0x84] sm:$0xf]
      %v238 = vld [vmem:[%s172 + $0x88] sm:$0xf]
      %v239 = vld [vmem:[%s172 + $0x90] sm:$0xf]
      %v240 = vld [vmem:[%s172 + $0x94] sm:$0xf]
      %v241 = vld [vmem:[%s172 + $0x9c] sm:$0xf]
      %v242 = vld [vmem:[%s172 + $0xa0] sm:$0xf]
      %v243 = vld [vmem:[%s172 + $0xa8] sm:$0xf]
      %v244 = vld [vmem:[%s172 + $0xac] sm:$0xf]
      %v245 = vld [vmem:[%s172 + $0xb4] sm:$0xf]
      %v246 = vld [vmem:[%s172 + $0xb8] sm:$0xf]
      %v247 = vld [vmem:[#allocation2] sm:$0xff]
      %v248 = vld [vmem:[#allocation2 + $0x8] sm:$0xff]
      %v249 = vld [vmem:[#allocation2 + $0x10] sm:$0xff]
      %v250 = vld [vmem:[#allocation2 + $0x18] sm:$0xff]
      %v251 = vld [vmem:[#allocation2 + $0x20] sm:$0xff]
      %v252 = vld [vmem:[#allocation2 + $0x28] sm:$0xff]
      %v253 = vld [vmem:[#allocation2 + $0x30] sm:$0xff]
      %v254 = vld [vmem:[#allocation2 + $0x38] sm:$0xff]
      %v255 = vld [vmem:[#allocation2 + $0x40] sm:$0xff]
      %v256 = vld [vmem:[#allocation2 + $0x48] sm:$0xff]
      %v257 = vld [vmem:[#allocation2 + $0x50] sm:$0xff]
      %v258 = vld [vmem:[#allocation2 + $0x58] sm:$0xff]
      %v259 = vld [vmem:[#allocation2 + $0x60] sm:$0xff]
      %v260 = vld [vmem:[#allocation2 + $0x68] sm:$0xff]
      %v261 = vld [vmem:[#allocation2 + $0x70] sm:$0xff]
      %v262 = vld [vmem:[#allocation2 + $0x78] sm:$0xff]
      %v263 = vld [vmem:[#allocation2 + $0x80] sm:$0xff]
      %v264 = vld [vmem:[#allocation2 + $0x88] sm:$0xff]
      %v265 = vld [vmem:[#allocation2 + $0x90] sm:$0xff]
      %v266 = vld [vmem:[#allocation2 + $0x98] sm:$0xff]
      %v267 = vld [vmem:[#allocation2 + $0xa0] sm:$0xff]
      %v268 = vld [vmem:[#allocation2 + $0xa8] sm:$0xff]
      %v269 = vld [vmem:[#allocation2 + $0xb0] sm:$0xff]
      %v270 = vld [vmem:[#allocation2 + $0xb8] sm:$0xff]
      %v271 = vld [vmem:[#allocation2 + $0xc0] sm:$0xff]
      %v272 = vld [vmem:[#allocation2 + $0xc8] sm:$0xff]
      %v273 = vld [vmem:[#allocation2 + $0xd0] sm:$0xff]
      %v274 = vld [vmem:[#allocation2 + $0xd8] sm:$0xff]
      %v275 = vld [vmem:[#allocation2 + $0xe0] sm:$0xff]
      %v276 = vld [vmem:[#allocation2 + $0xe8] sm:$0xff]
      %v277 = vld [vmem:[#allocation2 + $0xf0] sm:$0xff]
      %v278 = vld [vmem:[#allocation2 + $0xf8] sm:$0xff]
      %v279 = vld [vmem:[%s1] sm:$0xf]
      %v280 = vld [vmem:[%s1 + $0x4] sm:$0xf]
      %v281 = vld [vmem:[%s1 + $0x8] sm:$0xf]
      %v282 = vld [vmem:[%s1 + $0xc] sm:$0xf]
      %v283 = vld [vmem:[%s1 + $0x10] sm:$0xf]
      %v284 = vld [vmem:[%s1 + $0x14] sm:$0xf]
      %v285 = vld [vmem:[%s1 + $0x18] sm:$0xf]
      %v286 = vld [vmem:[%s1 + $0x1c] sm:$0xf]
      %v287 = vld [vmem:[%s1 + $0x20] sm:$0xf]
      %v288 = vld [vmem:[%s1 + $0x24] sm:$0xf]
      %v289 = vld [vmem:[%s1 + $0x28] sm:$0xf]
      %v290 = vld [vmem:[%s1 + $0x2c] sm:$0xf]
      %v291 = vld [vmem:[%s1 + $0x30] sm:$0xf]
      %v292 = vld [vmem:[%s1 + $0x34] sm:$0xf]
      %v293 = vld [vmem:[%s1 + $0x38] sm:$0xf]
      %v294 = vld [vmem:[%s1 + $0x3c] sm:$0xf]
      %v327 = vunpack.c.l.b16 %v215
      %v328 = vunpack.c.l.b16 %v216
      %v329 = vunpack.c.l.b16 %v217
      %v330 = vunpack.c.l.b16 %v218
      %v331 = vunpack.c.l.b16 %v219
      %v332 = vunpack.c.l.b16 %v220
      %v333 = vunpack.c.l.b16 %v221
      %v334 = vunpack.c.l.b16 %v222
      %v335 = vunpack.c.l.b16 %v223
      %v336 = vunpack.c.l.b16 %v224
      %v337 = vunpack.c.l.b16 %v225
      %v338 = vunpack.c.l.b16 %v226
      %v339 = vunpack.c.l.b16 %v227
      %v340 = vunpack.c.l.b16 %v228
      %v341 = vunpack.c.l.b16 %v229
      %v342 = vunpack.c.l.b16 %v230
      %v343 = vunpack.c.l.b16 %v231
      %v344 = vunpack.c.l.b16 %v232
      %v345 = vunpack.c.l.b16 %v233
      %v346 = vunpack.c.l.b16 %v234
      %v347 = vunpack.c.l.b16 %v235
      %v348 = vunpack.c.l.b16 %v236
      %v349 = vunpack.c.l.b16 %v237
      %v350 = vunpack.c.l.b16 %v238
      %v351 = vunpack.c.l.b16 %v239
      %v352 = vunpack.c.l.b16 %v240
      %v353 = vunpack.c.l.b16 %v241
      %v354 = vunpack.c.l.b16 %v242
      %v355 = vunpack.c.l.b16 %v243
      %v356 = vunpack.c.l.b16 %v244
      %v357 = vunpack.c.l.b16 %v245
      %v358 = vunpack.c.l.b16 %v246
      %v359 = vpack.c.b16 %v328, %v327
      %v360 = vpack.c.b16 %v330, %v329
      %v361 = vpack.c.b16 %v332, %v331
      %v362 = vpack.c.b16 %v334, %v333
      %v363 = vpack.c.b16 %v336, %v335
      %v364 = vpack.c.b16 %v338, %v337
      %v365 = vpack.c.b16 %v340, %v339
      %v366 = vpack.c.b16 %v342, %v341
      %v367 = vpack.c.b16 %v344, %v343
      %v368 = vpack.c.b16 %v346, %v345
      %v369 = vpack.c.b16 %v348, %v347
      %v370 = vpack.c.b16 %v350, %v349
      %v371 = vpack.c.b16 %v352, %v351
      %v372 = vpack.c.b16 %v354, %v353
      %v373 = vpack.c.b16 %v356, %v355
      %v374 = vpack.c.b16 %v358, %v357
      %v407 = vunpack.c.l.b16 %v279
      %v408 = vunpack.c.l.b16 %v280
      %v409 = vunpack.c.l.b16 %v281
      %v410 = vunpack.c.l.b16 %v282
      %v411 = vunpack.c.l.b16 %v283
      %v412 = vunpack.c.l.b16 %v284
      %v413 = vunpack.c.l.b16 %v285
      %v414 = vunpack.c.l.b16 %v286
      %v415 = vunpack.c.l.b16 %v287
      %v416 = vunpack.c.l.b16 %v288
      %v417 = vunpack.c.l.b16 %v289
      %v418 = vunpack.c.l.b16 %v290
      %v419 = vunpack.c.l.b16 %v291
      %v420 = vunpack.c.l.b16 %v292
      %v421 = vunpack.c.l.b16 %v293
      %v422 = vunpack.c.l.b16 %v294
      %v423 = vpack.c.b16 %v408, %v407
      %v424 = vpack.c.b16 %v410, %v409
      %v425 = vpack.c.b16 %v412, %v411
      %v426 = vpack.c.b16 %v414, %v413
      %v427 = vpack.c.b16 %v416, %v415
      %v428 = vpack.c.b16 %v418, %v417
      %v429 = vpack.c.b16 %v420, %v419
      %v430 = vpack.c.b16 %v422, %v421
      %439 = vmatprep.subr.bf16.mxu0 0
      %440 = vmatpush1.bf16.msra.mxu0 %v423
      %441 = vmatprep.subr.bf16.mxu0 0
      %442 = vmatpush1.bf16.msra.mxu0 %v424
      %443 = vmatprep.subr.bf16.mxu0 0
      %444 = vmatpush1.bf16.msra.mxu0 %v425
      %445 = vmatprep.subr.bf16.mxu0 0
      %446 = vmatpush1.bf16.msra.mxu0 %v426
      %447 = vmatprep.subr.bf16.mxu0 0
      %448 = vmatpush1.bf16.msra.mxu0 %v427
      %449 = vmatprep.subr.bf16.mxu0 0
      %450 = vmatpush1.bf16.msra.mxu0 %v428
      %451 = vmatprep.subr.bf16.mxu0 0
      %452 = vmatpush1.bf16.msra.mxu0 %v429
      %453 = vmatprep.subr.bf16.mxu0 0
      %454 = vmatpush1.bf16.msra.mxu0 %v430
      %455 = vmatprep.subr.bf16.mxu0 0
      %456 = vmatpush1.bf16.msra.mxu0 0
      %457 = vmatprep.subr.bf16.mxu0 0
      %458 = vmatpush1.bf16.msra.mxu0 0
      %459 = vmatprep.subr.bf16.mxu0 0
      %460 = vmatpush1.bf16.msra.mxu0 0
      %461 = vmatprep.subr.bf16.mxu0 0
      %462 = vmatpush1.bf16.msra.mxu0 0
      %463 = vmatprep.subr.bf16.mxu0 0
      %464 = vmatpush1.bf16.msra.mxu0 0
      %465 = vmatprep.subr.bf16.mxu0 0
      %466 = vmatpush1.bf16.msra.mxu0 0
      %467 = vmatprep.subr.bf16.mxu0 0
      %468 = vmatpush1.bf16.msra.mxu0 0
      %469 = vmatprep.subr.bf16.mxu0 0
      %470 = vmatpush1.bf16.msra.mxu0 0
      %471 = vmatprep.mubr.bf16.mxu0 0
      %472 = vmatmul.mubr.bf16.gmra.mrb[0].mxu0 %v359
      %v473 = vpop.f32.mrb[0].mxu0
      %v474 = vadd.f32 0.0, %v473
      %v475 = vpop.f32.mrb[0].mxu0
      %v476 = vpop.f32.mrb[0].mxu0
      %v477 = vadd.f32 0.0, %v476
      %v478 = vpop.f32.mrb[0].mxu0
      %479 = vmatprep.mubr.bf16.mxu0 0
      %480 = vmatmul.mubr.bf16.gmra.mrb[0].mxu0 %v360
      %v481 = vpop.f32.mrb[0].mxu0
      %v482 = vadd.f32 0.0, %v481
      %v483 = vpop.f32.mrb[0].mxu0
      %v484 = vpop.f32.mrb[0].mxu0
      %v485 = vadd.f32 0.0, %v484
      %v486 = vpop.f32.mrb[0].mxu0
      %487 = vmatprep.mubr.bf16.mxu0 0
      %488 = vmatmul.mubr.bf16.gmra.mrb[0].mxu0 %v361
      %v489 = vpop.f32.mrb[0].mxu0
      %v490 = vadd.f32 0.0, %v489
      %v491 = vpop.f32.mrb[0].mxu0
      %v492 = vpop.f32.mrb[0].mxu0
      %v493 = vadd.f32 0.0, %v492
      %v494 = vpop.f32.mrb[0].mxu0
      %495 = vmatprep.mubr.bf16.mxu0 0
      %496 = vmatmul.mubr.bf16.gmra.mrb[0].mxu0 %v362
      %v497 = vpop.f32.mrb[0].mxu0
      %v498 = vadd.f32 0.0, %v497
      %v499 = vpop.f32.mrb[0].mxu0
      %v500 = vpop.f32.mrb[0].mxu0
      %v501 = vadd.f32 0.0, %v500
      %v502 = vpop.f32.mrb[0].mxu0
      %503 = vmatprep.mubr.bf16.mxu0 0
      %504 = vmatmul.mubr.bf16.gmra.mrb[0].mxu0 %v363
      %v505 = vpop.f32.mrb[0].mxu0
      %v506 = vadd.f32 0.0, %v505
      %v507 = vpop.f32.mrb[0].mxu0
      %v508 = vpop.f32.mrb[0].mxu0
      %v509 = vadd.f32 0.0, %v508
      %v510 = vpop.f32.mrb[0].mxu0
      %511 = vmatprep.mubr.bf16.mxu0 0
      %512 = vmatmul.mubr.bf16.gmra.mrb[0].mxu0 %v364
      %v513 = vpop.f32.mrb[0].mxu0
      %v514 = vadd.f32 0.0, %v513
      %v515 = vpop.f32.mrb[0].mxu0
      %v516 = vpop.f32.mrb[0].mxu0
      %v517 = vadd.f32 0.0, %v516
      %v518 = vpop.f32.mrb[0].mxu0
      %519 = vmatprep.mubr.bf16.mxu0 0
      %520 = vmatmul.mubr.bf16.gmra.mrb[0].mxu0 %v365
      %v521 = vpop.f32.mrb[0].mxu0
      %v522 = vadd.f32 0.0, %v521
      %v523 = vpop.f32.mrb[0].mxu0
      %v524 = vpop.f32.mrb[0].mxu0
      %v525 = vadd.f32 0.0, %v524
      %v526 = vpop.f32.mrb[0].mxu0
      %527 = vmatprep.mubr.bf16.mxu0 0
      %528 = vmatmul.mubr.bf16.gmra.mrb[0].mxu0 %v366
      %v529 = vpop.f32.mrb[0].mxu0
      %v530 = vadd.f32 0.0, %v529
      %v531 = vpop.f32.mrb[0].mxu0
      %v532 = vpop.f32.mrb[0].mxu0
      %v533 = vadd.f32 0.0, %v532
      %v534 = vpop.f32.mrb[0].mxu0
      %535 = vmatprep.mubr.bf16.mxu0 0
      %536 = vmatmul.mubr.bf16.gmra.mrb[0].mxu0 %v367
      %v537 = vpop.f32.mrb[0].mxu0
      %v538 = vadd.f32 0.0, %v537
      %v539 = vpop.f32.mrb[0].mxu0
      %v540 = vpop.f32.mrb[0].mxu0
      %v541 = vadd.f32 0.0, %v540
      %v542 = vpop.f32.mrb[0].mxu0
      %543 = vmatprep.mubr.bf16.mxu0 0
      %544 = vmatmul.mubr.bf16.gmra.mrb[0].mxu0 %v368
      %v545 = vpop.f32.mrb[0].mxu0
      %v546 = vadd.f32 0.0, %v545
      %v547 = vpop.f32.mrb[0].mxu0
      %v548 = vpop.f32.mrb[0].mxu0
      %v549 = vadd.f32 0.0, %v548
      %v550 = vpop.f32.mrb[0].mxu0
      %551 = vmatprep.mubr.bf16.mxu0 0
      %552 = vmatmul.mubr.bf16.gmra.mrb[0].mxu0 %v369
      %v553 = vpop.f32.mrb[0].mxu0
      %v554 = vadd.f32 0.0, %v553
      %v555 = vpop.f32.mrb[0].mxu0
      %v556 = vpop.f32.mrb[0].mxu0
      %v557 = vadd.f32 0.0, %v556
      %v558 = vpop.f32.mrb[0].mxu0
      %559 = vmatprep.mubr.bf16.mxu0 0
      %560 = vmatmul.mubr.bf16.gmra.mrb[0].mxu0 %v370
      %v561 = vpop.f32.mrb[0].mxu0
      %v562 = vadd.f32 0.0, %v561
      %v563 = vpop.f32.mrb[0].mxu0
      %v564 = vpop.f32.mrb[0].mxu0
      %v565 = vadd.f32 0.0, %v564
      %v566 = vpop.f32.mrb[0].mxu0
      %567 = vmatprep.mubr.bf16.mxu0 0
      %568 = vmatmul.mubr.bf16.gmra.mrb[0].mxu0 %v371
      %v569 = vpop.f32.mrb[0].mxu0
      %v570 = vadd.f32 0.0, %v569
      %v571 = vpop.f32.mrb[0].mxu0
      %v572 = vpop.f32.mrb[0].mxu0
      %v573 = vadd.f32 0.0, %v572
      %v574 = vpop.f32.mrb[0].mxu0
      %575 = vmatprep.mubr.bf16.mxu0 0
      %576 = vmatmul.mubr.bf16.gmra.mrb[0].mxu0 %v372
      %v577 = vpop.f32.mrb[0].mxu0
      %v578 = vadd.f32 0.0, %v577
      %v579 = vpop.f32.mrb[0].mxu0
      %v580 = vpop.f32.mrb[0].mxu0
      %v581 = vadd.f32 0.0, %v580
      %v582 = vpop.f32.mrb[0].mxu0
      %583 = vmatprep.mubr.bf16.mxu0 0
      %584 = vmatmul.mubr.bf16.gmra.mrb[0].mxu0 %v373
      %v585 = vpop.f32.mrb[0].mxu0
      %v586 = vadd.f32 0.0, %v585
      %v587 = vpop.f32.mrb[0].mxu0
      %v588 = vpop.f32.mrb[0].mxu0
      %v589 = vadd.f32 0.0, %v588
      %v590 = vpop.f32.mrb[0].mxu0
      %591 = vmatprep.mubr.bf16.mxu0 0
      %592 = vmatmul.mubr.bf16.gmra.mrb[0].mxu0 %v374
      %v593 = vpop.f32.mrb[0].mxu0
      %v594 = vadd.f32 0.0, %v593
      %v595 = vpop.f32.mrb[0].mxu0
      %v596 = vpop.f32.mrb[0].mxu0
      %v597 = vadd.f32 0.0, %v596
      %v598 = vpop.f32.mrb[0].mxu0
      %599 = vdwg.mxu0
      %v600 = vadd.f32 %v247, %v474
      %v601 = vadd.f32 %v248, %v477
      %v602 = vadd.f32 %v249, %v482
      %v603 = vadd.f32 %v250, %v485
      %v604 = vadd.f32 %v251, %v490
      %v605 = vadd.f32 %v252, %v493
      %v606 = vadd.f32 %v253, %v498
      %v607 = vadd.f32 %v254, %v501
      %v608 = vadd.f32 %v255, %v506
      %v609 = vadd.f32 %v256, %v509
      %v610 = vadd.f32 %v257, %v514
      %v611 = vadd.f32 %v258, %v517
      %v612 = vadd.f32 %v259, %v522
      %v613 = vadd.f32 %v260, %v525
      %v614 = vadd.f32 %v261, %v530
      %v615 = vadd.f32 %v262, %v533
      %v616 = vadd.f32 %v263, %v538
      %v617 = vadd.f32 %v264, %v541
      %v618 = vadd.f32 %v265, %v546
      %v619 = vadd.f32 %v266, %v549
      %v620 = vadd.f32 %v267, %v554
      %v621 = vadd.f32 %v268, %v557
      %v622 = vadd.f32 %v269, %v562
      %v623 = vadd.f32 %v270, %v565
      %v624 = vadd.f32 %v271, %v570
      %v625 = vadd.f32 %v272, %v573
      %v626 = vadd.f32 %v273, %v578
      %v627 = vadd.f32 %v274, %v581
      %v628 = vadd.f32 %v275, %v586
      %v629 = vadd.f32 %v276, %v589
      %v630 = vadd.f32 %v277, %v594
      %v631 = vadd.f32 %v278, %v597
      %632 = vst [vmem:[#allocation2] sm:$0xff] %v600
      %633 = vst [vmem:[#allocation2 + $0x8] sm:$0xff] %v601
      %634 = vst [vmem:[#allocation2 + $0x10] sm:$0xff] %v602
      %635 = vst [vmem:[#allocation2 + $0x18] sm:$0xff] %v603
      %636 = vst [vmem:[#allocation2 + $0x20] sm:$0xff] %v604
      %637 = vst [vmem:[#allocation2 + $0x28] sm:$0xff] %v605
      %638 = vst [vmem:[#allocation2 + $0x30] sm:$0xff] %v606
      %639 = vst [vmem:[#allocation2 + $0x38] sm:$0xff] %v607
      %640 = vst [vmem:[#allocation2 + $0x40] sm:$0xff] %v608
      %641 = vst [vmem:[#allocation2 + $0x48] sm:$0xff] %v609
      %642 = vst [vmem:[#allocation2 + $0x50] sm:$0xff] %v610
      %643 = vst [vmem:[#allocation2 + $0x58] sm:$0xff] %v611
      %644 = vst [vmem:[#allocation2 + $0x60] sm:$0xff] %v612
      %645 = vst [vmem:[#allocation2 + $0x68] sm:$0xff] %v613
      %646 = vst [vmem:[#allocation2 + $0x70] sm:$0xff] %v614
      %647 = vst [vmem:[#allocation2 + $0x78] sm:$0xff] %v615
      %648 = vst [vmem:[#allocation2 + $0x80] sm:$0xff] %v616
      %649 = vst [vmem:[#allocation2 + $0x88] sm:$0xff] %v617
      %650 = vst [vmem:[#allocation2 + $0x90] sm:$0xff] %v618
      %651 = vst [vmem:[#allocation2 + $0x98] sm:$0xff] %v619
      %652 = vst [vmem:[#allocation2 + $0xa0] sm:$0xff] %v620
      %653 = vst [vmem:[#allocation2 + $0xa8] sm:$0xff] %v621
      %654 = vst [vmem:[#allocation2 + $0xb0] sm:$0xff] %v622
      %655 = vst [vmem:[#allocation2 + $0xb8] sm:$0xff] %v623
      %656 = vst [vmem:[#allocation2 + $0xc0] sm:$0xff] %v624
      %657 = vst [vmem:[#allocation2 + $0xc8] sm:$0xff] %v625
      %658 = vst [vmem:[#allocation2 + $0xd0] sm:$0xff] %v626
      %659 = vst [vmem:[#allocation2 + $0xd8] sm:$0xff] %v627
      %660 = vst [vmem:[#allocation2 + $0xe0] sm:$0xff] %v628
      %661 = vst [vmem:[#allocation2 + $0xe8] sm:$0xff] %v629
      %662 = vst [vmem:[#allocation2 + $0xf0] sm:$0xff] %v630
      %663 = vst [vmem:[#allocation2 + $0xf8] sm:$0xff] %v631
      %v664 = vld [vmem:[%s172] sm:$0xf]
      %v665 = vld [vmem:[%s172 + $0x4] sm:$0xf]
      %v666 = vld [vmem:[%s172 + $0x8] sm:$0x1]
      %v667 = vld [vmem:[%s172 + $0xc] sm:$0xf]
      %v668 = vld [vmem:[%s172 + $0x10] sm:$0xf]
      %v669 = vld [vmem:[%s172 + $0x14] sm:$0x1]
      %v670 = vld [vmem:[%s172 + $0x18] sm:$0xf]
      %v671 = vld [vmem:[%s172 + $0x1c] sm:$0xf]
      %v672 = vld [vmem:[%s172 + $0x20] sm:$0x1]
      %v673 = vld [vmem:[%s172 + $0x24] sm:$0xf]
      %v674 = vld [vmem:[%s172 + $0x28] sm:$0xf]
      %v675 = vld [vmem:[%s172 + $0x2c] sm:$0x1]
      %v676 = vld [vmem:[%s172 + $0x30] sm:$0xf]
      %v677 = vld [vmem:[%s172 + $0x34] sm:$0xf]
      %v678 = vld [vmem:[%s172 + $0x38] sm:$0x1]
      %v679 = vld [vmem:[%s172 + $0x3c] sm:$0xf]
      %v680 = vld [vmem:[%s172 + $0x40] sm:$0xf]
      %v681 = vld [vmem:[%s172 + $0x44] sm:$0x1]
      %v682 = vld [vmem:[%s172 + $0x48] sm:$0xf]
      %v683 = vld [vmem:[%s172 + $0x4c] sm:$0xf]
      %v684 = vld [vmem:[%s172 + $0x50] sm:$0x1]
      %v685 = vld [vmem:[%s172 + $0x54] sm:$0xf]
      %v686 = vld [vmem:[%s172 + $0x58] sm:$0xf]
      %v687 = vld [vmem:[%s172 + $0x5c] sm:$0x1]
      %v688 = vld [vmem:[%s172 + $0x60] sm:$0xf]
      %v689 = vld [vmem:[%s172 + $0x64] sm:$0xf]
      %v690 = vld [vmem:[%s172 + $0x68] sm:$0x1]
      %v691 = vld [vmem:[%s172 + $0x6c] sm:$0xf]
      %v692 = vld [vmem:[%s172 + $0x70] sm:$0xf]
      %v693 = vld [vmem:[%s172 + $0x74] sm:$0x1]
      %v694 = vld [vmem:[%s172 + $0x78] sm:$0xf]
      %v695 = vld [vmem:[%s172 + $0x7c] sm:$0xf]
      %v696 = vld [vmem:[%s172 + $0x80] sm:$0x1]
      %v697 = vld [vmem:[%s172 + $0x84] sm:$0xf]
      %v698 = vld [vmem:[%s172 + $0x88] sm:$0xf]
      %v699 = vld [vmem:[%s172 + $0x8c] sm:$0x1]
      %v700 = vld [vmem:[%s172 + $0x90] sm:$0xf]
      %v701 = vld [vmem:[%s172 + $0x94] sm:$0xf]
      %v702 = vld [vmem:[%s172 + $0x98] sm:$0x1]
      %v703 = vld [vmem:[%s172 + $0x9c] sm:$0xf]
      %v704 = vld [vmem:[%s172 + $0xa0] sm:$0xf]
      %v705 = vld [vmem:[%s172 + $0xa4] sm:$0x1]
      %v706 = vld [vmem:[%s172 + $0xa8] sm:$0xf]
      %v707 = vld [vmem:[%s172 + $0xac] sm:$0xf]
      %v708 = vld [vmem:[%s172 + $0xb0] sm:$0x1]
      %v709 = vld [vmem:[%s172 + $0xb4] sm:$0xf]
      %v710 = vld [vmem:[%s172 + $0xb8] sm:$0xf]
      %v711 = vld [vmem:[%s172 + $0xbc] sm:$0x1]
      %vm712 = vsmask.f32 3328
      %vm713 = vsmask.f32 7440
      %vm714 = vmor %vm712, %vm713
      %v716 = vshrl.u32 %v664, 16
      %v718 = vrot.slane %v716, 4
      %v719 = vshll.u32 %v664, 16
      %v721 = vrot.slane %v719, 5
      %v722 = vor.u32 %v718, %v721
      %v723 = vrot.slane %v722, 4
      %v725 = vshll.u32 %v665, 16
      %v727 = vrot.slane %v725, 5
      %v728 = vsel %vm714, %v723, %v727
      %v729 = vshrl.u32 %v665, 16
      %v731 = vrot.slane %v729, 4
      %v732 = vor.u32 %v731, %v727
      %v733 = vrot.slane %v732, 4
      %v735 = vshll.u32 %v666, 16
      %v737 = vrot.slane %v735, 5
      %v738 = vsel %vm714, %v733, %v737
      %v740 = vshrl.u32 %v667, 16
      %v742 = vrot.slane %v740, 4
      %v743 = vshll.u32 %v667, 16
      %v745 = vrot.slane %v743, 5
      %v746 = vor.u32 %v742, %v745
      %v747 = vrot.slane %v746, 4
      %v749 = vshll.u32 %v668, 16
      %v751 = vrot.slane %v749, 5
      %v752 = vsel %vm714, %v747, %v751
      %v753 = vshrl.u32 %v668, 16
      %v755 = vrot.slane %v753, 4
      %v756 = vor.u32 %v755, %v751
      %v757 = vrot.slane %v756, 4
      %v759 = vshll.u32 %v669, 16
      %v761 = vrot.slane %v759, 5
      %v762 = vsel %vm714, %v757, %v761
      %v764 = vshrl.u32 %v670, 16
      %v766 = vrot.slane %v764, 4
      %v767 = vshll.u32 %v670, 16
      %v769 = vrot.slane %v767, 5
      %v770 = vor.u32 %v766, %v769
      %v771 = vrot.slane %v770, 4
      %v773 = vshll.u32 %v671, 16
      %v775 = vrot.slane %v773, 5
      %v776 = vsel %vm714, %v771, %v775
      %v777 = vshrl.u32 %v671, 16
      %v779 = vrot.slane %v777, 4
      %v780 = vor.u32 %v779, %v775
      %v781 = vrot.slane %v780, 4
      %v783 = vshll.u32 %v672, 16
      %v785 = vrot.slane %v783, 5
      %v786 = vsel %vm714, %v781, %v785
      %v788 = vshrl.u32 %v673, 16
      %v790 = vrot.slane %v788, 4
      %v791 = vshll.u32 %v673, 16
      %v793 = vrot.slane %v791, 5
      %v794 = vor.u32 %v790, %v793
      %v795 = vrot.slane %v794, 4
      %v797 = vshll.u32 %v674, 16
      %v799 = vrot.slane %v797, 5
      %v800 = vsel %vm714, %v795, %v799
      %v801 = vshrl.u32 %v674, 16
      %v803 = vrot.slane %v801, 4
      %v804 = vor.u32 %v803, %v799
      %v805 = vrot.slane %v804, 4
      %v807 = vshll.u32 %v675, 16
      %v809 = vrot.slane %v807, 5
      %v810 = vsel %vm714, %v805, %v809
      %v812 = vshrl.u32 %v676, 16
      %v814 = vrot.slane %v812, 4
      %v815 = vshll.u32 %v676, 16
      %v817 = vrot.slane %v815, 5
      %v818 = vor.u32 %v814, %v817
      %v819 = vrot.slane %v818, 4
      %v821 = vshll.u32 %v677, 16
      %v823 = vrot.slane %v821, 5
      %v824 = vsel %vm714, %v819, %v823
      %v825 = vshrl.u32 %v677, 16
      %v827 = vrot.slane %v825, 4
      %v828 = vor.u32 %v827, %v823
      %v829 = vrot.slane %v828, 4
      %v831 = vshll.u32 %v678, 16
      %v833 = vrot.slane %v831, 5
      %v834 = vsel %vm714, %v829, %v833
      %v836 = vshrl.u32 %v679, 16
      %v838 = vrot.slane %v836, 4
      %v839 = vshll.u32 %v679, 16
      %v841 = vrot.slane %v839, 5
      %v842 = vor.u32 %v838, %v841
      %v843 = vrot.slane %v842, 4
      %v845 = vshll.u32 %v680, 16
      %v847 = vrot.slane %v845, 5
      %v848 = vsel %vm714, %v843, %v847
      %v849 = vshrl.u32 %v680, 16
      %v851 = vrot.slane %v849, 4
      %v852 = vor.u32 %v851, %v847
      %v853 = vrot.slane %v852, 4
      %v855 = vshll.u32 %v681, 16
      %v857 = vrot.slane %v855, 5
      %v858 = vsel %vm714, %v853, %v857
      %v860 = vshrl.u32 %v682, 16
      %v862 = vrot.slane %v860, 4
      %v863 = vshll.u32 %v682, 16
      %v865 = vrot.slane %v863, 5
      %v866 = vor.u32 %v862, %v865
      %v867 = vrot.slane %v866, 4
      %v869 = vshll.u32 %v683, 16
      %v871 = vrot.slane %v869, 5
      %v872 = vsel %vm714, %v867, %v871
      %v873 = vshrl.u32 %v683, 16
      %v875 = vrot.slane %v873, 4
      %v876 = vor.u32 %v875, %v871
      %v877 = vrot.slane %v876, 4
      %v879 = vshll.u32 %v684, 16
      %v881 = vrot.slane %v879, 5
      %v882 = vsel %vm714, %v877, %v881
      %v884 = vshrl.u32 %v685, 16
      %v886 = vrot.slane %v884, 4
      %v887 = vshll.u32 %v685, 16
      %v889 = vrot.slane %v887, 5
      %v890 = vor.u32 %v886, %v889
      %v891 = vrot.slane %v890, 4
      %v893 = vshll.u32 %v686, 16
      %v895 = vrot.slane %v893, 5
      %v896 = vsel %vm714, %v891, %v895
      %v897 = vshrl.u32 %v686, 16
      %v899 = vrot.slane %v897, 4
      %v900 = vor.u32 %v899, %v895
      %v901 = vrot.slane %v900, 4
      %v903 = vshll.u32 %v687, 16
      %v905 = vrot.slane %v903, 5
      %v906 = vsel %vm714, %v901, %v905
      %v908 = vshrl.u32 %v688, 16
      %v910 = vrot.slane %v908, 4
      %v911 = vshll.u32 %v688, 16
      %v913 = vrot.slane %v911, 5
      %v914 = vor.u32 %v910, %v913
      %v915 = vrot.slane %v914, 4
      %v917 = vshll.u32 %v689, 16
      %v919 = vrot.slane %v917, 5
      %v920 = vsel %vm714, %v915, %v919
      %v921 = vshrl.u32 %v689, 16
      %v923 = vrot.slane %v921, 4
      %v924 = vor.u32 %v923, %v919
      %v925 = vrot.slane %v924, 4
      %v927 = vshll.u32 %v690, 16
      %v929 = vrot.slane %v927, 5
      %v930 = vsel %vm714, %v925, %v929
      %v932 = vshrl.u32 %v691, 16
      %v934 = vrot.slane %v932, 4
      %v935 = vshll.u32 %v691, 16
      %v937 = vrot.slane %v935, 5
      %v938 = vor.u32 %v934, %v937
      %v939 = vrot.slane %v938, 4
      %v941 = vshll.u32 %v692, 16
      %v943 = vrot.slane %v941, 5
      %v944 = vsel %vm714, %v939, %v943
      %v945 = vshrl.u32 %v692, 16
      %v947 = vrot.slane %v945, 4
      %v948 = vor.u32 %v947, %v943
      %v949 = vrot.slane %v948, 4
      %v951 = vshll.u32 %v693, 16
      %v953 = vrot.slane %v951, 5
      %v954 = vsel %vm714, %v949, %v953
      %v956 = vshrl.u32 %v694, 16
      %v958 = vrot.slane %v956, 4
      %v959 = vshll.u32 %v694, 16
      %v961 = vrot.slane %v959, 5
      %v962 = vor.u32 %v958, %v961
      %v963 = vrot.slane %v962, 4
      %v965 = vshll.u32 %v695, 16
      %v967 = vrot.slane %v965, 5
      %v968 = vsel %vm714, %v963, %v967
      %v969 = vshrl.u32 %v695, 16
      %v971 = vrot.slane %v969, 4
      %v972 = vor.u32 %v971, %v967
      %v973 = vrot.slane %v972, 4
      %v975 = vshll.u32 %v696, 16
      %v977 = vrot.slane %v975, 5
      %v978 = vsel %vm714, %v973, %v977
      %v980 = vshrl.u32 %v697, 16
      %v982 = vrot.slane %v980, 4
      %v983 = vshll.u32 %v697, 16
      %v985 = vrot.slane %v983, 5
      %v986 = vor.u32 %v982, %v985
      %v987 = vrot.slane %v986, 4
      %v989 = vshll.u32 %v698, 16
      %v991 = vrot.slane %v989, 5
      %v992 = vsel %vm714, %v987, %v991
      %v993 = vshrl.u32 %v698, 16
      %v995 = vrot.slane %v993, 4
      %v996 = vor.u32 %v995, %v991
      %v997 = vrot.slane %v996, 4
      %v999 = vshll.u32 %v699, 16
      %v1001 = vrot.slane %v999, 5
      %v1002 = vsel %vm714, %v997, %v1001
      %v1004 = vshrl.u32 %v700, 16
      %v1006 = vrot.slane %v1004, 4
      %v1007 = vshll.u32 %v700, 16
      %v1009 = vrot.slane %v1007, 5
      %v1010 = vor.u32 %v1006, %v1009
      %v1011 = vrot.slane %v1010, 4
      %v1013 = vshll.u32 %v701, 16
      %v1015 = vrot.slane %v1013, 5
      %v1016 = vsel %vm714, %v1011, %v1015
      %v1017 = vshrl.u32 %v701, 16
      %v1019 = vrot.slane %v1017, 4
      %v1020 = vor.u32 %v1019, %v1015
      %v1021 = vrot.slane %v1020, 4
      %v1023 = vshll.u32 %v702, 16
      %v1025 = vrot.slane %v1023, 5
      %v1026 = vsel %vm714, %v1021, %v1025
      %v1028 = vshrl.u32 %v703, 16
      %v1030 = vrot.slane %v1028, 4
      %v1031 = vshll.u32 %v703, 16
      %v1033 = vrot.slane %v1031, 5
      %v1034 = vor.u32 %v1030, %v1033
      %v1035 = vrot.slane %v1034, 4
      %v1037 = vshll.u32 %v704, 16
      %v1039 = vrot.slane %v1037, 5
      %v1040 = vsel %vm714, %v1035, %v1039
      %v1041 = vshrl.u32 %v704, 16
      %v1043 = vrot.slane %v1041, 4
      %v1044 = vor.u32 %v1043, %v1039
      %v1045 = vrot.slane %v1044, 4
      %v1047 = vshll.u32 %v705, 16
      %v1049 = vrot.slane %v1047, 5
      %v1050 = vsel %vm714, %v1045, %v1049
      %v1052 = vshrl.u32 %v706, 16
      %v1054 = vrot.slane %v1052, 4
      %v1055 = vshll.u32 %v706, 16
      %v1057 = vrot.slane %v1055, 5
      %v1058 = vor.u32 %v1054, %v1057
      %v1059 = vrot.slane %v1058, 4
      %v1061 = vshll.u32 %v707, 16
      %v1063 = vrot.slane %v1061, 5
      %v1064 = vsel %vm714, %v1059, %v1063
      %v1065 = vshrl.u32 %v707, 16
      %v1067 = vrot.slane %v1065, 4
      %v1068 = vor.u32 %v1067, %v1063
      %v1069 = vrot.slane %v1068, 4
      %v1071 = vshll.u32 %v708, 16
      %v1073 = vrot.slane %v1071, 5
      %v1074 = vsel %vm714, %v1069, %v1073
      %v1076 = vshrl.u32 %v709, 16
      %v1078 = vrot.slane %v1076, 4
      %v1079 = vshll.u32 %v709, 16
      %v1081 = vrot.slane %v1079, 5
      %v1082 = vor.u32 %v1078, %v1081
      %v1083 = vrot.slane %v1082, 4
      %v1085 = vshll.u32 %v710, 16
      %v1087 = vrot.slane %v1085, 5
      %v1088 = vsel %vm714, %v1083, %v1087
      %v1089 = vshrl.u32 %v710, 16
      %v1091 = vrot.slane %v1089, 4
      %v1092 = vor.u32 %v1091, %v1087
      %v1093 = vrot.slane %v1092, 4
      %v1095 = vshll.u32 %v711, 16
      %v1097 = vrot.slane %v1095, 5
      %v1098 = vsel %vm714, %v1093, %v1097
      %v1099 = vld [vmem:[#allocation2] sm:$0xff]
      %v1100 = vld [vmem:[#allocation2 + $0x8] sm:$0xff]
      %v1101 = vld [vmem:[#allocation2 + $0x10] sm:$0xff]
      %v1102 = vld [vmem:[#allocation2 + $0x18] sm:$0xff]
      %v1103 = vld [vmem:[#allocation2 + $0x20] sm:$0xff]
      %v1104 = vld [vmem:[#allocation2 + $0x28] sm:$0xff]
      %v1105 = vld [vmem:[#allocation2 + $0x30] sm:$0xff]
      %v1106 = vld [vmem:[#allocation2 + $0x38] sm:$0xff]
      %v1107 = vld [vmem:[#allocation2 + $0x40] sm:$0xff]
      %v1108 = vld [vmem:[#allocation2 + $0x48] sm:$0xff]
      %v1109 = vld [vmem:[#allocation2 + $0x50] sm:$0xff]
      %v1110 = vld [vmem:[#allocation2 + $0x58] sm:$0xff]
      %v1111 = vld [vmem:[#allocation2 + $0x60] sm:$0xff]
      %v1112 = vld [vmem:[#allocation2 + $0x68] sm:$0xff]
      %v1113 = vld [vmem:[#allocation2 + $0x70] sm:$0xff]
      %v1114 = vld [vmem:[#allocation2 + $0x78] sm:$0xff]
      %v1115 = vld [vmem:[#allocation2 + $0x80] sm:$0xff]
      %v1116 = vld [vmem:[#allocation2 + $0x88] sm:$0xff]
      %v1117 = vld [vmem:[#allocation2 + $0x90] sm:$0xff]
      %v1118 = vld [vmem:[#allocation2 + $0x98] sm:$0xff]
      %v1119 = vld [vmem:[#allocation2 + $0xa0] sm:$0xff]
      %v1120 = vld [vmem:[#allocation2 + $0xa8] sm:$0xff]
      %v1121 = vld [vmem:[#allocation2 + $0xb0] sm:$0xff]
      %v1122 = vld [vmem:[#allocation2 + $0xb8] sm:$0xff]
      %v1123 = vld [vmem:[#allocation2 + $0xc0] sm:$0xff]
      %v1124 = vld [vmem:[#allocation2 + $0xc8] sm:$0xff]
      %v1125 = vld [vmem:[#allocation2 + $0xd0] sm:$0xff]
      %v1126 = vld [vmem:[#allocation2 + $0xd8] sm:$0xff]
      %v1127 = vld [vmem:[#allocation2 + $0xe0] sm:$0xff]
      %v1128 = vld [vmem:[#allocation2 + $0xe8] sm:$0xff]
      %v1129 = vld [vmem:[#allocation2 + $0xf0] sm:$0xff]
      %v1130 = vld [vmem:[#allocation2 + $0xf8] sm:$0xff]
      %s1131 = scalar_lea.vmem %s1, 64
      %v1132 = vld [vmem:[%s1131] sm:$0xf]
      %v1133 = vld [vmem:[%s1131 + $0x4] sm:$0xf]
      %v1134 = vld [vmem:[%s1131 + $0x8] sm:$0xf]
      %v1135 = vld [vmem:[%s1131 + $0xc] sm:$0xf]
      %v1136 = vld [vmem:[%s1131 + $0x10] sm:$0xf]
      %v1137 = vld [vmem:[%s1131 + $0x14] sm:$0xf]
      %v1138 = vld [vmem:[%s1131 + $0x18] sm:$0xf]
      %v1139 = vld [vmem:[%s1131 + $0x1c] sm:$0xf]
      %v1140 = vld [vmem:[%s1131 + $0x20] sm:$0xf]
      %v1141 = vld [vmem:[%s1131 + $0x24] sm:$0xf]
      %v1142 = vld [vmem:[%s1131 + $0x28] sm:$0xf]
      %v1143 = vld [vmem:[%s1131 + $0x2c] sm:$0xf]
      %v1144 = vld [vmem:[%s1131 + $0x30] sm:$0xf]
      %v1145 = vld [vmem:[%s1131 + $0x34] sm:$0xf]
      %v1146 = vld [vmem:[%s1131 + $0x38] sm:$0xf]
      %v1147 = vld [vmem:[%s1131 + $0x3c] sm:$0xf]
      %v1148 = vunpack.c.l.b16 %v728
      %v1149 = vunpack.c.l.b16 %v738
      %v1150 = vunpack.c.l.b16 %v752
      %v1151 = vunpack.c.l.b16 %v762
      %v1152 = vunpack.c.l.b16 %v776
      %v1153 = vunpack.c.l.b16 %v786
      %v1154 = vunpack.c.l.b16 %v800
      %v1155 = vunpack.c.l.b16 %v810
      %v1156 = vunpack.c.l.b16 %v824
      %v1157 = vunpack.c.l.b16 %v834
      %v1158 = vunpack.c.l.b16 %v848
      %v1159 = vunpack.c.l.b16 %v858
      %v1160 = vunpack.c.l.b16 %v872
      %v1161 = vunpack.c.l.b16 %v882
      %v1162 = vunpack.c.l.b16 %v896
      %v1163 = vunpack.c.l.b16 %v906
      %v1164 = vunpack.c.l.b16 %v920
      %v1165 = vunpack.c.l.b16 %v930
      %v1166 = vunpack.c.l.b16 %v944
      %v1167 = vunpack.c.l.b16 %v954
      %v1168 = vunpack.c.l.b16 %v968
      %v1169 = vunpack.c.l.b16 %v978
      %v1170 = vunpack.c.l.b16 %v992
      %v1171 = vunpack.c.l.b16 %v1002
      %v1172 = vunpack.c.l.b16 %v1016
      %v1173 = vunpack.c.l.b16 %v1026
      %v1174 = vunpack.c.l.b16 %v1040
      %v1175 = vunpack.c.l.b16 %v1050
      %v1176 = vunpack.c.l.b16 %v1064
      %v1177 = vunpack.c.l.b16 %v1074
      %v1178 = vunpack.c.l.b16 %v1088
      %v1179 = vunpack.c.l.b16 %v1098
      %v1180 = vpack.c.b16 %v1149, %v1148
      %v1181 = vpack.c.b16 %v1151, %v1150
      %v1182 = vpack.c.b16 %v1153, %v1152
      %v1183 = vpack.c.b16 %v1155, %v1154
      %v1184 = vpack.c.b16 %v1157, %v1156
      %v1185 = vpack.c.b16 %v1159, %v1158
      %v1186 = vpack.c.b16 %v1161, %v1160
      %v1187 = vpack.c.b16 %v1163, %v1162
      %v1188 = vpack.c.b16 %v1165, %v1164
      %v1189 = vpack.c.b16 %v1167, %v1166
      %v1190 = vpack.c.b16 %v1169, %v1168
      %v1191 = vpack.c.b16 %v1171, %v1170
      %v1192 = vpack.c.b16 %v1173, %v1172
      %v1193 = vpack.c.b16 %v1175, %v1174
      %v1194 = vpack.c.b16 %v1177, %v1176
      %v1195 = vpack.c.b16 %v1179, %v1178
      %v1228 = vunpack.c.l.b16 %v1132
      %v1229 = vunpack.c.l.b16 %v1133
      %v1230 = vunpack.c.l.b16 %v1134
      %v1231 = vunpack.c.l.b16 %v1135
      %v1232 = vunpack.c.l.b16 %v1136
      %v1233 = vunpack.c.l.b16 %v1137
      %v1234 = vunpack.c.l.b16 %v1138
      %v1235 = vunpack.c.l.b16 %v1139
      %v1236 = vunpack.c.l.b16 %v1140
      %v1237 = vunpack.c.l.b16 %v1141
      %v1238 = vunpack.c.l.b16 %v1142
      %v1239 = vunpack.c.l.b16 %v1143
      %v1240 = vunpack.c.l.b16 %v1144
      %v1241 = vunpack.c.l.b16 %v1145
      %v1242 = vunpack.c.l.b16 %v1146
      %v1243 = vunpack.c.l.b16 %v1147
      %v1244 = vpack.c.b16 %v1229, %v1228
      %v1245 = vpack.c.b16 %v1231, %v1230
      %v1246 = vpack.c.b16 %v1233, %v1232
      %v1247 = vpack.c.b16 %v1235, %v1234
      %v1248 = vpack.c.b16 %v1237, %v1236
      %v1249 = vpack.c.b16 %v1239, %v1238
      %v1250 = vpack.c.b16 %v1241, %v1240
      %v1251 = vpack.c.b16 %v1243, %v1242
      %1260 = vmatprep.subr.bf16.mxu0 0
      %1261 = vmatpush1.bf16.msra.mxu0 %v1244
      %1262 = vmatprep.subr.bf16.mxu0 0
      %1263 = vmatpush1.bf16.msra.mxu0 %v1245
      %1264 = vmatprep.subr.bf16.mxu0 0
      %1265 = vmatpush1.bf16.msra.mxu0 %v1246
      %1266 = vmatprep.subr.bf16.mxu0 0
      %1267 = vmatpush1.bf16.msra.mxu0 %v1247
      %1268 = vmatprep.subr.bf16.mxu0 0
      %1269 = vmatpush1.bf16.msra.mxu0 %v1248
      %1270 = vmatprep.subr.bf16.mxu0 0
      %1271 = vmatpush1.bf16.msra.mxu0 %v1249
      %1272 = vmatprep.subr.bf16.mxu0 0
      %1273 = vmatpush1.bf16.msra.mxu0 %v1250
      %1274 = vmatprep.subr.bf16.mxu0 0
      %1275 = vmatpush1.bf16.msra.mxu0 %v1251
      %1276 = vmatprep.subr.bf16.mxu0 0
      %1277 = vmatpush1.bf16.msra.mxu0 0
      %1278 = vmatprep.subr.bf16.mxu0 0
      %1279 = vmatpush1.bf16.msra.mxu0 0
      %1280 = vmatprep.subr.bf16.mxu0 0
      %1281 = vmatpush1.bf16.msra.mxu0 0
      %1282 = vmatprep.subr.bf16.mxu0 0
      %1283 = vmatpush1.bf16.msra.mxu0 0
      %1284 = vmatprep.subr.bf16.mxu0 0
      %1285 = vmatpush1.bf16.msra.mxu0 0
      %1286 = vmatprep.subr.bf16.mxu0 0
      %1287 = vmatpush1.bf16.msra.mxu0 0
      %1288 = vmatprep.subr.bf16.mxu0 0
      %1289 = vmatpush1.bf16.msra.mxu0 0
      %1290 = vmatprep.subr.bf16.mxu0 0
      %1291 = vmatpush1.bf16.msra.mxu0 0
      %1292 = vmatprep.mubr.bf16.mxu0 0
      %1293 = vmatmul.mubr.bf16.gmra.mrb[0].mxu0 %v1180
      %v1294 = vpop.f32.mrb[0].mxu0
      %v1295 = vadd.f32 0.0, %v1294
      %v1296 = vpop.f32.mrb[0].mxu0
      %v1297 = vpop.f32.mrb[0].mxu0
      %v1298 = vadd.f32 0.0, %v1297
      %v1299 = vpop.f32.mrb[0].mxu0
      %1300 = vmatprep.mubr.bf16.mxu0 0
      %1301 = vmatmul.mubr.bf16.gmra.mrb[0].mxu0 %v1181
      %v1302 = vpop.f32.mrb[0].mxu0
      %v1303 = vadd.f32 0.0, %v1302
      %v1304 = vpop.f32.mrb[0].mxu0
      %v1305 = vpop.f32.mrb[0].mxu0
      %v1306 = vadd.f32 0.0, %v1305
      %v1307 = vpop.f32.mrb[0].mxu0
      %1308 = vmatprep.mubr.bf16.mxu0 0
      %1309 = vmatmul.mubr.bf16.gmra.mrb[0].mxu0 %v1182
      %v1310 = vpop.f32.mrb[0].mxu0
      %v1311 = vadd.f32 0.0, %v1310
      %v1312 = vpop.f32.mrb[0].mxu0
      %v1313 = vpop.f32.mrb[0].mxu0
      %v1314 = vadd.f32 0.0, %v1313
      %v1315 = vpop.f32.mrb[0].mxu0
      %1316 = vmatprep.mubr.bf16.mxu0 0
      %1317 = vmatmul.mubr.bf16.gmra.mrb[0].mxu0 %v1183
      %v1318 = vpop.f32.mrb[0].mxu0
      %v1319 = vadd.f32 0.0, %v1318
      %v1320 = vpop.f32.mrb[0].mxu0
      %v1321 = vpop.f32.mrb[0].mxu0
      %v1322 = vadd.f32 0.0, %v1321
      %v1323 = vpop.f32.mrb[0].mxu0
      %1324 = vmatprep.mubr.bf16.mxu0 0
      %1325 = vmatmul.mubr.bf16.gmra.mrb[0].mxu0 %v1184
      %v1326 = vpop.f32.mrb[0].mxu0
      %v1327 = vadd.f32 0.0, %v1326
      %v1328 = vpop.f32.mrb[0].mxu0
      %v1329 = vpop.f32.mrb[0].mxu0
      %v1330 = vadd.f32 0.0, %v1329
      %v1331 = vpop.f32.mrb[0].mxu0
      %1332 = vmatprep.mubr.bf16.mxu0 0
      %1333 = vmatmul.mubr.bf16.gmra.mrb[0].mxu0 %v1185
      %v1334 = vpop.f32.mrb[0].mxu0
      %v1335 = vadd.f32 0.0, %v1334
      %v1336 = vpop.f32.mrb[0].mxu0
      %v1337 = vpop.f32.mrb[0].mxu0
      %v1338 = vadd.f32 0.0, %v1337
      %v1339 = vpop.f32.mrb[0].mxu0
      %1340 = vmatprep.mubr.bf16.mxu0 0
      %1341 = vmatmul.mubr.bf16.gmra.mrb[0].mxu0 %v1186
      %v1342 = vpop.f32.mrb[0].mxu0
      %v1343 = vadd.f32 0.0, %v1342
      %v1344 = vpop.f32.mrb[0].mxu0
      %v1345 = vpop.f32.mrb[0].mxu0
      %v1346 = vadd.f32 0.0, %v1345
      %v1347 = vpop.f32.mrb[0].mxu0
      %1348 = vmatprep.mubr.bf16.mxu0 0
      %1349 = vmatmul.mubr.bf16.gmra.mrb[0].mxu0 %v1187
      %v1350 = vpop.f32.mrb[0].mxu0
      %v1351 = vadd.f32 0.0, %v1350
      %v1352 = vpop.f32.mrb[0].mxu0
      %v1353 = vpop.f32.mrb[0].mxu0
      %v1354 = vadd.f32 0.0, %v1353
      %v1355 = vpop.f32.mrb[0].mxu0
      %1356 = vmatprep.mubr.bf16.mxu0 0
      %1357 = vmatmul.mubr.bf16.gmra.mrb[0].mxu0 %v1188
      %v1358 = vpop.f32.mrb[0].mxu0
      %v1359 = vadd.f32 0.0, %v1358
      %v1360 = vpop.f32.mrb[0].mxu0
      %v1361 = vpop.f32.mrb[0].mxu0
      %v1362 = vadd.f32 0.0, %v1361
      %v1363 = vpop.f32.mrb[0].mxu0
      %1364 = vmatprep.mubr.bf16.mxu0 0
      %1365 = vmatmul.mubr.bf16.gmra.mrb[0].mxu0 %v1189
      %v1366 = vpop.f32.mrb[0].mxu0
      %v1367 = vadd.f32 0.0, %v1366
      %v1368 = vpop.f32.mrb[0].mxu0
      %v1369 = vpop.f32.mrb[0].mxu0
      %v1370 = vadd.f32 0.0, %v1369
      %v1371 = vpop.f32.mrb[0].mxu0
      %1372 = vmatprep.mubr.bf16.mxu0 0
      %1373 = vmatmul.mubr.bf16.gmra.mrb[0].mxu0 %v1190
      %v1374 = vpop.f32.mrb[0].mxu0
      %v1375 = vadd.f32 0.0, %v1374
      %v1376 = vpop.f32.mrb[0].mxu0
      %v1377 = vpop.f32.mrb[0].mxu0
      %v1378 = vadd.f32 0.0, %v1377
      %v1379 = vpop.f32.mrb[0].mxu0
      %1380 = vmatprep.mubr.bf16.mxu0 0
      %1381 = vmatmul.mubr.bf16.gmra.mrb[0].mxu0 %v1191
      %v1382 = vpop.f32.mrb[0].mxu0
      %v1383 = vadd.f32 0.0, %v1382
      %v1384 = vpop.f32.mrb[0].mxu0
      %v1385 = vpop.f32.mrb[0].mxu0
      %v1386 = vadd.f32 0.0, %v1385
      %v1387 = vpop.f32.mrb[0].mxu0
      %1388 = vmatprep.mubr.bf16.mxu0 0
      %1389 = vmatmul.mubr.bf16.gmra.mrb[0].mxu0 %v1192
      %v1390 = vpop.f32.mrb[0].mxu0
      %v1391 = vadd.f32 0.0, %v1390
      %v1392 = vpop.f32.mrb[0].mxu0
      %v1393 = vpop.f32.mrb[0].mxu0
      %v1394 = vadd.f32 0.0, %v1393
      %v1395 = vpop.f32.mrb[0].mxu0
      %1396 = vmatprep.mubr.bf16.mxu0 0
      %1397 = vmatmul.mubr.bf16.gmra.mrb[0].mxu0 %v1193
      %v1398 = vpop.f32.mrb[0].mxu0
      %v1399 = vadd.f32 0.0, %v1398
      %v1400 = vpop.f32.mrb[0].mxu0
      %v1401 = vpop.f32.mrb[0].mxu0
      %v1402 = vadd.f32 0.0, %v1401
      %v1403 = vpop.f32.mrb[0].mxu0
      %1404 = vmatprep.mubr.bf16.mxu0 0
      %1405 = vmatmul.mubr.bf16.gmra.mrb[0].mxu0 %v1194
      %v1406 = vpop.f32.mrb[0].mxu0
      %v1407 = vadd.f32 0.0, %v1406
      %v1408 = vpop.f32.mrb[0].mxu0
      %v1409 = vpop.f32.mrb[0].mxu0
      %v1410 = vadd.f32 0.0, %v1409
      %v1411 = vpop.f32.mrb[0].mxu0
      %1412 = vmatprep.mubr.bf16.mxu0 0
      %1413 = vmatmul.mubr.bf16.gmra.mrb[0].mxu0 %v1195
      %v1414 = vpop.f32.mrb[0].mxu0
      %v1415 = vadd.f32 0.0, %v1414
      %v1416 = vpop.f32.mrb[0].mxu0
      %v1417 = vpop.f32.mrb[0].mxu0
      %v1418 = vadd.f32 0.0, %v1417
      %v1419 = vpop.f32.mrb[0].mxu0
      %1420 = vdwg.mxu0
      %v1421 = vadd.f32 %v1099, %v1295
      %v1422 = vadd.f32 %v1100, %v1298
      %v1423 = vadd.f32 %v1101, %v1303
      %v1424 = vadd.f32 %v1102, %v1306
      %v1425 = vadd.f32 %v1103, %v1311
      %v1426 = vadd.f32 %v1104, %v1314
      %v1427 = vadd.f32 %v1105, %v1319
      %v1428 = vadd.f32 %v1106, %v1322
      %v1429 = vadd.f32 %v1107, %v1327
      %v1430 = vadd.f32 %v1108, %v1330
      %v1431 = vadd.f32 %v1109, %v1335
      %v1432 = vadd.f32 %v1110, %v1338
      %v1433 = vadd.f32 %v1111, %v1343
      %v1434 = vadd.f32 %v1112, %v1346
      %v1435 = vadd.f32 %v1113, %v1351
      %v1436 = vadd.f32 %v1114, %v1354
      %v1437 = vadd.f32 %v1115, %v1359
      %v1438 = vadd.f32 %v1116, %v1362
      %v1439 = vadd.f32 %v1117, %v1367
      %v1440 = vadd.f32 %v1118, %v1370
      %v1441 = vadd.f32 %v1119, %v1375
      %v1442 = vadd.f32 %v1120, %v1378
      %v1443 = vadd.f32 %v1121, %v1383
      %v1444 = vadd.f32 %v1122, %v1386
      %v1445 = vadd.f32 %v1123, %v1391
      %v1446 = vadd.f32 %v1124, %v1394
      %v1447 = vadd.f32 %v1125, %v1399
      %v1448 = vadd.f32 %v1126, %v1402
      %v1449 = vadd.f32 %v1127, %v1407
      %v1450 = vadd.f32 %v1128, %v1410
      %v1451 = vadd.f32 %v1129, %v1415
      %v1452 = vadd.f32 %v1130, %v1418
      %1453 = vst [vmem:[#allocation2] sm:$0xff] %v1421
      %1454 = vst [vmem:[#allocation2 + $0x8] sm:$0xff] %v1422
      %1455 = vst [vmem:[#allocation2 + $0x10] sm:$0xff] %v1423
      %1456 = vst [vmem:[#allocation2 + $0x18] sm:$0xff] %v1424
      %1457 = vst [vmem:[#allocation2 + $0x20] sm:$0xff] %v1425
      %1458 = vst [vmem:[#allocation2 + $0x28] sm:$0xff] %v1426
      %1459 = vst [vmem:[#allocation2 + $0x30] sm:$0xff] %v1427
      %1460 = vst [vmem:[#allocation2 + $0x38] sm:$0xff] %v1428
      %1461 = vst [vmem:[#allocation2 + $0x40] sm:$0xff] %v1429
      %1462 = vst [vmem:[#allocation2 + $0x48] sm:$0xff] %v1430
      %1463 = vst [vmem:[#allocation2 + $0x50] sm:$0xff] %v1431
      %1464 = vst [vmem:[#allocation2 + $0x58] sm:$0xff] %v1432
      %1465 = vst [vmem:[#allocation2 + $0x60] sm:$0xff] %v1433
      %1466 = vst [vmem:[#allocation2 + $0x68] sm:$0xff] %v1434
      %1467 = vst [vmem:[#allocation2 + $0x70] sm:$0xff] %v1435
      %1468 = vst [vmem:[#allocation2 + $0x78] sm:$0xff] %v1436
      %1469 = vst [vmem:[#allocation2 + $0x80] sm:$0xff] %v1437
      %1470 = vst [vmem:[#allocation2 + $0x88] sm:$0xff] %v1438
      %1471 = vst [vmem:[#allocation2 + $0x90] sm:$0xff] %v1439
      %1472 = vst [vmem:[#allocation2 + $0x98] sm:$0xff] %v1440
      %1473 = vst [vmem:[#allocation2 + $0xa0] sm:$0xff] %v1441
      %1474 = vst [vmem:[#allocation2 + $0xa8] sm:$0xff] %v1442
      %1475 = vst [vmem:[#allocation2 + $0xb0] sm:$0xff] %v1443
      %1476 = vst [vmem:[#allocation2 + $0xb8] sm:$0xff] %v1444
      %1477 = vst [vmem:[#allocation2 + $0xc0] sm:$0xff] %v1445
      %1478 = vst [vmem:[#allocation2 + $0xc8] sm:$0xff] %v1446
      %1479 = vst [vmem:[#allocation2 + $0xd0] sm:$0xff] %v1447
      %1480 = vst [vmem:[#allocation2 + $0xd8] sm:$0xff] %v1448
      %1481 = vst [vmem:[#allocation2 + $0xe0] sm:$0xff] %v1449
      %1482 = vst [vmem:[#allocation2 + $0xe8] sm:$0xff] %v1450
      %1483 = vst [vmem:[#allocation2 + $0xf0] sm:$0xff] %v1451
      %1484 = vst [vmem:[#allocation2 + $0xf8] sm:$0xff] %v1452
      %v1485 = vld [vmem:[%s172] sm:$0xe]
      %v1486 = vld [vmem:[%s172 + $0x4] sm:$0xf]
      %v1487 = vld [vmem:[%s172 + $0x8] sm:$0x1]
      %v1488 = vld [vmem:[%s172 + $0xc] sm:$0xe]
      %v1489 = vld [vmem:[%s172 + $0x10] sm:$0xf]
      %v1490 = vld [vmem:[%s172 + $0x14] sm:$0x1]
      %v1491 = vld [vmem:[%s172 + $0x18] sm:$0xe]
      %v1492 = vld [vmem:[%s172 + $0x1c] sm:$0xf]
      %v1493 = vld [vmem:[%s172 + $0x20] sm:$0x1]
      %v1494 = vld [vmem:[%s172 + $0x24] sm:$0xe]
      %v1495 = vld [vmem:[%s172 + $0x28] sm:$0xf]
      %v1496 = vld [vmem:[%s172 + $0x2c] sm:$0x1]
      %v1497 = vld [vmem:[%s172 + $0x30] sm:$0xe]
      %v1498 = vld [vmem:[%s172 + $0x34] sm:$0xf]
      %v1499 = vld [vmem:[%s172 + $0x38] sm:$0x1]
      %v1500 = vld [vmem:[%s172 + $0x3c] sm:$0xe]
      %v1501 = vld [vmem:[%s172 + $0x40] sm:$0xf]
      %v1502 = vld [vmem:[%s172 + $0x44] sm:$0x1]
      %v1503 = vld [vmem:[%s172 + $0x48] sm:$0xe]
      %v1504 = vld [vmem:[%s172 + $0x4c] sm:$0xf]
      %v1505 = vld [vmem:[%s172 + $0x50] sm:$0x1]
      %v1506 = vld [vmem:[%s172 + $0x54] sm:$0xe]
      %v1507 = vld [vmem:[%s172 + $0x58] sm:$0xf]
      %v1508 = vld [vmem:[%s172 + $0x5c] sm:$0x1]
      %v1509 = vld [vmem:[%s172 + $0x60] sm:$0xe]
      %v1510 = vld [vmem:[%s172 + $0x64] sm:$0xf]
      %v1511 = vld [vmem:[%s172 + $0x68] sm:$0x1]
      %v1512 = vld [vmem:[%s172 + $0x6c] sm:$0xe]
      %v1513 = vld [vmem:[%s172 + $0x70] sm:$0xf]
      %v1514 = vld [vmem:[%s172 + $0x74] sm:$0x1]
      %v1515 = vld [vmem:[%s172 + $0x78] sm:$0xe]
      %v1516 = vld [vmem:[%s172 + $0x7c] sm:$0xf]
      %v1517 = vld [vmem:[%s172 + $0x80] sm:$0x1]
      %v1518 = vld [vmem:[%s172 + $0x84] sm:$0xe]
      %v1519 = vld [vmem:[%s172 + $0x88] sm:$0xf]
      %v1520 = vld [vmem:[%s172 + $0x8c] sm:$0x1]
      %v1521 = vld [vmem:[%s172 + $0x90] sm:$0xe]
      %v1522 = vld [vmem:[%s172 + $0x94] sm:$0xf]
      %v1523 = vld [vmem:[%s172 + $0x98] sm:$0x1]
      %v1524 = vld [vmem:[%s172 + $0x9c] sm:$0xe]
      %v1525 = vld [vmem:[%s172 + $0xa0] sm:$0xf]
      %v1526 = vld [vmem:[%s172 + $0xa4] sm:$0x1]
      %v1527 = vld [vmem:[%s172 + $0xa8] sm:$0xe]
      %v1528 = vld [vmem:[%s172 + $0xac] sm:$0xf]
      %v1529 = vld [vmem:[%s172 + $0xb0] sm:$0x1]
      %v1530 = vld [vmem:[%s172 + $0xb4] sm:$0xe]
      %v1531 = vld [vmem:[%s172 + $0xb8] sm:$0xf]
      %v1532 = vld [vmem:[%s172 + $0xbc] sm:$0x1]
      %vm1581 = vcmask 1042432
      %vm1582 = vcmask 1046532
      %vm1583 = vmor %vm1581, %vm1582
      %v1584 = vrot.slane %v1485, 5
      %v1585 = vrot.slane %v1584, 4
      %v1586 = vrot.slane %v1486, 5
      %v1587 = vsel %vm1583, %v1585, %v1586
      %v1588 = vrot.slane %v1586, 4
      %v1589 = vrot.slane %v1487, 5
      %v1590 = vsel %vm1583, %v1588, %v1589
      %v1591 = vrot.slane %v1488, 5
      %v1592 = vrot.slane %v1591, 4
      %v1593 = vrot.slane %v1489, 5
      %v1594 = vsel %vm1583, %v1592, %v1593
      %v1595 = vrot.slane %v1593, 4
      %v1596 = vrot.slane %v1490, 5
      %v1597 = vsel %vm1583, %v1595, %v1596
      %v1598 = vrot.slane %v1491, 5
      %v1599 = vrot.slane %v1598, 4
      %v1600 = vrot.slane %v1492, 5
      %v1601 = vsel %vm1583, %v1599, %v1600
      %v1602 = vrot.slane %v1600, 4
      %v1603 = vrot.slane %v1493, 5
      %v1604 = vsel %vm1583, %v1602, %v1603
      %v1605 = vrot.slane %v1494, 5
      %v1606 = vrot.slane %v1605, 4
      %v1607 = vrot.slane %v1495, 5
      %v1608 = vsel %vm1583, %v1606, %v1607
      %v1609 = vrot.slane %v1607, 4
      %v1610 = vrot.slane %v1496, 5
      %v1611 = vsel %vm1583, %v1609, %v1610
      %v1612 = vrot.slane %v1497, 5
      %v1613 = vrot.slane %v1612, 4
      %v1614 = vrot.slane %v1498, 5
      %v1615 = vsel %vm1583, %v1613, %v1614
      %v1616 = vrot.slane %v1614, 4
      %v1617 = vrot.slane %v1499, 5
      %v1618 = vsel %vm1583, %v1616, %v1617
      %v1619 = vrot.slane %v1500, 5
      %v1620 = vrot.slane %v1619, 4
      %v1621 = vrot.slane %v1501, 5
      %v1622 = vsel %vm1583, %v1620, %v1621
      %v1623 = vrot.slane %v1621, 4
      %v1624 = vrot.slane %v1502, 5
      %v1625 = vsel %vm1583, %v1623, %v1624
      %v1626 = vrot.slane %v1503, 5
      %v1627 = vrot.slane %v1626, 4
      %v1628 = vrot.slane %v1504, 5
      %v1629 = vsel %vm1583, %v1627, %v1628
      %v1630 = vrot.slane %v1628, 4
      %v1631 = vrot.slane %v1505, 5
      %v1632 = vsel %vm1583, %v1630, %v1631
      %v1633 = vrot.slane %v1506, 5
      %v1634 = vrot.slane %v1633, 4
      %v1635 = vrot.slane %v1507, 5
      %v1636 = vsel %vm1583, %v1634, %v1635
      %v1637 = vrot.slane %v1635, 4
      %v1638 = vrot.slane %v1508, 5
      %v1639 = vsel %vm1583, %v1637, %v1638
      %v1640 = vrot.slane %v1509, 5
      %v1641 = vrot.slane %v1640, 4
      %v1642 = vrot.slane %v1510, 5
      %v1643 = vsel %vm1583, %v1641, %v1642
      %v1644 = vrot.slane %v1642, 4
      %v1645 = vrot.slane %v1511, 5
      %v1646 = vsel %vm1583, %v1644, %v1645
      %v1647 = vrot.slane %v1512, 5
      %v1648 = vrot.slane %v1647, 4
      %v1649 = vrot.slane %v1513, 5
      %v1650 = vsel %vm1583, %v1648, %v1649
      %v1651 = vrot.slane %v1649, 4
      %v1652 = vrot.slane %v1514, 5
      %v1653 = vsel %vm1583, %v1651, %v1652
      %v1654 = vrot.slane %v1515, 5
      %v1655 = vrot.slane %v1654, 4
      %v1656 = vrot.slane %v1516, 5
      %v1657 = vsel %vm1583, %v1655, %v1656
      %v1658 = vrot.slane %v1656, 4
      %v1659 = vrot.slane %v1517, 5
      %v1660 = vsel %vm1583, %v1658, %v1659
      %v1661 = vrot.slane %v1518, 5
      %v1662 = vrot.slane %v1661, 4
      %v1663 = vrot.slane %v1519, 5
      %v1664 = vsel %vm1583, %v1662, %v1663
      %v1665 = vrot.slane %v1663, 4
      %v1666 = vrot.slane %v1520, 5
      %v1667 = vsel %vm1583, %v1665, %v1666
      %v1668 = vrot.slane %v1521, 5
      %v1669 = vrot.slane %v1668, 4
      %v1670 = vrot.slane %v1522, 5
      %v1671 = vsel %vm1583, %v1669, %v1670
      %v1672 = vrot.slane %v1670, 4
      %v1673 = vrot.slane %v1523, 5
      %v1674 = vsel %vm1583, %v1672, %v1673
      %v1675 = vrot.slane %v1524, 5
      %v1676 = vrot.slane %v1675, 4
      %v1677 = vrot.slane %v1525, 5
      %v1678 = vsel %vm1583, %v1676, %v1677
      %v1679 = vrot.slane %v1677, 4
      %v1680 = vrot.slane %v1526, 5
      %v1681 = vsel %vm1583, %v1679, %v1680
      %v1682 = vrot.slane %v1527, 5
      %v1683 = vrot.slane %v1682, 4
      %v1684 = vrot.slane %v1528, 5
      %v1685 = vsel %vm1583, %v1683, %v1684
      %v1686 = vrot.slane %v1684, 4
      %v1687 = vrot.slane %v1529, 5
      %v1688 = vsel %vm1583, %v1686, %v1687
      %v1689 = vrot.slane %v1530, 5
      %v1690 = vrot.slane %v1689, 4
      %v1691 = vrot.slane %v1531, 5
      %v1692 = vsel %vm1583, %v1690, %v1691
      %v1693 = vrot.slane %v1691, 4
      %v1694 = vrot.slane %v1532, 5
      %v1695 = vsel %vm1583, %v1693, %v1694
      %v1696 = vld [vmem:[#allocation2] sm:$0xff]
      %v1697 = vld [vmem:[#allocation2 + $0x8] sm:$0xff]
      %v1698 = vld [vmem:[#allocation2 + $0x10] sm:$0xff]
      %v1699 = vld [vmem:[#allocation2 + $0x18] sm:$0xff]
      %v1700 = vld [vmem:[#allocation2 + $0x20] sm:$0xff]
      %v1701 = vld [vmem:[#allocation2 + $0x28] sm:$0xff]
      %v1702 = vld [vmem:[#allocation2 + $0x30] sm:$0xff]
      %v1703 = vld [vmem:[#allocation2 + $0x38] sm:$0xff]
      %v1704 = vld [vmem:[#allocation2 + $0x40] sm:$0xff]
      %v1705 = vld [vmem:[#allocation2 + $0x48] sm:$0xff]
      %v1706 = vld [vmem:[#allocation2 + $0x50] sm:$0xff]
      %v1707 = vld [vmem:[#allocation2 + $0x58] sm:$0xff]
      %v1708 = vld [vmem:[#allocation2 + $0x60] sm:$0xff]
      %v1709 = vld [vmem:[#allocation2 + $0x68] sm:$0xff]
      %v1710 = vld [vmem:[#allocation2 + $0x70] sm:$0xff]
      %v1711 = vld [vmem:[#allocation2 + $0x78] sm:$0xff]
      %v1712 = vld [vmem:[#allocation2 + $0x80] sm:$0xff]
      %v1713 = vld [vmem:[#allocation2 + $0x88] sm:$0xff]
      %v1714 = vld [vmem:[#allocation2 + $0x90] sm:$0xff]
      %v1715 = vld [vmem:[#allocation2 + $0x98] sm:$0xff]
      %v1716 = vld [vmem:[#allocation2 + $0xa0] sm:$0xff]
      %v1717 = vld [vmem:[#allocation2 + $0xa8] sm:$0xff]
      %v1718 = vld [vmem:[#allocation2 + $0xb0] sm:$0xff]
      %v1719 = vld [vmem:[#allocation2 + $0xb8] sm:$0xff]
      %v1720 = vld [vmem:[#allocation2 + $0xc0] sm:$0xff]
      %v1721 = vld [vmem:[#allocation2 + $0xc8] sm:$0xff]
      %v1722 = vld [vmem:[#allocation2 + $0xd0] sm:$0xff]
      %v1723 = vld [vmem:[#allocation2 + $0xd8] sm:$0xff]
      %v1724 = vld [vmem:[#allocation2 + $0xe0] sm:$0xff]
      %v1725 = vld [vmem:[#allocation2 + $0xe8] sm:$0xff]
      %v1726 = vld [vmem:[#allocation2 + $0xf0] sm:$0xff]
      %v1727 = vld [vmem:[#allocation2 + $0xf8] sm:$0xff]
      %s1728 = scalar_lea.vmem %s1, 128
      %v1729 = vld [vmem:[%s1728] sm:$0xf]
      %v1730 = vld [vmem:[%s1728 + $0x4] sm:$0xf]
      %v1731 = vld [vmem:[%s1728 + $0x8] sm:$0xf]
      %v1732 = vld [vmem:[%s1728 + $0xc] sm:$0xf]
      %v1733 = vld [vmem:[%s1728 + $0x10] sm:$0xf]
      %v1734 = vld [vmem:[%s1728 + $0x14] sm:$0xf]
      %v1735 = vld [vmem:[%s1728 + $0x18] sm:$0xf]
      %v1736 = vld [vmem:[%s1728 + $0x1c] sm:$0xf]
      %v1737 = vld [vmem:[%s1728 + $0x20] sm:$0xf]
      %v1738 = vld [vmem:[%s1728 + $0x24] sm:$0xf]
      %v1739 = vld [vmem:[%s1728 + $0x28] sm:$0xf]
      %v1740 = vld [vmem:[%s1728 + $0x2c] sm:$0xf]
      %v1741 = vld [vmem:[%s1728 + $0x30] sm:$0xf]
      %v1742 = vld [vmem:[%s1728 + $0x34] sm:$0xf]
      %v1743 = vld [vmem:[%s1728 + $0x38] sm:$0xf]
      %v1744 = vld [vmem:[%s1728 + $0x3c] sm:$0xf]
      %v1745 = vunpack.c.l.b16 %v1587
      %v1746 = vunpack.c.l.b16 %v1590
      %v1747 = vunpack.c.l.b16 %v1594
      %v1748 = vunpack.c.l.b16 %v1597
      %v1749 = vunpack.c.l.b16 %v1601
      %v1750 = vunpack.c.l.b16 %v1604
      %v1751 = vunpack.c.l.b16 %v1608
      %v1752 = vunpack.c.l.b16 %v1611
      %v1753 = vunpack.c.l.b16 %v1615
      %v1754 = vunpack.c.l.b16 %v1618
      %v1755 = vunpack.c.l.b16 %v1622
      %v1756 = vunpack.c.l.b16 %v1625
      %v1757 = vunpack.c.l.b16 %v1629
      %v1758 = vunpack.c.l.b16 %v1632
      %v1759 = vunpack.c.l.b16 %v1636
      %v1760 = vunpack.c.l.b16 %v1639
      %v1761 = vunpack.c.l.b16 %v1643
      %v1762 = vunpack.c.l.b16 %v1646
      %v1763 = vunpack.c.l.b16 %v1650
      %v1764 = vunpack.c.l.b16 %v1653
      %v1765 = vunpack.c.l.b16 %v1657
      %v1766 = vunpack.c.l.b16 %v1660
      %v1767 = vunpack.c.l.b16 %v1664
      %v1768 = vunpack.c.l.b16 %v1667
      %v1769 = vunpack.c.l.b16 %v1671
      %v1770 = vunpack.c.l.b16 %v1674
      %v1771 = vunpack.c.l.b16 %v1678
      %v1772 = vunpack.c.l.b16 %v1681
      %v1773 = vunpack.c.l.b16 %v1685
      %v1774 = vunpack.c.l.b16 %v1688
      %v1775 = vunpack.c.l.b16 %v1692
      %v1776 = vunpack.c.l.b16 %v1695
      %v1777 = vpack.c.b16 %v1746, %v1745
      %v1778 = vpack.c.b16 %v1748, %v1747
      %v1779 = vpack.c.b16 %v1750, %v1749
      %v1780 = vpack.c.b16 %v1752, %v1751
      %v1781 = vpack.c.b16 %v1754, %v1753
      %v1782 = vpack.c.b16 %v1756, %v1755
      %v1783 = vpack.c.b16 %v1758, %v1757
      %v1784 = vpack.c.b16 %v1760, %v1759
      %v1785 = vpack.c.b16 %v1762, %v1761
      %v1786 = vpack.c.b16 %v1764, %v1763
      %v1787 = vpack.c.b16 %v1766, %v1765
      %v1788 = vpack.c.b16 %v1768, %v1767
      %v1789 = vpack.c.b16 %v1770, %v1769
      %v1790 = vpack.c.b16 %v1772, %v1771
      %v1791 = vpack.c.b16 %v1774, %v1773
      %v1792 = vpack.c.b16 %v1776, %v1775
      %v1825 = vunpack.c.l.b16 %v1729
      %v1826 = vunpack.c.l.b16 %v1730
      %v1827 = vunpack.c.l.b16 %v1731
      %v1828 = vunpack.c.l.b16 %v1732
      %v1829 = vunpack.c.l.b16 %v1733
      %v1830 = vunpack.c.l.b16 %v1734
      %v1831 = vunpack.c.l.b16 %v1735
      %v1832 = vunpack.c.l.b16 %v1736
      %v1833 = vunpack.c.l.b16 %v1737
      %v1834 = vunpack.c.l.b16 %v1738
      %v1835 = vunpack.c.l.b16 %v1739
      %v1836 = vunpack.c.l.b16 %v1740
      %v1837 = vunpack.c.l.b16 %v1741
      %v1838 = vunpack.c.l.b16 %v1742
      %v1839 = vunpack.c.l.b16 %v1743
      %v1840 = vunpack.c.l.b16 %v1744
      %v1841 = vpack.c.b16 %v1826, %v1825
      %v1842 = vpack.c.b16 %v1828, %v1827
      %v1843 = vpack.c.b16 %v1830, %v1829
      %v1844 = vpack.c.b16 %v1832, %v1831
      %v1845 = vpack.c.b16 %v1834, %v1833
      %v1846 = vpack.c.b16 %v1836, %v1835
      %v1847 = vpack.c.b16 %v1838, %v1837
      %v1848 = vpack.c.b16 %v1840, %v1839
      %1857 = vmatprep.subr.bf16.mxu0 0
      %1858 = vmatpush1.bf16.msra.mxu0 %v1841
      %1859 = vmatprep.subr.bf16.mxu0 0
      %1860 = vmatpush1.bf16.msra.mxu0 %v1842
      %1861 = vmatprep.subr.bf16.mxu0 0
      %1862 = vmatpush1.bf16.msra.mxu0 %v1843
      %1863 = vmatprep.subr.bf16.mxu0 0
      %1864 = vmatpush1.bf16.msra.mxu0 %v1844
      %1865 = vmatprep.subr.bf16.mxu0 0
      %1866 = vmatpush1.bf16.msra.mxu0 %v1845
      %1867 = vmatprep.subr.bf16.mxu0 0
      %1868 = vmatpush1.bf16.msra.mxu0 %v1846
      %1869 = vmatprep.subr.bf16.mxu0 0
      %1870 = vmatpush1.bf16.msra.mxu0 %v1847
      %1871 = vmatprep.subr.bf16.mxu0 0
      %1872 = vmatpush1.bf16.msra.mxu0 %v1848
      %1873 = vmatprep.subr.bf16.mxu0 0
      %1874 = vmatpush1.bf16.msra.mxu0 0
      %1875 = vmatprep.subr.bf16.mxu0 0
      %1876 = vmatpush1.bf16.msra.mxu0 0
      %1877 = vmatprep.subr.bf16.mxu0 0
      %1878 = vmatpush1.bf16.msra.mxu0 0
      %1879 = vmatprep.subr.bf16.mxu0 0
      %1880 = vmatpush1.bf16.msra.mxu0 0
      %1881 = vmatprep.subr.bf16.mxu0 0
      %1882 = vmatpush1.bf16.msra.mxu0 0
      %1883 = vmatprep.subr.bf16.mxu0 0
      %1884 = vmatpush1.bf16.msra.mxu0 0
      %1885 = vmatprep.subr.bf16.mxu0 0
      %1886 = vmatpush1.bf16.msra.mxu0 0
      %1887 = vmatprep.subr.bf16.mxu0 0
      %1888 = vmatpush1.bf16.msra.mxu0 0
      %1889 = vmatprep.mubr.bf16.mxu0 0
      %1890 = vmatmul.mubr.bf16.gmra.mrb[0].mxu0 %v1777
      %v1891 = vpop.f32.mrb[0].mxu0
      %v1892 = vadd.f32 0.0, %v1891
      %v1893 = vpop.f32.mrb[0].mxu0
      %v1894 = vpop.f32.mrb[0].mxu0
      %v1895 = vadd.f32 0.0, %v1894
      %v1896 = vpop.f32.mrb[0].mxu0
      %1897 = vmatprep.mubr.bf16.mxu0 0
      %1898 = vmatmul.mubr.bf16.gmra.mrb[0].mxu0 %v1778
      %v1899 = vpop.f32.mrb[0].mxu0
      %v1900 = vadd.f32 0.0, %v1899
      %v1901 = vpop.f32.mrb[0].mxu0
      %v1902 = vpop.f32.mrb[0].mxu0
      %v1903 = vadd.f32 0.0, %v1902
      %v1904 = vpop.f32.mrb[0].mxu0
      %1905 = vmatprep.mubr.bf16.mxu0 0
      %1906 = vmatmul.mubr.bf16.gmra.mrb[0].mxu0 %v1779
      %v1907 = vpop.f32.mrb[0].mxu0
      %v1908 = vadd.f32 0.0, %v1907
      %v1909 = vpop.f32.mrb[0].mxu0
      %v1910 = vpop.f32.mrb[0].mxu0
      %v1911 = vadd.f32 0.0, %v1910
      %v1912 = vpop.f32.mrb[0].mxu0
      %1913 = vmatprep.mubr.bf16.mxu0 0
      %1914 = vmatmul.mubr.bf16.gmra.mrb[0].mxu0 %v1780
      %v1915 = vpop.f32.mrb[0].mxu0
      %v1916 = vadd.f32 0.0, %v1915
      %v1917 = vpop.f32.mrb[0].mxu0
      %v1918 = vpop.f32.mrb[0].mxu0
      %v1919 = vadd.f32 0.0, %v1918
      %v1920 = vpop.f32.mrb[0].mxu0
      %1921 = vmatprep.mubr.bf16.mxu0 0
      %1922 = vmatmul.mubr.bf16.gmra.mrb[0].mxu0 %v1781
      %v1923 = vpop.f32.mrb[0].mxu0
      %v1924 = vadd.f32 0.0, %v1923
      %v1925 = vpop.f32.mrb[0].mxu0
      %v1926 = vpop.f32.mrb[0].mxu0
      %v1927 = vadd.f32 0.0, %v1926
      %v1928 = vpop.f32.mrb[0].mxu0
      %1929 = vmatprep.mubr.bf16.mxu0 0
      %1930 = vmatmul.mubr.bf16.gmra.mrb[0].mxu0 %v1782
      %v1931 = vpop.f32.mrb[0].mxu0
      %v1932 = vadd.f32 0.0, %v1931
      %v1933 = vpop.f32.mrb[0].mxu0
      %v1934 = vpop.f32.mrb[0].mxu0
      %v1935 = vadd.f32 0.0, %v1934
      %v1936 = vpop.f32.mrb[0].mxu0
      %1937 = vmatprep.mubr.bf16.mxu0 0
      %1938 = vmatmul.mubr.bf16.gmra.mrb[0].mxu0 %v1783
      %v1939 = vpop.f32.mrb[0].mxu0
      %v1940 = vadd.f32 0.0, %v1939
      %v1941 = vpop.f32.mrb[0].mxu0
      %v1942 = vpop.f32.mrb[0].mxu0
      %v1943 = vadd.f32 0.0, %v1942
      %v1944 = vpop.f32.mrb[0].mxu0
      %1945 = vmatprep.mubr.bf16.mxu0 0
      %1946 = vmatmul.mubr.bf16.gmra.mrb[0].mxu0 %v1784
      %v1947 = vpop.f32.mrb[0].mxu0
      %v1948 = vadd.f32 0.0, %v1947
      %v1949 = vpop.f32.mrb[0].mxu0
      %v1950 = vpop.f32.mrb[0].mxu0
      %v1951 = vadd.f32 0.0, %v1950
      %v1952 = vpop.f32.mrb[0].mxu0
      %1953 = vmatprep.mubr.bf16.mxu0 0
      %1954 = vmatmul.mubr.bf16.gmra.mrb[0].mxu0 %v1785
      %v1955 = vpop.f32.mrb[0].mxu0
      %v1956 = vadd.f32 0.0, %v1955
      %v1957 = vpop.f32.mrb[0].mxu0
      %v1958 = vpop.f32.mrb[0].mxu0
      %v1959 = vadd.f32 0.0, %v1958
      %v1960 = vpop.f32.mrb[0].mxu0
      %1961 = vmatprep.mubr.bf16.mxu0 0
      %1962 = vmatmul.mubr.bf16.gmra.mrb[0].mxu0 %v1786
      %v1963 = vpop.f32.mrb[0].mxu0
      %v1964 = vadd.f32 0.0, %v1963
      %v1965 = vpop.f32.mrb[0].mxu0
      %v1966 = vpop.f32.mrb[0].mxu0
      %v1967 = vadd.f32 0.0, %v1966
      %v1968 = vpop.f32.mrb[0].mxu0
      %1969 = vmatprep.mubr.bf16.mxu0 0
      %1970 = vmatmul.mubr.bf16.gmra.mrb[0].mxu0 %v1787
      %v1971 = vpop.f32.mrb[0].mxu0
      %v1972 = vadd.f32 0.0, %v1971
      %v1973 = vpop.f32.mrb[0].mxu0
      %v1974 = vpop.f32.mrb[0].mxu0
      %v1975 = vadd.f32 0.0, %v1974
      %v1976 = vpop.f32.mrb[0].mxu0
      %1977 = vmatprep.mubr.bf16.mxu0 0
      %1978 = vmatmul.mubr.bf16.gmra.mrb[0].mxu0 %v1788
      %v1979 = vpop.f32.mrb[0].mxu0
      %v1980 = vadd.f32 0.0, %v1979
      %v1981 = vpop.f32.mrb[0].mxu0
      %v1982 = vpop.f32.mrb[0].mxu0
      %v1983 = vadd.f32 0.0, %v1982
      %v1984 = vpop.f32.mrb[0].mxu0
      %1985 = vmatprep.mubr.bf16.mxu0 0
      %1986 = vmatmul.mubr.bf16.gmra.mrb[0].mxu0 %v1789
      %v1987 = vpop.f32.mrb[0].mxu0
      %v1988 = vadd.f32 0.0, %v1987
      %v1989 = vpop.f32.mrb[0].mxu0
      %v1990 = vpop.f32.mrb[0].mxu0
      %v1991 = vadd.f32 0.0, %v1990
      %v1992 = vpop.f32.mrb[0].mxu0
      %1993 = vmatprep.mubr.bf16.mxu0 0
      %1994 = vmatmul.mubr.bf16.gmra.mrb[0].mxu0 %v1790
      %v1995 = vpop.f32.mrb[0].mxu0
      %v1996 = vadd.f32 0.0, %v1995
      %v1997 = vpop.f32.mrb[0].mxu0
      %v1998 = vpop.f32.mrb[0].mxu0
      %v1999 = vadd.f32 0.0, %v1998
      %v2000 = vpop.f32.mrb[0].mxu0
      %2001 = vmatprep.mubr.bf16.mxu0 0
      %2002 = vmatmul.mubr.bf16.gmra.mrb[0].mxu0 %v1791
      %v2003 = vpop.f32.mrb[0].mxu0
      %v2004 = vadd.f32 0.0, %v2003
      %v2005 = vpop.f32.mrb[0].mxu0
      %v2006 = vpop.f32.mrb[0].mxu0
      %v2007 = vadd.f32 0.0, %v2006
      %v2008 = vpop.f32.mrb[0].mxu0
      %2009 = vmatprep.mubr.bf16.mxu0 0
      %2010 = vmatmul.mubr.bf16.gmra.mrb[0].mxu0 %v1792
      %v2011 = vpop.f32.mrb[0].mxu0
      %v2012 = vadd.f32 0.0, %v2011
      %v2013 = vpop.f32.mrb[0].mxu0
      %v2014 = vpop.f32.mrb[0].mxu0
      %v2015 = vadd.f32 0.0, %v2014
      %v2016 = vpop.f32.mrb[0].mxu0
      %2017 = vdwg.mxu0
      %v2018 = vadd.f32 %v1696, %v1892
      %v2019 = vadd.f32 %v1697, %v1895
      %v2020 = vadd.f32 %v1698, %v1900
      %v2021 = vadd.f32 %v1699, %v1903
      %v2022 = vadd.f32 %v1700, %v1908
      %v2023 = vadd.f32 %v1701, %v1911
      %v2024 = vadd.f32 %v1702, %v1916
      %v2025 = vadd.f32 %v1703, %v1919
      %v2026 = vadd.f32 %v1704, %v1924
      %v2027 = vadd.f32 %v1705, %v1927
      %v2028 = vadd.f32 %v1706, %v1932
      %v2029 = vadd.f32 %v1707, %v1935
      %v2030 = vadd.f32 %v1708, %v1940
      %v2031 = vadd.f32 %v1709, %v1943
      %v2032 = vadd.f32 %v1710, %v1948
      %v2033 = vadd.f32 %v1711, %v1951
      %v2034 = vadd.f32 %v1712, %v1956
      %v2035 = vadd.f32 %v1713, %v1959
      %v2036 = vadd.f32 %v1714, %v1964
      %v2037 = vadd.f32 %v1715, %v1967
      %v2038 = vadd.f32 %v1716, %v1972
      %v2039 = vadd.f32 %v1717, %v1975
      %v2040 = vadd.f32 %v1718, %v1980
      %v2041 = vadd.f32 %v1719, %v1983
      %v2042 = vadd.f32 %v1720, %v1988
      %v2043 = vadd.f32 %v1721, %v1991
      %v2044 = vadd.f32 %v1722, %v1996
      %v2045 = vadd.f32 %v1723, %v1999
      %v2046 = vadd.f32 %v1724, %v2004
      %v2047 = vadd.f32 %v1725, %v2007
      %v2048 = vadd.f32 %v1726, %v2012
      %v2049 = vadd.f32 %v1727, %v2015
      %2050 = vst [vmem:[#allocation2] sm:$0xff] %v2018
      %2051 = vst [vmem:[#allocation2 + $0x8] sm:$0xff] %v2019
      %2052 = vst [vmem:[#allocation2 + $0x10] sm:$0xff] %v2020
      %2053 = vst [vmem:[#allocation2 + $0x18] sm:$0xff] %v2021
      %2054 = vst [vmem:[#allocation2 + $0x20] sm:$0xff] %v2022
      %2055 = vst [vmem:[#allocation2 + $0x28] sm:$0xff] %v2023
      %2056 = vst [vmem:[#allocation2 + $0x30] sm:$0xff] %v2024
      %2057 = vst [vmem:[#allocation2 + $0x38] sm:$0xff] %v2025
      %2058 = vst [vmem:[#allocation2 + $0x40] sm:$0xff] %v2026
      %2059 = vst [vmem:[#allocation2 + $0x48] sm:$0xff] %v2027
      %2060 = vst [vmem:[#allocation2 + $0x50] sm:$0xff] %v2028
      %2061 = vst [vmem:[#allocation2 + $0x58] sm:$0xff] %v2029
      %2062 = vst [vmem:[#allocation2 + $0x60] sm:$0xff] %v2030
      %2063 = vst [vmem:[#allocation2 + $0x68] sm:$0xff] %v2031
      %2064 = vst [vmem:[#allocation2 + $0x70] sm:$0xff] %v2032
      %2065 = vst [vmem:[#allocation2 + $0x78] sm:$0xff] %v2033
      %2066 = vst [vmem:[#allocation2 + $0x80] sm:$0xff] %v2034
      %2067 = vst [vmem:[#allocation2 + $0x88] sm:$0xff] %v2035
      %2068 = vst [vmem:[#allocation2 + $0x90] sm:$0xff] %v2036
      %2069 = vst [vmem:[#allocation2 + $0x98] sm:$0xff] %v2037
      %2070 = vst [vmem:[#allocation2 + $0xa0] sm:$0xff] %v2038
      %2071 = vst [vmem:[#allocation2 + $0xa8] sm:$0xff] %v2039
      %2072 = vst [vmem:[#allocation2 + $0xb0] sm:$0xff] %v2040
      %2073 = vst [vmem:[#allocation2 + $0xb8] sm:$0xff] %v2041
      %2074 = vst [vmem:[#allocation2 + $0xc0] sm:$0xff] %v2042
      %2075 = vst [vmem:[#allocation2 + $0xc8] sm:$0xff] %v2043
      %2076 = vst [vmem:[#allocation2 + $0xd0] sm:$0xff] %v2044
      %2077 = vst [vmem:[#allocation2 + $0xd8] sm:$0xff] %v2045
      %2078 = vst [vmem:[#allocation2 + $0xe0] sm:$0xff] %v2046
      %2079 = vst [vmem:[#allocation2 + $0xe8] sm:$0xff] %v2047
      %2080 = vst [vmem:[#allocation2 + $0xf0] sm:$0xff] %v2048
      %2081 = vst [vmem:[#allocation2 + $0xf8] sm:$0xff] %v2049
      %s2082 = scalar_lea.vmem %s172, 12
      %v2083 = vld [vmem:[%s2082] sm:$0xf]
      %v2084 = vld [vmem:[%s2082 + $0x4] sm:$0xf]
      %v2085 = vld [vmem:[%s2082 + $0xc] sm:$0xf]
      %v2086 = vld [vmem:[%s2082 + $0x10] sm:$0xf]
      %v2087 = vld [vmem:[%s2082 + $0x18] sm:$0xf]
      %v2088 = vld [vmem:[%s2082 + $0x1c] sm:$0xf]
      %v2089 = vld [vmem:[%s2082 + $0x24] sm:$0xf]
      %v2090 = vld [vmem:[%s2082 + $0x28] sm:$0xf]
      %v2091 = vld [vmem:[%s2082 + $0x30] sm:$0xf]
      %v2092 = vld [vmem:[%s2082 + $0x34] sm:$0xf]
      %v2093 = vld [vmem:[%s2082 + $0x3c] sm:$0xf]
      %v2094 = vld [vmem:[%s2082 + $0x40] sm:$0xf]
      %v2095 = vld [vmem:[%s2082 + $0x48] sm:$0xf]
      %v2096 = vld [vmem:[%s2082 + $0x4c] sm:$0xf]
      %v2097 = vld [vmem:[%s2082 + $0x54] sm:$0xf]
      %v2098 = vld [vmem:[%s2082 + $0x58] sm:$0xf]
      %v2099 = vld [vmem:[%s2082 + $0x60] sm:$0xf]
      %v2100 = vld [vmem:[%s2082 + $0x64] sm:$0xf]
      %v2101 = vld [vmem:[%s2082 + $0x6c] sm:$0xf]
      %v2102 = vld [vmem:[%s2082 + $0x70] sm:$0xf]
      %v2103 = vld [vmem:[%s2082 + $0x78] sm:$0xf]
      %v2104 = vld [vmem:[%s2082 + $0x7c] sm:$0xf]
      %v2105 = vld [vmem:[%s2082 + $0x84] sm:$0xf]
      %v2106 = vld [vmem:[%s2082 + $0x88] sm:$0xf]
      %v2107 = vld [vmem:[%s2082 + $0x90] sm:$0xf]
      %v2108 = vld [vmem:[%s2082 + $0x94] sm:$0xf]
      %v2109 = vld [vmem:[%s2082 + $0x9c] sm:$0xf]
      %v2110 = vld [vmem:[%s2082 + $0xa0] sm:$0xf]
      %v2111 = vld [vmem:[%s2082 + $0xa8] sm:$0xf]
      %v2112 = vld [vmem:[%s2082 + $0xac] sm:$0xf]
      %v2113 = vld [vmem:[%s2082 + $0xb4] sm:$0xf]
      %v2114 = vld [vmem:[%s2082 + $0xb8] sm:$0xf]
      %v2115 = vld [vmem:[#allocation2] sm:$0xff]
      %v2116 = vld [vmem:[#allocation2 + $0x8] sm:$0xff]
      %v2117 = vld [vmem:[#allocation2 + $0x10] sm:$0xff]
      %v2118 = vld [vmem:[#allocation2 + $0x18] sm:$0xff]
      %v2119 = vld [vmem:[#allocation2 + $0x20] sm:$0xff]
      %v2120 = vld [vmem:[#allocation2 + $0x28] sm:$0xff]
      %v2121 = vld [vmem:[#allocation2 + $0x30] sm:$0xff]
      %v2122 = vld [vmem:[#allocation2 + $0x38] sm:$0xff]
      %v2123 = vld [vmem:[#allocation2 + $0x40] sm:$0xff]
      %v2124 = vld [vmem:[#allocation2 + $0x48] sm:$0xff]
      %v2125 = vld [vmem:[#allocation2 + $0x50] sm:$0xff]
      %v2126 = vld [vmem:[#allocation2 + $0x58] sm:$0xff]
      %v2127 = vld [vmem:[#allocation2 + $0x60] sm:$0xff]
      %v2128 = vld [vmem:[#allocation2 + $0x68] sm:$0xff]
      %v2129 = vld [vmem:[#allocation2 + $0x70] sm:$0xff]
      %v2130 = vld [vmem:[#allocation2 + $0x78] sm:$0xff]
      %v2131 = vld [vmem:[#allocation2 + $0x80] sm:$0xff]
      %v2132 = vld [vmem:[#allocation2 + $0x88] sm:$0xff]
      %v2133 = vld [vmem:[#allocation2 + $0x90] sm:$0xff]
      %v2134 = vld [vmem:[#allocation2 + $0x98] sm:$0xff]
      %v2135 = vld [vmem:[#allocation2 + $0xa0] sm:$0xff]
      %v2136 = vld [vmem:[#allocation2 + $0xa8] sm:$0xff]
      %v2137 = vld [vmem:[#allocation2 + $0xb0] sm:$0xff]
      %v2138 = vld [vmem:[#allocation2 + $0xb8] sm:$0xff]
      %v2139 = vld [vmem:[#allocation2 + $0xc0] sm:$0xff]
      %v2140 = vld [vmem:[#allocation2 + $0xc8] sm:$0xff]
      %v2141 = vld [vmem:[#allocation2 + $0xd0] sm:$0xff]
      %v2142 = vld [vmem:[#allocation2 + $0xd8] sm:$0xff]
      %v2143 = vld [vmem:[#allocation2 + $0xe0] sm:$0xff]
      %v2144 = vld [vmem:[#allocation2 + $0xe8] sm:$0xff]
      %v2145 = vld [vmem:[#allocation2 + $0xf0] sm:$0xff]
      %v2146 = vld [vmem:[#allocation2 + $0xf8] sm:$0xff]
      %s2147 = scalar_lea.vmem %s1, 192
      %v2148 = vld [vmem:[%s2147] sm:$0xf]
      %v2149 = vld [vmem:[%s2147 + $0x4] sm:$0xf]
      %v2150 = vld [vmem:[%s2147 + $0x8] sm:$0xf]
      %v2151 = vld [vmem:[%s2147 + $0xc] sm:$0xf]
      %v2152 = vld [vmem:[%s2147 + $0x10] sm:$0xf]
      %v2153 = vld [vmem:[%s2147 + $0x14] sm:$0xf]
      %v2154 = vld [vmem:[%s2147 + $0x18] sm:$0xf]
      %v2155 = vld [vmem:[%s2147 + $0x1c] sm:$0xf]
      %v2156 = vld [vmem:[%s2147 + $0x20] sm:$0xf]
      %v2157 = vld [vmem:[%s2147 + $0x24] sm:$0xf]
      %v2158 = vld [vmem:[%s2147 + $0x28] sm:$0xf]
      %v2159 = vld [vmem:[%s2147 + $0x2c] sm:$0xf]
      %v2160 = vld [vmem:[%s2147 + $0x30] sm:$0xf]
      %v2161 = vld [vmem:[%s2147 + $0x34] sm:$0xf]
      %v2162 = vld [vmem:[%s2147 + $0x38] sm:$0xf]
      %v2163 = vld [vmem:[%s2147 + $0x3c] sm:$0xf]
      %v2196 = vunpack.c.l.b16 %v2083
      %v2197 = vunpack.c.l.b16 %v2084
      %v2198 = vunpack.c.l.b16 %v2085
      %v2199 = vunpack.c.l.b16 %v2086
      %v2200 = vunpack.c.l.b16 %v2087
      %v2201 = vunpack.c.l.b16 %v2088
      %v2202 = vunpack.c.l.b16 %v2089
      %v2203 = vunpack.c.l.b16 %v2090
      %v2204 = vunpack.c.l.b16 %v2091
      %v2205 = vunpack.c.l.b16 %v2092
      %v2206 = vunpack.c.l.b16 %v2093
      %v2207 = vunpack.c.l.b16 %v2094
      %v2208 = vunpack.c.l.b16 %v2095
      %v2209 = vunpack.c.l.b16 %v2096
      %v2210 = vunpack.c.l.b16 %v2097
      %v2211 = vunpack.c.l.b16 %v2098
      %v2212 = vunpack.c.l.b16 %v2099
      %v2213 = vunpack.c.l.b16 %v2100
      %v2214 = vunpack.c.l.b16 %v2101
      %v2215 = vunpack.c.l.b16 %v2102
      %v2216 = vunpack.c.l.b16 %v2103
      %v2217 = vunpack.c.l.b16 %v2104
      %v2218 = vunpack.c.l.b16 %v2105
      %v2219 = vunpack.c.l.b16 %v2106
      %v2220 = vunpack.c.l.b16 %v2107
      %v2221 = vunpack.c.l.b16 %v2108
      %v2222 = vunpack.c.l.b16 %v2109
      %v2223 = vunpack.c.l.b16 %v2110
      %v2224 = vunpack.c.l.b16 %v2111
      %v2225 = vunpack.c.l.b16 %v2112
      %v2226 = vunpack.c.l.b16 %v2113
      %v2227 = vunpack.c.l.b16 %v2114
      %v2228 = vpack.c.b16 %v2197, %v2196
      %v2229 = vpack.c.b16 %v2199, %v2198
      %v2230 = vpack.c.b16 %v2201, %v2200
      %v2231 = vpack.c.b16 %v2203, %v2202
      %v2232 = vpack.c.b16 %v2205, %v2204
      %v2233 = vpack.c.b16 %v2207, %v2206
      %v2234 = vpack.c.b16 %v2209, %v2208
      %v2235 = vpack.c.b16 %v2211, %v2210
      %v2236 = vpack.c.b16 %v2213, %v2212
      %v2237 = vpack.c.b16 %v2215, %v2214
      %v2238 = vpack.c.b16 %v2217, %v2216
      %v2239 = vpack.c.b16 %v2219, %v2218
      %v2240 = vpack.c.b16 %v2221, %v2220
      %v2241 = vpack.c.b16 %v2223, %v2222
      %v2242 = vpack.c.b16 %v2225, %v2224
      %v2243 = vpack.c.b16 %v2227, %v2226
      %v2276 = vunpack.c.l.b16 %v2148
      %v2277 = vunpack.c.l.b16 %v2149
      %v2278 = vunpack.c.l.b16 %v2150
      %v2279 = vunpack.c.l.b16 %v2151
      %v2280 = vunpack.c.l.b16 %v2152
      %v2281 = vunpack.c.l.b16 %v2153
      %v2282 = vunpack.c.l.b16 %v2154
      %v2283 = vunpack.c.l.b16 %v2155
      %v2284 = vunpack.c.l.b16 %v2156
      %v2285 = vunpack.c.l.b16 %v2157
      %v2286 = vunpack.c.l.b16 %v2158
      %v2287 = vunpack.c.l.b16 %v2159
      %v2288 = vunpack.c.l.b16 %v2160
      %v2289 = vunpack.c.l.b16 %v2161
      %v2290 = vunpack.c.l.b16 %v2162
      %v2291 = vunpack.c.l.b16 %v2163
      %v2292 = vpack.c.b16 %v2277, %v2276
      %v2293 = vpack.c.b16 %v2279, %v2278
      %v2294 = vpack.c.b16 %v2281, %v2280
      %v2295 = vpack.c.b16 %v2283, %v2282
      %v2296 = vpack.c.b16 %v2285, %v2284
      %v2297 = vpack.c.b16 %v2287, %v2286
      %v2298 = vpack.c.b16 %v2289, %v2288
      %v2299 = vpack.c.b16 %v2291, %v2290
      %2308 = vmatprep.subr.bf16.mxu0 0
      %2309 = vmatpush1.bf16.msra.mxu0 %v2292
      %2310 = vmatprep.subr.bf16.mxu0 0
      %2311 = vmatpush1.bf16.msra.mxu0 %v2293
      %2312 = vmatprep.subr.bf16.mxu0 0
      %2313 = vmatpush1.bf16.msra.mxu0 %v2294
      %2314 = vmatprep.subr.bf16.mxu0 0
      %2315 = vmatpush1.bf16.msra.mxu0 %v2295
      %2316 = vmatprep.subr.bf16.mxu0 0
      %2317 = vmatpush1.bf16.msra.mxu0 %v2296
      %2318 = vmatprep.subr.bf16.mxu0 0
      %2319 = vmatpush1.bf16.msra.mxu0 %v2297
      %2320 = vmatprep.subr.bf16.mxu0 0
      %2321 = vmatpush1.bf16.msra.mxu0 %v2298
      %2322 = vmatprep.subr.bf16.mxu0 0
      %2323 = vmatpush1.bf16.msra.mxu0 %v2299
      %2324 = vmatprep.subr.bf16.mxu0 0
      %2325 = vmatpush1.bf16.msra.mxu0 0
      %2326 = vmatprep.subr.bf16.mxu0 0
      %2327 = vmatpush1.bf16.msra.mxu0 0
      %2328 = vmatprep.subr.bf16.mxu0 0
      %2329 = vmatpush1.bf16.msra.mxu0 0
      %2330 = vmatprep.subr.bf16.mxu0 0
      %2331 = vmatpush1.bf16.msra.mxu0 0
      %2332 = vmatprep.subr.bf16.mxu0 0
      %2333 = vmatpush1.bf16.msra.mxu0 0
      %2334 = vmatprep.subr.bf16.mxu0 0
      %2335 = vmatpush1.bf16.msra.mxu0 0
      %2336 = vmatprep.subr.bf16.mxu0 0
      %2337 = vmatpush1.bf16.msra.mxu0 0
      %2338 = vmatprep.subr.bf16.mxu0 0
      %2339 = vmatpush1.bf16.msra.mxu0 0
      %2340 = vmatprep.mubr.bf16.mxu0 0
      %2341 = vmatmul.mubr.bf16.gmra.mrb[0].mxu0 %v2228
      %v2342 = vpop.f32.mrb[0].mxu0
      %v2343 = vadd.f32 0.0, %v2342
      %v2344 = vpop.f32.mrb[0].mxu0
      %v2345 = vpop.f32.mrb[0].mxu0
      %v2346 = vadd.f32 0.0, %v2345
      %v2347 = vpop.f32.mrb[0].mxu0
      %2348 = vmatprep.mubr.bf16.mxu0 0
      %2349 = vmatmul.mubr.bf16.gmra.mrb[0].mxu0 %v2229
      %v2350 = vpop.f32.mrb[0].mxu0
      %v2351 = vadd.f32 0.0, %v2350
      %v2352 = vpop.f32.mrb[0].mxu0
      %v2353 = vpop.f32.mrb[0].mxu0
      %v2354 = vadd.f32 0.0, %v2353
      %v2355 = vpop.f32.mrb[0].mxu0
      %2356 = vmatprep.mubr.bf16.mxu0 0
      %2357 = vmatmul.mubr.bf16.gmra.mrb[0].mxu0 %v2230
      %v2358 = vpop.f32.mrb[0].mxu0
      %v2359 = vadd.f32 0.0, %v2358
      %v2360 = vpop.f32.mrb[0].mxu0
      %v2361 = vpop.f32.mrb[0].mxu0
      %v2362 = vadd.f32 0.0, %v2361
      %v2363 = vpop.f32.mrb[0].mxu0
      %2364 = vmatprep.mubr.bf16.mxu0 0
      %2365 = vmatmul.mubr.bf16.gmra.mrb[0].mxu0 %v2231
      %v2366 = vpop.f32.mrb[0].mxu0
      %v2367 = vadd.f32 0.0, %v2366
      %v2368 = vpop.f32.mrb[0].mxu0
      %v2369 = vpop.f32.mrb[0].mxu0
      %v2370 = vadd.f32 0.0, %v2369
      %v2371 = vpop.f32.mrb[0].mxu0
      %2372 = vmatprep.mubr.bf16.mxu0 0
      %2373 = vmatmul.mubr.bf16.gmra.mrb[0].mxu0 %v2232
      %v2374 = vpop.f32.mrb[0].mxu0
      %v2375 = vadd.f32 0.0, %v2374
      %v2376 = vpop.f32.mrb[0].mxu0
      %v2377 = vpop.f32.mrb[0].mxu0
      %v2378 = vadd.f32 0.0, %v2377
      %v2379 = vpop.f32.mrb[0].mxu0
      %2380 = vmatprep.mubr.bf16.mxu0 0
      %2381 = vmatmul.mubr.bf16.gmra.mrb[0].mxu0 %v2233
      %v2382 = vpop.f32.mrb[0].mxu0
      %v2383 = vadd.f32 0.0, %v2382
      %v2384 = vpop.f32.mrb[0].mxu0
      %v2385 = vpop.f32.mrb[0].mxu0
      %v2386 = vadd.f32 0.0, %v2385
      %v2387 = vpop.f32.mrb[0].mxu0
      %2388 = vmatprep.mubr.bf16.mxu0 0
      %2389 = vmatmul.mubr.bf16.gmra.mrb[0].mxu0 %v2234
      %v2390 = vpop.f32.mrb[0].mxu0
      %v2391 = vadd.f32 0.0, %v2390
      %v2392 = vpop.f32.mrb[0].mxu0
      %v2393 = vpop.f32.mrb[0].mxu0
      %v2394 = vadd.f32 0.0, %v2393
      %v2395 = vpop.f32.mrb[0].mxu0
      %2396 = vmatprep.mubr.bf16.mxu0 0
      %2397 = vmatmul.mubr.bf16.gmra.mrb[0].mxu0 %v2235
      %v2398 = vpop.f32.mrb[0].mxu0
      %v2399 = vadd.f32 0.0, %v2398
      %v2400 = vpop.f32.mrb[0].mxu0
      %v2401 = vpop.f32.mrb[0].mxu0
      %v2402 = vadd.f32 0.0, %v2401
      %v2403 = vpop.f32.mrb[0].mxu0
      %2404 = vmatprep.mubr.bf16.mxu0 0
      %2405 = vmatmul.mubr.bf16.gmra.mrb[0].mxu0 %v2236
      %v2406 = vpop.f32.mrb[0].mxu0
      %v2407 = vadd.f32 0.0, %v2406
      %v2408 = vpop.f32.mrb[0].mxu0
      %v2409 = vpop.f32.mrb[0].mxu0
      %v2410 = vadd.f32 0.0, %v2409
      %v2411 = vpop.f32.mrb[0].mxu0
      %2412 = vmatprep.mubr.bf16.mxu0 0
      %2413 = vmatmul.mubr.bf16.gmra.mrb[0].mxu0 %v2237
      %v2414 = vpop.f32.mrb[0].mxu0
      %v2415 = vadd.f32 0.0, %v2414
      %v2416 = vpop.f32.mrb[0].mxu0
      %v2417 = vpop.f32.mrb[0].mxu0
      %v2418 = vadd.f32 0.0, %v2417
      %v2419 = vpop.f32.mrb[0].mxu0
      %2420 = vmatprep.mubr.bf16.mxu0 0
      %2421 = vmatmul.mubr.bf16.gmra.mrb[0].mxu0 %v2238
      %v2422 = vpop.f32.mrb[0].mxu0
      %v2423 = vadd.f32 0.0, %v2422
      %v2424 = vpop.f32.mrb[0].mxu0
      %v2425 = vpop.f32.mrb[0].mxu0
      %v2426 = vadd.f32 0.0, %v2425
      %v2427 = vpop.f32.mrb[0].mxu0
      %2428 = vmatprep.mubr.bf16.mxu0 0
      %2429 = vmatmul.mubr.bf16.gmra.mrb[0].mxu0 %v2239
      %v2430 = vpop.f32.mrb[0].mxu0
      %v2431 = vadd.f32 0.0, %v2430
      %v2432 = vpop.f32.mrb[0].mxu0
      %v2433 = vpop.f32.mrb[0].mxu0
      %v2434 = vadd.f32 0.0, %v2433
      %v2435 = vpop.f32.mrb[0].mxu0
      %2436 = vmatprep.mubr.bf16.mxu0 0
      %2437 = vmatmul.mubr.bf16.gmra.mrb[0].mxu0 %v2240
      %v2438 = vpop.f32.mrb[0].mxu0
      %v2439 = vadd.f32 0.0, %v2438
      %v2440 = vpop.f32.mrb[0].mxu0
      %v2441 = vpop.f32.mrb[0].mxu0
      %v2442 = vadd.f32 0.0, %v2441
      %v2443 = vpop.f32.mrb[0].mxu0
      %2444 = vmatprep.mubr.bf16.mxu0 0
      %2445 = vmatmul.mubr.bf16.gmra.mrb[0].mxu0 %v2241
      %v2446 = vpop.f32.mrb[0].mxu0
      %v2447 = vadd.f32 0.0, %v2446
      %v2448 = vpop.f32.mrb[0].mxu0
      %v2449 = vpop.f32.mrb[0].mxu0
      %v2450 = vadd.f32 0.0, %v2449
      %v2451 = vpop.f32.mrb[0].mxu0
      %2452 = vmatprep.mubr.bf16.mxu0 0
      %2453 = vmatmul.mubr.bf16.gmra.mrb[0].mxu0 %v2242
      %v2454 = vpop.f32.mrb[0].mxu0
      %v2455 = vadd.f32 0.0, %v2454
      %v2456 = vpop.f32.mrb[0].mxu0
      %v2457 = vpop.f32.mrb[0].mxu0
      %v2458 = vadd.f32 0.0, %v2457
      %v2459 = vpop.f32.mrb[0].mxu0
      %2460 = vmatprep.mubr.bf16.mxu0 0
      %2461 = vmatmul.mubr.bf16.gmra.mrb[0].mxu0 %v2243
      %v2462 = vpop.f32.mrb[0].mxu0
      %v2463 = vadd.f32 0.0, %v2462
      %v2464 = vpop.f32.mrb[0].mxu0
      %v2465 = vpop.f32.mrb[0].mxu0
      %v2466 = vadd.f32 0.0, %v2465
      %v2467 = vpop.f32.mrb[0].mxu0
      %2468 = vdwg.mxu0
      %v2469 = vadd.f32 %v2115, %v2343
      %v2470 = vadd.f32 %v2116, %v2346
      %v2471 = vadd.f32 %v2117, %v2351
      %v2472 = vadd.f32 %v2118, %v2354
      %v2473 = vadd.f32 %v2119, %v2359
      %v2474 = vadd.f32 %v2120, %v2362
      %v2475 = vadd.f32 %v2121, %v2367
      %v2476 = vadd.f32 %v2122, %v2370
      %v2477 = vadd.f32 %v2123, %v2375
      %v2478 = vadd.f32 %v2124, %v2378
      %v2479 = vadd.f32 %v2125, %v2383
      %v2480 = vadd.f32 %v2126, %v2386
      %v2481 = vadd.f32 %v2127, %v2391
      %v2482 = vadd.f32 %v2128, %v2394
      %v2483 = vadd.f32 %v2129, %v2399
      %v2484 = vadd.f32 %v2130, %v2402
      %v2485 = vadd.f32 %v2131, %v2407
      %v2486 = vadd.f32 %v2132, %v2410
      %v2487 = vadd.f32 %v2133, %v2415
      %v2488 = vadd.f32 %v2134, %v2418
      %v2489 = vadd.f32 %v2135, %v2423
      %v2490 = vadd.f32 %v2136, %v2426
      %v2491 = vadd.f32 %v2137, %v2431
      %v2492 = vadd.f32 %v2138, %v2434
      %v2493 = vadd.f32 %v2139, %v2439
      %v2494 = vadd.f32 %v2140, %v2442
      %v2495 = vadd.f32 %v2141, %v2447
      %v2496 = vadd.f32 %v2142, %v2450
      %v2497 = vadd.f32 %v2143, %v2455
      %v2498 = vadd.f32 %v2144, %v2458
      %v2499 = vadd.f32 %v2145, %v2463
      %v2500 = vadd.f32 %v2146, %v2466
      %2501 = vst [vmem:[#allocation2] sm:$0xff] %v2469
      %2502 = vst [vmem:[#allocation2 + $0x8] sm:$0xff] %v2470
      %2503 = vst [vmem:[#allocation2 + $0x10] sm:$0xff] %v2471
      %2504 = vst [vmem:[#allocation2 + $0x18] sm:$0xff] %v2472
      %2505 = vst [vmem:[#allocation2 + $0x20] sm:$0xff] %v2473
      %2506 = vst [vmem:[#allocation2 + $0x28] sm:$0xff] %v2474
      %2507 = vst [vmem:[#allocation2 + $0x30] sm:$0xff] %v2475
      %2508 = vst [vmem:[#allocation2 + $0x38] sm:$0xff] %v2476
      %2509 = vst [vmem:[#allocation2 + $0x40] sm:$0xff] %v2477
      %2510 = vst [vmem:[#allocation2 + $0x48] sm:$0xff] %v2478
      %2511 = vst [vmem:[#allocation2 + $0x50] sm:$0xff] %v2479
      %2512 = vst [vmem:[#allocation2 + $0x58] sm:$0xff] %v2480
      %2513 = vst [vmem:[#allocation2 + $0x60] sm:$0xff] %v2481
      %2514 = vst [vmem:[#allocation2 + $0x68] sm:$0xff] %v2482
      %2515 = vst [vmem:[#allocation2 + $0x70] sm:$0xff] %v2483
      %2516 = vst [vmem:[#allocation2 + $0x78] sm:$0xff] %v2484
      %2517 = vst [vmem:[#allocation2 + $0x80] sm:$0xff] %v2485
      %2518 = vst [vmem:[#allocation2 + $0x88] sm:$0xff] %v2486
      %2519 = vst [vmem:[#allocation2 + $0x90] sm:$0xff] %v2487
      %2520 = vst [vmem:[#allocation2 + $0x98] sm:$0xff] %v2488
      %2521 = vst [vmem:[#allocation2 + $0xa0] sm:$0xff] %v2489
      %2522 = vst [vmem:[#allocation2 + $0xa8] sm:$0xff] %v2490
      %2523 = vst [vmem:[#allocation2 + $0xb0] sm:$0xff] %v2491
      %2524 = vst [vmem:[#allocation2 + $0xb8] sm:$0xff] %v2492
      %2525 = vst [vmem:[#allocation2 + $0xc0] sm:$0xff] %v2493
      %2526 = vst [vmem:[#allocation2 + $0xc8] sm:$0xff] %v2494
      %2527 = vst [vmem:[#allocation2 + $0xd0] sm:$0xff] %v2495
      %2528 = vst [vmem:[#allocation2 + $0xd8] sm:$0xff] %v2496
      %2529 = vst [vmem:[#allocation2 + $0xe0] sm:$0xff] %v2497
      %2530 = vst [vmem:[#allocation2 + $0xe8] sm:$0xff] %v2498
      %2531 = vst [vmem:[#allocation2 + $0xf0] sm:$0xff] %v2499
      %2532 = vst [vmem:[#allocation2 + $0xf8] sm:$0xff] %v2500
      %v2533 = vld [vmem:[%s2082] sm:$0xf]
      %v2534 = vld [vmem:[%s2082 + $0x4] sm:$0xf]
      %v2535 = vld [vmem:[%s2082 + $0x8] sm:$0x1]
      %v2536 = vld [vmem:[%s2082 + $0xc] sm:$0xf]
      %v2537 = vld [vmem:[%s2082 + $0x10] sm:$0xf]
      %v2538 = vld [vmem:[%s2082 + $0x14] sm:$0x1]
      %v2539 = vld [vmem:[%s2082 + $0x18] sm:$0xf]
      %v2540 = vld [vmem:[%s2082 + $0x1c] sm:$0xf]
      %v2541 = vld [vmem:[%s2082 + $0x20] sm:$0x1]
      %v2542 = vld [vmem:[%s2082 + $0x24] sm:$0xf]
      %v2543 = vld [vmem:[%s2082 + $0x28] sm:$0xf]
      %v2544 = vld [vmem:[%s2082 + $0x2c] sm:$0x1]
      %v2545 = vld [vmem:[%s2082 + $0x30] sm:$0xf]
      %v2546 = vld [vmem:[%s2082 + $0x34] sm:$0xf]
      %v2547 = vld [vmem:[%s2082 + $0x38] sm:$0x1]
      %v2548 = vld [vmem:[%s2082 + $0x3c] sm:$0xf]
      %v2549 = vld [vmem:[%s2082 + $0x40] sm:$0xf]
      %v2550 = vld [vmem:[%s2082 + $0x44] sm:$0x1]
      %v2551 = vld [vmem:[%s2082 + $0x48] sm:$0xf]
      %v2552 = vld [vmem:[%s2082 + $0x4c] sm:$0xf]
      %v2553 = vld [vmem:[%s2082 + $0x50] sm:$0x1]
      %v2554 = vld [vmem:[%s2082 + $0x54] sm:$0xf]
      %v2555 = vld [vmem:[%s2082 + $0x58] sm:$0xf]
      %v2556 = vld [vmem:[%s2082 + $0x5c] sm:$0x1]
      %v2557 = vld [vmem:[%s2082 + $0x60] sm:$0xf]
      %v2558 = vld [vmem:[%s2082 + $0x64] sm:$0xf]
      %v2559 = vld [vmem:[%s2082 + $0x68] sm:$0x1]
      %v2560 = vld [vmem:[%s2082 + $0x6c] sm:$0xf]
      %v2561 = vld [vmem:[%s2082 + $0x70] sm:$0xf]
      %v2562 = vld [vmem:[%s2082 + $0x74] sm:$0x1]
      %v2563 = vld [vmem:[%s2082 + $0x78] sm:$0xf]
      %v2564 = vld [vmem:[%s2082 + $0x7c] sm:$0xf]
      %v2565 = vld [vmem:[%s2082 + $0x80] sm:$0x1]
      %v2566 = vld [vmem:[%s2082 + $0x84] sm:$0xf]
      %v2567 = vld [vmem:[%s2082 + $0x88] sm:$0xf]
      %v2568 = vld [vmem:[%s2082 + $0x8c] sm:$0x1]
      %v2569 = vld [vmem:[%s2082 + $0x90] sm:$0xf]
      %v2570 = vld [vmem:[%s2082 + $0x94] sm:$0xf]
      %v2571 = vld [vmem:[%s2082 + $0x98] sm:$0x1]
      %v2572 = vld [vmem:[%s2082 + $0x9c] sm:$0xf]
      %v2573 = vld [vmem:[%s2082 + $0xa0] sm:$0xf]
      %v2574 = vld [vmem:[%s2082 + $0xa4] sm:$0x1]
      %v2575 = vld [vmem:[%s2082 + $0xa8] sm:$0xf]
      %v2576 = vld [vmem:[%s2082 + $0xac] sm:$0xf]
      %v2577 = vld [vmem:[%s2082 + $0xb0] sm:$0x1]
      %v2578 = vld [vmem:[%s2082 + $0xb4] sm:$0xf]
      %v2579 = vld [vmem:[%s2082 + $0xb8] sm:$0xf]
      %v2580 = vld [vmem:[%s2082 + $0xbc] sm:$0x1]
      %v2582 = vshrl.u32 %v2533, 16
      %v2584 = vrot.slane %v2582, 4
      %v2585 = vshll.u32 %v2533, 16
      %v2587 = vrot.slane %v2585, 5
      %v2588 = vor.u32 %v2584, %v2587
      %v2589 = vrot.slane %v2588, 4
      %v2591 = vshll.u32 %v2534, 16
      %v2593 = vrot.slane %v2591, 5
      %v2594 = vsel %vm714, %v2589, %v2593
      %v2595 = vshrl.u32 %v2534, 16
      %v2597 = vrot.slane %v2595, 4
      %v2598 = vor.u32 %v2597, %v2593
      %v2599 = vrot.slane %v2598, 4
      %v2601 = vshll.u32 %v2535, 16
      %v2603 = vrot.slane %v2601, 5
      %v2604 = vsel %vm714, %v2599, %v2603
      %v2606 = vshrl.u32 %v2536, 16
      %v2608 = vrot.slane %v2606, 4
      %v2609 = vshll.u32 %v2536, 16
      %v2611 = vrot.slane %v2609, 5
      %v2612 = vor.u32 %v2608, %v2611
      %v2613 = vrot.slane %v2612, 4
      %v2615 = vshll.u32 %v2537, 16
      %v2617 = vrot.slane %v2615, 5
      %v2618 = vsel %vm714, %v2613, %v2617
      %v2619 = vshrl.u32 %v2537, 16
      %v2621 = vrot.slane %v2619, 4
      %v2622 = vor.u32 %v2621, %v2617
      %v2623 = vrot.slane %v2622, 4
      %v2625 = vshll.u32 %v2538, 16
      %v2627 = vrot.slane %v2625, 5
      %v2628 = vsel %vm714, %v2623, %v2627
      %v2630 = vshrl.u32 %v2539, 16
      %v2632 = vrot.slane %v2630, 4
      %v2633 = vshll.u32 %v2539, 16
      %v2635 = vrot.slane %v2633, 5
      %v2636 = vor.u32 %v2632, %v2635
      %v2637 = vrot.slane %v2636, 4
      %v2639 = vshll.u32 %v2540, 16
      %v2641 = vrot.slane %v2639, 5
      %v2642 = vsel %vm714, %v2637, %v2641
      %v2643 = vshrl.u32 %v2540, 16
      %v2645 = vrot.slane %v2643, 4
      %v2646 = vor.u32 %v2645, %v2641
      %v2647 = vrot.slane %v2646, 4
      %v2649 = vshll.u32 %v2541, 16
      %v2651 = vrot.slane %v2649, 5
      %v2652 = vsel %vm714, %v2647, %v2651
      %v2654 = vshrl.u32 %v2542, 16
      %v2656 = vrot.slane %v2654, 4
      %v2657 = vshll.u32 %v2542, 16
      %v2659 = vrot.slane %v2657, 5
      %v2660 = vor.u32 %v2656, %v2659
      %v2661 = vrot.slane %v2660, 4
      %v2663 = vshll.u32 %v2543, 16
      %v2665 = vrot.slane %v2663, 5
      %v2666 = vsel %vm714, %v2661, %v2665
      %v2667 = vshrl.u32 %v2543, 16
      %v2669 = vrot.slane %v2667, 4
      %v2670 = vor.u32 %v2669, %v2665
      %v2671 = vrot.slane %v2670, 4
      %v2673 = vshll.u32 %v2544, 16
      %v2675 = vrot.slane %v2673, 5
      %v2676 = vsel %vm714, %v2671, %v2675
      %v2678 = vshrl.u32 %v2545, 16
      %v2680 = vrot.slane %v2678, 4
      %v2681 = vshll.u32 %v2545, 16
      %v2683 = vrot.slane %v2681, 5
      %v2684 = vor.u32 %v2680, %v2683
      %v2685 = vrot.slane %v2684, 4
      %v2687 = vshll.u32 %v2546, 16
      %v2689 = vrot.slane %v2687, 5
      %v2690 = vsel %vm714, %v2685, %v2689
      %v2691 = vshrl.u32 %v2546, 16
      %v2693 = vrot.slane %v2691, 4
      %v2694 = vor.u32 %v2693, %v2689
      %v2695 = vrot.slane %v2694, 4
      %v2697 = vshll.u32 %v2547, 16
      %v2699 = vrot.slane %v2697, 5
      %v2700 = vsel %vm714, %v2695, %v2699
      %v2702 = vshrl.u32 %v2548, 16
      %v2704 = vrot.slane %v2702, 4
      %v2705 = vshll.u32 %v2548, 16
      %v2707 = vrot.slane %v2705, 5
      %v2708 = vor.u32 %v2704, %v2707
      %v2709 = vrot.slane %v2708, 4
      %v2711 = vshll.u32 %v2549, 16
      %v2713 = vrot.slane %v2711, 5
      %v2714 = vsel %vm714, %v2709, %v2713
      %v2715 = vshrl.u32 %v2549, 16
      %v2717 = vrot.slane %v2715, 4
      %v2718 = vor.u32 %v2717, %v2713
      %v2719 = vrot.slane %v2718, 4
      %v2721 = vshll.u32 %v2550, 16
      %v2723 = vrot.slane %v2721, 5
      %v2724 = vsel %vm714, %v2719, %v2723
      %v2726 = vshrl.u32 %v2551, 16
      %v2728 = vrot.slane %v2726, 4
      %v2729 = vshll.u32 %v2551, 16
      %v2731 = vrot.slane %v2729, 5
      %v2732 = vor.u32 %v2728, %v2731
      %v2733 = vrot.slane %v2732, 4
      %v2735 = vshll.u32 %v2552, 16
      %v2737 = vrot.slane %v2735, 5
      %v2738 = vsel %vm714, %v2733, %v2737
      %v2739 = vshrl.u32 %v2552, 16
      %v2741 = vrot.slane %v2739, 4
      %v2742 = vor.u32 %v2741, %v2737
      %v2743 = vrot.slane %v2742, 4
      %v2745 = vshll.u32 %v2553, 16
      %v2747 = vrot.slane %v2745, 5
      %v2748 = vsel %vm714, %v2743, %v2747
      %v2750 = vshrl.u32 %v2554, 16
      %v2752 = vrot.slane %v2750, 4
      %v2753 = vshll.u32 %v2554, 16
      %v2755 = vrot.slane %v2753, 5
      %v2756 = vor.u32 %v2752, %v2755
      %v2757 = vrot.slane %v2756, 4
      %v2759 = vshll.u32 %v2555, 16
      %v2761 = vrot.slane %v2759, 5
      %v2762 = vsel %vm714, %v2757, %v2761
      %v2763 = vshrl.u32 %v2555, 16
      %v2765 = vrot.slane %v2763, 4
      %v2766 = vor.u32 %v2765, %v2761
      %v2767 = vrot.slane %v2766, 4
      %v2769 = vshll.u32 %v2556, 16
      %v2771 = vrot.slane %v2769, 5
      %v2772 = vsel %vm714, %v2767, %v2771
      %v2774 = vshrl.u32 %v2557, 16
      %v2776 = vrot.slane %v2774, 4
      %v2777 = vshll.u32 %v2557, 16
      %v2779 = vrot.slane %v2777, 5
      %v2780 = vor.u32 %v2776, %v2779
      %v2781 = vrot.slane %v2780, 4
      %v2783 = vshll.u32 %v2558, 16
      %v2785 = vrot.slane %v2783, 5
      %v2786 = vsel %vm714, %v2781, %v2785
      %v2787 = vshrl.u32 %v2558, 16
      %v2789 = vrot.slane %v2787, 4
      %v2790 = vor.u32 %v2789, %v2785
      %v2791 = vrot.slane %v2790, 4
      %v2793 = vshll.u32 %v2559, 16
      %v2795 = vrot.slane %v2793, 5
      %v2796 = vsel %vm714, %v2791, %v2795
      %v2798 = vshrl.u32 %v2560, 16
      %v2800 = vrot.slane %v2798, 4
      %v2801 = vshll.u32 %v2560, 16
      %v2803 = vrot.slane %v2801, 5
      %v2804 = vor.u32 %v2800, %v2803
      %v2805 = vrot.slane %v2804, 4
      %v2807 = vshll.u32 %v2561, 16
      %v2809 = vrot.slane %v2807, 5
      %v2810 = vsel %vm714, %v2805, %v2809
      %v2811 = vshrl.u32 %v2561, 16
      %v2813 = vrot.slane %v2811, 4
      %v2814 = vor.u32 %v2813, %v2809
      %v2815 = vrot.slane %v2814, 4
      %v2817 = vshll.u32 %v2562, 16
      %v2819 = vrot.slane %v2817, 5
      %v2820 = vsel %vm714, %v2815, %v2819
      %v2822 = vshrl.u32 %v2563, 16
      %v2824 = vrot.slane %v2822, 4
      %v2825 = vshll.u32 %v2563, 16
      %v2827 = vrot.slane %v2825, 5
      %v2828 = vor.u32 %v2824, %v2827
      %v2829 = vrot.slane %v2828, 4
      %v2831 = vshll.u32 %v2564, 16
      %v2833 = vrot.slane %v2831, 5
      %v2834 = vsel %vm714, %v2829, %v2833
      %v2835 = vshrl.u32 %v2564, 16
      %v2837 = vrot.slane %v2835, 4
      %v2838 = vor.u32 %v2837, %v2833
      %v2839 = vrot.slane %v2838, 4
      %v2841 = vshll.u32 %v2565, 16
      %v2843 = vrot.slane %v2841, 5
      %v2844 = vsel %vm714, %v2839, %v2843
      %v2846 = vshrl.u32 %v2566, 16
      %v2848 = vrot.slane %v2846, 4
      %v2849 = vshll.u32 %v2566, 16
      %v2851 = vrot.slane %v2849, 5
      %v2852 = vor.u32 %v2848, %v2851
      %v2853 = vrot.slane %v2852, 4
      %v2855 = vshll.u32 %v2567, 16
      %v2857 = vrot.slane %v2855, 5
      %v2858 = vsel %vm714, %v2853, %v2857
      %v2859 = vshrl.u32 %v2567, 16
      %v2861 = vrot.slane %v2859, 4
      %v2862 = vor.u32 %v2861, %v2857
      %v2863 = vrot.slane %v2862, 4
      %v2865 = vshll.u32 %v2568, 16
      %v2867 = vrot.slane %v2865, 5
      %v2868 = vsel %vm714, %v2863, %v2867
      %v2870 = vshrl.u32 %v2569, 16
      %v2872 = vrot.slane %v2870, 4
      %v2873 = vshll.u32 %v2569, 16
      %v2875 = vrot.slane %v2873, 5
      %v2876 = vor.u32 %v2872, %v2875
      %v2877 = vrot.slane %v2876, 4
      %v2879 = vshll.u32 %v2570, 16
      %v2881 = vrot.slane %v2879, 5
      %v2882 = vsel %vm714, %v2877, %v2881
      %v2883 = vshrl.u32 %v2570, 16
      %v2885 = vrot.slane %v2883, 4
      %v2886 = vor.u32 %v2885, %v2881
      %v2887 = vrot.slane %v2886, 4
      %v2889 = vshll.u32 %v2571, 16
      %v2891 = vrot.slane %v2889, 5
      %v2892 = vsel %vm714, %v2887, %v2891
      %v2894 = vshrl.u32 %v2572, 16
      %v2896 = vrot.slane %v2894, 4
      %v2897 = vshll.u32 %v2572, 16
      %v2899 = vrot.slane %v2897, 5
      %v2900 = vor.u32 %v2896, %v2899
      %v2901 = vrot.slane %v2900, 4
      %v2903 = vshll.u32 %v2573, 16
      %v2905 = vrot.slane %v2903, 5
      %v2906 = vsel %vm714, %v2901, %v2905
      %v2907 = vshrl.u32 %v2573, 16
      %v2909 = vrot.slane %v2907, 4
      %v2910 = vor.u32 %v2909, %v2905
      %v2911 = vrot.slane %v2910, 4
      %v2913 = vshll.u32 %v2574, 16
      %v2915 = vrot.slane %v2913, 5
      %v2916 = vsel %vm714, %v2911, %v2915
      %v2918 = vshrl.u32 %v2575, 16
      %v2920 = vrot.slane %v2918, 4
      %v2921 = vshll.u32 %v2575, 16
      %v2923 = vrot.slane %v2921, 5
      %v2924 = vor.u32 %v2920, %v2923
      %v2925 = vrot.slane %v2924, 4
      %v2927 = vshll.u32 %v2576, 16
      %v2929 = vrot.slane %v2927, 5
      %v2930 = vsel %vm714, %v2925, %v2929
      %v2931 = vshrl.u32 %v2576, 16
      %v2933 = vrot.slane %v2931, 4
      %v2934 = vor.u32 %v2933, %v2929
      %v2935 = vrot.slane %v2934, 4
      %v2937 = vshll.u32 %v2577, 16
      %v2939 = vrot.slane %v2937, 5
      %v2940 = vsel %vm714, %v2935, %v2939
      %v2942 = vshrl.u32 %v2578, 16
      %v2944 = vrot.slane %v2942, 4
      %v2945 = vshll.u32 %v2578, 16
      %v2947 = vrot.slane %v2945, 5
      %v2948 = vor.u32 %v2944, %v2947
      %v2949 = vrot.slane %v2948, 4
      %v2951 = vshll.u32 %v2579, 16
      %v2953 = vrot.slane %v2951, 5
      %v2954 = vsel %vm714, %v2949, %v2953
      %v2955 = vshrl.u32 %v2579, 16
      %v2957 = vrot.slane %v2955, 4
      %v2958 = vor.u32 %v2957, %v2953
      %v2959 = vrot.slane %v2958, 4
      %v2961 = vshll.u32 %v2580, 16
      %v2963 = vrot.slane %v2961, 5
      %v2964 = vsel %vm714, %v2959, %v2963
      %v2965 = vld [vmem:[#allocation2] sm:$0xff]
      %v2966 = vld [vmem:[#allocation2 + $0x8] sm:$0xff]
      %v2967 = vld [vmem:[#allocation2 + $0x10] sm:$0xff]
      %v2968 = vld [vmem:[#allocation2 + $0x18] sm:$0xff]
      %v2969 = vld [vmem:[#allocation2 + $0x20] sm:$0xff]
      %v2970 = vld [vmem:[#allocation2 + $0x28] sm:$0xff]
      %v2971 = vld [vmem:[#allocation2 + $0x30] sm:$0xff]
      %v2972 = vld [vmem:[#allocation2 + $0x38] sm:$0xff]
      %v2973 = vld [vmem:[#allocation2 + $0x40] sm:$0xff]
      %v2974 = vld [vmem:[#allocation2 + $0x48] sm:$0xff]
      %v2975 = vld [vmem:[#allocation2 + $0x50] sm:$0xff]
      %v2976 = vld [vmem:[#allocation2 + $0x58] sm:$0xff]
      %v2977 = vld [vmem:[#allocation2 + $0x60] sm:$0xff]
      %v2978 = vld [vmem:[#allocation2 + $0x68] sm:$0xff]
      %v2979 = vld [vmem:[#allocation2 + $0x70] sm:$0xff]
      %v2980 = vld [vmem:[#allocation2 + $0x78] sm:$0xff]
      %v2981 = vld [vmem:[#allocation2 + $0x80] sm:$0xff]
      %v2982 = vld [vmem:[#allocation2 + $0x88] sm:$0xff]
      %v2983 = vld [vmem:[#allocation2 + $0x90] sm:$0xff]
      %v2984 = vld [vmem:[#allocation2 + $0x98] sm:$0xff]
      %v2985 = vld [vmem:[#allocation2 + $0xa0] sm:$0xff]
      %v2986 = vld [vmem:[#allocation2 + $0xa8] sm:$0xff]
      %v2987 = vld [vmem:[#allocation2 + $0xb0] sm:$0xff]
      %v2988 = vld [vmem:[#allocation2 + $0xb8] sm:$0xff]
      %v2989 = vld [vmem:[#allocation2 + $0xc0] sm:$0xff]
      %v2990 = vld [vmem:[#allocation2 + $0xc8] sm:$0xff]
      %v2991 = vld [vmem:[#allocation2 + $0xd0] sm:$0xff]
      %v2992 = vld [vmem:[#allocation2 + $0xd8] sm:$0xff]
      %v2993 = vld [vmem:[#allocation2 + $0xe0] sm:$0xff]
      %v2994 = vld [vmem:[#allocation2 + $0xe8] sm:$0xff]
      %v2995 = vld [vmem:[#allocation2 + $0xf0] sm:$0xff]
      %v2996 = vld [vmem:[#allocation2 + $0xf8] sm:$0xff]
      %s2997 = scalar_lea.vmem %s1, 256
      %v2998 = vld [vmem:[%s2997] sm:$0xf]
      %v2999 = vld [vmem:[%s2997 + $0x4] sm:$0xf]
      %v3000 = vld [vmem:[%s2997 + $0x8] sm:$0xf]
      %v3001 = vld [vmem:[%s2997 + $0xc] sm:$0xf]
      %v3002 = vld [vmem:[%s2997 + $0x10] sm:$0xf]
      %v3003 = vld [vmem:[%s2997 + $0x14] sm:$0xf]
      %v3004 = vld [vmem:[%s2997 + $0x18] sm:$0xf]
      %v3005 = vld [vmem:[%s2997 + $0x1c] sm:$0xf]
      %v3006 = vld [vmem:[%s2997 + $0x20] sm:$0xf]
      %v3007 = vld [vmem:[%s2997 + $0x24] sm:$0xf]
      %v3008 = vld [vmem:[%s2997 + $0x28] sm:$0xf]
      %v3009 = vld [vmem:[%s2997 + $0x2c] sm:$0xf]
      %v3010 = vld [vmem:[%s2997 + $0x30] sm:$0xf]
      %v3011 = vld [vmem:[%s2997 + $0x34] sm:$0xf]
      %v3012 = vld [vmem:[%s2997 + $0x38] sm:$0xf]
      %v3013 = vld [vmem:[%s2997 + $0x3c] sm:$0xf]
      %v3014 = vunpack.c.l.b16 %v2594
      %v3015 = vunpack.c.l.b16 %v2604
      %v3016 = vunpack.c.l.b16 %v2618
      %v3017 = vunpack.c.l.b16 %v2628
      %v3018 = vunpack.c.l.b16 %v2642
      %v3019 = vunpack.c.l.b16 %v2652
      %v3020 = vunpack.c.l.b16 %v2666
      %v3021 = vunpack.c.l.b16 %v2676
      %v3022 = vunpack.c.l.b16 %v2690
      %v3023 = vunpack.c.l.b16 %v2700
      %v3024 = vunpack.c.l.b16 %v2714
      %v3025 = vunpack.c.l.b16 %v2724
      %v3026 = vunpack.c.l.b16 %v2738
      %v3027 = vunpack.c.l.b16 %v2748
      %v3028 = vunpack.c.l.b16 %v2762
      %v3029 = vunpack.c.l.b16 %v2772
      %v3030 = vunpack.c.l.b16 %v2786
      %v3031 = vunpack.c.l.b16 %v2796
      %v3032 = vunpack.c.l.b16 %v2810
      %v3033 = vunpack.c.l.b16 %v2820
      %v3034 = vunpack.c.l.b16 %v2834
      %v3035 = vunpack.c.l.b16 %v2844
      %v3036 = vunpack.c.l.b16 %v2858
      %v3037 = vunpack.c.l.b16 %v2868
      %v3038 = vunpack.c.l.b16 %v2882
      %v3039 = vunpack.c.l.b16 %v2892
      %v3040 = vunpack.c.l.b16 %v2906
      %v3041 = vunpack.c.l.b16 %v2916
      %v3042 = vunpack.c.l.b16 %v2930
      %v3043 = vunpack.c.l.b16 %v2940
      %v3044 = vunpack.c.l.b16 %v2954
      %v3045 = vunpack.c.l.b16 %v2964
      %v3046 = vpack.c.b16 %v3015, %v3014
      %v3047 = vpack.c.b16 %v3017, %v3016
      %v3048 = vpack.c.b16 %v3019, %v3018
      %v3049 = vpack.c.b16 %v3021, %v3020
      %v3050 = vpack.c.b16 %v3023, %v3022
      %v3051 = vpack.c.b16 %v3025, %v3024
      %v3052 = vpack.c.b16 %v3027, %v3026
      %v3053 = vpack.c.b16 %v3029, %v3028
      %v3054 = vpack.c.b16 %v3031, %v3030
      %v3055 = vpack.c.b16 %v3033, %v3032
      %v3056 = vpack.c.b16 %v3035, %v3034
      %v3057 = vpack.c.b16 %v3037, %v3036
      %v3058 = vpack.c.b16 %v3039, %v3038
      %v3059 = vpack.c.b16 %v3041, %v3040
      %v3060 = vpack.c.b16 %v3043, %v3042
      %v3061 = vpack.c.b16 %v3045, %v3044
      %v3094 = vunpack.c.l.b16 %v2998
      %v3095 = vunpack.c.l.b16 %v2999
      %v3096 = vunpack.c.l.b16 %v3000
      %v3097 = vunpack.c.l.b16 %v3001
      %v3098 = vunpack.c.l.b16 %v3002
      %v3099 = vunpack.c.l.b16 %v3003
      %v3100 = vunpack.c.l.b16 %v3004
      %v3101 = vunpack.c.l.b16 %v3005
      %v3102 = vunpack.c.l.b16 %v3006
      %v3103 = vunpack.c.l.b16 %v3007
      %v3104 = vunpack.c.l.b16 %v3008
      %v3105 = vunpack.c.l.b16 %v3009
      %v3106 = vunpack.c.l.b16 %v3010
      %v3107 = vunpack.c.l.b16 %v3011
      %v3108 = vunpack.c.l.b16 %v3012
      %v3109 = vunpack.c.l.b16 %v3013
      %v3110 = vpack.c.b16 %v3095, %v3094
      %v3111 = vpack.c.b16 %v3097, %v3096
      %v3112 = vpack.c.b16 %v3099, %v3098
      %v3113 = vpack.c.b16 %v3101, %v3100
      %v3114 = vpack.c.b16 %v3103, %v3102
      %v3115 = vpack.c.b16 %v3105, %v3104
      %v3116 = vpack.c.b16 %v3107, %v3106
      %v3117 = vpack.c.b16 %v3109, %v3108
      %3126 = vmatprep.subr.bf16.mxu0 0
      %3127 = vmatpush1.bf16.msra.mxu0 %v3110
      %3128 = vmatprep.subr.bf16.mxu0 0
      %3129 = vmatpush1.bf16.msra.mxu0 %v3111
      %3130 = vmatprep.subr.bf16.mxu0 0
      %3131 = vmatpush1.bf16.msra.mxu0 %v3112
      %3132 = vmatprep.subr.bf16.mxu0 0
      %3133 = vmatpush1.bf16.msra.mxu0 %v3113
      %3134 = vmatprep.subr.bf16.mxu0 0
      %3135 = vmatpush1.bf16.msra.mxu0 %v3114
      %3136 = vmatprep.subr.bf16.mxu0 0
      %3137 = vmatpush1.bf16.msra.mxu0 %v3115
      %3138 = vmatprep.subr.bf16.mxu0 0
      %3139 = vmatpush1.bf16.msra.mxu0 %v3116
      %3140 = vmatprep.subr.bf16.mxu0 0
      %3141 = vmatpush1.bf16.msra.mxu0 %v3117
      %3142 = vmatprep.subr.bf16.mxu0 0
      %3143 = vmatpush1.bf16.msra.mxu0 0
      %3144 = vmatprep.subr.bf16.mxu0 0
      %3145 = vmatpush1.bf16.msra.mxu0 0
      %3146 = vmatprep.subr.bf16.mxu0 0
      %3147 = vmatpush1.bf16.msra.mxu0 0
      %3148 = vmatprep.subr.bf16.mxu0 0
      %3149 = vmatpush1.bf16.msra.mxu0 0
      %3150 = vmatprep.subr.bf16.mxu0 0
      %3151 = vmatpush1.bf16.msra.mxu0 0
      %3152 = vmatprep.subr.bf16.mxu0 0
      %3153 = vmatpush1.bf16.msra.mxu0 0
      %3154 = vmatprep.subr.bf16.mxu0 0
      %3155 = vmatpush1.bf16.msra.mxu0 0
      %3156 = vmatprep.subr.bf16.mxu0 0
      %3157 = vmatpush1.bf16.msra.mxu0 0
      %3158 = vmatprep.mubr.bf16.mxu0 0
      %3159 = vmatmul.mubr.bf16.gmra.mrb[0].mxu0 %v3046
      %v3160 = vpop.f32.mrb[0].mxu0
      %v3161 = vadd.f32 0.0, %v3160
      %v3162 = vpop.f32.mrb[0].mxu0
      %v3163 = vpop.f32.mrb[0].mxu0
      %v3164 = vadd.f32 0.0, %v3163
      %v3165 = vpop.f32.mrb[0].mxu0
      %3166 = vmatprep.mubr.bf16.mxu0 0
      %3167 = vmatmul.mubr.bf16.gmra.mrb[0].mxu0 %v3047
      %v3168 = vpop.f32.mrb[0].mxu0
      %v3169 = vadd.f32 0.0, %v3168
      %v3170 = vpop.f32.mrb[0].mxu0
      %v3171 = vpop.f32.mrb[0].mxu0
      %v3172 = vadd.f32 0.0, %v3171
      %v3173 = vpop.f32.mrb[0].mxu0
      %3174 = vmatprep.mubr.bf16.mxu0 0
      %3175 = vmatmul.mubr.bf16.gmra.mrb[0].mxu0 %v3048
      %v3176 = vpop.f32.mrb[0].mxu0
      %v3177 = vadd.f32 0.0, %v3176
      %v3178 = vpop.f32.mrb[0].mxu0
      %v3179 = vpop.f32.mrb[0].mxu0
      %v3180 = vadd.f32 0.0, %v3179
      %v3181 = vpop.f32.mrb[0].mxu0
      %3182 = vmatprep.mubr.bf16.mxu0 0
      %3183 = vmatmul.mubr.bf16.gmra.mrb[0].mxu0 %v3049
      %v3184 = vpop.f32.mrb[0].mxu0
      %v3185 = vadd.f32 0.0, %v3184
      %v3186 = vpop.f32.mrb[0].mxu0
      %v3187 = vpop.f32.mrb[0].mxu0
      %v3188 = vadd.f32 0.0, %v3187
      %v3189 = vpop.f32.mrb[0].mxu0
      %3190 = vmatprep.mubr.bf16.mxu0 0
      %3191 = vmatmul.mubr.bf16.gmra.mrb[0].mxu0 %v3050
      %v3192 = vpop.f32.mrb[0].mxu0
      %v3193 = vadd.f32 0.0, %v3192
      %v3194 = vpop.f32.mrb[0].mxu0
      %v3195 = vpop.f32.mrb[0].mxu0
      %v3196 = vadd.f32 0.0, %v3195
      %v3197 = vpop.f32.mrb[0].mxu0
      %3198 = vmatprep.mubr.bf16.mxu0 0
      %3199 = vmatmul.mubr.bf16.gmra.mrb[0].mxu0 %v3051
      %v3200 = vpop.f32.mrb[0].mxu0
      %v3201 = vadd.f32 0.0, %v3200
      %v3202 = vpop.f32.mrb[0].mxu0
      %v3203 = vpop.f32.mrb[0].mxu0
      %v3204 = vadd.f32 0.0, %v3203
      %v3205 = vpop.f32.mrb[0].mxu0
      %3206 = vmatprep.mubr.bf16.mxu0 0
      %3207 = vmatmul.mubr.bf16.gmra.mrb[0].mxu0 %v3052
      %v3208 = vpop.f32.mrb[0].mxu0
      %v3209 = vadd.f32 0.0, %v3208
      %v3210 = vpop.f32.mrb[0].mxu0
      %v3211 = vpop.f32.mrb[0].mxu0
      %v3212 = vadd.f32 0.0, %v3211
      %v3213 = vpop.f32.mrb[0].mxu0
      %3214 = vmatprep.mubr.bf16.mxu0 0
      %3215 = vmatmul.mubr.bf16.gmra.mrb[0].mxu0 %v3053
      %v3216 = vpop.f32.mrb[0].mxu0
      %v3217 = vadd.f32 0.0, %v3216
      %v3218 = vpop.f32.mrb[0].mxu0
      %v3219 = vpop.f32.mrb[0].mxu0
      %v3220 = vadd.f32 0.0, %v3219
      %v3221 = vpop.f32.mrb[0].mxu0
      %3222 = vmatprep.mubr.bf16.mxu0 0
      %3223 = vmatmul.mubr.bf16.gmra.mrb[0].mxu0 %v3054
      %v3224 = vpop.f32.mrb[0].mxu0
      %v3225 = vadd.f32 0.0, %v3224
      %v3226 = vpop.f32.mrb[0].mxu0
      %v3227 = vpop.f32.mrb[0].mxu0
      %v3228 = vadd.f32 0.0, %v3227
      %v3229 = vpop.f32.mrb[0].mxu0
      %3230 = vmatprep.mubr.bf16.mxu0 0
      %3231 = vmatmul.mubr.bf16.gmra.mrb[0].mxu0 %v3055
      %v3232 = vpop.f32.mrb[0].mxu0
      %v3233 = vadd.f32 0.0, %v3232
      %v3234 = vpop.f32.mrb[0].mxu0
      %v3235 = vpop.f32.mrb[0].mxu0
      %v3236 = vadd.f32 0.0, %v3235
      %v3237 = vpop.f32.mrb[0].mxu0
      %3238 = vmatprep.mubr.bf16.mxu0 0
      %3239 = vmatmul.mubr.bf16.gmra.mrb[0].mxu0 %v3056
      %v3240 = vpop.f32.mrb[0].mxu0
      %v3241 = vadd.f32 0.0, %v3240
      %v3242 = vpop.f32.mrb[0].mxu0
      %v3243 = vpop.f32.mrb[0].mxu0
      %v3244 = vadd.f32 0.0, %v3243
      %v3245 = vpop.f32.mrb[0].mxu0
      %3246 = vmatprep.mubr.bf16.mxu0 0
      %3247 = vmatmul.mubr.bf16.gmra.mrb[0].mxu0 %v3057
      %v3248 = vpop.f32.mrb[0].mxu0
      %v3249 = vadd.f32 0.0, %v3248
      %v3250 = vpop.f32.mrb[0].mxu0
      %v3251 = vpop.f32.mrb[0].mxu0
      %v3252 = vadd.f32 0.0, %v3251
      %v3253 = vpop.f32.mrb[0].mxu0
      %3254 = vmatprep.mubr.bf16.mxu0 0
      %3255 = vmatmul.mubr.bf16.gmra.mrb[0].mxu0 %v3058
      %v3256 = vpop.f32.mrb[0].mxu0
      %v3257 = vadd.f32 0.0, %v3256
      %v3258 = vpop.f32.mrb[0].mxu0
      %v3259 = vpop.f32.mrb[0].mxu0
      %v3260 = vadd.f32 0.0, %v3259
      %v3261 = vpop.f32.mrb[0].mxu0
      %3262 = vmatprep.mubr.bf16.mxu0 0
      %3263 = vmatmul.mubr.bf16.gmra.mrb[0].mxu0 %v3059
      %v3264 = vpop.f32.mrb[0].mxu0
      %v3265 = vadd.f32 0.0, %v3264
      %v3266 = vpop.f32.mrb[0].mxu0
      %v3267 = vpop.f32.mrb[0].mxu0
      %v3268 = vadd.f32 0.0, %v3267
      %v3269 = vpop.f32.mrb[0].mxu0
      %3270 = vmatprep.mubr.bf16.mxu0 0
      %3271 = vmatmul.mubr.bf16.gmra.mrb[0].mxu0 %v3060
      %v3272 = vpop.f32.mrb[0].mxu0
      %v3273 = vadd.f32 0.0, %v3272
      %v3274 = vpop.f32.mrb[0].mxu0
      %v3275 = vpop.f32.mrb[0].mxu0
      %v3276 = vadd.f32 0.0, %v3275
      %v3277 = vpop.f32.mrb[0].mxu0
      %3278 = vmatprep.mubr.bf16.mxu0 0
      %3279 = vmatmul.mubr.bf16.gmra.mrb[0].mxu0 %v3061
      %v3280 = vpop.f32.mrb[0].mxu0
      %v3281 = vadd.f32 0.0, %v3280
      %v3282 = vpop.f32.mrb[0].mxu0
      %v3283 = vpop.f32.mrb[0].mxu0
      %v3284 = vadd.f32 0.0, %v3283
      %v3285 = vpop.f32.mrb[0].mxu0
      %3286 = vdwg.mxu0
      %v3287 = vadd.f32 %v2965, %v3161
      %v3288 = vadd.f32 %v2966, %v3164
      %v3289 = vadd.f32 %v2967, %v3169
      %v3290 = vadd.f32 %v2968, %v3172
      %v3291 = vadd.f32 %v2969, %v3177
      %v3292 = vadd.f32 %v2970, %v3180
      %v3293 = vadd.f32 %v2971, %v3185
      %v3294 = vadd.f32 %v2972, %v3188
      %v3295 = vadd.f32 %v2973, %v3193
      %v3296 = vadd.f32 %v2974, %v3196
      %v3297 = vadd.f32 %v2975, %v3201
      %v3298 = vadd.f32 %v2976, %v3204
      %v3299 = vadd.f32 %v2977, %v3209
      %v3300 = vadd.f32 %v2978, %v3212
      %v3301 = vadd.f32 %v2979, %v3217
      %v3302 = vadd.f32 %v2980, %v3220
      %v3303 = vadd.f32 %v2981, %v3225
      %v3304 = vadd.f32 %v2982, %v3228
      %v3305 = vadd.f32 %v2983, %v3233
      %v3306 = vadd.f32 %v2984, %v3236
      %v3307 = vadd.f32 %v2985, %v3241
      %v3308 = vadd.f32 %v2986, %v3244
      %v3309 = vadd.f32 %v2987, %v3249
      %v3310 = vadd.f32 %v2988, %v3252
      %v3311 = vadd.f32 %v2989, %v3257
      %v3312 = vadd.f32 %v2990, %v3260
      %v3313 = vadd.f32 %v2991, %v3265
      %v3314 = vadd.f32 %v2992, %v3268
      %v3315 = vadd.f32 %v2993, %v3273
      %v3316 = vadd.f32 %v2994, %v3276
      %v3317 = vadd.f32 %v2995, %v3281
      %v3318 = vadd.f32 %v2996, %v3284
      %3319 = vst [vmem:[#allocation2] sm:$0xff] %v3287
      %3320 = vst [vmem:[#allocation2 + $0x8] sm:$0xff] %v3288
      %3321 = vst [vmem:[#allocation2 + $0x10] sm:$0xff] %v3289
      %3322 = vst [vmem:[#allocation2 + $0x18] sm:$0xff] %v3290
      %3323 = vst [vmem:[#allocation2 + $0x20] sm:$0xff] %v3291
      %3324 = vst [vmem:[#allocation2 + $0x28] sm:$0xff] %v3292
      %3325 = vst [vmem:[#allocation2 + $0x30] sm:$0xff] %v3293
      %3326 = vst [vmem:[#allocation2 + $0x38] sm:$0xff] %v3294
      %3327 = vst [vmem:[#allocation2 + $0x40] sm:$0xff] %v3295
      %3328 = vst [vmem:[#allocation2 + $0x48] sm:$0xff] %v3296
      %3329 = vst [vmem:[#allocation2 + $0x50] sm:$0xff] %v3297
      %3330 = vst [vmem:[#allocation2 + $0x58] sm:$0xff] %v3298
      %3331 = vst [vmem:[#allocation2 + $0x60] sm:$0xff] %v3299
      %3332 = vst [vmem:[#allocation2 + $0x68] sm:$0xff] %v3300
      %3333 = vst [vmem:[#allocation2 + $0x70] sm:$0xff] %v3301
      %3334 = vst [vmem:[#allocation2 + $0x78] sm:$0xff] %v3302
      %3335 = vst [vmem:[#allocation2 + $0x80] sm:$0xff] %v3303
      %3336 = vst [vmem:[#allocation2 + $0x88] sm:$0xff] %v3304
      %3337 = vst [vmem:[#allocation2 + $0x90] sm:$0xff] %v3305
      %3338 = vst [vmem:[#allocation2 + $0x98] sm:$0xff] %v3306
      %3339 = vst [vmem:[#allocation2 + $0xa0] sm:$0xff] %v3307
      %3340 = vst [vmem:[#allocation2 + $0xa8] sm:$0xff] %v3308
      %3341 = vst [vmem:[#allocation2 + $0xb0] sm:$0xff] %v3309
      %3342 = vst [vmem:[#allocation2 + $0xb8] sm:$0xff] %v3310
      %3343 = vst [vmem:[#allocation2 + $0xc0] sm:$0xff] %v3311
      %3344 = vst [vmem:[#allocation2 + $0xc8] sm:$0xff] %v3312
      %3345 = vst [vmem:[#allocation2 + $0xd0] sm:$0xff] %v3313
      %3346 = vst [vmem:[#allocation2 + $0xd8] sm:$0xff] %v3314
      %3347 = vst [vmem:[#allocation2 + $0xe0] sm:$0xff] %v3315
      %3348 = vst [vmem:[#allocation2 + $0xe8] sm:$0xff] %v3316
      %3349 = vst [vmem:[#allocation2 + $0xf0] sm:$0xff] %v3317
      %3350 = vst [vmem:[#allocation2 + $0xf8] sm:$0xff] %v3318
      %v3351 = vld [vmem:[%s2082] sm:$0xe]
      %v3352 = vld [vmem:[%s2082 + $0x4] sm:$0xf]
      %v3353 = vld [vmem:[%s2082 + $0x8] sm:$0x1]
      %v3354 = vld [vmem:[%s2082 + $0xc] sm:$0xe]
      %v3355 = vld [vmem:[%s2082 + $0x10] sm:$0xf]
      %v3356 = vld [vmem:[%s2082 + $0x14] sm:$0x1]
      %v3357 = vld [vmem:[%s2082 + $0x18] sm:$0xe]
      %v3358 = vld [vmem:[%s2082 + $0x1c] sm:$0xf]
      %v3359 = vld [vmem:[%s2082 + $0x20] sm:$0x1]
      %v3360 = vld [vmem:[%s2082 + $0x24] sm:$0xe]
      %v3361 = vld [vmem:[%s2082 + $0x28] sm:$0xf]
      %v3362 = vld [vmem:[%s2082 + $0x2c] sm:$0x1]
      %v3363 = vld [vmem:[%s2082 + $0x30] sm:$0xe]
      %v3364 = vld [vmem:[%s2082 + $0x34] sm:$0xf]
      %v3365 = vld [vmem:[%s2082 + $0x38] sm:$0x1]
      %v3366 = vld [vmem:[%s2082 + $0x3c] sm:$0xe]
      %v3367 = vld [vmem:[%s2082 + $0x40] sm:$0xf]
      %v3368 = vld [vmem:[%s2082 + $0x44] sm:$0x1]
      %v3369 = vld [vmem:[%s2082 + $0x48] sm:$0xe]
      %v3370 = vld [vmem:[%s2082 + $0x4c] sm:$0xf]
      %v3371 = vld [vmem:[%s2082 + $0x50] sm:$0x1]
      %v3372 = vld [vmem:[%s2082 + $0x54] sm:$0xe]
      %v3373 = vld [vmem:[%s2082 + $0x58] sm:$0xf]
      %v3374 = vld [vmem:[%s2082 + $0x5c] sm:$0x1]
      %v3375 = vld [vmem:[%s2082 + $0x60] sm:$0xe]
      %v3376 = vld [vmem:[%s2082 + $0x64] sm:$0xf]
      %v3377 = vld [vmem:[%s2082 + $0x68] sm:$0x1]
      %v3378 = vld [vmem:[%s2082 + $0x6c] sm:$0xe]
      %v3379 = vld [vmem:[%s2082 + $0x70] sm:$0xf]
      %v3380 = vld [vmem:[%s2082 + $0x74] sm:$0x1]
      %v3381 = vld [vmem:[%s2082 + $0x78] sm:$0xe]
      %v3382 = vld [vmem:[%s2082 + $0x7c] sm:$0xf]
      %v3383 = vld [vmem:[%s2082 + $0x80] sm:$0x1]
      %v3384 = vld [vmem:[%s2082 + $0x84] sm:$0xe]
      %v3385 = vld [vmem:[%s2082 + $0x88] sm:$0xf]
      %v3386 = vld [vmem:[%s2082 + $0x8c] sm:$0x1]
      %v3387 = vld [vmem:[%s2082 + $0x90] sm:$0xe]
      %v3388 = vld [vmem:[%s2082 + $0x94] sm:$0xf]
      %v3389 = vld [vmem:[%s2082 + $0x98] sm:$0x1]
      %v3390 = vld [vmem:[%s2082 + $0x9c] sm:$0xe]
      %v3391 = vld [vmem:[%s2082 + $0xa0] sm:$0xf]
      %v3392 = vld [vmem:[%s2082 + $0xa4] sm:$0x1]
      %v3393 = vld [vmem:[%s2082 + $0xa8] sm:$0xe]
      %v3394 = vld [vmem:[%s2082 + $0xac] sm:$0xf]
      %v3395 = vld [vmem:[%s2082 + $0xb0] sm:$0x1]
      %v3396 = vld [vmem:[%s2082 + $0xb4] sm:$0xe]
      %v3397 = vld [vmem:[%s2082 + $0xb8] sm:$0xf]
      %v3398 = vld [vmem:[%s2082 + $0xbc] sm:$0x1]
      %v3447 = vrot.slane %v3351, 5
      %v3448 = vrot.slane %v3447, 4
      %v3449 = vrot.slane %v3352, 5
      %v3450 = vsel %vm1583, %v3448, %v3449
      %v3451 = vrot.slane %v3449, 4
      %v3452 = vrot.slane %v3353, 5
      %v3453 = vsel %vm1583, %v3451, %v3452
      %v3454 = vrot.slane %v3354, 5
      %v3455 = vrot.slane %v3454, 4
      %v3456 = vrot.slane %v3355, 5
      %v3457 = vsel %vm1583, %v3455, %v3456
      %v3458 = vrot.slane %v3456, 4
      %v3459 = vrot.slane %v3356, 5
      %v3460 = vsel %vm1583, %v3458, %v3459
      %v3461 = vrot.slane %v3357, 5
      %v3462 = vrot.slane %v3461, 4
      %v3463 = vrot.slane %v3358, 5
      %v3464 = vsel %vm1583, %v3462, %v3463
      %v3465 = vrot.slane %v3463, 4
      %v3466 = vrot.slane %v3359, 5
      %v3467 = vsel %vm1583, %v3465, %v3466
      %v3468 = vrot.slane %v3360, 5
      %v3469 = vrot.slane %v3468, 4
      %v3470 = vrot.slane %v3361, 5
      %v3471 = vsel %vm1583, %v3469, %v3470
      %v3472 = vrot.slane %v3470, 4
      %v3473 = vrot.slane %v3362, 5
      %v3474 = vsel %vm1583, %v3472, %v3473
      %v3475 = vrot.slane %v3363, 5
      %v3476 = vrot.slane %v3475, 4
      %v3477 = vrot.slane %v3364, 5
      %v3478 = vsel %vm1583, %v3476, %v3477
      %v3479 = vrot.slane %v3477, 4
      %v3480 = vrot.slane %v3365, 5
      %v3481 = vsel %vm1583, %v3479, %v3480
      %v3482 = vrot.slane %v3366, 5
      %v3483 = vrot.slane %v3482, 4
      %v3484 = vrot.slane %v3367, 5
      %v3485 = vsel %vm1583, %v3483, %v3484
      %v3486 = vrot.slane %v3484, 4
      %v3487 = vrot.slane %v3368, 5
      %v3488 = vsel %vm1583, %v3486, %v3487
      %v3489 = vrot.slane %v3369, 5
      %v3490 = vrot.slane %v3489, 4
      %v3491 = vrot.slane %v3370, 5
      %v3492 = vsel %vm1583, %v3490, %v3491
      %v3493 = vrot.slane %v3491, 4
      %v3494 = vrot.slane %v3371, 5
      %v3495 = vsel %vm1583, %v3493, %v3494
      %v3496 = vrot.slane %v3372, 5
      %v3497 = vrot.slane %v3496, 4
      %v3498 = vrot.slane %v3373, 5
      %v3499 = vsel %vm1583, %v3497, %v3498
      %v3500 = vrot.slane %v3498, 4
      %v3501 = vrot.slane %v3374, 5
      %v3502 = vsel %vm1583, %v3500, %v3501
      %v3503 = vrot.slane %v3375, 5
      %v3504 = vrot.slane %v3503, 4
      %v3505 = vrot.slane %v3376, 5
      %v3506 = vsel %vm1583, %v3504, %v3505
      %v3507 = vrot.slane %v3505, 4
      %v3508 = vrot.slane %v3377, 5
      %v3509 = vsel %vm1583, %v3507, %v3508
      %v3510 = vrot.slane %v3378, 5
      %v3511 = vrot.slane %v3510, 4
      %v3512 = vrot.slane %v3379, 5
      %v3513 = vsel %vm1583, %v3511, %v3512
      %v3514 = vrot.slane %v3512, 4
      %v3515 = vrot.slane %v3380, 5
      %v3516 = vsel %vm1583, %v3514, %v3515
      %v3517 = vrot.slane %v3381, 5
      %v3518 = vrot.slane %v3517, 4
      %v3519 = vrot.slane %v3382, 5
      %v3520 = vsel %vm1583, %v3518, %v3519
      %v3521 = vrot.slane %v3519, 4
      %v3522 = vrot.slane %v3383, 5
      %v3523 = vsel %vm1583, %v3521, %v3522
      %v3524 = vrot.slane %v3384, 5
      %v3525 = vrot.slane %v3524, 4
      %v3526 = vrot.slane %v3385, 5
      %v3527 = vsel %vm1583, %v3525, %v3526
      %v3528 = vrot.slane %v3526, 4
      %v3529 = vrot.slane %v3386, 5
      %v3530 = vsel %vm1583, %v3528, %v3529
      %v3531 = vrot.slane %v3387, 5
      %v3532 = vrot.slane %v3531, 4
      %v3533 = vrot.slane %v3388, 5
      %v3534 = vsel %vm1583, %v3532, %v3533
      %v3535 = vrot.slane %v3533, 4
      %v3536 = vrot.slane %v3389, 5
      %v3537 = vsel %vm1583, %v3535, %v3536
      %v3538 = vrot.slane %v3390, 5
      %v3539 = vrot.slane %v3538, 4
      %v3540 = vrot.slane %v3391, 5
      %v3541 = vsel %vm1583, %v3539, %v3540
      %v3542 = vrot.slane %v3540, 4
      %v3543 = vrot.slane %v3392, 5
      %v3544 = vsel %vm1583, %v3542, %v3543
      %v3545 = vrot.slane %v3393, 5
      %v3546 = vrot.slane %v3545, 4
      %v3547 = vrot.slane %v3394, 5
      %v3548 = vsel %vm1583, %v3546, %v3547
      %v3549 = vrot.slane %v3547, 4
      %v3550 = vrot.slane %v3395, 5
      %v3551 = vsel %vm1583, %v3549, %v3550
      %v3552 = vrot.slane %v3396, 5
      %v3553 = vrot.slane %v3552, 4
      %v3554 = vrot.slane %v3397, 5
      %v3555 = vsel %vm1583, %v3553, %v3554
      %v3556 = vrot.slane %v3554, 4
      %v3557 = vrot.slane %v3398, 5
      %v3558 = vsel %vm1583, %v3556, %v3557
      %v3559 = vld [vmem:[#allocation2] sm:$0xff]
      %v3560 = vld [vmem:[#allocation2 + $0x8] sm:$0xff]
      %v3561 = vld [vmem:[#allocation2 + $0x10] sm:$0xff]
      %v3562 = vld [vmem:[#allocation2 + $0x18] sm:$0xff]
      %v3563 = vld [vmem:[#allocation2 + $0x20] sm:$0xff]
      %v3564 = vld [vmem:[#allocation2 + $0x28] sm:$0xff]
      %v3565 = vld [vmem:[#allocation2 + $0x30] sm:$0xff]
      %v3566 = vld [vmem:[#allocation2 + $0x38] sm:$0xff]
      %v3567 = vld [vmem:[#allocation2 + $0x40] sm:$0xff]
      %v3568 = vld [vmem:[#allocation2 + $0x48] sm:$0xff]
      %v3569 = vld [vmem:[#allocation2 + $0x50] sm:$0xff]
      %v3570 = vld [vmem:[#allocation2 + $0x58] sm:$0xff]
      %v3571 = vld [vmem:[#allocation2 + $0x60] sm:$0xff]
      %v3572 = vld [vmem:[#allocation2 + $0x68] sm:$0xff]
      %v3573 = vld [vmem:[#allocation2 + $0x70] sm:$0xff]
      %v3574 = vld [vmem:[#allocation2 + $0x78] sm:$0xff]
      %v3575 = vld [vmem:[#allocation2 + $0x80] sm:$0xff]
      %v3576 = vld [vmem:[#allocation2 + $0x88] sm:$0xff]
      %v3577 = vld [vmem:[#allocation2 + $0x90] sm:$0xff]
      %v3578 = vld [vmem:[#allocation2 + $0x98] sm:$0xff]
      %v3579 = vld [vmem:[#allocation2 + $0xa0] sm:$0xff]
      %v3580 = vld [vmem:[#allocation2 + $0xa8] sm:$0xff]
      %v3581 = vld [vmem:[#allocation2 + $0xb0] sm:$0xff]
      %v3582 = vld [vmem:[#allocation2 + $0xb8] sm:$0xff]
      %v3583 = vld [vmem:[#allocation2 + $0xc0] sm:$0xff]
      %v3584 = vld [vmem:[#allocation2 + $0xc8] sm:$0xff]
      %v3585 = vld [vmem:[#allocation2 + $0xd0] sm:$0xff]
      %v3586 = vld [vmem:[#allocation2 + $0xd8] sm:$0xff]
      %v3587 = vld [vmem:[#allocation2 + $0xe0] sm:$0xff]
      %v3588 = vld [vmem:[#allocation2 + $0xe8] sm:$0xff]
      %v3589 = vld [vmem:[#allocation2 + $0xf0] sm:$0xff]
      %v3590 = vld [vmem:[#allocation2 + $0xf8] sm:$0xff]
      %s3591 = scalar_lea.vmem %s1, 320
      %v3592 = vld [vmem:[%s3591] sm:$0xf]
      %v3593 = vld [vmem:[%s3591 + $0x4] sm:$0xf]
      %v3594 = vld [vmem:[%s3591 + $0x8] sm:$0xf]
      %v3595 = vld [vmem:[%s3591 + $0xc] sm:$0xf]
      %v3596 = vld [vmem:[%s3591 + $0x10] sm:$0xf]
      %v3597 = vld [vmem:[%s3591 + $0x14] sm:$0xf]
      %v3598 = vld [vmem:[%s3591 + $0x18] sm:$0xf]
      %v3599 = vld [vmem:[%s3591 + $0x1c] sm:$0xf]
      %v3600 = vld [vmem:[%s3591 + $0x20] sm:$0xf]
      %v3601 = vld [vmem:[%s3591 + $0x24] sm:$0xf]
      %v3602 = vld [vmem:[%s3591 + $0x28] sm:$0xf]
      %v3603 = vld [vmem:[%s3591 + $0x2c] sm:$0xf]
      %v3604 = vld [vmem:[%s3591 + $0x30] sm:$0xf]
      %v3605 = vld [vmem:[%s3591 + $0x34] sm:$0xf]
      %v3606 = vld [vmem:[%s3591 + $0x38] sm:$0xf]
      %v3607 = vld [vmem:[%s3591 + $0x3c] sm:$0xf]
      %v3608 = vunpack.c.l.b16 %v3450
      %v3609 = vunpack.c.l.b16 %v3453
      %v3610 = vunpack.c.l.b16 %v3457
      %v3611 = vunpack.c.l.b16 %v3460
      %v3612 = vunpack.c.l.b16 %v3464
      %v3613 = vunpack.c.l.b16 %v3467
      %v3614 = vunpack.c.l.b16 %v3471
      %v3615 = vunpack.c.l.b16 %v3474
      %v3616 = vunpack.c.l.b16 %v3478
      %v3617 = vunpack.c.l.b16 %v3481
      %v3618 = vunpack.c.l.b16 %v3485
      %v3619 = vunpack.c.l.b16 %v3488
      %v3620 = vunpack.c.l.b16 %v3492
      %v3621 = vunpack.c.l.b16 %v3495
      %v3622 = vunpack.c.l.b16 %v3499
      %v3623 = vunpack.c.l.b16 %v3502
      %v3624 = vunpack.c.l.b16 %v3506
      %v3625 = vunpack.c.l.b16 %v3509
      %v3626 = vunpack.c.l.b16 %v3513
      %v3627 = vunpack.c.l.b16 %v3516
      %v3628 = vunpack.c.l.b16 %v3520
      %v3629 = vunpack.c.l.b16 %v3523
      %v3630 = vunpack.c.l.b16 %v3527
      %v3631 = vunpack.c.l.b16 %v3530
      %v3632 = vunpack.c.l.b16 %v3534
      %v3633 = vunpack.c.l.b16 %v3537
      %v3634 = vunpack.c.l.b16 %v3541
      %v3635 = vunpack.c.l.b16 %v3544
      %v3636 = vunpack.c.l.b16 %v3548
      %v3637 = vunpack.c.l.b16 %v3551
      %v3638 = vunpack.c.l.b16 %v3555
      %v3639 = vunpack.c.l.b16 %v3558
      %v3640 = vpack.c.b16 %v3609, %v3608
      %v3641 = vpack.c.b16 %v3611, %v3610
      %v3642 = vpack.c.b16 %v3613, %v3612
      %v3643 = vpack.c.b16 %v3615, %v3614
      %v3644 = vpack.c.b16 %v3617, %v3616
      %v3645 = vpack.c.b16 %v3619, %v3618
      %v3646 = vpack.c.b16 %v3621, %v3620
      %v3647 = vpack.c.b16 %v3623, %v3622
      %v3648 = vpack.c.b16 %v3625, %v3624
      %v3649 = vpack.c.b16 %v3627, %v3626
      %v3650 = vpack.c.b16 %v3629, %v3628
      %v3651 = vpack.c.b16 %v3631, %v3630
      %v3652 = vpack.c.b16 %v3633, %v3632
      %v3653 = vpack.c.b16 %v3635, %v3634
      %v3654 = vpack.c.b16 %v3637, %v3636
      %v3655 = vpack.c.b16 %v3639, %v3638
      %v3688 = vunpack.c.l.b16 %v3592
      %v3689 = vunpack.c.l.b16 %v3593
      %v3690 = vunpack.c.l.b16 %v3594
      %v3691 = vunpack.c.l.b16 %v3595
      %v3692 = vunpack.c.l.b16 %v3596
      %v3693 = vunpack.c.l.b16 %v3597
      %v3694 = vunpack.c.l.b16 %v3598
      %v3695 = vunpack.c.l.b16 %v3599
      %v3696 = vunpack.c.l.b16 %v3600
      %v3697 = vunpack.c.l.b16 %v3601
      %v3698 = vunpack.c.l.b16 %v3602
      %v3699 = vunpack.c.l.b16 %v3603
      %v3700 = vunpack.c.l.b16 %v3604
      %v3701 = vunpack.c.l.b16 %v3605
      %v3702 = vunpack.c.l.b16 %v3606
      %v3703 = vunpack.c.l.b16 %v3607
      %v3704 = vpack.c.b16 %v3689, %v3688
      %v3705 = vpack.c.b16 %v3691, %v3690
      %v3706 = vpack.c.b16 %v3693, %v3692
      %v3707 = vpack.c.b16 %v3695, %v3694
      %v3708 = vpack.c.b16 %v3697, %v3696
      %v3709 = vpack.c.b16 %v3699, %v3698
      %v3710 = vpack.c.b16 %v3701, %v3700
      %v3711 = vpack.c.b16 %v3703, %v3702
      %3720 = vmatprep.subr.bf16.mxu0 0
      %3721 = vmatpush1.bf16.msra.mxu0 %v3704
      %3722 = vmatprep.subr.bf16.mxu0 0
      %3723 = vmatpush1.bf16.msra.mxu0 %v3705
      %3724 = vmatprep.subr.bf16.mxu0 0
      %3725 = vmatpush1.bf16.msra.mxu0 %v3706
      %3726 = vmatprep.subr.bf16.mxu0 0
      %3727 = vmatpush1.bf16.msra.mxu0 %v3707
      %3728 = vmatprep.subr.bf16.mxu0 0
      %3729 = vmatpush1.bf16.msra.mxu0 %v3708
      %3730 = vmatprep.subr.bf16.mxu0 0
      %3731 = vmatpush1.bf16.msra.mxu0 %v3709
      %3732 = vmatprep.subr.bf16.mxu0 0
      %3733 = vmatpush1.bf16.msra.mxu0 %v3710
      %3734 = vmatprep.subr.bf16.mxu0 0
      %3735 = vmatpush1.bf16.msra.mxu0 %v3711
      %3736 = vmatprep.subr.bf16.mxu0 0
      %3737 = vmatpush1.bf16.msra.mxu0 0
      %3738 = vmatprep.subr.bf16.mxu0 0
      %3739 = vmatpush1.bf16.msra.mxu0 0
      %3740 = vmatprep.subr.bf16.mxu0 0
      %3741 = vmatpush1.bf16.msra.mxu0 0
      %3742 = vmatprep.subr.bf16.mxu0 0
      %3743 = vmatpush1.bf16.msra.mxu0 0
      %3744 = vmatprep.subr.bf16.mxu0 0
      %3745 = vmatpush1.bf16.msra.mxu0 0
      %3746 = vmatprep.subr.bf16.mxu0 0
      %3747 = vmatpush1.bf16.msra.mxu0 0
      %3748 = vmatprep.subr.bf16.mxu0 0
      %3749 = vmatpush1.bf16.msra.mxu0 0
      %3750 = vmatprep.subr.bf16.mxu0 0
      %3751 = vmatpush1.bf16.msra.mxu0 0
      %3752 = vmatprep.mubr.bf16.mxu0 0
      %3753 = vmatmul.mubr.bf16.gmra.mrb[0].mxu0 %v3640
      %v3754 = vpop.f32.mrb[0].mxu0
      %v3755 = vadd.f32 0.0, %v3754
      %v3756 = vpop.f32.mrb[0].mxu0
      %v3757 = vpop.f32.mrb[0].mxu0
      %v3758 = vadd.f32 0.0, %v3757
      %v3759 = vpop.f32.mrb[0].mxu0
      %3760 = vmatprep.mubr.bf16.mxu0 0
      %3761 = vmatmul.mubr.bf16.gmra.mrb[0].mxu0 %v3641
      %v3762 = vpop.f32.mrb[0].mxu0
      %v3763 = vadd.f32 0.0, %v3762
      %v3764 = vpop.f32.mrb[0].mxu0
      %v3765 = vpop.f32.mrb[0].mxu0
      %v3766 = vadd.f32 0.0, %v3765
      %v3767 = vpop.f32.mrb[0].mxu0
      %3768 = vmatprep.mubr.bf16.mxu0 0
      %3769 = vmatmul.mubr.bf16.gmra.mrb[0].mxu0 %v3642
      %v3770 = vpop.f32.mrb[0].mxu0
      %v3771 = vadd.f32 0.0, %v3770
      %v3772 = vpop.f32.mrb[0].mxu0
      %v3773 = vpop.f32.mrb[0].mxu0
      %v3774 = vadd.f32 0.0, %v3773
      %v3775 = vpop.f32.mrb[0].mxu0
      %3776 = vmatprep.mubr.bf16.mxu0 0
      %3777 = vmatmul.mubr.bf16.gmra.mrb[0].mxu0 %v3643
      %v3778 = vpop.f32.mrb[0].mxu0
      %v3779 = vadd.f32 0.0, %v3778
      %v3780 = vpop.f32.mrb[0].mxu0
      %v3781 = vpop.f32.mrb[0].mxu0
      %v3782 = vadd.f32 0.0, %v3781
      %v3783 = vpop.f32.mrb[0].mxu0
      %3784 = vmatprep.mubr.bf16.mxu0 0
      %3785 = vmatmul.mubr.bf16.gmra.mrb[0].mxu0 %v3644
      %v3786 = vpop.f32.mrb[0].mxu0
      %v3787 = vadd.f32 0.0, %v3786
      %v3788 = vpop.f32.mrb[0].mxu0
      %v3789 = vpop.f32.mrb[0].mxu0
      %v3790 = vadd.f32 0.0, %v3789
      %v3791 = vpop.f32.mrb[0].mxu0
      %3792 = vmatprep.mubr.bf16.mxu0 0
      %3793 = vmatmul.mubr.bf16.gmra.mrb[0].mxu0 %v3645
      %v3794 = vpop.f32.mrb[0].mxu0
      %v3795 = vadd.f32 0.0, %v3794
      %v3796 = vpop.f32.mrb[0].mxu0
      %v3797 = vpop.f32.mrb[0].mxu0
      %v3798 = vadd.f32 0.0, %v3797
      %v3799 = vpop.f32.mrb[0].mxu0
      %3800 = vmatprep.mubr.bf16.mxu0 0
      %3801 = vmatmul.mubr.bf16.gmra.mrb[0].mxu0 %v3646
      %v3802 = vpop.f32.mrb[0].mxu0
      %v3803 = vadd.f32 0.0, %v3802
      %v3804 = vpop.f32.mrb[0].mxu0
      %v3805 = vpop.f32.mrb[0].mxu0
      %v3806 = vadd.f32 0.0, %v3805
      %v3807 = vpop.f32.mrb[0].mxu0
      %3808 = vmatprep.mubr.bf16.mxu0 0
      %3809 = vmatmul.mubr.bf16.gmra.mrb[0].mxu0 %v3647
      %v3810 = vpop.f32.mrb[0].mxu0
      %v3811 = vadd.f32 0.0, %v3810
      %v3812 = vpop.f32.mrb[0].mxu0
      %v3813 = vpop.f32.mrb[0].mxu0
      %v3814 = vadd.f32 0.0, %v3813
      %v3815 = vpop.f32.mrb[0].mxu0
      %3816 = vmatprep.mubr.bf16.mxu0 0
      %3817 = vmatmul.mubr.bf16.gmra.mrb[0].mxu0 %v3648
      %v3818 = vpop.f32.mrb[0].mxu0
      %v3819 = vadd.f32 0.0, %v3818
      %v3820 = vpop.f32.mrb[0].mxu0
      %v3821 = vpop.f32.mrb[0].mxu0
      %v3822 = vadd.f32 0.0, %v3821
      %v3823 = vpop.f32.mrb[0].mxu0
      %3824 = vmatprep.mubr.bf16.mxu0 0
      %3825 = vmatmul.mubr.bf16.gmra.mrb[0].mxu0 %v3649
      %v3826 = vpop.f32.mrb[0].mxu0
      %v3827 = vadd.f32 0.0, %v3826
      %v3828 = vpop.f32.mrb[0].mxu0
      %v3829 = vpop.f32.mrb[0].mxu0
      %v3830 = vadd.f32 0.0, %v3829
      %v3831 = vpop.f32.mrb[0].mxu0
      %3832 = vmatprep.mubr.bf16.mxu0 0
      %3833 = vmatmul.mubr.bf16.gmra.mrb[0].mxu0 %v3650
      %v3834 = vpop.f32.mrb[0].mxu0
      %v3835 = vadd.f32 0.0, %v3834
      %v3836 = vpop.f32.mrb[0].mxu0
      %v3837 = vpop.f32.mrb[0].mxu0
      %v3838 = vadd.f32 0.0, %v3837
      %v3839 = vpop.f32.mrb[0].mxu0
      %3840 = vmatprep.mubr.bf16.mxu0 0
      %3841 = vmatmul.mubr.bf16.gmra.mrb[0].mxu0 %v3651
      %v3842 = vpop.f32.mrb[0].mxu0
      %v3843 = vadd.f32 0.0, %v3842
      %v3844 = vpop.f32.mrb[0].mxu0
      %v3845 = vpop.f32.mrb[0].mxu0
      %v3846 = vadd.f32 0.0, %v3845
      %v3847 = vpop.f32.mrb[0].mxu0
      %3848 = vmatprep.mubr.bf16.mxu0 0
      %3849 = vmatmul.mubr.bf16.gmra.mrb[0].mxu0 %v3652
      %v3850 = vpop.f32.mrb[0].mxu0
      %v3851 = vadd.f32 0.0, %v3850
      %v3852 = vpop.f32.mrb[0].mxu0
      %v3853 = vpop.f32.mrb[0].mxu0
      %v3854 = vadd.f32 0.0, %v3853
      %v3855 = vpop.f32.mrb[0].mxu0
      %3856 = vmatprep.mubr.bf16.mxu0 0
      %3857 = vmatmul.mubr.bf16.gmra.mrb[0].mxu0 %v3653
      %v3858 = vpop.f32.mrb[0].mxu0
      %v3859 = vadd.f32 0.0, %v3858
      %v3860 = vpop.f32.mrb[0].mxu0
      %v3861 = vpop.f32.mrb[0].mxu0
      %v3862 = vadd.f32 0.0, %v3861
      %v3863 = vpop.f32.mrb[0].mxu0
      %3864 = vmatprep.mubr.bf16.mxu0 0
      %3865 = vmatmul.mubr.bf16.gmra.mrb[0].mxu0 %v3654
      %v3866 = vpop.f32.mrb[0].mxu0
      %v3867 = vadd.f32 0.0, %v3866
      %v3868 = vpop.f32.mrb[0].mxu0
      %v3869 = vpop.f32.mrb[0].mxu0
      %v3870 = vadd.f32 0.0, %v3869
      %v3871 = vpop.f32.mrb[0].mxu0
      %3872 = vmatprep.mubr.bf16.mxu0 0
      %3873 = vmatmul.mubr.bf16.gmra.mrb[0].mxu0 %v3655
      %v3874 = vpop.f32.mrb[0].mxu0
      %v3875 = vadd.f32 0.0, %v3874
      %v3876 = vpop.f32.mrb[0].mxu0
      %v3877 = vpop.f32.mrb[0].mxu0
      %v3878 = vadd.f32 0.0, %v3877
      %v3879 = vpop.f32.mrb[0].mxu0
      %3880 = vdwg.mxu0
      %v3881 = vadd.f32 %v3559, %v3755
      %v3882 = vadd.f32 %v3560, %v3758
      %v3883 = vadd.f32 %v3561, %v3763
      %v3884 = vadd.f32 %v3562, %v3766
      %v3885 = vadd.f32 %v3563, %v3771
      %v3886 = vadd.f32 %v3564, %v3774
      %v3887 = vadd.f32 %v3565, %v3779
      %v3888 = vadd.f32 %v3566, %v3782
      %v3889 = vadd.f32 %v3567, %v3787
      %v3890 = vadd.f32 %v3568, %v3790
      %v3891 = vadd.f32 %v3569, %v3795
      %v3892 = vadd.f32 %v3570, %v3798
      %v3893 = vadd.f32 %v3571, %v3803
      %v3894 = vadd.f32 %v3572, %v3806
      %v3895 = vadd.f32 %v3573, %v3811
      %v3896 = vadd.f32 %v3574, %v3814
      %v3897 = vadd.f32 %v3575, %v3819
      %v3898 = vadd.f32 %v3576, %v3822
      %v3899 = vadd.f32 %v3577, %v3827
      %v3900 = vadd.f32 %v3578, %v3830
      %v3901 = vadd.f32 %v3579, %v3835
      %v3902 = vadd.f32 %v3580, %v3838
      %v3903 = vadd.f32 %v3581, %v3843
      %v3904 = vadd.f32 %v3582, %v3846
      %v3905 = vadd.f32 %v3583, %v3851
      %v3906 = vadd.f32 %v3584, %v3854
      %v3907 = vadd.f32 %v3585, %v3859
      %v3908 = vadd.f32 %v3586, %v3862
      %v3909 = vadd.f32 %v3587, %v3867
      %v3910 = vadd.f32 %v3588, %v3870
      %v3911 = vadd.f32 %v3589, %v3875
      %v3912 = vadd.f32 %v3590, %v3878
      %3913 = vst [vmem:[#allocation2] sm:$0xff] %v3881
      %3914 = vst [vmem:[#allocation2 + $0x8] sm:$0xff] %v3882
      %3915 = vst [vmem:[#allocation2 + $0x10] sm:$0xff] %v3883
      %3916 = vst [vmem:[#allocation2 + $0x18] sm:$0xff] %v3884
      %3917 = vst [vmem:[#allocation2 + $0x20] sm:$0xff] %v3885
      %3918 = vst [vmem:[#allocation2 + $0x28] sm:$0xff] %v3886
      %3919 = vst [vmem:[#allocation2 + $0x30] sm:$0xff] %v3887
      %3920 = vst [vmem:[#allocation2 + $0x38] sm:$0xff] %v3888
      %3921 = vst [vmem:[#allocation2 + $0x40] sm:$0xff] %v3889
      %3922 = vst [vmem:[#allocation2 + $0x48] sm:$0xff] %v3890
      %3923 = vst [vmem:[#allocation2 + $0x50] sm:$0xff] %v3891
      %3924 = vst [vmem:[#allocation2 + $0x58] sm:$0xff] %v3892
      %3925 = vst [vmem:[#allocation2 + $0x60] sm:$0xff] %v3893
      %3926 = vst [vmem:[#allocation2 + $0x68] sm:$0xff] %v3894
      %3927 = vst [vmem:[#allocation2 + $0x70] sm:$0xff] %v3895
      %3928 = vst [vmem:[#allocation2 + $0x78] sm:$0xff] %v3896
      %3929 = vst [vmem:[#allocation2 + $0x80] sm:$0xff] %v3897
      %3930 = vst [vmem:[#allocation2 + $0x88] sm:$0xff] %v3898
      %3931 = vst [vmem:[#allocation2 + $0x90] sm:$0xff] %v3899
      %3932 = vst [vmem:[#allocation2 + $0x98] sm:$0xff] %v3900
      %3933 = vst [vmem:[#allocation2 + $0xa0] sm:$0xff] %v3901
      %3934 = vst [vmem:[#allocation2 + $0xa8] sm:$0xff] %v3902
      %3935 = vst [vmem:[#allocation2 + $0xb0] sm:$0xff] %v3903
      %3936 = vst [vmem:[#allocation2 + $0xb8] sm:$0xff] %v3904
      %3937 = vst [vmem:[#allocation2 + $0xc0] sm:$0xff] %v3905
      %3938 = vst [vmem:[#allocation2 + $0xc8] sm:$0xff] %v3906
      %3939 = vst [vmem:[#allocation2 + $0xd0] sm:$0xff] %v3907
      %3940 = vst [vmem:[#allocation2 + $0xd8] sm:$0xff] %v3908
      %3941 = vst [vmem:[#allocation2 + $0xe0] sm:$0xff] %v3909
      %3942 = vst [vmem:[#allocation2 + $0xe8] sm:$0xff] %v3910
      %3943 = vst [vmem:[#allocation2 + $0xf0] sm:$0xff] %v3911
      %3944 = vst [vmem:[#allocation2 + $0xf8] sm:$0xff] %v3912
      %s3945 = scalar_lea.vmem %s172, 24
      %v3946 = vld [vmem:[%s3945] sm:$0xf]
      %v3947 = vld [vmem:[%s3945 + $0x4] sm:$0xf]
      %v3948 = vld [vmem:[%s3945 + $0xc] sm:$0xf]
      %v3949 = vld [vmem:[%s3945 + $0x10] sm:$0xf]
      %v3950 = vld [vmem:[%s3945 + $0x18] sm:$0xf]
      %v3951 = vld [vmem:[%s3945 + $0x1c] sm:$0xf]
      %v3952 = vld [vmem:[%s3945 + $0x24] sm:$0xf]
      %v3953 = vld [vmem:[%s3945 + $0x28] sm:$0xf]
      %v3954 = vld [vmem:[%s3945 + $0x30] sm:$0xf]
      %v3955 = vld [vmem:[%s3945 + $0x34] sm:$0xf]
      %v3956 = vld [vmem:[%s3945 + $0x3c] sm:$0xf]
      %v3957 = vld [vmem:[%s3945 + $0x40] sm:$0xf]
      %v3958 = vld [vmem:[%s3945 + $0x48] sm:$0xf]
      %v3959 = vld [vmem:[%s3945 + $0x4c] sm:$0xf]
      %v3960 = vld [vmem:[%s3945 + $0x54] sm:$0xf]
      %v3961 = vld [vmem:[%s3945 + $0x58] sm:$0xf]
      %v3962 = vld [vmem:[%s3945 + $0x60] sm:$0xf]
      %v3963 = vld [vmem:[%s3945 + $0x64] sm:$0xf]
      %v3964 = vld [vmem:[%s3945 + $0x6c] sm:$0xf]
      %v3965 = vld [vmem:[%s3945 + $0x70] sm:$0xf]
      %v3966 = vld [vmem:[%s3945 + $0x78] sm:$0xf]
      %v3967 = vld [vmem:[%s3945 + $0x7c] sm:$0xf]
      %v3968 = vld [vmem:[%s3945 + $0x84] sm:$0xf]
      %v3969 = vld [vmem:[%s3945 + $0x88] sm:$0xf]
      %v3970 = vld [vmem:[%s3945 + $0x90] sm:$0xf]
      %v3971 = vld [vmem:[%s3945 + $0x94] sm:$0xf]
      %v3972 = vld [vmem:[%s3945 + $0x9c] sm:$0xf]
      %v3973 = vld [vmem:[%s3945 + $0xa0] sm:$0xf]
      %v3974 = vld [vmem:[%s3945 + $0xa8] sm:$0xf]
      %v3975 = vld [vmem:[%s3945 + $0xac] sm:$0xf]
      %v3976 = vld [vmem:[%s3945 + $0xb4] sm:$0xf]
      %v3977 = vld [vmem:[%s3945 + $0xb8] sm:$0xf]
      %v3978 = vld [vmem:[#allocation2] sm:$0xff]
      %v3979 = vld [vmem:[#allocation2 + $0x8] sm:$0xff]
      %v3980 = vld [vmem:[#allocation2 + $0x10] sm:$0xff]
      %v3981 = vld [vmem:[#allocation2 + $0x18] sm:$0xff]
      %v3982 = vld [vmem:[#allocation2 + $0x20] sm:$0xff]
      %v3983 = vld [vmem:[#allocation2 + $0x28] sm:$0xff]
      %v3984 = vld [vmem:[#allocation2 + $0x30] sm:$0xff]
      %v3985 = vld [vmem:[#allocation2 + $0x38] sm:$0xff]
      %v3986 = vld [vmem:[#allocation2 + $0x40] sm:$0xff]
      %v3987 = vld [vmem:[#allocation2 + $0x48] sm:$0xff]
      %v3988 = vld [vmem:[#allocation2 + $0x50] sm:$0xff]
      %v3989 = vld [vmem:[#allocation2 + $0x58] sm:$0xff]
      %v3990 = vld [vmem:[#allocation2 + $0x60] sm:$0xff]
      %v3991 = vld [vmem:[#allocation2 + $0x68] sm:$0xff]
      %v3992 = vld [vmem:[#allocation2 + $0x70] sm:$0xff]
      %v3993 = vld [vmem:[#allocation2 + $0x78] sm:$0xff]
      %v3994 = vld [vmem:[#allocation2 + $0x80] sm:$0xff]
      %v3995 = vld [vmem:[#allocation2 + $0x88] sm:$0xff]
      %v3996 = vld [vmem:[#allocation2 + $0x90] sm:$0xff]
      %v3997 = vld [vmem:[#allocation2 + $0x98] sm:$0xff]
      %v3998 = vld [vmem:[#allocation2 + $0xa0] sm:$0xff]
      %v3999 = vld [vmem:[#allocation2 + $0xa8] sm:$0xff]
      %v4000 = vld [vmem:[#allocation2 + $0xb0] sm:$0xff]
      %v4001 = vld [vmem:[#allocation2 + $0xb8] sm:$0xff]
      %v4002 = vld [vmem:[#allocation2 + $0xc0] sm:$0xff]
      %v4003 = vld [vmem:[#allocation2 + $0xc8] sm:$0xff]
      %v4004 = vld [vmem:[#allocation2 + $0xd0] sm:$0xff]
      %v4005 = vld [vmem:[#allocation2 + $0xd8] sm:$0xff]
      %v4006 = vld [vmem:[#allocation2 + $0xe0] sm:$0xff]
      %v4007 = vld [vmem:[#allocation2 + $0xe8] sm:$0xff]
      %v4008 = vld [vmem:[#allocation2 + $0xf0] sm:$0xff]
      %v4009 = vld [vmem:[#allocation2 + $0xf8] sm:$0xff]
      %s4010 = scalar_lea.vmem %s1, 384
      %v4011 = vld [vmem:[%s4010] sm:$0xf]
      %v4012 = vld [vmem:[%s4010 + $0x4] sm:$0xf]
      %v4013 = vld [vmem:[%s4010 + $0x8] sm:$0xf]
      %v4014 = vld [vmem:[%s4010 + $0xc] sm:$0xf]
      %v4015 = vld [vmem:[%s4010 + $0x10] sm:$0xf]
      %v4016 = vld [vmem:[%s4010 + $0x14] sm:$0xf]
      %v4017 = vld [vmem:[%s4010 + $0x18] sm:$0xf]
      %v4018 = vld [vmem:[%s4010 + $0x1c] sm:$0xf]
      %v4019 = vld [vmem:[%s4010 + $0x20] sm:$0xf]
      %v4020 = vld [vmem:[%s4010 + $0x24] sm:$0xf]
      %v4021 = vld [vmem:[%s4010 + $0x28] sm:$0xf]
      %v4022 = vld [vmem:[%s4010 + $0x2c] sm:$0xf]
      %v4023 = vld [vmem:[%s4010 + $0x30] sm:$0xf]
      %v4024 = vld [vmem:[%s4010 + $0x34] sm:$0xf]
      %v4025 = vld [vmem:[%s4010 + $0x38] sm:$0xf]
      %v4026 = vld [vmem:[%s4010 + $0x3c] sm:$0xf]
      %v4059 = vunpack.c.l.b16 %v3946
      %v4060 = vunpack.c.l.b16 %v3947
      %v4061 = vunpack.c.l.b16 %v3948
      %v4062 = vunpack.c.l.b16 %v3949
      %v4063 = vunpack.c.l.b16 %v3950
      %v4064 = vunpack.c.l.b16 %v3951
      %v4065 = vunpack.c.l.b16 %v3952
      %v4066 = vunpack.c.l.b16 %v3953
      %v4067 = vunpack.c.l.b16 %v3954
      %v4068 = vunpack.c.l.b16 %v3955
      %v4069 = vunpack.c.l.b16 %v3956
      %v4070 = vunpack.c.l.b16 %v3957
      %v4071 = vunpack.c.l.b16 %v3958
      %v4072 = vunpack.c.l.b16 %v3959
      %v4073 = vunpack.c.l.b16 %v3960
      %v4074 = vunpack.c.l.b16 %v3961
      %v4075 = vunpack.c.l.b16 %v3962
      %v4076 = vunpack.c.l.b16 %v3963
      %v4077 = vunpack.c.l.b16 %v3964
      %v4078 = vunpack.c.l.b16 %v3965
      %v4079 = vunpack.c.l.b16 %v3966
      %v4080 = vunpack.c.l.b16 %v3967
      %v4081 = vunpack.c.l.b16 %v3968
      %v4082 = vunpack.c.l.b16 %v3969
      %v4083 = vunpack.c.l.b16 %v3970
      %v4084 = vunpack.c.l.b16 %v3971
      %v4085 = vunpack.c.l.b16 %v3972
      %v4086 = vunpack.c.l.b16 %v3973
      %v4087 = vunpack.c.l.b16 %v3974
      %v4088 = vunpack.c.l.b16 %v3975
      %v4089 = vunpack.c.l.b16 %v3976
      %v4090 = vunpack.c.l.b16 %v3977
      %v4091 = vpack.c.b16 %v4060, %v4059
      %v4092 = vpack.c.b16 %v4062, %v4061
      %v4093 = vpack.c.b16 %v4064, %v4063
      %v4094 = vpack.c.b16 %v4066, %v4065
      %v4095 = vpack.c.b16 %v4068, %v4067
      %v4096 = vpack.c.b16 %v4070, %v4069
      %v4097 = vpack.c.b16 %v4072, %v4071
      %v4098 = vpack.c.b16 %v4074, %v4073
      %v4099 = vpack.c.b16 %v4076, %v4075
      %v4100 = vpack.c.b16 %v4078, %v4077
      %v4101 = vpack.c.b16 %v4080, %v4079
      %v4102 = vpack.c.b16 %v4082, %v4081
      %v4103 = vpack.c.b16 %v4084, %v4083
      %v4104 = vpack.c.b16 %v4086, %v4085
      %v4105 = vpack.c.b16 %v4088, %v4087
      %v4106 = vpack.c.b16 %v4090, %v4089
      %v4139 = vunpack.c.l.b16 %v4011
      %v4140 = vunpack.c.l.b16 %v4012
      %v4141 = vunpack.c.l.b16 %v4013
      %v4142 = vunpack.c.l.b16 %v4014
      %v4143 = vunpack.c.l.b16 %v4015
      %v4144 = vunpack.c.l.b16 %v4016
      %v4145 = vunpack.c.l.b16 %v4017
      %v4146 = vunpack.c.l.b16 %v4018
      %v4147 = vunpack.c.l.b16 %v4019
      %v4148 = vunpack.c.l.b16 %v4020
      %v4149 = vunpack.c.l.b16 %v4021
      %v4150 = vunpack.c.l.b16 %v4022
      %v4151 = vunpack.c.l.b16 %v4023
      %v4152 = vunpack.c.l.b16 %v4024
      %v4153 = vunpack.c.l.b16 %v4025
      %v4154 = vunpack.c.l.b16 %v4026
      %v4155 = vpack.c.b16 %v4140, %v4139
      %v4156 = vpack.c.b16 %v4142, %v4141
      %v4157 = vpack.c.b16 %v4144, %v4143
      %v4158 = vpack.c.b16 %v4146, %v4145
      %v4159 = vpack.c.b16 %v4148, %v4147
      %v4160 = vpack.c.b16 %v4150, %v4149
      %v4161 = vpack.c.b16 %v4152, %v4151
      %v4162 = vpack.c.b16 %v4154, %v4153
      %4171 = vmatprep.subr.bf16.mxu0 0
      %4172 = vmatpush1.bf16.msra.mxu0 %v4155
      %4173 = vmatprep.subr.bf16.mxu0 0
      %4174 = vmatpush1.bf16.msra.mxu0 %v4156
      %4175 = vmatprep.subr.bf16.mxu0 0
      %4176 = vmatpush1.bf16.msra.mxu0 %v4157
      %4177 = vmatprep.subr.bf16.mxu0 0
      %4178 = vmatpush1.bf16.msra.mxu0 %v4158
      %4179 = vmatprep.subr.bf16.mxu0 0
      %4180 = vmatpush1.bf16.msra.mxu0 %v4159
      %4181 = vmatprep.subr.bf16.mxu0 0
      %4182 = vmatpush1.bf16.msra.mxu0 %v4160
      %4183 = vmatprep.subr.bf16.mxu0 0
      %4184 = vmatpush1.bf16.msra.mxu0 %v4161
      %4185 = vmatprep.subr.bf16.mxu0 0
      %4186 = vmatpush1.bf16.msra.mxu0 %v4162
      %4187 = vmatprep.subr.bf16.mxu0 0
      %4188 = vmatpush1.bf16.msra.mxu0 0
      %4189 = vmatprep.subr.bf16.mxu0 0
      %4190 = vmatpush1.bf16.msra.mxu0 0
      %4191 = vmatprep.subr.bf16.mxu0 0
      %4192 = vmatpush1.bf16.msra.mxu0 0
      %4193 = vmatprep.subr.bf16.mxu0 0
      %4194 = vmatpush1.bf16.msra.mxu0 0
      %4195 = vmatprep.subr.bf16.mxu0 0
      %4196 = vmatpush1.bf16.msra.mxu0 0
      %4197 = vmatprep.subr.bf16.mxu0 0
      %4198 = vmatpush1.bf16.msra.mxu0 0
      %4199 = vmatprep.subr.bf16.mxu0 0
      %4200 = vmatpush1.bf16.msra.mxu0 0
      %4201 = vmatprep.subr.bf16.mxu0 0
      %4202 = vmatpush1.bf16.msra.mxu0 0
      %4203 = vmatprep.mubr.bf16.mxu0 0
      %4204 = vmatmul.mubr.bf16.gmra.mrb[0].mxu0 %v4091
      %v4205 = vpop.f32.mrb[0].mxu0
      %v4206 = vadd.f32 0.0, %v4205
      %v4207 = vpop.f32.mrb[0].mxu0
      %v4208 = vpop.f32.mrb[0].mxu0
      %v4209 = vadd.f32 0.0, %v4208
      %v4210 = vpop.f32.mrb[0].mxu0
      %4211 = vmatprep.mubr.bf16.mxu0 0
      %4212 = vmatmul.mubr.bf16.gmra.mrb[0].mxu0 %v4092
      %v4213 = vpop.f32.mrb[0].mxu0
      %v4214 = vadd.f32 0.0, %v4213
      %v4215 = vpop.f32.mrb[0].mxu0
      %v4216 = vpop.f32.mrb[0].mxu0
      %v4217 = vadd.f32 0.0, %v4216
      %v4218 = vpop.f32.mrb[0].mxu0
      %4219 = vmatprep.mubr.bf16.mxu0 0
      %4220 = vmatmul.mubr.bf16.gmra.mrb[0].mxu0 %v4093
      %v4221 = vpop.f32.mrb[0].mxu0
      %v4222 = vadd.f32 0.0, %v4221
      %v4223 = vpop.f32.mrb[0].mxu0
      %v4224 = vpop.f32.mrb[0].mxu0
      %v4225 = vadd.f32 0.0, %v4224
      %v4226 = vpop.f32.mrb[0].mxu0
      %4227 = vmatprep.mubr.bf16.mxu0 0
      %4228 = vmatmul.mubr.bf16.gmra.mrb[0].mxu0 %v4094
      %v4229 = vpop.f32.mrb[0].mxu0
      %v4230 = vadd.f32 0.0, %v4229
      %v4231 = vpop.f32.mrb[0].mxu0
      %v4232 = vpop.f32.mrb[0].mxu0
      %v4233 = vadd.f32 0.0, %v4232
      %v4234 = vpop.f32.mrb[0].mxu0
      %4235 = vmatprep.mubr.bf16.mxu0 0
      %4236 = vmatmul.mubr.bf16.gmra.mrb[0].mxu0 %v4095
      %v4237 = vpop.f32.mrb[0].mxu0
      %v4238 = vadd.f32 0.0, %v4237
      %v4239 = vpop.f32.mrb[0].mxu0
      %v4240 = vpop.f32.mrb[0].mxu0
      %v4241 = vadd.f32 0.0, %v4240
      %v4242 = vpop.f32.mrb[0].mxu0
      %4243 = vmatprep.mubr.bf16.mxu0 0
      %4244 = vmatmul.mubr.bf16.gmra.mrb[0].mxu0 %v4096
      %v4245 = vpop.f32.mrb[0].mxu0
      %v4246 = vadd.f32 0.0, %v4245
      %v4247 = vpop.f32.mrb[0].mxu0
      %v4248 = vpop.f32.mrb[0].mxu0
      %v4249 = vadd.f32 0.0, %v4248
      %v4250 = vpop.f32.mrb[0].mxu0
      %4251 = vmatprep.mubr.bf16.mxu0 0
      %4252 = vmatmul.mubr.bf16.gmra.mrb[0].mxu0 %v4097
      %v4253 = vpop.f32.mrb[0].mxu0
      %v4254 = vadd.f32 0.0, %v4253
      %v4255 = vpop.f32.mrb[0].mxu0
      %v4256 = vpop.f32.mrb[0].mxu0
      %v4257 = vadd.f32 0.0, %v4256
      %v4258 = vpop.f32.mrb[0].mxu0
      %4259 = vmatprep.mubr.bf16.mxu0 0
      %4260 = vmatmul.mubr.bf16.gmra.mrb[0].mxu0 %v4098
      %v4261 = vpop.f32.mrb[0].mxu0
      %v4262 = vadd.f32 0.0, %v4261
      %v4263 = vpop.f32.mrb[0].mxu0
      %v4264 = vpop.f32.mrb[0].mxu0
      %v4265 = vadd.f32 0.0, %v4264
      %v4266 = vpop.f32.mrb[0].mxu0
      %4267 = vmatprep.mubr.bf16.mxu0 0
      %4268 = vmatmul.mubr.bf16.gmra.mrb[0].mxu0 %v4099
      %v4269 = vpop.f32.mrb[0].mxu0
      %v4270 = vadd.f32 0.0, %v4269
      %v4271 = vpop.f32.mrb[0].mxu0
      %v4272 = vpop.f32.mrb[0].mxu0
      %v4273 = vadd.f32 0.0, %v4272
      %v4274 = vpop.f32.mrb[0].mxu0
      %4275 = vmatprep.mubr.bf16.mxu0 0
      %4276 = vmatmul.mubr.bf16.gmra.mrb[0].mxu0 %v4100
      %v4277 = vpop.f32.mrb[0].mxu0
      %v4278 = vadd.f32 0.0, %v4277
      %v4279 = vpop.f32.mrb[0].mxu0
      %v4280 = vpop.f32.mrb[0].mxu0
      %v4281 = vadd.f32 0.0, %v4280
      %v4282 = vpop.f32.mrb[0].mxu0
      %4283 = vmatprep.mubr.bf16.mxu0 0
      %4284 = vmatmul.mubr.bf16.gmra.mrb[0].mxu0 %v4101
      %v4285 = vpop.f32.mrb[0].mxu0
      %v4286 = vadd.f32 0.0, %v4285
      %v4287 = vpop.f32.mrb[0].mxu0
      %v4288 = vpop.f32.mrb[0].mxu0
      %v4289 = vadd.f32 0.0, %v4288
      %v4290 = vpop.f32.mrb[0].mxu0
      %4291 = vmatprep.mubr.bf16.mxu0 0
      %4292 = vmatmul.mubr.bf16.gmra.mrb[0].mxu0 %v4102
      %v4293 = vpop.f32.mrb[0].mxu0
      %v4294 = vadd.f32 0.0, %v4293
      %v4295 = vpop.f32.mrb[0].mxu0
      %v4296 = vpop.f32.mrb[0].mxu0
      %v4297 = vadd.f32 0.0, %v4296
      %v4298 = vpop.f32.mrb[0].mxu0
      %4299 = vmatprep.mubr.bf16.mxu0 0
      %4300 = vmatmul.mubr.bf16.gmra.mrb[0].mxu0 %v4103
      %v4301 = vpop.f32.mrb[0].mxu0
      %v4302 = vadd.f32 0.0, %v4301
      %v4303 = vpop.f32.mrb[0].mxu0
      %v4304 = vpop.f32.mrb[0].mxu0
      %v4305 = vadd.f32 0.0, %v4304
      %v4306 = vpop.f32.mrb[0].mxu0
      %4307 = vmatprep.mubr.bf16.mxu0 0
      %4308 = vmatmul.mubr.bf16.gmra.mrb[0].mxu0 %v4104
      %v4309 = vpop.f32.mrb[0].mxu0
      %v4310 = vadd.f32 0.0, %v4309
      %v4311 = vpop.f32.mrb[0].mxu0
      %v4312 = vpop.f32.mrb[0].mxu0
      %v4313 = vadd.f32 0.0, %v4312
      %v4314 = vpop.f32.mrb[0].mxu0
      %4315 = vmatprep.mubr.bf16.mxu0 0
      %4316 = vmatmul.mubr.bf16.gmra.mrb[0].mxu0 %v4105
      %v4317 = vpop.f32.mrb[0].mxu0
      %v4318 = vadd.f32 0.0, %v4317
      %v4319 = vpop.f32.mrb[0].mxu0
      %v4320 = vpop.f32.mrb[0].mxu0
      %v4321 = vadd.f32 0.0, %v4320
      %v4322 = vpop.f32.mrb[0].mxu0
      %4323 = vmatprep.mubr.bf16.mxu0 0
      %4324 = vmatmul.mubr.bf16.gmra.mrb[0].mxu0 %v4106
      %v4325 = vpop.f32.mrb[0].mxu0
      %v4326 = vadd.f32 0.0, %v4325
      %v4327 = vpop.f32.mrb[0].mxu0
      %v4328 = vpop.f32.mrb[0].mxu0
      %v4329 = vadd.f32 0.0, %v4328
      %v4330 = vpop.f32.mrb[0].mxu0
      %4331 = vdwg.mxu0
      %v4332 = vadd.f32 %v3978, %v4206
      %v4333 = vadd.f32 %v3979, %v4209
      %v4334 = vadd.f32 %v3980, %v4214
      %v4335 = vadd.f32 %v3981, %v4217
      %v4336 = vadd.f32 %v3982, %v4222
      %v4337 = vadd.f32 %v3983, %v4225
      %v4338 = vadd.f32 %v3984, %v4230
      %v4339 = vadd.f32 %v3985, %v4233
      %v4340 = vadd.f32 %v3986, %v4238
      %v4341 = vadd.f32 %v3987, %v4241
      %v4342 = vadd.f32 %v3988, %v4246
      %v4343 = vadd.f32 %v3989, %v4249
      %v4344 = vadd.f32 %v3990, %v4254
      %v4345 = vadd.f32 %v3991, %v4257
      %v4346 = vadd.f32 %v3992, %v4262
      %v4347 = vadd.f32 %v3993, %v4265
      %v4348 = vadd.f32 %v3994, %v4270
      %v4349 = vadd.f32 %v3995, %v4273
      %v4350 = vadd.f32 %v3996, %v4278
      %v4351 = vadd.f32 %v3997, %v4281
      %v4352 = vadd.f32 %v3998, %v4286
      %v4353 = vadd.f32 %v3999, %v4289
      %v4354 = vadd.f32 %v4000, %v4294
      %v4355 = vadd.f32 %v4001, %v4297
      %v4356 = vadd.f32 %v4002, %v4302
      %v4357 = vadd.f32 %v4003, %v4305
      %v4358 = vadd.f32 %v4004, %v4310
      %v4359 = vadd.f32 %v4005, %v4313
      %v4360 = vadd.f32 %v4006, %v4318
      %v4361 = vadd.f32 %v4007, %v4321
      %v4362 = vadd.f32 %v4008, %v4326
      %v4363 = vadd.f32 %v4009, %v4329
      %4364 = vst [vmem:[#allocation2] sm:$0xff] %v4332
      %4365 = vst [vmem:[#allocation2 + $0x8] sm:$0xff] %v4333
      %4366 = vst [vmem:[#allocation2 + $0x10] sm:$0xff] %v4334
      %4367 = vst [vmem:[#allocation2 + $0x18] sm:$0xff] %v4335
      %4368 = vst [vmem:[#allocation2 + $0x20] sm:$0xff] %v4336
      %4369 = vst [vmem:[#allocation2 + $0x28] sm:$0xff] %v4337
      %4370 = vst [vmem:[#allocation2 + $0x30] sm:$0xff] %v4338
      %4371 = vst [vmem:[#allocation2 + $0x38] sm:$0xff] %v4339
      %4372 = vst [vmem:[#allocation2 + $0x40] sm:$0xff] %v4340
      %4373 = vst [vmem:[#allocation2 + $0x48] sm:$0xff] %v4341
      %4374 = vst [vmem:[#allocation2 + $0x50] sm:$0xff] %v4342
      %4375 = vst [vmem:[#allocation2 + $0x58] sm:$0xff] %v4343
      %4376 = vst [vmem:[#allocation2 + $0x60] sm:$0xff] %v4344
      %4377 = vst [vmem:[#allocation2 + $0x68] sm:$0xff] %v4345
      %4378 = vst [vmem:[#allocation2 + $0x70] sm:$0xff] %v4346
      %4379 = vst [vmem:[#allocation2 + $0x78] sm:$0xff] %v4347
      %4380 = vst [vmem:[#allocation2 + $0x80] sm:$0xff] %v4348
      %4381 = vst [vmem:[#allocation2 + $0x88] sm:$0xff] %v4349
      %4382 = vst [vmem:[#allocation2 + $0x90] sm:$0xff] %v4350
      %4383 = vst [vmem:[#allocation2 + $0x98] sm:$0xff] %v4351
      %4384 = vst [vmem:[#allocation2 + $0xa0] sm:$0xff] %v4352
      %4385 = vst [vmem:[#allocation2 + $0xa8] sm:$0xff] %v4353
      %4386 = vst [vmem:[#allocation2 + $0xb0] sm:$0xff] %v4354
      %4387 = vst [vmem:[#allocation2 + $0xb8] sm:$0xff] %v4355
      %4388 = vst [vmem:[#allocation2 + $0xc0] sm:$0xff] %v4356
      %4389 = vst [vmem:[#allocation2 + $0xc8] sm:$0xff] %v4357
      %4390 = vst [vmem:[#allocation2 + $0xd0] sm:$0xff] %v4358
      %4391 = vst [vmem:[#allocation2 + $0xd8] sm:$0xff] %v4359
      %4392 = vst [vmem:[#allocation2 + $0xe0] sm:$0xff] %v4360
      %4393 = vst [vmem:[#allocation2 + $0xe8] sm:$0xff] %v4361
      %4394 = vst [vmem:[#allocation2 + $0xf0] sm:$0xff] %v4362
      %4395 = vst [vmem:[#allocation2 + $0xf8] sm:$0xff] %v4363
      %v4396 = vld [vmem:[%s3945] sm:$0xf]
      %v4397 = vld [vmem:[%s3945 + $0x4] sm:$0xf]
      %v4398 = vld [vmem:[%s3945 + $0x8] sm:$0x1]
      %v4399 = vld [vmem:[%s3945 + $0xc] sm:$0xf]
      %v4400 = vld [vmem:[%s3945 + $0x10] sm:$0xf]
      %v4401 = vld [vmem:[%s3945 + $0x14] sm:$0x1]
      %v4402 = vld [vmem:[%s3945 + $0x18] sm:$0xf]
      %v4403 = vld [vmem:[%s3945 + $0x1c] sm:$0xf]
      %v4404 = vld [vmem:[%s3945 + $0x20] sm:$0x1]
      %v4405 = vld [vmem:[%s3945 + $0x24] sm:$0xf]
      %v4406 = vld [vmem:[%s3945 + $0x28] sm:$0xf]
      %v4407 = vld [vmem:[%s3945 + $0x2c] sm:$0x1]
      %v4408 = vld [vmem:[%s3945 + $0x30] sm:$0xf]
      %v4409 = vld [vmem:[%s3945 + $0x34] sm:$0xf]
      %v4410 = vld [vmem:[%s3945 + $0x38] sm:$0x1]
      %v4411 = vld [vmem:[%s3945 + $0x3c] sm:$0xf]
      %v4412 = vld [vmem:[%s3945 + $0x40] sm:$0xf]
      %v4413 = vld [vmem:[%s3945 + $0x44] sm:$0x1]
      %v4414 = vld [vmem:[%s3945 + $0x48] sm:$0xf]
      %v4415 = vld [vmem:[%s3945 + $0x4c] sm:$0xf]
      %v4416 = vld [vmem:[%s3945 + $0x50] sm:$0x1]
      %v4417 = vld [vmem:[%s3945 + $0x54] sm:$0xf]
      %v4418 = vld [vmem:[%s3945 + $0x58] sm:$0xf]
      %v4419 = vld [vmem:[%s3945 + $0x5c] sm:$0x1]
      %v4420 = vld [vmem:[%s3945 + $0x60] sm:$0xf]
      %v4421 = vld [vmem:[%s3945 + $0x64] sm:$0xf]
      %v4422 = vld [vmem:[%s3945 + $0x68] sm:$0x1]
      %v4423 = vld [vmem:[%s3945 + $0x6c] sm:$0xf]
      %v4424 = vld [vmem:[%s3945 + $0x70] sm:$0xf]
      %v4425 = vld [vmem:[%s3945 + $0x74] sm:$0x1]
      %v4426 = vld [vmem:[%s3945 + $0x78] sm:$0xf]
      %v4427 = vld [vmem:[%s3945 + $0x7c] sm:$0xf]
      %v4428 = vld [vmem:[%s3945 + $0x80] sm:$0x1]
      %v4429 = vld [vmem:[%s3945 + $0x84] sm:$0xf]
      %v4430 = vld [vmem:[%s3945 + $0x88] sm:$0xf]
      %v4431 = vld [vmem:[%s3945 + $0x8c] sm:$0x1]
      %v4432 = vld [vmem:[%s3945 + $0x90] sm:$0xf]
      %v4433 = vld [vmem:[%s3945 + $0x94] sm:$0xf]
      %v4434 = vld [vmem:[%s3945 + $0x98] sm:$0x1]
      %v4435 = vld [vmem:[%s3945 + $0x9c] sm:$0xf]
      %v4436 = vld [vmem:[%s3945 + $0xa0] sm:$0xf]
      %v4437 = vld [vmem:[%s3945 + $0xa4] sm:$0x1]
      %v4438 = vld [vmem:[%s3945 + $0xa8] sm:$0xf]
      %v4439 = vld [vmem:[%s3945 + $0xac] sm:$0xf]
      %v4440 = vld [vmem:[%s3945 + $0xb0] sm:$0x1]
      %v4441 = vld [vmem:[%s3945 + $0xb4] sm:$0xf]
      %v4442 = vld [vmem:[%s3945 + $0xb8] sm:$0xf]
      %v4443 = vld [vmem:[%s3945 + $0xbc] sm:$0x1]
      %v4445 = vshrl.u32 %v4396, 16
      %v4447 = vrot.slane %v4445, 4
      %v4448 = vshll.u32 %v4396, 16
      %v4450 = vrot.slane %v4448, 5
      %v4451 = vor.u32 %v4447, %v4450
      %v4452 = vrot.slane %v4451, 4
      %v4454 = vshll.u32 %v4397, 16
      %v4456 = vrot.slane %v4454, 5
      %v4457 = vsel %vm714, %v4452, %v4456
      %v4458 = vshrl.u32 %v4397, 16
      %v4460 = vrot.slane %v4458, 4
      %v4461 = vor.u32 %v4460, %v4456
      %v4462 = vrot.slane %v4461, 4
      %v4464 = vshll.u32 %v4398, 16
      %v4466 = vrot.slane %v4464, 5
      %v4467 = vsel %vm714, %v4462, %v4466
      %v4469 = vshrl.u32 %v4399, 16
      %v4471 = vrot.slane %v4469, 4
      %v4472 = vshll.u32 %v4399, 16
      %v4474 = vrot.slane %v4472, 5
      %v4475 = vor.u32 %v4471, %v4474
      %v4476 = vrot.slane %v4475, 4
      %v4478 = vshll.u32 %v4400, 16
      %v4480 = vrot.slane %v4478, 5
      %v4481 = vsel %vm714, %v4476, %v4480
      %v4482 = vshrl.u32 %v4400, 16
      %v4484 = vrot.slane %v4482, 4
      %v4485 = vor.u32 %v4484, %v4480
      %v4486 = vrot.slane %v4485, 4
      %v4488 = vshll.u32 %v4401, 16
      %v4490 = vrot.slane %v4488, 5
      %v4491 = vsel %vm714, %v4486, %v4490
      %v4493 = vshrl.u32 %v4402, 16
      %v4495 = vrot.slane %v4493, 4
      %v4496 = vshll.u32 %v4402, 16
      %v4498 = vrot.slane %v4496, 5
      %v4499 = vor.u32 %v4495, %v4498
      %v4500 = vrot.slane %v4499, 4
      %v4502 = vshll.u32 %v4403, 16
      %v4504 = vrot.slane %v4502, 5
      %v4505 = vsel %vm714, %v4500, %v4504
      %v4506 = vshrl.u32 %v4403, 16
      %v4508 = vrot.slane %v4506, 4
      %v4509 = vor.u32 %v4508, %v4504
      %v4510 = vrot.slane %v4509, 4
      %v4512 = vshll.u32 %v4404, 16
      %v4514 = vrot.slane %v4512, 5
      %v4515 = vsel %vm714, %v4510, %v4514
      %v4517 = vshrl.u32 %v4405, 16
      %v4519 = vrot.slane %v4517, 4
      %v4520 = vshll.u32 %v4405, 16
      %v4522 = vrot.slane %v4520, 5
      %v4523 = vor.u32 %v4519, %v4522
      %v4524 = vrot.slane %v4523, 4
      %v4526 = vshll.u32 %v4406, 16
      %v4528 = vrot.slane %v4526, 5
      %v4529 = vsel %vm714, %v4524, %v4528
      %v4530 = vshrl.u32 %v4406, 16
      %v4532 = vrot.slane %v4530, 4
      %v4533 = vor.u32 %v4532, %v4528
      %v4534 = vrot.slane %v4533, 4
      %v4536 = vshll.u32 %v4407, 16
      %v4538 = vrot.slane %v4536, 5
      %v4539 = vsel %vm714, %v4534, %v4538
      %v4541 = vshrl.u32 %v4408, 16
      %v4543 = vrot.slane %v4541, 4
      %v4544 = vshll.u32 %v4408, 16
      %v4546 = vrot.slane %v4544, 5
      %v4547 = vor.u32 %v4543, %v4546
      %v4548 = vrot.slane %v4547, 4
      %v4550 = vshll.u32 %v4409, 16
      %v4552 = vrot.slane %v4550, 5
      %v4553 = vsel %vm714, %v4548, %v4552
      %v4554 = vshrl.u32 %v4409, 16
      %v4556 = vrot.slane %v4554, 4
      %v4557 = vor.u32 %v4556, %v4552
      %v4558 = vrot.slane %v4557, 4
      %v4560 = vshll.u32 %v4410, 16
      %v4562 = vrot.slane %v4560, 5
      %v4563 = vsel %vm714, %v4558, %v4562
      %v4565 = vshrl.u32 %v4411, 16
      %v4567 = vrot.slane %v4565, 4
      %v4568 = vshll.u32 %v4411, 16
      %v4570 = vrot.slane %v4568, 5
      %v4571 = vor.u32 %v4567, %v4570
      %v4572 = vrot.slane %v4571, 4
      %v4574 = vshll.u32 %v4412, 16
      %v4576 = vrot.slane %v4574, 5
      %v4577 = vsel %vm714, %v4572, %v4576
      %v4578 = vshrl.u32 %v4412, 16
      %v4580 = vrot.slane %v4578, 4
      %v4581 = vor.u32 %v4580, %v4576
      %v4582 = vrot.slane %v4581, 4
      %v4584 = vshll.u32 %v4413, 16
      %v4586 = vrot.slane %v4584, 5
      %v4587 = vsel %vm714, %v4582, %v4586
      %v4589 = vshrl.u32 %v4414, 16
      %v4591 = vrot.slane %v4589, 4
      %v4592 = vshll.u32 %v4414, 16
      %v4594 = vrot.slane %v4592, 5
      %v4595 = vor.u32 %v4591, %v4594
      %v4596 = vrot.slane %v4595, 4
      %v4598 = vshll.u32 %v4415, 16
      %v4600 = vrot.slane %v4598, 5
      %v4601 = vsel %vm714, %v4596, %v4600
      %v4602 = vshrl.u32 %v4415, 16
      %v4604 = vrot.slane %v4602, 4
      %v4605 = vor.u32 %v4604, %v4600
      %v4606 = vrot.slane %v4605, 4
      %v4608 = vshll.u32 %v4416, 16
      %v4610 = vrot.slane %v4608, 5
      %v4611 = vsel %vm714, %v4606, %v4610
      %v4613 = vshrl.u32 %v4417, 16
      %v4615 = vrot.slane %v4613, 4
      %v4616 = vshll.u32 %v4417, 16
      %v4618 = vrot.slane %v4616, 5
      %v4619 = vor.u32 %v4615, %v4618
      %v4620 = vrot.slane %v4619, 4
      %v4622 = vshll.u32 %v4418, 16
      %v4624 = vrot.slane %v4622, 5
      %v4625 = vsel %vm714, %v4620, %v4624
      %v4626 = vshrl.u32 %v4418, 16
      %v4628 = vrot.slane %v4626, 4
      %v4629 = vor.u32 %v4628, %v4624
      %v4630 = vrot.slane %v4629, 4
      %v4632 = vshll.u32 %v4419, 16
      %v4634 = vrot.slane %v4632, 5
      %v4635 = vsel %vm714, %v4630, %v4634
      %v4637 = vshrl.u32 %v4420, 16
      %v4639 = vrot.slane %v4637, 4
      %v4640 = vshll.u32 %v4420, 16
      %v4642 = vrot.slane %v4640, 5
      %v4643 = vor.u32 %v4639, %v4642
      %v4644 = vrot.slane %v4643, 4
      %v4646 = vshll.u32 %v4421, 16
      %v4648 = vrot.slane %v4646, 5
      %v4649 = vsel %vm714, %v4644, %v4648
      %v4650 = vshrl.u32 %v4421, 16
      %v4652 = vrot.slane %v4650, 4
      %v4653 = vor.u32 %v4652, %v4648
      %v4654 = vrot.slane %v4653, 4
      %v4656 = vshll.u32 %v4422, 16
      %v4658 = vrot.slane %v4656, 5
      %v4659 = vsel %vm714, %v4654, %v4658
      %v4661 = vshrl.u32 %v4423, 16
      %v4663 = vrot.slane %v4661, 4
      %v4664 = vshll.u32 %v4423, 16
      %v4666 = vrot.slane %v4664, 5
      %v4667 = vor.u32 %v4663, %v4666
      %v4668 = vrot.slane %v4667, 4
      %v4670 = vshll.u32 %v4424, 16
      %v4672 = vrot.slane %v4670, 5
      %v4673 = vsel %vm714, %v4668, %v4672
      %v4674 = vshrl.u32 %v4424, 16
      %v4676 = vrot.slane %v4674, 4
      %v4677 = vor.u32 %v4676, %v4672
      %v4678 = vrot.slane %v4677, 4
      %v4680 = vshll.u32 %v4425, 16
      %v4682 = vrot.slane %v4680, 5
      %v4683 = vsel %vm714, %v4678, %v4682
      %v4685 = vshrl.u32 %v4426, 16
      %v4687 = vrot.slane %v4685, 4
      %v4688 = vshll.u32 %v4426, 16
      %v4690 = vrot.slane %v4688, 5
      %v4691 = vor.u32 %v4687, %v4690
      %v4692 = vrot.slane %v4691, 4
      %v4694 = vshll.u32 %v4427, 16
      %v4696 = vrot.slane %v4694, 5
      %v4697 = vsel %vm714, %v4692, %v4696
      %v4698 = vshrl.u32 %v4427, 16
      %v4700 = vrot.slane %v4698, 4
      %v4701 = vor.u32 %v4700, %v4696
      %v4702 = vrot.slane %v4701, 4
      %v4704 = vshll.u32 %v4428, 16
      %v4706 = vrot.slane %v4704, 5
      %v4707 = vsel %vm714, %v4702, %v4706
      %v4709 = vshrl.u32 %v4429, 16
      %v4711 = vrot.slane %v4709, 4
      %v4712 = vshll.u32 %v4429, 16
      %v4714 = vrot.slane %v4712, 5
      %v4715 = vor.u32 %v4711, %v4714
      %v4716 = vrot.slane %v4715, 4
      %v4718 = vshll.u32 %v4430, 16
      %v4720 = vrot.slane %v4718, 5
      %v4721 = vsel %vm714, %v4716, %v4720
      %v4722 = vshrl.u32 %v4430, 16
      %v4724 = vrot.slane %v4722, 4
      %v4725 = vor.u32 %v4724, %v4720
      %v4726 = vrot.slane %v4725, 4
      %v4728 = vshll.u32 %v4431, 16
      %v4730 = vrot.slane %v4728, 5
      %v4731 = vsel %vm714, %v4726, %v4730
      %v4733 = vshrl.u32 %v4432, 16
      %v4735 = vrot.slane %v4733, 4
      %v4736 = vshll.u32 %v4432, 16
      %v4738 = vrot.slane %v4736, 5
      %v4739 = vor.u32 %v4735, %v4738
      %v4740 = vrot.slane %v4739, 4
      %v4742 = vshll.u32 %v4433, 16
      %v4744 = vrot.slane %v4742, 5
      %v4745 = vsel %vm714, %v4740, %v4744
      %v4746 = vshrl.u32 %v4433, 16
      %v4748 = vrot.slane %v4746, 4
      %v4749 = vor.u32 %v4748, %v4744
      %v4750 = vrot.slane %v4749, 4
      %v4752 = vshll.u32 %v4434, 16
      %v4754 = vrot.slane %v4752, 5
      %v4755 = vsel %vm714, %v4750, %v4754
      %v4757 = vshrl.u32 %v4435, 16
      %v4759 = vrot.slane %v4757, 4
      %v4760 = vshll.u32 %v4435, 16
      %v4762 = vrot.slane %v4760, 5
      %v4763 = vor.u32 %v4759, %v4762
      %v4764 = vrot.slane %v4763, 4
      %v4766 = vshll.u32 %v4436, 16
      %v4768 = vrot.slane %v4766, 5
      %v4769 = vsel %vm714, %v4764, %v4768
      %v4770 = vshrl.u32 %v4436, 16
      %v4772 = vrot.slane %v4770, 4
      %v4773 = vor.u32 %v4772, %v4768
      %v4774 = vrot.slane %v4773, 4
      %v4776 = vshll.u32 %v4437, 16
      %v4778 = vrot.slane %v4776, 5
      %v4779 = vsel %vm714, %v4774, %v4778
      %v4781 = vshrl.u32 %v4438, 16
      %v4783 = vrot.slane %v4781, 4
      %v4784 = vshll.u32 %v4438, 16
      %v4786 = vrot.slane %v4784, 5
      %v4787 = vor.u32 %v4783, %v4786
      %v4788 = vrot.slane %v4787, 4
      %v4790 = vshll.u32 %v4439, 16
      %v4792 = vrot.slane %v4790, 5
      %v4793 = vsel %vm714, %v4788, %v4792
      %v4794 = vshrl.u32 %v4439, 16
      %v4796 = vrot.slane %v4794, 4
      %v4797 = vor.u32 %v4796, %v4792
      %v4798 = vrot.slane %v4797, 4
      %v4800 = vshll.u32 %v4440, 16
      %v4802 = vrot.slane %v4800, 5
      %v4803 = vsel %vm714, %v4798, %v4802
      %v4805 = vshrl.u32 %v4441, 16
      %v4807 = vrot.slane %v4805, 4
      %v4808 = vshll.u32 %v4441, 16
      %v4810 = vrot.slane %v4808, 5
      %v4811 = vor.u32 %v4807, %v4810
      %v4812 = vrot.slane %v4811, 4
      %v4814 = vshll.u32 %v4442, 16
      %v4816 = vrot.slane %v4814, 5
      %v4817 = vsel %vm714, %v4812, %v4816
      %v4818 = vshrl.u32 %v4442, 16
      %v4820 = vrot.slane %v4818, 4
      %v4821 = vor.u32 %v4820, %v4816
      %v4822 = vrot.slane %v4821, 4
      %v4824 = vshll.u32 %v4443, 16
      %v4826 = vrot.slane %v4824, 5
      %v4827 = vsel %vm714, %v4822, %v4826
      %v4828 = vld [vmem:[#allocation2] sm:$0xff]
      %v4829 = vld [vmem:[#allocation2 + $0x8] sm:$0xff]
      %v4830 = vld [vmem:[#allocation2 + $0x10] sm:$0xff]
      %v4831 = vld [vmem:[#allocation2 + $0x18] sm:$0xff]
      %v4832 = vld [vmem:[#allocation2 + $0x20] sm:$0xff]
      %v4833 = vld [vmem:[#allocation2 + $0x28] sm:$0xff]
      %v4834 = vld [vmem:[#allocation2 + $0x30] sm:$0xff]
      %v4835 = vld [vmem:[#allocation2 + $0x38] sm:$0xff]
      %v4836 = vld [vmem:[#allocation2 + $0x40] sm:$0xff]
      %v4837 = vld [vmem:[#allocation2 + $0x48] sm:$0xff]
      %v4838 = vld [vmem:[#allocation2 + $0x50] sm:$0xff]
      %v4839 = vld [vmem:[#allocation2 + $0x58] sm:$0xff]
      %v4840 = vld [vmem:[#allocation2 + $0x60] sm:$0xff]
      %v4841 = vld [vmem:[#allocation2 + $0x68] sm:$0xff]
      %v4842 = vld [vmem:[#allocation2 + $0x70] sm:$0xff]
      %v4843 = vld [vmem:[#allocation2 + $0x78] sm:$0xff]
      %v4844 = vld [vmem:[#allocation2 + $0x80] sm:$0xff]
      %v4845 = vld [vmem:[#allocation2 + $0x88] sm:$0xff]
      %v4846 = vld [vmem:[#allocation2 + $0x90] sm:$0xff]
      %v4847 = vld [vmem:[#allocation2 + $0x98] sm:$0xff]
      %v4848 = vld [vmem:[#allocation2 + $0xa0] sm:$0xff]
      %v4849 = vld [vmem:[#allocation2 + $0xa8] sm:$0xff]
      %v4850 = vld [vmem:[#allocation2 + $0xb0] sm:$0xff]
      %v4851 = vld [vmem:[#allocation2 + $0xb8] sm:$0xff]
      %v4852 = vld [vmem:[#allocation2 + $0xc0] sm:$0xff]
      %v4853 = vld [vmem:[#allocation2 + $0xc8] sm:$0xff]
      %v4854 = vld [vmem:[#allocation2 + $0xd0] sm:$0xff]
      %v4855 = vld [vmem:[#allocation2 + $0xd8] sm:$0xff]
      %v4856 = vld [vmem:[#allocation2 + $0xe0] sm:$0xff]
      %v4857 = vld [vmem:[#allocation2 + $0xe8] sm:$0xff]
      %v4858 = vld [vmem:[#allocation2 + $0xf0] sm:$0xff]
      %v4859 = vld [vmem:[#allocation2 + $0xf8] sm:$0xff]
      %s4860 = scalar_lea.vmem %s1, 448
      %v4861 = vld [vmem:[%s4860] sm:$0xf]
      %v4862 = vld [vmem:[%s4860 + $0x4] sm:$0xf]
      %v4863 = vld [vmem:[%s4860 + $0x8] sm:$0xf]
      %v4864 = vld [vmem:[%s4860 + $0xc] sm:$0xf]
      %v4865 = vld [vmem:[%s4860 + $0x10] sm:$0xf]
      %v4866 = vld [vmem:[%s4860 + $0x14] sm:$0xf]
      %v4867 = vld [vmem:[%s4860 + $0x18] sm:$0xf]
      %v4868 = vld [vmem:[%s4860 + $0x1c] sm:$0xf]
      %v4869 = vld [vmem:[%s4860 + $0x20] sm:$0xf]
      %v4870 = vld [vmem:[%s4860 + $0x24] sm:$0xf]
      %v4871 = vld [vmem:[%s4860 + $0x28] sm:$0xf]
      %v4872 = vld [vmem:[%s4860 + $0x2c] sm:$0xf]
      %v4873 = vld [vmem:[%s4860 + $0x30] sm:$0xf]
      %v4874 = vld [vmem:[%s4860 + $0x34] sm:$0xf]
      %v4875 = vld [vmem:[%s4860 + $0x38] sm:$0xf]
      %v4876 = vld [vmem:[%s4860 + $0x3c] sm:$0xf]
      %v4877 = vunpack.c.l.b16 %v4457
      %v4878 = vunpack.c.l.b16 %v4467
      %v4879 = vunpack.c.l.b16 %v4481
      %v4880 = vunpack.c.l.b16 %v4491
      %v4881 = vunpack.c.l.b16 %v4505
      %v4882 = vunpack.c.l.b16 %v4515
      %v4883 = vunpack.c.l.b16 %v4529
      %v4884 = vunpack.c.l.b16 %v4539
      %v4885 = vunpack.c.l.b16 %v4553
      %v4886 = vunpack.c.l.b16 %v4563
      %v4887 = vunpack.c.l.b16 %v4577
      %v4888 = vunpack.c.l.b16 %v4587
      %v4889 = vunpack.c.l.b16 %v4601
      %v4890 = vunpack.c.l.b16 %v4611
      %v4891 = vunpack.c.l.b16 %v4625
      %v4892 = vunpack.c.l.b16 %v4635
      %v4893 = vunpack.c.l.b16 %v4649
      %v4894 = vunpack.c.l.b16 %v4659
      %v4895 = vunpack.c.l.b16 %v4673
      %v4896 = vunpack.c.l.b16 %v4683
      %v4897 = vunpack.c.l.b16 %v4697
      %v4898 = vunpack.c.l.b16 %v4707
      %v4899 = vunpack.c.l.b16 %v4721
      %v4900 = vunpack.c.l.b16 %v4731
      %v4901 = vunpack.c.l.b16 %v4745
      %v4902 = vunpack.c.l.b16 %v4755
      %v4903 = vunpack.c.l.b16 %v4769
      %v4904 = vunpack.c.l.b16 %v4779
      %v4905 = vunpack.c.l.b16 %v4793
      %v4906 = vunpack.c.l.b16 %v4803
      %v4907 = vunpack.c.l.b16 %v4817
      %v4908 = vunpack.c.l.b16 %v4827
      %v4909 = vpack.c.b16 %v4878, %v4877
      %v4910 = vpack.c.b16 %v4880, %v4879
      %v4911 = vpack.c.b16 %v4882, %v4881
      %v4912 = vpack.c.b16 %v4884, %v4883
      %v4913 = vpack.c.b16 %v4886, %v4885
      %v4914 = vpack.c.b16 %v4888, %v4887
      %v4915 = vpack.c.b16 %v4890, %v4889
      %v4916 = vpack.c.b16 %v4892, %v4891
      %v4917 = vpack.c.b16 %v4894, %v4893
      %v4918 = vpack.c.b16 %v4896, %v4895
      %v4919 = vpack.c.b16 %v4898, %v4897
      %v4920 = vpack.c.b16 %v4900, %v4899
      %v4921 = vpack.c.b16 %v4902, %v4901
      %v4922 = vpack.c.b16 %v4904, %v4903
      %v4923 = vpack.c.b16 %v4906, %v4905
      %v4924 = vpack.c.b16 %v4908, %v4907
      %v4957 = vunpack.c.l.b16 %v4861
      %v4958 = vunpack.c.l.b16 %v4862
      %v4959 = vunpack.c.l.b16 %v4863
      %v4960 = vunpack.c.l.b16 %v4864
      %v4961 = vunpack.c.l.b16 %v4865
      %v4962 = vunpack.c.l.b16 %v4866
      %v4963 = vunpack.c.l.b16 %v4867
      %v4964 = vunpack.c.l.b16 %v4868
      %v4965 = vunpack.c.l.b16 %v4869
      %v4966 = vunpack.c.l.b16 %v4870
      %v4967 = vunpack.c.l.b16 %v4871
      %v4968 = vunpack.c.l.b16 %v4872
      %v4969 = vunpack.c.l.b16 %v4873
      %v4970 = vunpack.c.l.b16 %v4874
      %v4971 = vunpack.c.l.b16 %v4875
      %v4972 = vunpack.c.l.b16 %v4876
      %v4973 = vpack.c.b16 %v4958, %v4957
      %v4974 = vpack.c.b16 %v4960, %v4959
      %v4975 = vpack.c.b16 %v4962, %v4961
      %v4976 = vpack.c.b16 %v4964, %v4963
      %v4977 = vpack.c.b16 %v4966, %v4965
      %v4978 = vpack.c.b16 %v4968, %v4967
      %v4979 = vpack.c.b16 %v4970, %v4969
      %v4980 = vpack.c.b16 %v4972, %v4971
      %4989 = vmatprep.subr.bf16.mxu0 0
      %4990 = vmatpush1.bf16.msra.mxu0 %v4973
      %4991 = vmatprep.subr.bf16.mxu0 0
      %4992 = vmatpush1.bf16.msra.mxu0 %v4974
      %4993 = vmatprep.subr.bf16.mxu0 0
      %4994 = vmatpush1.bf16.msra.mxu0 %v4975
      %4995 = vmatprep.subr.bf16.mxu0 0
      %4996 = vmatpush1.bf16.msra.mxu0 %v4976
      %4997 = vmatprep.subr.bf16.mxu0 0
      %4998 = vmatpush1.bf16.msra.mxu0 %v4977
      %4999 = vmatprep.subr.bf16.mxu0 0
      %5000 = vmatpush1.bf16.msra.mxu0 %v4978
      %5001 = vmatprep.subr.bf16.mxu0 0
      %5002 = vmatpush1.bf16.msra.mxu0 %v4979
      %5003 = vmatprep.subr.bf16.mxu0 0
      %5004 = vmatpush1.bf16.msra.mxu0 %v4980
      %5005 = vmatprep.subr.bf16.mxu0 0
      %5006 = vmatpush1.bf16.msra.mxu0 0
      %5007 = vmatprep.subr.bf16.mxu0 0
      %5008 = vmatpush1.bf16.msra.mxu0 0
      %5009 = vmatprep.subr.bf16.mxu0 0
      %5010 = vmatpush1.bf16.msra.mxu0 0
      %5011 = vmatprep.subr.bf16.mxu0 0
      %5012 = vmatpush1.bf16.msra.mxu0 0
      %5013 = vmatprep.subr.bf16.mxu0 0
      %5014 = vmatpush1.bf16.msra.mxu0 0
      %5015 = vmatprep.subr.bf16.mxu0 0
      %5016 = vmatpush1.bf16.msra.mxu0 0
      %5017 = vmatprep.subr.bf16.mxu0 0
      %5018 = vmatpush1.bf16.msra.mxu0 0
      %5019 = vmatprep.subr.bf16.mxu0 0
      %5020 = vmatpush1.bf16.msra.mxu0 0
      %5021 = vmatprep.mubr.bf16.mxu0 0
      %5022 = vmatmul.mubr.bf16.gmra.mrb[0].mxu0 %v4909
      %v5023 = vpop.f32.mrb[0].mxu0
      %v5024 = vadd.f32 0.0, %v5023
      %v5025 = vpop.f32.mrb[0].mxu0
      %v5026 = vpop.f32.mrb[0].mxu0
      %v5027 = vadd.f32 0.0, %v5026
      %v5028 = vpop.f32.mrb[0].mxu0
      %5029 = vmatprep.mubr.bf16.mxu0 0
      %5030 = vmatmul.mubr.bf16.gmra.mrb[0].mxu0 %v4910
      %v5031 = vpop.f32.mrb[0].mxu0
      %v5032 = vadd.f32 0.0, %v5031
      %v5033 = vpop.f32.mrb[0].mxu0
      %v5034 = vpop.f32.mrb[0].mxu0
      %v5035 = vadd.f32 0.0, %v5034
      %v5036 = vpop.f32.mrb[0].mxu0
      %5037 = vmatprep.mubr.bf16.mxu0 0
      %5038 = vmatmul.mubr.bf16.gmra.mrb[0].mxu0 %v4911
      %v5039 = vpop.f32.mrb[0].mxu0
      %v5040 = vadd.f32 0.0, %v5039
      %v5041 = vpop.f32.mrb[0].mxu0
      %v5042 = vpop.f32.mrb[0].mxu0
      %v5043 = vadd.f32 0.0, %v5042
      %v5044 = vpop.f32.mrb[0].mxu0
      %5045 = vmatprep.mubr.bf16.mxu0 0
      %5046 = vmatmul.mubr.bf16.gmra.mrb[0].mxu0 %v4912
      %v5047 = vpop.f32.mrb[0].mxu0
      %v5048 = vadd.f32 0.0, %v5047
      %v5049 = vpop.f32.mrb[0].mxu0
      %v5050 = vpop.f32.mrb[0].mxu0
      %v5051 = vadd.f32 0.0, %v5050
      %v5052 = vpop.f32.mrb[0].mxu0
      %5053 = vmatprep.mubr.bf16.mxu0 0
      %5054 = vmatmul.mubr.bf16.gmra.mrb[0].mxu0 %v4913
      %v5055 = vpop.f32.mrb[0].mxu0
      %v5056 = vadd.f32 0.0, %v5055
      %v5057 = vpop.f32.mrb[0].mxu0
      %v5058 = vpop.f32.mrb[0].mxu0
      %v5059 = vadd.f32 0.0, %v5058
      %v5060 = vpop.f32.mrb[0].mxu0
      %5061 = vmatprep.mubr.bf16.mxu0 0
      %5062 = vmatmul.mubr.bf16.gmra.mrb[0].mxu0 %v4914
      %v5063 = vpop.f32.mrb[0].mxu0
      %v5064 = vadd.f32 0.0, %v5063
      %v5065 = vpop.f32.mrb[0].mxu0
      %v5066 = vpop.f32.mrb[0].mxu0
      %v5067 = vadd.f32 0.0, %v5066
      %v5068 = vpop.f32.mrb[0].mxu0
      %5069 = vmatprep.mubr.bf16.mxu0 0
      %5070 = vmatmul.mubr.bf16.gmra.mrb[0].mxu0 %v4915
      %v5071 = vpop.f32.mrb[0].mxu0
      %v5072 = vadd.f32 0.0, %v5071
      %v5073 = vpop.f32.mrb[0].mxu0
      %v5074 = vpop.f32.mrb[0].mxu0
      %v5075 = vadd.f32 0.0, %v5074
      %v5076 = vpop.f32.mrb[0].mxu0
      %5077 = vmatprep.mubr.bf16.mxu0 0
      %5078 = vmatmul.mubr.bf16.gmra.mrb[0].mxu0 %v4916
      %v5079 = vpop.f32.mrb[0].mxu0
      %v5080 = vadd.f32 0.0, %v5079
      %v5081 = vpop.f32.mrb[0].mxu0
      %v5082 = vpop.f32.mrb[0].mxu0
      %v5083 = vadd.f32 0.0, %v5082
      %v5084 = vpop.f32.mrb[0].mxu0
      %5085 = vmatprep.mubr.bf16.mxu0 0
      %5086 = vmatmul.mubr.bf16.gmra.mrb[0].mxu0 %v4917
      %v5087 = vpop.f32.mrb[0].mxu0
      %v5088 = vadd.f32 0.0, %v5087
      %v5089 = vpop.f32.mrb[0].mxu0
      %v5090 = vpop.f32.mrb[0].mxu0
      %v5091 = vadd.f32 0.0, %v5090
      %v5092 = vpop.f32.mrb[0].mxu0
      %5093 = vmatprep.mubr.bf16.mxu0 0
      %5094 = vmatmul.mubr.bf16.gmra.mrb[0].mxu0 %v4918
      %v5095 = vpop.f32.mrb[0].mxu0
      %v5096 = vadd.f32 0.0, %v5095
      %v5097 = vpop.f32.mrb[0].mxu0
      %v5098 = vpop.f32.mrb[0].mxu0
      %v5099 = vadd.f32 0.0, %v5098
      %v5100 = vpop.f32.mrb[0].mxu0
      %5101 = vmatprep.mubr.bf16.mxu0 0
      %5102 = vmatmul.mubr.bf16.gmra.mrb[0].mxu0 %v4919
      %v5103 = vpop.f32.mrb[0].mxu0
      %v5104 = vadd.f32 0.0, %v5103
      %v5105 = vpop.f32.mrb[0].mxu0
      %v5106 = vpop.f32.mrb[0].mxu0
      %v5107 = vadd.f32 0.0, %v5106
      %v5108 = vpop.f32.mrb[0].mxu0
      %5109 = vmatprep.mubr.bf16.mxu0 0
      %5110 = vmatmul.mubr.bf16.gmra.mrb[0].mxu0 %v4920
      %v5111 = vpop.f32.mrb[0].mxu0
      %v5112 = vadd.f32 0.0, %v5111
      %v5113 = vpop.f32.mrb[0].mxu0
      %v5114 = vpop.f32.mrb[0].mxu0
      %v5115 = vadd.f32 0.0, %v5114
      %v5116 = vpop.f32.mrb[0].mxu0
      %5117 = vmatprep.mubr.bf16.mxu0 0
      %5118 = vmatmul.mubr.bf16.gmra.mrb[0].mxu0 %v4921
      %v5119 = vpop.f32.mrb[0].mxu0
      %v5120 = vadd.f32 0.0, %v5119
      %v5121 = vpop.f32.mrb[0].mxu0
      %v5122 = vpop.f32.mrb[0].mxu0
      %v5123 = vadd.f32 0.0, %v5122
      %v5124 = vpop.f32.mrb[0].mxu0
      %5125 = vmatprep.mubr.bf16.mxu0 0
      %5126 = vmatmul.mubr.bf16.gmra.mrb[0].mxu0 %v4922
      %v5127 = vpop.f32.mrb[0].mxu0
      %v5128 = vadd.f32 0.0, %v5127
      %v5129 = vpop.f32.mrb[0].mxu0
      %v5130 = vpop.f32.mrb[0].mxu0
      %v5131 = vadd.f32 0.0, %v5130
      %v5132 = vpop.f32.mrb[0].mxu0
      %5133 = vmatprep.mubr.bf16.mxu0 0
      %5134 = vmatmul.mubr.bf16.gmra.mrb[0].mxu0 %v4923
      %v5135 = vpop.f32.mrb[0].mxu0
      %v5136 = vadd.f32 0.0, %v5135
      %v5137 = vpop.f32.mrb[0].mxu0
      %v5138 = vpop.f32.mrb[0].mxu0
      %v5139 = vadd.f32 0.0, %v5138
      %v5140 = vpop.f32.mrb[0].mxu0
      %5141 = vmatprep.mubr.bf16.mxu0 0
      %5142 = vmatmul.mubr.bf16.gmra.mrb[0].mxu0 %v4924
      %v5143 = vpop.f32.mrb[0].mxu0
      %v5144 = vadd.f32 0.0, %v5143
      %v5145 = vpop.f32.mrb[0].mxu0
      %v5146 = vpop.f32.mrb[0].mxu0
      %v5147 = vadd.f32 0.0, %v5146
      %v5148 = vpop.f32.mrb[0].mxu0
      %5149 = vdwg.mxu0
      %v5150 = vadd.f32 %v4828, %v5024
      %v5151 = vadd.f32 %v4829, %v5027
      %v5152 = vadd.f32 %v4830, %v5032
      %v5153 = vadd.f32 %v4831, %v5035
      %v5154 = vadd.f32 %v4832, %v5040
      %v5155 = vadd.f32 %v4833, %v5043
      %v5156 = vadd.f32 %v4834, %v5048
      %v5157 = vadd.f32 %v4835, %v5051
      %v5158 = vadd.f32 %v4836, %v5056
      %v5159 = vadd.f32 %v4837, %v5059
      %v5160 = vadd.f32 %v4838, %v5064
      %v5161 = vadd.f32 %v4839, %v5067
      %v5162 = vadd.f32 %v4840, %v5072
      %v5163 = vadd.f32 %v4841, %v5075
      %v5164 = vadd.f32 %v4842, %v5080
      %v5165 = vadd.f32 %v4843, %v5083
      %v5166 = vadd.f32 %v4844, %v5088
      %v5167 = vadd.f32 %v4845, %v5091
      %v5168 = vadd.f32 %v4846, %v5096
      %v5169 = vadd.f32 %v4847, %v5099
      %v5170 = vadd.f32 %v4848, %v5104
      %v5171 = vadd.f32 %v4849, %v5107
      %v5172 = vadd.f32 %v4850, %v5112
      %v5173 = vadd.f32 %v4851, %v5115
      %v5174 = vadd.f32 %v4852, %v5120
      %v5175 = vadd.f32 %v4853, %v5123
      %v5176 = vadd.f32 %v4854, %v5128
      %v5177 = vadd.f32 %v4855, %v5131
      %v5178 = vadd.f32 %v4856, %v5136
      %v5179 = vadd.f32 %v4857, %v5139
      %v5180 = vadd.f32 %v4858, %v5144
      %v5181 = vadd.f32 %v4859, %v5147
      %5182 = vst [vmem:[#allocation2] sm:$0xff] %v5150
      %5183 = vst [vmem:[#allocation2 + $0x8] sm:$0xff] %v5151
      %5184 = vst [vmem:[#allocation2 + $0x10] sm:$0xff] %v5152
      %5185 = vst [vmem:[#allocation2 + $0x18] sm:$0xff] %v5153
      %5186 = vst [vmem:[#allocation2 + $0x20] sm:$0xff] %v5154
      %5187 = vst [vmem:[#allocation2 + $0x28] sm:$0xff] %v5155
      %5188 = vst [vmem:[#allocation2 + $0x30] sm:$0xff] %v5156
      %5189 = vst [vmem:[#allocation2 + $0x38] sm:$0xff] %v5157
      %5190 = vst [vmem:[#allocation2 + $0x40] sm:$0xff] %v5158
      %5191 = vst [vmem:[#allocation2 + $0x48] sm:$0xff] %v5159
      %5192 = vst [vmem:[#allocation2 + $0x50] sm:$0xff] %v5160
      %5193 = vst [vmem:[#allocation2 + $0x58] sm:$0xff] %v5161
      %5194 = vst [vmem:[#allocation2 + $0x60] sm:$0xff] %v5162
      %5195 = vst [vmem:[#allocation2 + $0x68] sm:$0xff] %v5163
      %5196 = vst [vmem:[#allocation2 + $0x70] sm:$0xff] %v5164
      %5197 = vst [vmem:[#allocation2 + $0x78] sm:$0xff] %v5165
      %5198 = vst [vmem:[#allocation2 + $0x80] sm:$0xff] %v5166
      %5199 = vst [vmem:[#allocation2 + $0x88] sm:$0xff] %v5167
      %5200 = vst [vmem:[#allocation2 + $0x90] sm:$0xff] %v5168
      %5201 = vst [vmem:[#allocation2 + $0x98] sm:$0xff] %v5169
      %5202 = vst [vmem:[#allocation2 + $0xa0] sm:$0xff] %v5170
      %5203 = vst [vmem:[#allocation2 + $0xa8] sm:$0xff] %v5171
      %5204 = vst [vmem:[#allocation2 + $0xb0] sm:$0xff] %v5172
      %5205 = vst [vmem:[#allocation2 + $0xb8] sm:$0xff] %v5173
      %5206 = vst [vmem:[#allocation2 + $0xc0] sm:$0xff] %v5174
      %5207 = vst [vmem:[#allocation2 + $0xc8] sm:$0xff] %v5175
      %5208 = vst [vmem:[#allocation2 + $0xd0] sm:$0xff] %v5176
      %5209 = vst [vmem:[#allocation2 + $0xd8] sm:$0xff] %v5177
      %5210 = vst [vmem:[#allocation2 + $0xe0] sm:$0xff] %v5178
      %5211 = vst [vmem:[#allocation2 + $0xe8] sm:$0xff] %v5179
      %5212 = vst [vmem:[#allocation2 + $0xf0] sm:$0xff] %v5180
      %5213 = vst [vmem:[#allocation2 + $0xf8] sm:$0xff] %v5181
      %v5214 = vld [vmem:[%s3945] sm:$0xe]
      %v5215 = vld [vmem:[%s3945 + $0x4] sm:$0xf]
      %v5216 = vld [vmem:[%s3945 + $0x8] sm:$0x1]
      %v5217 = vld [vmem:[%s3945 + $0xc] sm:$0xe]
      %v5218 = vld [vmem:[%s3945 + $0x10] sm:$0xf]
      %v5219 = vld [vmem:[%s3945 + $0x14] sm:$0x1]
      %v5220 = vld [vmem:[%s3945 + $0x18] sm:$0xe]
      %v5221 = vld [vmem:[%s3945 + $0x1c] sm:$0xf]
      %v5222 = vld [vmem:[%s3945 + $0x20] sm:$0x1]
      %v5223 = vld [vmem:[%s3945 + $0x24] sm:$0xe]
      %v5224 = vld [vmem:[%s3945 + $0x28] sm:$0xf]
      %v5225 = vld [vmem:[%s3945 + $0x2c] sm:$0x1]
      %v5226 = vld [vmem:[%s3945 + $0x30] sm:$0xe]
      %v5227 = vld [vmem:[%s3945 + $0x34] sm:$0xf]
      %v5228 = vld [vmem:[%s3945 + $0x38] sm:$0x1]
      %v5229 = vld [vmem:[%s3945 + $0x3c] sm:$0xe]
      %v5230 = vld [vmem:[%s3945 + $0x40] sm:$0xf]
      %v5231 = vld [vmem:[%s3945 + $0x44] sm:$0x1]
      %v5232 = vld [vmem:[%s3945 + $0x48] sm:$0xe]
      %v5233 = vld [vmem:[%s3945 + $0x4c] sm:$0xf]
      %v5234 = vld [vmem:[%s3945 + $0x50] sm:$0x1]
      %v5235 = vld [vmem:[%s3945 + $0x54] sm:$0xe]
      %v5236 = vld [vmem:[%s3945 + $0x58] sm:$0xf]
      %v5237 = vld [vmem:[%s3945 + $0x5c] sm:$0x1]
      %v5238 = vld [vmem:[%s3945 + $0x60] sm:$0xe]
      %v5239 = vld [vmem:[%s3945 + $0x64] sm:$0xf]
      %v5240 = vld [vmem:[%s3945 + $0x68] sm:$0x1]
      %v5241 = vld [vmem:[%s3945 + $0x6c] sm:$0xe]
      %v5242 = vld [vmem:[%s3945 + $0x70] sm:$0xf]
      %v5243 = vld [vmem:[%s3945 + $0x74] sm:$0x1]
      %v5244 = vld [vmem:[%s3945 + $0x78] sm:$0xe]
      %v5245 = vld [vmem:[%s3945 + $0x7c] sm:$0xf]
      %v5246 = vld [vmem:[%s3945 + $0x80] sm:$0x1]
      %v5247 = vld [vmem:[%s3945 + $0x84] sm:$0xe]
      %v5248 = vld [vmem:[%s3945 + $0x88] sm:$0xf]
      %v5249 = vld [vmem:[%s3945 + $0x8c] sm:$0x1]
      %v5250 = vld [vmem:[%s3945 + $0x90] sm:$0xe]
      %v5251 = vld [vmem:[%s3945 + $0x94] sm:$0xf]
      %v5252 = vld [vmem:[%s3945 + $0x98] sm:$0x1]
      %v5253 = vld [vmem:[%s3945 + $0x9c] sm:$0xe]
      %v5254 = vld [vmem:[%s3945 + $0xa0] sm:$0xf]
      %v5255 = vld [vmem:[%s3945 + $0xa4] sm:$0x1]
      %v5256 = vld [vmem:[%s3945 + $0xa8] sm:$0xe]
      %v5257 = vld [vmem:[%s3945 + $0xac] sm:$0xf]
      %v5258 = vld [vmem:[%s3945 + $0xb0] sm:$0x1]
      %v5259 = vld [vmem:[%s3945 + $0xb4] sm:$0xe]
      %v5260 = vld [vmem:[%s3945 + $0xb8] sm:$0xf]
      %v5261 = vld [vmem:[%s3945 + $0xbc] sm:$0x1]
      %v5310 = vrot.slane %v5214, 5
      %v5311 = vrot.slane %v5310, 4
      %v5312 = vrot.slane %v5215, 5
      %v5313 = vsel %vm1583, %v5311, %v5312
      %v5314 = vrot.slane %v5312, 4
      %v5315 = vrot.slane %v5216, 5
      %v5316 = vsel %vm1583, %v5314, %v5315
      %v5317 = vrot.slane %v5217, 5
      %v5318 = vrot.slane %v5317, 4
      %v5319 = vrot.slane %v5218, 5
      %v5320 = vsel %vm1583, %v5318, %v5319
      %v5321 = vrot.slane %v5319, 4
      %v5322 = vrot.slane %v5219, 5
      %v5323 = vsel %vm1583, %v5321, %v5322
      %v5324 = vrot.slane %v5220, 5
      %v5325 = vrot.slane %v5324, 4
      %v5326 = vrot.slane %v5221, 5
      %v5327 = vsel %vm1583, %v5325, %v5326
      %v5328 = vrot.slane %v5326, 4
      %v5329 = vrot.slane %v5222, 5
      %v5330 = vsel %vm1583, %v5328, %v5329
      %v5331 = vrot.slane %v5223, 5
      %v5332 = vrot.slane %v5331, 4
      %v5333 = vrot.slane %v5224, 5
      %v5334 = vsel %vm1583, %v5332, %v5333
      %v5335 = vrot.slane %v5333, 4
      %v5336 = vrot.slane %v5225, 5
      %v5337 = vsel %vm1583, %v5335, %v5336
      %v5338 = vrot.slane %v5226, 5
      %v5339 = vrot.slane %v5338, 4
      %v5340 = vrot.slane %v5227, 5
      %v5341 = vsel %vm1583, %v5339, %v5340
      %v5342 = vrot.slane %v5340, 4
      %v5343 = vrot.slane %v5228, 5
      %v5344 = vsel %vm1583, %v5342, %v5343
      %v5345 = vrot.slane %v5229, 5
      %v5346 = vrot.slane %v5345, 4
      %v5347 = vrot.slane %v5230, 5
      %v5348 = vsel %vm1583, %v5346, %v5347
      %v5349 = vrot.slane %v5347, 4
      %v5350 = vrot.slane %v5231, 5
      %v5351 = vsel %vm1583, %v5349, %v5350
      %v5352 = vrot.slane %v5232, 5
      %v5353 = vrot.slane %v5352, 4
      %v5354 = vrot.slane %v5233, 5
      %v5355 = vsel %vm1583, %v5353, %v5354
      %v5356 = vrot.slane %v5354, 4
      %v5357 = vrot.slane %v5234, 5
      %v5358 = vsel %vm1583, %v5356, %v5357
      %v5359 = vrot.slane %v5235, 5
      %v5360 = vrot.slane %v5359, 4
      %v5361 = vrot.slane %v5236, 5
      %v5362 = vsel %vm1583, %v5360, %v5361
      %v5363 = vrot.slane %v5361, 4
      %v5364 = vrot.slane %v5237, 5
      %v5365 = vsel %vm1583, %v5363, %v5364
      %v5366 = vrot.slane %v5238, 5
      %v5367 = vrot.slane %v5366, 4
      %v5368 = vrot.slane %v5239, 5
      %v5369 = vsel %vm1583, %v5367, %v5368
      %v5370 = vrot.slane %v5368, 4
      %v5371 = vrot.slane %v5240, 5
      %v5372 = vsel %vm1583, %v5370, %v5371
      %v5373 = vrot.slane %v5241, 5
      %v5374 = vrot.slane %v5373, 4
      %v5375 = vrot.slane %v5242, 5
      %v5376 = vsel %vm1583, %v5374, %v5375
      %v5377 = vrot.slane %v5375, 4
      %v5378 = vrot.slane %v5243, 5
      %v5379 = vsel %vm1583, %v5377, %v5378
      %v5380 = vrot.slane %v5244, 5
      %v5381 = vrot.slane %v5380, 4
      %v5382 = vrot.slane %v5245, 5
      %v5383 = vsel %vm1583, %v5381, %v5382
      %v5384 = vrot.slane %v5382, 4
      %v5385 = vrot.slane %v5246, 5
      %v5386 = vsel %vm1583, %v5384, %v5385
      %v5387 = vrot.slane %v5247, 5
      %v5388 = vrot.slane %v5387, 4
      %v5389 = vrot.slane %v5248, 5
      %v5390 = vsel %vm1583, %v5388, %v5389
      %v5391 = vrot.slane %v5389, 4
      %v5392 = vrot.slane %v5249, 5
      %v5393 = vsel %vm1583, %v5391, %v5392
      %v5394 = vrot.slane %v5250, 5
      %v5395 = vrot.slane %v5394, 4
      %v5396 = vrot.slane %v5251, 5
      %v5397 = vsel %vm1583, %v5395, %v5396
      %v5398 = vrot.slane %v5396, 4
      %v5399 = vrot.slane %v5252, 5
      %v5400 = vsel %vm1583, %v5398, %v5399
      %v5401 = vrot.slane %v5253, 5
      %v5402 = vrot.slane %v5401, 4
      %v5403 = vrot.slane %v5254, 5
      %v5404 = vsel %vm1583, %v5402, %v5403
      %v5405 = vrot.slane %v5403, 4
      %v5406 = vrot.slane %v5255, 5
      %v5407 = vsel %vm1583, %v5405, %v5406
      %v5408 = vrot.slane %v5256, 5
      %v5409 = vrot.slane %v5408, 4
      %v5410 = vrot.slane %v5257, 5
      %v5411 = vsel %vm1583, %v5409, %v5410
      %v5412 = vrot.slane %v5410, 4
      %v5413 = vrot.slane %v5258, 5
      %v5414 = vsel %vm1583, %v5412, %v5413
      %v5415 = vrot.slane %v5259, 5
      %v5416 = vrot.slane %v5415, 4
      %v5417 = vrot.slane %v5260, 5
      %v5418 = vsel %vm1583, %v5416, %v5417
      %v5419 = vrot.slane %v5417, 4
      %v5420 = vrot.slane %v5261, 5
      %v5421 = vsel %vm1583, %v5419, %v5420
      %v5422 = vld [vmem:[#allocation2] sm:$0xff]
      %v5423 = vld [vmem:[#allocation2 + $0x8] sm:$0xff]
      %v5424 = vld [vmem:[#allocation2 + $0x10] sm:$0xff]
      %v5425 = vld [vmem:[#allocation2 + $0x18] sm:$0xff]
      %v5426 = vld [vmem:[#allocation2 + $0x20] sm:$0xff]
      %v5427 = vld [vmem:[#allocation2 + $0x28] sm:$0xff]
      %v5428 = vld [vmem:[#allocation2 + $0x30] sm:$0xff]
      %v5429 = vld [vmem:[#allocation2 + $0x38] sm:$0xff]
      %v5430 = vld [vmem:[#allocation2 + $0x40] sm:$0xff]
      %v5431 = vld [vmem:[#allocation2 + $0x48] sm:$0xff]
      %v5432 = vld [vmem:[#allocation2 + $0x50] sm:$0xff]
      %v5433 = vld [vmem:[#allocation2 + $0x58] sm:$0xff]
      %v5434 = vld [vmem:[#allocation2 + $0x60] sm:$0xff]
      %v5435 = vld [vmem:[#allocation2 + $0x68] sm:$0xff]
      %v5436 = vld [vmem:[#allocation2 + $0x70] sm:$0xff]
      %v5437 = vld [vmem:[#allocation2 + $0x78] sm:$0xff]
      %v5438 = vld [vmem:[#allocation2 + $0x80] sm:$0xff]
      %v5439 = vld [vmem:[#allocation2 + $0x88] sm:$0xff]
      %v5440 = vld [vmem:[#allocation2 + $0x90] sm:$0xff]
      %v5441 = vld [vmem:[#allocation2 + $0x98] sm:$0xff]
      %v5442 = vld [vmem:[#allocation2 + $0xa0] sm:$0xff]
      %v5443 = vld [vmem:[#allocation2 + $0xa8] sm:$0xff]
      %v5444 = vld [vmem:[#allocation2 + $0xb0] sm:$0xff]
      %v5445 = vld [vmem:[#allocation2 + $0xb8] sm:$0xff]
      %v5446 = vld [vmem:[#allocation2 + $0xc0] sm:$0xff]
      %v5447 = vld [vmem:[#allocation2 + $0xc8] sm:$0xff]
      %v5448 = vld [vmem:[#allocation2 + $0xd0] sm:$0xff]
      %v5449 = vld [vmem:[#allocation2 + $0xd8] sm:$0xff]
      %v5450 = vld [vmem:[#allocation2 + $0xe0] sm:$0xff]
      %v5451 = vld [vmem:[#allocation2 + $0xe8] sm:$0xff]
      %v5452 = vld [vmem:[#allocation2 + $0xf0] sm:$0xff]
      %v5453 = vld [vmem:[#allocation2 + $0xf8] sm:$0xff]
      %s5454 = scalar_lea.vmem %s1, 512
      %v5455 = vld [vmem:[%s5454] sm:$0xf]
      %v5456 = vld [vmem:[%s5454 + $0x4] sm:$0xf]
      %v5457 = vld [vmem:[%s5454 + $0x8] sm:$0xf]
      %v5458 = vld [vmem:[%s5454 + $0xc] sm:$0xf]
      %v5459 = vld [vmem:[%s5454 + $0x10] sm:$0xf]
      %v5460 = vld [vmem:[%s5454 + $0x14] sm:$0xf]
      %v5461 = vld [vmem:[%s5454 + $0x18] sm:$0xf]
      %v5462 = vld [vmem:[%s5454 + $0x1c] sm:$0xf]
      %v5463 = vld [vmem:[%s5454 + $0x20] sm:$0xf]
      %v5464 = vld [vmem:[%s5454 + $0x24] sm:$0xf]
      %v5465 = vld [vmem:[%s5454 + $0x28] sm:$0xf]
      %v5466 = vld [vmem:[%s5454 + $0x2c] sm:$0xf]
      %v5467 = vld [vmem:[%s5454 + $0x30] sm:$0xf]
      %v5468 = vld [vmem:[%s5454 + $0x34] sm:$0xf]
      %v5469 = vld [vmem:[%s5454 + $0x38] sm:$0xf]
      %v5470 = vld [vmem:[%s5454 + $0x3c] sm:$0xf]
      %v5471 = vunpack.c.l.b16 %v5313
      %v5472 = vunpack.c.l.b16 %v5316
      %v5473 = vunpack.c.l.b16 %v5320
      %v5474 = vunpack.c.l.b16 %v5323
      %v5475 = vunpack.c.l.b16 %v5327
      %v5476 = vunpack.c.l.b16 %v5330
      %v5477 = vunpack.c.l.b16 %v5334
      %v5478 = vunpack.c.l.b16 %v5337
      %v5479 = vunpack.c.l.b16 %v5341
      %v5480 = vunpack.c.l.b16 %v5344
      %v5481 = vunpack.c.l.b16 %v5348
      %v5482 = vunpack.c.l.b16 %v5351
      %v5483 = vunpack.c.l.b16 %v5355
      %v5484 = vunpack.c.l.b16 %v5358
      %v5485 = vunpack.c.l.b16 %v5362
      %v5486 = vunpack.c.l.b16 %v5365
      %v5487 = vunpack.c.l.b16 %v5369
      %v5488 = vunpack.c.l.b16 %v5372
      %v5489 = vunpack.c.l.b16 %v5376
      %v5490 = vunpack.c.l.b16 %v5379
      %v5491 = vunpack.c.l.b16 %v5383
      %v5492 = vunpack.c.l.b16 %v5386
      %v5493 = vunpack.c.l.b16 %v5390
      %v5494 = vunpack.c.l.b16 %v5393
      %v5495 = vunpack.c.l.b16 %v5397
      %v5496 = vunpack.c.l.b16 %v5400
      %v5497 = vunpack.c.l.b16 %v5404
      %v5498 = vunpack.c.l.b16 %v5407
      %v5499 = vunpack.c.l.b16 %v5411
      %v5500 = vunpack.c.l.b16 %v5414
      %v5501 = vunpack.c.l.b16 %v5418
      %v5502 = vunpack.c.l.b16 %v5421
      %v5503 = vpack.c.b16 %v5472, %v5471
      %v5504 = vpack.c.b16 %v5474, %v5473
      %v5505 = vpack.c.b16 %v5476, %v5475
      %v5506 = vpack.c.b16 %v5478, %v5477
      %v5507 = vpack.c.b16 %v5480, %v5479
      %v5508 = vpack.c.b16 %v5482, %v5481
      %v5509 = vpack.c.b16 %v5484, %v5483
      %v5510 = vpack.c.b16 %v5486, %v5485
      %v5511 = vpack.c.b16 %v5488, %v5487
      %v5512 = vpack.c.b16 %v5490, %v5489
      %v5513 = vpack.c.b16 %v5492, %v5491
      %v5514 = vpack.c.b16 %v5494, %v5493
      %v5515 = vpack.c.b16 %v5496, %v5495
      %v5516 = vpack.c.b16 %v5498, %v5497
      %v5517 = vpack.c.b16 %v5500, %v5499
      %v5518 = vpack.c.b16 %v5502, %v5501
      %v5551 = vunpack.c.l.b16 %v5455
      %v5552 = vunpack.c.l.b16 %v5456
      %v5553 = vunpack.c.l.b16 %v5457
      %v5554 = vunpack.c.l.b16 %v5458
      %v5555 = vunpack.c.l.b16 %v5459
      %v5556 = vunpack.c.l.b16 %v5460
      %v5557 = vunpack.c.l.b16 %v5461
      %v5558 = vunpack.c.l.b16 %v5462
      %v5559 = vunpack.c.l.b16 %v5463
      %v5560 = vunpack.c.l.b16 %v5464
      %v5561 = vunpack.c.l.b16 %v5465
      %v5562 = vunpack.c.l.b16 %v5466
      %v5563 = vunpack.c.l.b16 %v5467
      %v5564 = vunpack.c.l.b16 %v5468
      %v5565 = vunpack.c.l.b16 %v5469
      %v5566 = vunpack.c.l.b16 %v5470
      %v5567 = vpack.c.b16 %v5552, %v5551
      %v5568 = vpack.c.b16 %v5554, %v5553
      %v5569 = vpack.c.b16 %v5556, %v5555
      %v5570 = vpack.c.b16 %v5558, %v5557
      %v5571 = vpack.c.b16 %v5560, %v5559
      %v5572 = vpack.c.b16 %v5562, %v5561
      %v5573 = vpack.c.b16 %v5564, %v5563
      %v5574 = vpack.c.b16 %v5566, %v5565
      %5583 = vmatprep.subr.bf16.mxu0 0
      %5584 = vmatpush1.bf16.msra.mxu0 %v5567
      %5585 = vmatprep.subr.bf16.mxu0 0
      %5586 = vmatpush1.bf16.msra.mxu0 %v5568
      %5587 = vmatprep.subr.bf16.mxu0 0
      %5588 = vmatpush1.bf16.msra.mxu0 %v5569
      %5589 = vmatprep.subr.bf16.mxu0 0
      %5590 = vmatpush1.bf16.msra.mxu0 %v5570
      %5591 = vmatprep.subr.bf16.mxu0 0
      %5592 = vmatpush1.bf16.msra.mxu0 %v5571
      %5593 = vmatprep.subr.bf16.mxu0 0
      %5594 = vmatpush1.bf16.msra.mxu0 %v5572
      %5595 = vmatprep.subr.bf16.mxu0 0
      %5596 = vmatpush1.bf16.msra.mxu0 %v5573
      %5597 = vmatprep.subr.bf16.mxu0 0
      %5598 = vmatpush1.bf16.msra.mxu0 %v5574
      %5599 = vmatprep.subr.bf16.mxu0 0
      %5600 = vmatpush1.bf16.msra.mxu0 0
      %5601 = vmatprep.subr.bf16.mxu0 0
      %5602 = vmatpush1.bf16.msra.mxu0 0
      %5603 = vmatprep.subr.bf16.mxu0 0
      %5604 = vmatpush1.bf16.msra.mxu0 0
      %5605 = vmatprep.subr.bf16.mxu0 0
      %5606 = vmatpush1.bf16.msra.mxu0 0
      %5607 = vmatprep.subr.bf16.mxu0 0
      %5608 = vmatpush1.bf16.msra.mxu0 0
      %5609 = vmatprep.subr.bf16.mxu0 0
      %5610 = vmatpush1.bf16.msra.mxu0 0
      %5611 = vmatprep.subr.bf16.mxu0 0
      %5612 = vmatpush1.bf16.msra.mxu0 0
      %5613 = vmatprep.subr.bf16.mxu0 0
      %5614 = vmatpush1.bf16.msra.mxu0 0
      %5615 = vmatprep.mubr.bf16.mxu0 0
      %5616 = vmatmul.mubr.bf16.gmra.mrb[0].mxu0 %v5503
      %v5617 = vpop.f32.mrb[0].mxu0
      %v5618 = vadd.f32 0.0, %v5617
      %v5619 = vpop.f32.mrb[0].mxu0
      %v5620 = vpop.f32.mrb[0].mxu0
      %v5621 = vadd.f32 0.0, %v5620
      %v5622 = vpop.f32.mrb[0].mxu0
      %5623 = vmatprep.mubr.bf16.mxu0 0
      %5624 = vmatmul.mubr.bf16.gmra.mrb[0].mxu0 %v5504
      %v5625 = vpop.f32.mrb[0].mxu0
      %v5626 = vadd.f32 0.0, %v5625
      %v5627 = vpop.f32.mrb[0].mxu0
      %v5628 = vpop.f32.mrb[0].mxu0
      %v5629 = vadd.f32 0.0, %v5628
      %v5630 = vpop.f32.mrb[0].mxu0
      %5631 = vmatprep.mubr.bf16.mxu0 0
      %5632 = vmatmul.mubr.bf16.gmra.mrb[0].mxu0 %v5505
      %v5633 = vpop.f32.mrb[0].mxu0
      %v5634 = vadd.f32 0.0, %v5633
      %v5635 = vpop.f32.mrb[0].mxu0
      %v5636 = vpop.f32.mrb[0].mxu0
      %v5637 = vadd.f32 0.0, %v5636
      %v5638 = vpop.f32.mrb[0].mxu0
      %5639 = vmatprep.mubr.bf16.mxu0 0
      %5640 = vmatmul.mubr.bf16.gmra.mrb[0].mxu0 %v5506
      %v5641 = vpop.f32.mrb[0].mxu0
      %v5642 = vadd.f32 0.0, %v5641
      %v5643 = vpop.f32.mrb[0].mxu0
      %v5644 = vpop.f32.mrb[0].mxu0
      %v5645 = vadd.f32 0.0, %v5644
      %v5646 = vpop.f32.mrb[0].mxu0
      %5647 = vmatprep.mubr.bf16.mxu0 0
      %5648 = vmatmul.mubr.bf16.gmra.mrb[0].mxu0 %v5507
      %v5649 = vpop.f32.mrb[0].mxu0
      %v5650 = vadd.f32 0.0, %v5649
      %v5651 = vpop.f32.mrb[0].mxu0
      %v5652 = vpop.f32.mrb[0].mxu0
      %v5653 = vadd.f32 0.0, %v5652
      %v5654 = vpop.f32.mrb[0].mxu0
      %5655 = vmatprep.mubr.bf16.mxu0 0
      %5656 = vmatmul.mubr.bf16.gmra.mrb[0].mxu0 %v5508
      %v5657 = vpop.f32.mrb[0].mxu0
      %v5658 = vadd.f32 0.0, %v5657
      %v5659 = vpop.f32.mrb[0].mxu0
      %v5660 = vpop.f32.mrb[0].mxu0
      %v5661 = vadd.f32 0.0, %v5660
      %v5662 = vpop.f32.mrb[0].mxu0
      %5663 = vmatprep.mubr.bf16.mxu0 0
      %5664 = vmatmul.mubr.bf16.gmra.mrb[0].mxu0 %v5509
      %v5665 = vpop.f32.mrb[0].mxu0
      %v5666 = vadd.f32 0.0, %v5665
      %v5667 = vpop.f32.mrb[0].mxu0
      %v5668 = vpop.f32.mrb[0].mxu0
      %v5669 = vadd.f32 0.0, %v5668
      %v5670 = vpop.f32.mrb[0].mxu0
      %5671 = vmatprep.mubr.bf16.mxu0 0
      %5672 = vmatmul.mubr.bf16.gmra.mrb[0].mxu0 %v5510
      %v5673 = vpop.f32.mrb[0].mxu0
      %v5674 = vadd.f32 0.0, %v5673
      %v5675 = vpop.f32.mrb[0].mxu0
      %v5676 = vpop.f32.mrb[0].mxu0
      %v5677 = vadd.f32 0.0, %v5676
      %v5678 = vpop.f32.mrb[0].mxu0
      %5679 = vmatprep.mubr.bf16.mxu0 0
      %5680 = vmatmul.mubr.bf16.gmra.mrb[0].mxu0 %v5511
      %v5681 = vpop.f32.mrb[0].mxu0
      %v5682 = vadd.f32 0.0, %v5681
      %v5683 = vpop.f32.mrb[0].mxu0
      %v5684 = vpop.f32.mrb[0].mxu0
      %v5685 = vadd.f32 0.0, %v5684
      %v5686 = vpop.f32.mrb[0].mxu0
      %5687 = vmatprep.mubr.bf16.mxu0 0
      %5688 = vmatmul.mubr.bf16.gmra.mrb[0].mxu0 %v5512
      %v5689 = vpop.f32.mrb[0].mxu0
      %v5690 = vadd.f32 0.0, %v5689
      %v5691 = vpop.f32.mrb[0].mxu0
      %v5692 = vpop.f32.mrb[0].mxu0
      %v5693 = vadd.f32 0.0, %v5692
      %v5694 = vpop.f32.mrb[0].mxu0
      %5695 = vmatprep.mubr.bf16.mxu0 0
      %5696 = vmatmul.mubr.bf16.gmra.mrb[0].mxu0 %v5513
      %v5697 = vpop.f32.mrb[0].mxu0
      %v5698 = vadd.f32 0.0, %v5697
      %v5699 = vpop.f32.mrb[0].mxu0
      %v5700 = vpop.f32.mrb[0].mxu0
      %v5701 = vadd.f32 0.0, %v5700
      %v5702 = vpop.f32.mrb[0].mxu0
      %5703 = vmatprep.mubr.bf16.mxu0 0
      %5704 = vmatmul.mubr.bf16.gmra.mrb[0].mxu0 %v5514
      %v5705 = vpop.f32.mrb[0].mxu0
      %v5706 = vadd.f32 0.0, %v5705
      %v5707 = vpop.f32.mrb[0].mxu0
      %v5708 = vpop.f32.mrb[0].mxu0
      %v5709 = vadd.f32 0.0, %v5708
      %v5710 = vpop.f32.mrb[0].mxu0
      %5711 = vmatprep.mubr.bf16.mxu0 0
      %5712 = vmatmul.mubr.bf16.gmra.mrb[0].mxu0 %v5515
      %v5713 = vpop.f32.mrb[0].mxu0
      %v5714 = vadd.f32 0.0, %v5713
      %v5715 = vpop.f32.mrb[0].mxu0
      %v5716 = vpop.f32.mrb[0].mxu0
      %v5717 = vadd.f32 0.0, %v5716
      %v5718 = vpop.f32.mrb[0].mxu0
      %5719 = vmatprep.mubr.bf16.mxu0 0
      %5720 = vmatmul.mubr.bf16.gmra.mrb[0].mxu0 %v5516
      %v5721 = vpop.f32.mrb[0].mxu0
      %v5722 = vadd.f32 0.0, %v5721
      %v5723 = vpop.f32.mrb[0].mxu0
      %v5724 = vpop.f32.mrb[0].mxu0
      %v5725 = vadd.f32 0.0, %v5724
      %v5726 = vpop.f32.mrb[0].mxu0
      %5727 = vmatprep.mubr.bf16.mxu0 0
      %5728 = vmatmul.mubr.bf16.gmra.mrb[0].mxu0 %v5517
      %v5729 = vpop.f32.mrb[0].mxu0
      %v5730 = vadd.f32 0.0, %v5729
      %v5731 = vpop.f32.mrb[0].mxu0
      %v5732 = vpop.f32.mrb[0].mxu0
      %v5733 = vadd.f32 0.0, %v5732
      %v5734 = vpop.f32.mrb[0].mxu0
      %5735 = vmatprep.mubr.bf16.mxu0 0
      %5736 = vmatmul.mubr.bf16.gmra.mrb[0].mxu0 %v5518
      %v5737 = vpop.f32.mrb[0].mxu0
      %v5738 = vadd.f32 0.0, %v5737
      %v5739 = vpop.f32.mrb[0].mxu0
      %v5740 = vpop.f32.mrb[0].mxu0
      %v5741 = vadd.f32 0.0, %v5740
      %v5742 = vpop.f32.mrb[0].mxu0
      %5743 = vdwg.mxu0
      %v5744 = vadd.f32 %v5422, %v5618
      %v5745 = vadd.f32 %v5423, %v5621
      %v5746 = vadd.f32 %v5424, %v5626
      %v5747 = vadd.f32 %v5425, %v5629
      %v5748 = vadd.f32 %v5426, %v5634
      %v5749 = vadd.f32 %v5427, %v5637
      %v5750 = vadd.f32 %v5428, %v5642
      %v5751 = vadd.f32 %v5429, %v5645
      %v5752 = vadd.f32 %v5430, %v5650
      %v5753 = vadd.f32 %v5431, %v5653
      %v5754 = vadd.f32 %v5432, %v5658
      %v5755 = vadd.f32 %v5433, %v5661
      %v5756 = vadd.f32 %v5434, %v5666
      %v5757 = vadd.f32 %v5435, %v5669
      %v5758 = vadd.f32 %v5436, %v5674
      %v5759 = vadd.f32 %v5437, %v5677
      %v5760 = vadd.f32 %v5438, %v5682
      %v5761 = vadd.f32 %v5439, %v5685
      %v5762 = vadd.f32 %v5440, %v5690
      %v5763 = vadd.f32 %v5441, %v5693
      %v5764 = vadd.f32 %v5442, %v5698
      %v5765 = vadd.f32 %v5443, %v5701
      %v5766 = vadd.f32 %v5444, %v5706
      %v5767 = vadd.f32 %v5445, %v5709
      %v5768 = vadd.f32 %v5446, %v5714
      %v5769 = vadd.f32 %v5447, %v5717
      %v5770 = vadd.f32 %v5448, %v5722
      %v5771 = vadd.f32 %v5449, %v5725
      %v5772 = vadd.f32 %v5450, %v5730
      %v5773 = vadd.f32 %v5451, %v5733
      %v5774 = vadd.f32 %v5452, %v5738
      %v5775 = vadd.f32 %v5453, %v5741
      %5776 = vst [vmem:[#allocation2] sm:$0xff] %v5744
      %5777 = vst [vmem:[#allocation2 + $0x8] sm:$0xff] %v5745
      %5778 = vst [vmem:[#allocation2 + $0x10] sm:$0xff] %v5746
      %5779 = vst [vmem:[#allocation2 + $0x18] sm:$0xff] %v5747
      %5780 = vst [vmem:[#allocation2 + $0x20] sm:$0xff] %v5748
      %5781 = vst [vmem:[#allocation2 + $0x28] sm:$0xff] %v5749
      %5782 = vst [vmem:[#allocation2 + $0x30] sm:$0xff] %v5750
      %5783 = vst [vmem:[#allocation2 + $0x38] sm:$0xff] %v5751
      %5784 = vst [vmem:[#allocation2 + $0x40] sm:$0xff] %v5752
      %5785 = vst [vmem:[#allocation2 + $0x48] sm:$0xff] %v5753
      %5786 = vst [vmem:[#allocation2 + $0x50] sm:$0xff] %v5754
      %5787 = vst [vmem:[#allocation2 + $0x58] sm:$0xff] %v5755
      %5788 = vst [vmem:[#allocation2 + $0x60] sm:$0xff] %v5756
      %5789 = vst [vmem:[#allocation2 + $0x68] sm:$0xff] %v5757
      %5790 = vst [vmem:[#allocation2 + $0x70] sm:$0xff] %v5758
      %5791 = vst [vmem:[#allocation2 + $0x78] sm:$0xff] %v5759
      %5792 = vst [vmem:[#allocation2 + $0x80] sm:$0xff] %v5760
      %5793 = vst [vmem:[#allocation2 + $0x88] sm:$0xff] %v5761
      %5794 = vst [vmem:[#allocation2 + $0x90] sm:$0xff] %v5762
      %5795 = vst [vmem:[#allocation2 + $0x98] sm:$0xff] %v5763
      %5796 = vst [vmem:[#allocation2 + $0xa0] sm:$0xff] %v5764
      %5797 = vst [vmem:[#allocation2 + $0xa8] sm:$0xff] %v5765
      %5798 = vst [vmem:[#allocation2 + $0xb0] sm:$0xff] %v5766
      %5799 = vst [vmem:[#allocation2 + $0xb8] sm:$0xff] %v5767
      %5800 = vst [vmem:[#allocation2 + $0xc0] sm:$0xff] %v5768
      %5801 = vst [vmem:[#allocation2 + $0xc8] sm:$0xff] %v5769
      %5802 = vst [vmem:[#allocation2 + $0xd0] sm:$0xff] %v5770
      %5803 = vst [vmem:[#allocation2 + $0xd8] sm:$0xff] %v5771
      %5804 = vst [vmem:[#allocation2 + $0xe0] sm:$0xff] %v5772
      %5805 = vst [vmem:[#allocation2 + $0xe8] sm:$0xff] %v5773
      %5806 = vst [vmem:[#allocation2 + $0xf0] sm:$0xff] %v5774
      %5807 = vst [vmem:[#allocation2 + $0xf8] sm:$0xff] %v5775
      %v5808 = vld [vmem:[#allocation2] sm:$0xff]
      %v5809 = vld [vmem:[#allocation2 + $0x8] sm:$0xff]
      %v5810 = vld [vmem:[#allocation2 + $0x10] sm:$0xff]
      %v5811 = vld [vmem:[#allocation2 + $0x18] sm:$0xff]
      %v5812 = vld [vmem:[#allocation2 + $0x20] sm:$0xff]
      %v5813 = vld [vmem:[#allocation2 + $0x28] sm:$0xff]
      %v5814 = vld [vmem:[#allocation2 + $0x30] sm:$0xff]
      %v5815 = vld [vmem:[#allocation2 + $0x38] sm:$0xff]
      %v5816 = vld [vmem:[#allocation2 + $0x40] sm:$0xff]
      %v5817 = vld [vmem:[#allocation2 + $0x48] sm:$0xff]
      %v5818 = vld [vmem:[#allocation2 + $0x50] sm:$0xff]
      %v5819 = vld [vmem:[#allocation2 + $0x58] sm:$0xff]
      %v5820 = vld [vmem:[#allocation2 + $0x60] sm:$0xff]
      %v5821 = vld [vmem:[#allocation2 + $0x68] sm:$0xff]
      %v5822 = vld [vmem:[#allocation2 + $0x70] sm:$0xff]
      %v5823 = vld [vmem:[#allocation2 + $0x78] sm:$0xff]
      %v5824 = vld [vmem:[#allocation2 + $0x80] sm:$0xff]
      %v5825 = vld [vmem:[#allocation2 + $0x88] sm:$0xff]
      %v5826 = vld [vmem:[#allocation2 + $0x90] sm:$0xff]
      %v5827 = vld [vmem:[#allocation2 + $0x98] sm:$0xff]
      %v5828 = vld [vmem:[#allocation2 + $0xa0] sm:$0xff]
      %v5829 = vld [vmem:[#allocation2 + $0xa8] sm:$0xff]
      %v5830 = vld [vmem:[#allocation2 + $0xb0] sm:$0xff]
      %v5831 = vld [vmem:[#allocation2 + $0xb8] sm:$0xff]
      %v5832 = vld [vmem:[#allocation2 + $0xc0] sm:$0xff]
      %v5833 = vld [vmem:[#allocation2 + $0xc8] sm:$0xff]
      %v5834 = vld [vmem:[#allocation2 + $0xd0] sm:$0xff]
      %v5835 = vld [vmem:[#allocation2 + $0xd8] sm:$0xff]
      %v5836 = vld [vmem:[#allocation2 + $0xe0] sm:$0xff]
      %v5837 = vld [vmem:[#allocation2 + $0xe8] sm:$0xff]
      %v5838 = vld [vmem:[#allocation2 + $0xf0] sm:$0xff]
      %v5839 = vld [vmem:[#allocation2 + $0xf8] sm:$0xff]
      %5840 = vst [vmem:[%s177] sm:$0xff] %v5808
      %5841 = vst [vmem:[%s177 + $0x8] sm:$0xff] %v5809
      %5842 = vst [vmem:[%s177 + $0x10] sm:$0xff] %v5810
      %5843 = vst [vmem:[%s177 + $0x18] sm:$0xff] %v5811
      %5844 = vst [vmem:[%s177 + $0x20] sm:$0xff] %v5812
      %5845 = vst [vmem:[%s177 + $0x28] sm:$0xff] %v5813
      %5846 = vst [vmem:[%s177 + $0x30] sm:$0xff] %v5814
      %5847 = vst [vmem:[%s177 + $0x38] sm:$0xff] %v5815
      %5848 = vst [vmem:[%s177 + $0x40] sm:$0xff] %v5816
      %5849 = vst [vmem:[%s177 + $0x48] sm:$0xff] %v5817
      %5850 = vst [vmem:[%s177 + $0x50] sm:$0xff] %v5818
      %5851 = vst [vmem:[%s177 + $0x58] sm:$0xff] %v5819
      %5852 = vst [vmem:[%s177 + $0x60] sm:$0xff] %v5820
      %5853 = vst [vmem:[%s177 + $0x68] sm:$0xff] %v5821
      %5854 = vst [vmem:[%s177 + $0x70] sm:$0xff] %v5822
      %5855 = vst [vmem:[%s177 + $0x78] sm:$0xff] %v5823
      %5856 = vst [vmem:[%s177 + $0x80] sm:$0xff] %v5824
      %5857 = vst [vmem:[%s177 + $0x88] sm:$0xff] %v5825
      %5858 = vst [vmem:[%s177 + $0x90] sm:$0xff] %v5826
      %5859 = vst [vmem:[%s177 + $0x98] sm:$0xff] %v5827
      %5860 = vst [vmem:[%s177 + $0xa0] sm:$0xff] %v5828
      %5861 = vst [vmem:[%s177 + $0xa8] sm:$0xff] %v5829
      %5862 = vst [vmem:[%s177 + $0xb0] sm:$0xff] %v5830
      %5863 = vst [vmem:[%s177 + $0xb8] sm:$0xff] %v5831
      %5864 = vst [vmem:[%s177 + $0xc0] sm:$0xff] %v5832
      %5865 = vst [vmem:[%s177 + $0xc8] sm:$0xff] %v5833
      %5866 = vst [vmem:[%s177 + $0xd0] sm:$0xff] %v5834
      %5867 = vst [vmem:[%s177 + $0xd8] sm:$0xff] %v5835
      %5868 = vst [vmem:[%s177 + $0xe0] sm:$0xff] %v5836
      %5869 = vst [vmem:[%s177 + $0xe8] sm:$0xff] %v5837
      %5870 = vst [vmem:[%s177 + $0xf0] sm:$0xff] %v5838
      %5871 = vst [vmem:[%s177 + $0xf8] sm:$0xff] %v5839
      %v5872 = vadd.f32 %v5808, %v5809
      %v5873 = vadd.f32 %v5872, %v5810
      %v5874 = vadd.f32 %v5873, %v5811
      %v5875 = vadd.f32 %v5874, %v5812
      %v5876 = vadd.f32 %v5875, %v5813
      %v5877 = vadd.f32 %v5876, %v5814
      %v5878 = vadd.f32 %v5877, %v5815
      %v5879 = vadd.f32 %v5878, %v5816
      %v5880 = vadd.f32 %v5879, %v5817
      %v5881 = vadd.f32 %v5880, %v5818
      %v5882 = vadd.f32 %v5881, %v5819
      %v5883 = vadd.f32 %v5882, %v5820
      %v5884 = vadd.f32 %v5883, %v5821
      %v5885 = vadd.f32 %v5884, %v5822
      %v5886 = vadd.f32 %v5885, %v5823
      %v5887 = vadd.f32 %v5886, %v5824
      %v5888 = vadd.f32 %v5887, %v5825
      %v5889 = vadd.f32 %v5888, %v5826
      %v5890 = vadd.f32 %v5889, %v5827
      %v5891 = vadd.f32 %v5890, %v5828
      %v5892 = vadd.f32 %v5891, %v5829
      %v5893 = vadd.f32 %v5892, %v5830
      %v5894 = vadd.f32 %v5893, %v5831
      %v5895 = vadd.f32 %v5894, %v5832
      %v5896 = vadd.f32 %v5895, %v5833
      %v5897 = vadd.f32 %v5896, %v5834
      %v5898 = vadd.f32 %v5897, %v5835
      %v5899 = vadd.f32 %v5898, %v5836
      %v5900 = vadd.f32 %v5899, %v5837
      %v5901 = vadd.f32 %v5900, %v5838
      %v5902 = vadd.f32 %v5901, %v5839
      %v5903 = vrot.slane %v5902, 4
      %v5904 = vadd.f32 %v5902, %v5903
      %v5905 = vrot.slane %v5904, 2
      %v5906 = vadd.f32 %v5904, %v5905
      %v5907 = vrot.slane %v5906, 1
      %v5908 = vadd.f32 %v5906, %v5907
      %v5909 = vmul.f32 %v5808, %v5808
      %v5910 = vmul.f32 %v5809, %v5809
      %v5911 = vmul.f32 %v5810, %v5810
      %v5912 = vmul.f32 %v5811, %v5811
      %v5913 = vmul.f32 %v5812, %v5812
      %v5914 = vmul.f32 %v5813, %v5813
      %v5915 = vmul.f32 %v5814, %v5814
      %v5916 = vmul.f32 %v5815, %v5815
      %v5917 = vmul.f32 %v5816, %v5816
      %v5918 = vmul.f32 %v5817, %v5817
      %v5919 = vmul.f32 %v5818, %v5818
      %v5920 = vmul.f32 %v5819, %v5819
      %v5921 = vmul.f32 %v5820, %v5820
      %v5922 = vmul.f32 %v5821, %v5821
      %v5923 = vmul.f32 %v5822, %v5822
      %v5924 = vmul.f32 %v5823, %v5823
      %v5925 = vmul.f32 %v5824, %v5824
      %v5926 = vmul.f32 %v5825, %v5825
      %v5927 = vmul.f32 %v5826, %v5826
      %v5928 = vmul.f32 %v5827, %v5827
      %v5929 = vmul.f32 %v5828, %v5828
      %v5930 = vmul.f32 %v5829, %v5829
      %v5931 = vmul.f32 %v5830, %v5830
      %v5932 = vmul.f32 %v5831, %v5831
      %v5933 = vmul.f32 %v5832, %v5832
      %v5934 = vmul.f32 %v5833, %v5833
      %v5935 = vmul.f32 %v5834, %v5834
      %v5936 = vmul.f32 %v5835, %v5835
      %v5937 = vmul.f32 %v5836, %v5836
      %v5938 = vmul.f32 %v5837, %v5837
      %v5939 = vmul.f32 %v5838, %v5838
      %v5940 = vmul.f32 %v5839, %v5839
      %v5941 = vadd.f32 %v5909, %v5910
      %v5942 = vadd.f32 %v5941, %v5911
      %v5943 = vadd.f32 %v5942, %v5912
      %v5944 = vadd.f32 %v5943, %v5913
      %v5945 = vadd.f32 %v5944, %v5914
      %v5946 = vadd.f32 %v5945, %v5915
      %v5947 = vadd.f32 %v5946, %v5916
      %v5948 = vadd.f32 %v5947, %v5917
      %v5949 = vadd.f32 %v5948, %v5918
      %v5950 = vadd.f32 %v5949, %v5919
      %v5951 = vadd.f32 %v5950, %v5920
      %v5952 = vadd.f32 %v5951, %v5921
      %v5953 = vadd.f32 %v5952, %v5922
      %v5954 = vadd.f32 %v5953, %v5923
      %v5955 = vadd.f32 %v5954, %v5924
      %v5956 = vadd.f32 %v5955, %v5925
      %v5957 = vadd.f32 %v5956, %v5926
      %v5958 = vadd.f32 %v5957, %v5927
      %v5959 = vadd.f32 %v5958, %v5928
      %v5960 = vadd.f32 %v5959, %v5929
      %v5961 = vadd.f32 %v5960, %v5930
      %v5962 = vadd.f32 %v5961, %v5931
      %v5963 = vadd.f32 %v5962, %v5932
      %v5964 = vadd.f32 %v5963, %v5933
      %v5965 = vadd.f32 %v5964, %v5934
      %v5966 = vadd.f32 %v5965, %v5935
      %v5967 = vadd.f32 %v5966, %v5936
      %v5968 = vadd.f32 %v5967, %v5937
      %v5969 = vadd.f32 %v5968, %v5938
      %v5970 = vadd.f32 %v5969, %v5939
      %v5971 = vadd.f32 %v5970, %v5940
      %v5972 = vrot.slane %v5971, 4
      %v5973 = vadd.f32 %v5971, %v5972
      %v5974 = vrot.slane %v5973, 2
      %v5975 = vadd.f32 %v5973, %v5974
      %v5976 = vrot.slane %v5975, 1
      %v5977 = vadd.f32 %v5975, %v5976
      %vm5978 = vcmask 1040384
      %v5979 = vsel %vm5978, %v5908, %v5977
      %5980 = vst [vmem:[%s181] sm:$0x3] %v5979
      %p5981 = scmp.lt.s32.totalorder %s15, 1
      %s5982 = scalar_select %p5981, %s15, 1
      %s5983 = smul.addr %s5982, 32
      %s5984 = smul.addr %s5983, 8
      %s5985 = scalar_lea.vmem %s2, %s5984
      %p5986 = scmp.lt.s32.totalorder %s15, 1
      %s5987 = scalar_select %p5986, %s15, 1
      %s5988 = smul.addr %s5987, 2
      %s5989 = scalar_lea.vmem %s3, %s5988
      // Predicated region
      $region29: #{basic_block_forward.4} parent=27 // pred_check
        %p5990 = pneg %p80
      $region30: #{basic_block_forward.4} parent=27 // pred_check_branch
        %5992 = sbr.rel (%p5990) target = $region32
      $region31: #{basic_block_forward.4} parent=27 // pred_region
        _
      $region32: #{basic_block_forward.4} parent=27 // pred_fallthru
        _
      // Predicated region
      $region33: #{basic_block_forward.4} parent=27 // pred_check
        %p5993 = pneg %p106
      $region34: #{basic_block_forward.4} parent=27 // pred_check_branch
        %5995 = sbr.rel (%p5993) target = $region36
      $region35: #{basic_block_forward.4} parent=27 // pred_region
        _
      $region36: #{basic_block_forward.4} parent=27 // pred_fallthru
        _
    $region28: #{basic_block_forward.4} parent=5 // pred_fallthru
      _
    %p5996 = scmp.le.s32.totalorder 2, %s10
    // Predicated region
    $region37: #{basic_block_forward.4} parent=5 // pred_check
      %p5997 = pneg %p5996
    $region38: #{basic_block_forward.4} parent=5 // pred_check_branch
      %5999 = sbr.rel (%p5997) target = $region40
    $region39: #{basic_block_forward.4} parent=5 // pred_region
      %s6000 = ssub.s32 %s10, 2
      // Predicated region
      $region41: #{basic_block_forward.4} parent=39 // pred_check
        %p6001 = pneg %p86
      $region42: #{basic_block_forward.4} parent=39 // pred_check_branch
        %6003 = sbr.rel (%p6001) target = $region44
      $region43: #{basic_block_forward.4} parent=39 // pred_region
        %p6004 = scmp.lt.s32.totalorder %s16, 1
        %s6005 = scalar_select %p6004, %s16, 1
        %s6006 = smul.addr %s6005, 32
        %s6007 = smul.addr %s6006, 8
        %s6008 = scalar_lea.vmem %s2, %s6007
      $region44: #{basic_block_forward.4} parent=39 // pred_fallthru
        _
      // Predicated region
      $region45: #{basic_block_forward.4} parent=39 // pred_check
        %p6009 = pneg %p112
      $region46: #{basic_block_forward.4} parent=39 // pred_check_branch
        %6011 = sbr.rel (%p6009) target = $region48
      $region47: #{basic_block_forward.4} parent=39 // pred_region
        %p6012 = scmp.lt.s32.totalorder %s16, 1
        %s6013 = scalar_select %p6012, %s16, 1
        %s6014 = smul.addr %s6013, 2
        %s6015 = scalar_lea.vmem %s3, %s6014
      $region48: #{basic_block_forward.4} parent=39 // pred_fallthru
        _
    $region40: #{basic_block_forward.4} parent=5 // pred_fallthru
      _
  $region6: #{basic_block_forward.4} parent=0 // loop_footer
    %s14 = sadd.s32 1, %s10
  $region7: #{basic_block_forward.4} parent=0 // loop_footer_branch
    %9 = sbr.rel target = $region3
  $region8: #{basic_block_forward.4} parent=0 // loop_exit
    _

</llo_original>
